<compile_context>
chip_gen: v6e
topology: v6e:2x2x1
jax: 0.10.0
libtpu: 0.0.40
codegen_flags: <defaults>
</compile_context>

<pallas_src>
import functools

import jax
import jax.numpy as jnp
from jax.experimental import pallas as pl
from jax.experimental.pallas import tpu as pltpu


def _lstm_single_with_emb_kernel(
    scene_ref,
    w_emb_ref, b_emb_ref, w_cur_ref, b_cur_ref,
    nfe_wih0_ref, nfe_wih12_ref, nfe_whh_ref, nfe_b_ref,
    ee_wih0_ref, ee_wih12_ref, ee_b_ref,
    w_tag_ref, b_tag_ref,
    out_ref,
    xg_ref, cat_ref,
    *, T, BB, H):
    G = 4 * H                      # gates per direction (= 128 lanes for H=32)

    def dot(a, b):
        return jnp.dot(a, b, preferred_element_type=jnp.float32)

    def cell(g, c):
        # Fused activations: one sigmoid and one tanh over the full (rows, 4H)
        # gate tile, then lane slices (PyTorch gate order i, f, g, o).
        sg = jax.nn.sigmoid(g)
        tg = jnp.tanh(g)
        c = sg[:, H:2 * H] * c + sg[:, 0:H] * tg[:, 2 * H:3 * H]   # f*c + i*g
        h = sg[:, 3 * H:4 * H] * jnp.tanh(c)                        # o*tanh(c)
        return h, c

    # ---- edge_encoder first: independent of the serial recurrence, so its
    #      MXU/EUP work is free filler under the h @ W_hh latency.  seq_len==1
    #      and h0 = c0 = 0, so its recurrent matmuls vanish entirely. ---------
    cur = jax.nn.relu(
        dot(scene_ref[(T - 1) * BB:T * BB, :], w_cur_ref[...]) + b_cur_ref[...])
    zc = jnp.zeros((BB, H), jnp.float32)
    eg = dot(cur, ee_wih0_ref[...]) + ee_b_ref[0]
    ef, _ = cell(eg[:, 0:G], zc)
    eb, _ = cell(eg[:, G:2 * G], zc)
    for l in (1, 2):
        w12 = ee_wih12_ref[l - 1]                       # (2H, 8H)
        eg = dot(ef, w12[0:H, :]) + dot(eb, w12[H:2 * H, :]) + ee_b_ref[l]
        ef, _ = cell(eg[:, 0:G], zc)
        eb, _ = cell(eg[:, G:2 * G], zc)

    # ---- inp_emb: relu(Linear(2 -> D)) on all T*BB rows in one matmul -------
    emb = jax.nn.relu(dot(scene_ref[...], w_emb_ref[...]) + b_emb_ref[...])

    def run_layer(whh):
        """Interleaved fwd/bwd bi-LSTM recurrence.

        whh: (H, 8H) packed [W_hh_f.T | W_hh_b.T], loaded into vregs once and
        reused for all T steps.  Gates for step s are fetched from the staged
        projection scratch xg_ref; the only serial matmul is the fused
        (2*BB, H) @ (H, 8H) recurrent dot.
        """
        hf = [None] * T
        hb = [None] * T
        hc = jnp.zeros((2 * BB, H), jnp.float32)   # rows 0:BB fwd, BB:2BB bwd
        cc = jnp.zeros((2 * BB, H), jnp.float32)
        for s in range(T):                          # static unroll: T is small
            tb = T - 1 - s
            gx = jnp.concatenate(
                [xg_ref[s * BB:(s + 1) * BB, 0:G],          # fwd gates, t = s
                 xg_ref[tb * BB:(tb + 1) * BB, G:2 * G]],    # bwd gates, t = tb
                axis=0)                                      # (2BB, 4H)
            if s == 0:
                g = gx                                       # h0 == 0
            else:
                grec = dot(hc, whh)                          # (2BB, 8H), fused
                g = gx + jnp.concatenate(
                    [grec[0:BB, 0:G], grec[BB:2 * BB, G:2 * G]], axis=0)
            hc, cc = cell(g, cc)
            hf[s] = hc[0:BB]
            hb[tb] = hc[BB:2 * BB]
        return hf, hb

    # ---- node_future_encoder: 3-layer bidirectional LSTM over T steps -------
    xg_ref[...] = dot(emb, nfe_wih0_ref[...]) + nfe_b_ref[0]   # hoisted proj
    hf, hb = run_layer(nfe_whh_ref[0])
    for l in (1, 2):
        seq_f = jnp.concatenate(hf, axis=0)         # (T*BB, H), time-major
        seq_b = jnp.concatenate(hb, axis=0)         # (T*BB, H)
        w12 = nfe_wih12_ref[l - 1]                  # (2H, 8H): rows[:H] fwd
        xg_ref[...] = (dot(seq_f, w12[0:H, :]) + dot(seq_b, w12[H:2 * H, :])
                       + nfe_b_ref[l])
        hf, hb = run_layer(nfe_whh_ref[l])

    # ---- cat((lstm_out, distr), dim=1).reshape(-1, 18H) @ W_tag^T + b -------
    for t in range(T):
        cat_ref[:, (2 * t) * H:(2 * t + 1) * H] = hf[t]
        cat_ref[:, (2 * t + 1) * H:(2 * t + 2) * H] = hb[t]
    cat_ref[:, 16 * H:17 * H] = ef
    cat_ref[:, 17 * H:18 * H] = eb
    out_ref[...] = dot(cat_ref[...], w_tag_ref[...]) + b_tag_ref[...]


def _pack_lstm(layers, H):
    """Pack per-layer / per-direction PyTorch-style LSTM weights into
    MXU-friendly, pre-transposed tensors ([fwd | bwd] gate columns)."""
    def parts(l, d):
        w_ih = layers[l]["w_ih_" + d].T                       # (in_l, 4H)
        w_hh = layers[l]["w_hh_" + d].T                       # (H, 4H)
        b = layers[l]["b_ih_" + d] + layers[l]["b_hh_" + d]   # (4H,)
        return w_ih, w_hh, b
    wih0 = jnp.concatenate([parts(0, "f")[0], parts(0, "b")[0]], axis=1)
    wih12 = jnp.stack([
        jnp.concatenate([parts(l, "f")[0], parts(l, "b")[0]], axis=1)
        for l in (1, 2)])                                     # (2, 2H, 8H)
    whh = jnp.stack([
        jnp.concatenate([parts(l, "f")[1], parts(l, "b")[1]], axis=1)
        for l in (0, 1, 2)])                                  # (3, H, 8H)
    bias = jnp.stack([
        jnp.concatenate([parts(l, "f")[2], parts(l, "b")[2]])[None, :]
        for l in (0, 1, 2)])                                  # (3, 1, 8H)
    return wih0, wih12, whh, bias


def lstm_single_with_emb_forward(params, scene, block_b=None):
    """Pallas implementation of LSTM_single_with_emb.forward (eval semantics)."""
    B, T, _ = scene.shape
    D = params["w_emb"].shape[0]
    H = params["nfe"][0]["w_hh_f"].shape[1]
    tagset = params["w_tag"].shape[0]
    assert (T + 1) * 2 * H == 18 * H, "module's reshape requires T == 8"

    # Batch block size: full sublane groups when possible; raise it to fold
    # more instances into each grid step if B is large.
    if block_b is None:
        block_b = 8 if B % 8 == 0 else B
    BB = block_b
    assert B % BB == 0
    nblk = B // BB

    # Parameter / layout plumbing (plain JAX glue, done once per call).
    # Per-block time-major rows: row index = blk*T*BB + t*BB + b_local.
    scene_blk = (scene.reshape(nblk, BB, T, 2)
                      .transpose(0, 2, 1, 3)
                      .reshape(nblk * T * BB, 2))
    nfe_wih0, nfe_wih12, nfe_whh, nfe_b = _pack_lstm(params["nfe"], H)
    ee_wih0, ee_wih12, _, ee_b = _pack_lstm(params["ee"], H)  # W_hh unused (T=1, h0=0)

    weights = (
        params["w_emb"].T, params["b_emb"][None, :],
        params["w_cur"].T, params["b_cur"][None, :],
        nfe_wih0, nfe_wih12, nfe_whh, nfe_b,
        ee_wih0, ee_wih12, ee_b,
        params["w_tag"].T, params["b_tag"][None, :],
    )

    def _rep_spec(x):
        # Whole-array block with a constant index map: fetched once, resident
        # in VMEM across all grid steps.
        ndim = x.ndim
        def idx(i, _n=ndim):
            return (0,) * _n
        return pl.BlockSpec(x.shape, idx)

    grid_spec = pltpu.PrefetchScalarGridSpec(
        num_scalar_prefetch=0,
        grid=(nblk,),
        in_specs=[pl.BlockSpec((T * BB, 2), lambda i: (i, 0))]
                 + [_rep_spec(w) for w in weights],
        out_specs=pl.BlockSpec((BB, tagset), lambda i: (i, 0)),
        scratch_shapes=[
            pltpu.VMEM((T * BB, 8 * H), jnp.float32),   # staged gate projections
            pltpu.VMEM((BB, 18 * H), jnp.float32),      # catted features
        ],
    )

    # Advisory cost estimate (kernel is small; hint the XLA scheduler).
    flops = 2 * (
        T * B * 2 * D + B * 2 * D                       # input embeddings
        + T * B * D * 8 * H                             # nfe layer-0 projection
        + 2 * 2 * T * B * H * 8 * H                     # nfe layer-1/2 projections
        + 3 * (T - 1) * 2 * B * H * 8 * H               # fused recurrent matmuls
        + B * D * 8 * H + 2 * 2 * B * H * 8 * H         # edge-encoder projections
        + B * 18 * H * tagset)                          # hidden2tag
    transcendentals = (3 * T * 2 + 3 * 2) * B * 9 * H
    bytes_accessed = 4 * (int(scene_blk.size)
                          + sum(int(w.size) for w in weights) + B * tagset)

    kernel = functools.partial(_lstm_single_with_emb_kernel, T=T, BB=BB, H=H)

    tag = pl.pallas_call(
        kernel,
        out_shape=jax.ShapeDtypeStruct((B, tagset), jnp.float32),
        grid_spec=grid_spec,
        compiler_params=pltpu.CompilerParams(
            dimension_semantics=("parallel",)),
        cost_estimate=pl.CostEstimate(
            flops=flops, transcendentals=transcendentals,
            bytes_accessed=bytes_accessed),
    )(scene_blk, *weights)

    return tag[:, None, :]                              # (B, 1, tagset)


# ----------------------------- pure-JAX reference -----------------------------
def _ref_bilstm(layers, x):
    B, T, _ = x.shape
    H = layers[0]["w_hh_f"].shape[1]
    inp = x
    for p in layers:
        outs = {}
        for d in ("f", "b"):
            w_ih, w_hh = p["w_ih_" + d], p["w_hh_" + d]
            b = p["b_ih_" + d] + p["b_hh_" + d]
            h = jnp.zeros((B, H), jnp.float32)
            c = jnp.zeros((B, H), jnp.float32)
            order = range(T) if d == "f" else range(T - 1, -1, -1)
            o_list = [None] * T
            for t in order:
                g = inp[:, t, :] @ w_ih.T + h @ w_hh.T + b
                i_g, f_g, g_g, o_g = jnp.split(g, 4, axis=-1)
                c = jax.nn.sigmoid(f_g) * c + jax.nn.sigmoid(i_g) * jnp.tanh(g_g)
                h = jax.nn.sigmoid(o_g) * jnp.tanh(c)
                o_list[t] = h
            outs[d] = o_list
        inp = jnp.stack(
            [jnp.concatenate([outs["f"][t], outs["b"][t]], axis=-1)
             for t in range(T)], axis=1)
    return inp                                          # (B, T, 2H)


def reference_forward(params, scene):
    B, T, _ = scene.shape
    H = params["nfe"][0]["w_hh_f"].shape[1]
    emb = jax.nn.relu(scene @ params["w_emb"].T + params["b_emb"])
    lstm_out = _ref_bilstm(params["nfe"], emb)                    # (B, T, 2H)
    current = scene[:, -1, :]
    cur_emb = jax.nn.relu(current @ params["w_cur"].T + params["b_cur"])
    distr = _ref_bilstm(params["ee"], cur_emb[:, None, :])        # (B, 1, 2H)
    catted = jnp.concatenate([lstm_out, distr], axis=1).reshape(-1, 18 * H)
    tag = catted @ params["w_tag"].T + params["b_tag"]
    return tag[:, None, :]


def init_params(key, hidden_dim, input_dim, tagset_size):
    """Deterministic PyTorch-style uniform init, shapes match the nn.Module."""
    H, D = hidden_dim, input_dim
    keys = iter(jax.random.split(key, 64))

    def u(shape, fan_in):
        b = 1.0 / jnp.sqrt(fan_in)
        return jax.random.uniform(next(keys), shape, jnp.float32, -b, b)

    def lstm_params():
        layers = []
        for l in range(3):
            in_l = D if l == 0 else 2 * H
            layers.append({
                "w_ih_f": u((4 * H, in_l), H), "w_hh_f": u((4 * H, H), H),
                "b_ih_f": u((4 * H,), H),      "b_hh_f": u((4 * H,), H),
                "w_ih_b": u((4 * H, in_l), H), "w_hh_b": u((4 * H, H), H),
                "b_ih_b": u((4 * H,), H),      "b_hh_b": u((4 * H,), H),
            })
        return layers

    return {
        "w_emb": u((D, 2), 2), "b_emb": u((D,), 2),
        "w_cur": u((D, 2), 2), "b_cur": u((D,), 2),
        "nfe": lstm_params(), "ee": lstm_params(),
        "w_tag": u((tagset_size, 18 * H), 18 * H),
        "b_tag": u((tagset_size,), 18 * H),
    }


if __name__ == "__main__":
    hidden_dim, input_dim, tagset_size = 32, 16, 16
    # T = 8 so that (T+1) * 2 * hidden == 18 * hidden, as the module requires.
    # B = 16 -> two batch blocks of 8 on the parallel grid axis.
    B, T = 16, 8

    key = jax.random.PRNGKey(0)
    k_par, k_x = jax.random.split(key)
    params = init_params(k_par, hidden_dim, input_dim, tagset_size)
    scene = jax.random.normal(k_x, (B, T, 2), jnp.float32)

    out = lstm_single_with_emb_forward(params, scene)
    jax.block_until_ready(out)

    with jax.default_matmul_precision("float32"):
        ref = reference_forward(params, scene)

    assert out.shape == (B, 1, tagset_size)
    assert jnp.allclose(out, ref, rtol=2e-2, atol=2e-2)

    print("KERNEL_OK")
</pallas_src>

<mosaic_0001>
module attributes {stable_mosaic.version = 11 : i64} {
  func.func @_lstm_single_with_emb_kernel(%arg0: i32, %arg1: memref<64x2xf32, #tpu.memory_space<vmem>>, %arg2: memref<2x16xf32, #tpu.memory_space<vmem>>, %arg3: memref<1x16xf32, #tpu.memory_space<vmem>>, %arg4: memref<2x16xf32, #tpu.memory_space<vmem>>, %arg5: memref<1x16xf32, #tpu.memory_space<vmem>>, %arg6: memref<16x256xf32, #tpu.memory_space<vmem>>, %arg7: memref<2x64x256xf32, #tpu.memory_space<vmem>>, %arg8: memref<3x32x256xf32, #tpu.memory_space<vmem>>, %arg9: memref<3x1x256xf32, #tpu.memory_space<vmem>>, %arg10: memref<16x256xf32, #tpu.memory_space<vmem>>, %arg11: memref<2x64x256xf32, #tpu.memory_space<vmem>>, %arg12: memref<3x1x256xf32, #tpu.memory_space<vmem>>, %arg13: memref<576x16xf32, #tpu.memory_space<vmem>>, %arg14: memref<1x16xf32, #tpu.memory_space<vmem>>, %arg15: memref<8x16xf32, #tpu.memory_space<vmem>>, %arg16: memref<64x256xf32, #tpu.memory_space<vmem>>, %arg17: memref<8x576xf32, #tpu.memory_space<vmem>>) attributes {dimension_semantics = [#tpu.dimension_semantics<parallel>], iteration_bounds = array<i64: 2>, scalar_prefetch = 0 : i64, scratch_operands = 2 : i64, tpu.core_type = #tpu.core_type<tc>, window_params = [{transform_indices = @transform_0, window_bounds = array<i64: 64, 2>}, {pipeline_mode = #tpu.pipeline_mode<synchronous>, transform_indices = @transform_1, window_bounds = array<i64: 2, 16>}, {pipeline_mode = #tpu.pipeline_mode<synchronous>, transform_indices = @transform_2, window_bounds = array<i64: 1, 16>}, {pipeline_mode = #tpu.pipeline_mode<synchronous>, transform_indices = @transform_3, window_bounds = array<i64: 2, 16>}, {pipeline_mode = #tpu.pipeline_mode<synchronous>, transform_indices = @transform_4, window_bounds = array<i64: 1, 16>}, {pipeline_mode = #tpu.pipeline_mode<synchronous>, transform_indices = @transform_5, window_bounds = array<i64: 16, 256>}, {pipeline_mode = #tpu.pipeline_mode<synchronous>, transform_indices = @transform_6, window_bounds = array<i64: 2, 64, 256>}, {pipeline_mode = #tpu.pipeline_mode<synchronous>, transform_indices = @transform_7, window_bounds = array<i64: 3, 32, 256>}, {pipeline_mode = #tpu.pipeline_mode<synchronous>, transform_indices = @transform_8, window_bounds = array<i64: 3, 1, 256>}, {pipeline_mode = #tpu.pipeline_mode<synchronous>, transform_indices = @transform_9, window_bounds = array<i64: 16, 256>}, {pipeline_mode = #tpu.pipeline_mode<synchronous>, transform_indices = @transform_10, window_bounds = array<i64: 2, 64, 256>}, {pipeline_mode = #tpu.pipeline_mode<synchronous>, transform_indices = @transform_11, window_bounds = array<i64: 3, 1, 256>}, {pipeline_mode = #tpu.pipeline_mode<synchronous>, transform_indices = @transform_12, window_bounds = array<i64: 576, 16>}, {pipeline_mode = #tpu.pipeline_mode<synchronous>, transform_indices = @transform_13, window_bounds = array<i64: 1, 16>}, {transform_indices = @transform_14, window_bounds = array<i64: 8, 16>}]} {
    %c56 = arith.constant 56 : index
    %c0 = arith.constant 0 : index
    %0 = vector.load %arg1[%c56, %c0] : memref<64x2xf32, #tpu.memory_space<vmem>>, vector<8x2xf32>
    %c0_0 = arith.constant 0 : index
    %c0_1 = arith.constant 0 : index
    %1 = vector.load %arg4[%c0_0, %c0_1] : memref<2x16xf32, #tpu.memory_space<vmem>>, vector<2x16xf32>
    %cst = arith.constant dense<0.000000e+00> : vector<8x16xf32>
    %2 = tpu.matmul %0, %1, %cst {dimension_numbers = #tpu.dot_dimension_numbers<[1], [0], [0], [1], [0, 0, 1, 1], [], []>} : vector<8x2xf32>, vector<2x16xf32>, vector<8x16xf32> -> vector<8x16xf32>
    %c0_2 = arith.constant 0 : index
    %c0_3 = arith.constant 0 : index
    %3 = vector.load %arg5[%c0_2, %c0_3] : memref<1x16xf32, #tpu.memory_space<vmem>>, vector<1x16xf32>
    %4 = vector.broadcast %3 : vector<1x16xf32> to vector<8x16xf32>
    %5 = arith.addf %2, %4 : vector<8x16xf32>
    %cst_4 = arith.constant 0.000000e+00 : f32
    %6 = vector.broadcast %cst_4 : f32 to vector<8x16xf32>
    %7 = arith.maximumf %5, %6 : vector<8x16xf32>
    %cst_5 = arith.constant 0.000000e+00 : f32
    %8 = vector.broadcast %cst_5 : f32 to vector<8x32xf32>
    %c0_6 = arith.constant 0 : index
    %c0_7 = arith.constant 0 : index
    %9 = vector.load %arg10[%c0_6, %c0_7] : memref<16x256xf32, #tpu.memory_space<vmem>>, vector<16x256xf32>
    %cst_8 = arith.constant dense<0.000000e+00> : vector<8x256xf32>
    %10 = tpu.matmul %7, %9, %cst_8 {dimension_numbers = #tpu.dot_dimension_numbers<[1], [0], [0], [1], [0, 0, 1, 1], [], []>} : vector<8x16xf32>, vector<16x256xf32>, vector<8x256xf32> -> vector<8x256xf32>
    %c0_9 = arith.constant 0 : index
    %c0_10 = arith.constant 0 : index
    %c0_11 = arith.constant 0 : index
    %11 = vector.load %arg12[%c0_9, %c0_10, %c0_11] : memref<3x1x256xf32, #tpu.memory_space<vmem>>, vector<1x1x256xf32>
    %12 = vector.shape_cast %11 : vector<1x1x256xf32> to vector<1x256xf32>
    %13 = vector.broadcast %12 : vector<1x256xf32> to vector<8x256xf32>
    %14 = arith.addf %10, %13 : vector<8x256xf32>
    %15 = vector.extract_strided_slice %14 {offsets = [0, 0], sizes = [8, 128], strides = [1, 1]} : vector<8x256xf32> to vector<8x128xf32>
    %16 = arith.negf %15 : vector<8x128xf32>
    %17 = math.exp %16 : vector<8x128xf32>
    %cst_12 = arith.constant 1.000000e+00 : f32
    %18 = vector.broadcast %cst_12 : f32 to vector<8x128xf32>
    %19 = arith.addf %18, %17 : vector<8x128xf32>
    %20 = arith.divf %18, %19 : vector<8x128xf32>
    %21 = math.tanh %15 : vector<8x128xf32>
    %22 = vector.extract_strided_slice %20 {offsets = [0, 32], sizes = [8, 32], strides = [1, 1]} : vector<8x128xf32> to vector<8x32xf32>
    %23 = arith.mulf %22, %8 : vector<8x32xf32>
    %24 = vector.extract_strided_slice %20 {offsets = [0, 0], sizes = [8, 32], strides = [1, 1]} : vector<8x128xf32> to vector<8x32xf32>
    %25 = vector.extract_strided_slice %21 {offsets = [0, 64], sizes = [8, 32], strides = [1, 1]} : vector<8x128xf32> to vector<8x32xf32>
    %26 = arith.mulf %24, %25 : vector<8x32xf32>
    %27 = arith.addf %23, %26 : vector<8x32xf32>
    %28 = vector.extract_strided_slice %20 {offsets = [0, 96], sizes = [8, 32], strides = [1, 1]} : vector<8x128xf32> to vector<8x32xf32>
    %29 = math.tanh %27 : vector<8x32xf32>
    %30 = arith.mulf %28, %29 : vector<8x32xf32>
    %31 = vector.extract_strided_slice %14 {offsets = [0, 128], sizes = [8, 128], strides = [1, 1]} : vector<8x256xf32> to vector<8x128xf32>
    %32 = arith.negf %31 : vector<8x128xf32>
    %33 = math.exp %32 : vector<8x128xf32>
    %cst_13 = arith.constant 1.000000e+00 : f32
    %34 = vector.broadcast %cst_13 : f32 to vector<8x128xf32>
    %35 = arith.addf %34, %33 : vector<8x128xf32>
    %36 = arith.divf %34, %35 : vector<8x128xf32>
    %37 = math.tanh %31 : vector<8x128xf32>
    %38 = vector.extract_strided_slice %36 {offsets = [0, 32], sizes = [8, 32], strides = [1, 1]} : vector<8x128xf32> to vector<8x32xf32>
    %39 = arith.mulf %38, %8 : vector<8x32xf32>
    %40 = vector.extract_strided_slice %36 {offsets = [0, 0], sizes = [8, 32], strides = [1, 1]} : vector<8x128xf32> to vector<8x32xf32>
    %41 = vector.extract_strided_slice %37 {offsets = [0, 64], sizes = [8, 32], strides = [1, 1]} : vector<8x128xf32> to vector<8x32xf32>
    %42 = arith.mulf %40, %41 : vector<8x32xf32>
    %43 = arith.addf %39, %42 : vector<8x32xf32>
    %44 = vector.extract_strided_slice %36 {offsets = [0, 96], sizes = [8, 32], strides = [1, 1]} : vector<8x128xf32> to vector<8x32xf32>
    %45 = math.tanh %43 : vector<8x32xf32>
    %46 = arith.mulf %44, %45 : vector<8x32xf32>
    %c0_14 = arith.constant 0 : index
    %c0_15 = arith.constant 0 : index
    %c0_16 = arith.constant 0 : index
    %47 = vector.load %arg11[%c0_14, %c0_15, %c0_16] : memref<2x64x256xf32, #tpu.memory_space<vmem>>, vector<1x64x256xf32>
    %48 = vector.shape_cast %47 : vector<1x64x256xf32> to vector<64x256xf32>
    %49 = vector.extract_strided_slice %48 {offsets = [0, 0], sizes = [32, 256], strides = [1, 1]} : vector<64x256xf32> to vector<32x256xf32>
    %cst_17 = arith.constant dense<0.000000e+00> : vector<8x256xf32>
    %50 = tpu.matmul %30, %49, %cst_17 {dimension_numbers = #tpu.dot_dimension_numbers<[1], [0], [0], [1], [0, 0, 1, 1], [], []>} : vector<8x32xf32>, vector<32x256xf32>, vector<8x256xf32> -> vector<8x256xf32>
    %51 = vector.extract_strided_slice %48 {offsets = [32, 0], sizes = [32, 256], strides = [1, 1]} : vector<64x256xf32> to vector<32x256xf32>
    %cst_18 = arith.constant dense<0.000000e+00> : vector<8x256xf32>
    %52 = tpu.matmul %46, %51, %cst_18 {dimension_numbers = #tpu.dot_dimension_numbers<[1], [0], [0], [1], [0, 0, 1, 1], [], []>} : vector<8x32xf32>, vector<32x256xf32>, vector<8x256xf32> -> vector<8x256xf32>
    %53 = arith.addf %50, %52 : vector<8x256xf32>
    %c1 = arith.constant 1 : index
    %c0_19 = arith.constant 0 : index
    %c0_20 = arith.constant 0 : index
    %54 = vector.load %arg12[%c1, %c0_19, %c0_20] : memref<3x1x256xf32, #tpu.memory_space<vmem>>, vector<1x1x256xf32>
    %55 = vector.shape_cast %54 : vector<1x1x256xf32> to vector<1x256xf32>
    %56 = vector.broadcast %55 : vector<1x256xf32> to vector<8x256xf32>
    %57 = arith.addf %53, %56 : vector<8x256xf32>
    %58 = vector.extract_strided_slice %57 {offsets = [0, 0], sizes = [8, 128], strides = [1, 1]} : vector<8x256xf32> to vector<8x128xf32>
    %59 = arith.negf %58 : vector<8x128xf32>
    %60 = math.exp %59 : vector<8x128xf32>
    %cst_21 = arith.constant 1.000000e+00 : f32
    %61 = vector.broadcast %cst_21 : f32 to vector<8x128xf32>
    %62 = arith.addf %61, %60 : vector<8x128xf32>
    %63 = arith.divf %61, %62 : vector<8x128xf32>
    %64 = math.tanh %58 : vector<8x128xf32>
    %65 = vector.extract_strided_slice %63 {offsets = [0, 32], sizes = [8, 32], strides = [1, 1]} : vector<8x128xf32> to vector<8x32xf32>
    %66 = arith.mulf %65, %8 : vector<8x32xf32>
    %67 = vector.extract_strided_slice %63 {offsets = [0, 0], sizes = [8, 32], strides = [1, 1]} : vector<8x128xf32> to vector<8x32xf32>
    %68 = vector.extract_strided_slice %64 {offsets = [0, 64], sizes = [8, 32], strides = [1, 1]} : vector<8x128xf32> to vector<8x32xf32>
    %69 = arith.mulf %67, %68 : vector<8x32xf32>
    %70 = arith.addf %66, %69 : vector<8x32xf32>
    %71 = vector.extract_strided_slice %63 {offsets = [0, 96], sizes = [8, 32], strides = [1, 1]} : vector<8x128xf32> to vector<8x32xf32>
    %72 = math.tanh %70 : vector<8x32xf32>
    %73 = arith.mulf %71, %72 : vector<8x32xf32>
    %74 = vector.extract_strided_slice %57 {offsets = [0, 128], sizes = [8, 128], strides = [1, 1]} : vector<8x256xf32> to vector<8x128xf32>
    %75 = arith.negf %74 : vector<8x128xf32>
    %76 = math.exp %75 : vector<8x128xf32>
    %cst_22 = arith.constant 1.000000e+00 : f32
    %77 = vector.broadcast %cst_22 : f32 to vector<8x128xf32>
    %78 = arith.addf %77, %76 : vector<8x128xf32>
    %79 = arith.divf %77, %78 : vector<8x128xf32>
    %80 = math.tanh %74 : vector<8x128xf32>
    %81 = vector.extract_strided_slice %79 {offsets = [0, 32], sizes = [8, 32], strides = [1, 1]} : vector<8x128xf32> to vector<8x32xf32>
    %82 = arith.mulf %81, %8 : vector<8x32xf32>
    %83 = vector.extract_strided_slice %79 {offsets = [0, 0], sizes = [8, 32], strides = [1, 1]} : vector<8x128xf32> to vector<8x32xf32>
    %84 = vector.extract_strided_slice %80 {offsets = [0, 64], sizes = [8, 32], strides = [1, 1]} : vector<8x128xf32> to vector<8x32xf32>
    %85 = arith.mulf %83, %84 : vector<8x32xf32>
    %86 = arith.addf %82, %85 : vector<8x32xf32>
    %87 = vector.extract_strided_slice %79 {offsets = [0, 96], sizes = [8, 32], strides = [1, 1]} : vector<8x128xf32> to vector<8x32xf32>
    %88 = math.tanh %86 : vector<8x32xf32>
    %89 = arith.mulf %87, %88 : vector<8x32xf32>
    %c1_23 = arith.constant 1 : index
    %c0_24 = arith.constant 0 : index
    %c0_25 = arith.constant 0 : index
    %90 = vector.load %arg11[%c1_23, %c0_24, %c0_25] : memref<2x64x256xf32, #tpu.memory_space<vmem>>, vector<1x64x256xf32>
    %91 = vector.shape_cast %90 : vector<1x64x256xf32> to vector<64x256xf32>
    %92 = vector.extract_strided_slice %91 {offsets = [0, 0], sizes = [32, 256], strides = [1, 1]} : vector<64x256xf32> to vector<32x256xf32>
    %cst_26 = arith.constant dense<0.000000e+00> : vector<8x256xf32>
    %93 = tpu.matmul %73, %92, %cst_26 {dimension_numbers = #tpu.dot_dimension_numbers<[1], [0], [0], [1], [0, 0, 1, 1], [], []>} : vector<8x32xf32>, vector<32x256xf32>, vector<8x256xf32> -> vector<8x256xf32>
    %94 = vector.extract_strided_slice %91 {offsets = [32, 0], sizes = [32, 256], strides = [1, 1]} : vector<64x256xf32> to vector<32x256xf32>
    %cst_27 = arith.constant dense<0.000000e+00> : vector<8x256xf32>
    %95 = tpu.matmul %89, %94, %cst_27 {dimension_numbers = #tpu.dot_dimension_numbers<[1], [0], [0], [1], [0, 0, 1, 1], [], []>} : vector<8x32xf32>, vector<32x256xf32>, vector<8x256xf32> -> vector<8x256xf32>
    %96 = arith.addf %93, %95 : vector<8x256xf32>
    %c2 = arith.constant 2 : index
    %c0_28 = arith.constant 0 : index
    %c0_29 = arith.constant 0 : index
    %97 = vector.load %arg12[%c2, %c0_28, %c0_29] : memref<3x1x256xf32, #tpu.memory_space<vmem>>, vector<1x1x256xf32>
    %98 = vector.shape_cast %97 : vector<1x1x256xf32> to vector<1x256xf32>
    %99 = vector.broadcast %98 : vector<1x256xf32> to vector<8x256xf32>
    %100 = arith.addf %96, %99 : vector<8x256xf32>
    %101 = vector.extract_strided_slice %100 {offsets = [0, 0], sizes = [8, 128], strides = [1, 1]} : vector<8x256xf32> to vector<8x128xf32>
    %102 = arith.negf %101 : vector<8x128xf32>
    %103 = math.exp %102 : vector<8x128xf32>
    %cst_30 = arith.constant 1.000000e+00 : f32
    %104 = vector.broadcast %cst_30 : f32 to vector<8x128xf32>
    %105 = arith.addf %104, %103 : vector<8x128xf32>
    %106 = arith.divf %104, %105 : vector<8x128xf32>
    %107 = math.tanh %101 : vector<8x128xf32>
    %108 = vector.extract_strided_slice %106 {offsets = [0, 32], sizes = [8, 32], strides = [1, 1]} : vector<8x128xf32> to vector<8x32xf32>
    %109 = arith.mulf %108, %8 : vector<8x32xf32>
    %110 = vector.extract_strided_slice %106 {offsets = [0, 0], sizes = [8, 32], strides = [1, 1]} : vector<8x128xf32> to vector<8x32xf32>
    %111 = vector.extract_strided_slice %107 {offsets = [0, 64], sizes = [8, 32], strides = [1, 1]} : vector<8x128xf32> to vector<8x32xf32>
    %112 = arith.mulf %110, %111 : vector<8x32xf32>
    %113 = arith.addf %109, %112 : vector<8x32xf32>
    %114 = vector.extract_strided_slice %106 {offsets = [0, 96], sizes = [8, 32], strides = [1, 1]} : vector<8x128xf32> to vector<8x32xf32>
    %115 = math.tanh %113 : vector<8x32xf32>
    %116 = arith.mulf %114, %115 : vector<8x32xf32>
    %117 = vector.extract_strided_slice %100 {offsets = [0, 128], sizes = [8, 128], strides = [1, 1]} : vector<8x256xf32> to vector<8x128xf32>
    %118 = arith.negf %117 : vector<8x128xf32>
    %119 = math.exp %118 : vector<8x128xf32>
    %cst_31 = arith.constant 1.000000e+00 : f32
    %120 = vector.broadcast %cst_31 : f32 to vector<8x128xf32>
    %121 = arith.addf %120, %119 : vector<8x128xf32>
    %122 = arith.divf %120, %121 : vector<8x128xf32>
    %123 = math.tanh %117 : vector<8x128xf32>
    %124 = vector.extract_strided_slice %122 {offsets = [0, 32], sizes = [8, 32], strides = [1, 1]} : vector<8x128xf32> to vector<8x32xf32>
    %125 = arith.mulf %124, %8 : vector<8x32xf32>
    %126 = vector.extract_strided_slice %122 {offsets = [0, 0], sizes = [8, 32], strides = [1, 1]} : vector<8x128xf32> to vector<8x32xf32>
    %127 = vector.extract_strided_slice %123 {offsets = [0, 64], sizes = [8, 32], strides = [1, 1]} : vector<8x128xf32> to vector<8x32xf32>
    %128 = arith.mulf %126, %127 : vector<8x32xf32>
    %129 = arith.addf %125, %128 : vector<8x32xf32>
    %130 = vector.extract_strided_slice %122 {offsets = [0, 96], sizes = [8, 32], strides = [1, 1]} : vector<8x128xf32> to vector<8x32xf32>
    %131 = math.tanh %129 : vector<8x32xf32>
    %132 = arith.mulf %130, %131 : vector<8x32xf32>
    %c0_32 = arith.constant 0 : index
    %c0_33 = arith.constant 0 : index
    %133 = vector.load %arg1[%c0_32, %c0_33] : memref<64x2xf32, #tpu.memory_space<vmem>>, vector<64x2xf32>
    %c0_34 = arith.constant 0 : index
    %c0_35 = arith.constant 0 : index
    %134 = vector.load %arg2[%c0_34, %c0_35] : memref<2x16xf32, #tpu.memory_space<vmem>>, vector<2x16xf32>
    %cst_36 = arith.constant dense<0.000000e+00> : vector<64x16xf32>
    %135 = tpu.matmul %133, %134, %cst_36 {dimension_numbers = #tpu.dot_dimension_numbers<[1], [0], [0], [1], [0, 0, 1, 1], [], []>} : vector<64x2xf32>, vector<2x16xf32>, vector<64x16xf32> -> vector<64x16xf32>
    %c0_37 = arith.constant 0 : index
    %c0_38 = arith.constant 0 : index
    %136 = vector.load %arg3[%c0_37, %c0_38] : memref<1x16xf32, #tpu.memory_space<vmem>>, vector<1x16xf32>
    %137 = vector.broadcast %136 : vector<1x16xf32> to vector<64x16xf32>
    %138 = arith.addf %135, %137 : vector<64x16xf32>
    %cst_39 = arith.constant 0.000000e+00 : f32
    %139 = vector.broadcast %cst_39 : f32 to vector<64x16xf32>
    %140 = arith.maximumf %138, %139 : vector<64x16xf32>
    %c0_40 = arith.constant 0 : index
    %c0_41 = arith.constant 0 : index
    %141 = vector.load %arg6[%c0_40, %c0_41] : memref<16x256xf32, #tpu.memory_space<vmem>>, vector<16x256xf32>
    %cst_42 = arith.constant dense<0.000000e+00> : vector<64x256xf32>
    %142 = tpu.matmul %140, %141, %cst_42 {dimension_numbers = #tpu.dot_dimension_numbers<[1], [0], [0], [1], [0, 0, 1, 1], [], []>} : vector<64x16xf32>, vector<16x256xf32>, vector<64x256xf32> -> vector<64x256xf32>
    %c0_43 = arith.constant 0 : index
    %c0_44 = arith.constant 0 : index
    %c0_45 = arith.constant 0 : index
    %143 = vector.load %arg9[%c0_43, %c0_44, %c0_45] : memref<3x1x256xf32, #tpu.memory_space<vmem>>, vector<1x1x256xf32>
    %144 = vector.shape_cast %143 : vector<1x1x256xf32> to vector<1x256xf32>
    %145 = vector.broadcast %144 : vector<1x256xf32> to vector<64x256xf32>
    %146 = arith.addf %142, %145 : vector<64x256xf32>
    %c0_46 = arith.constant 0 : index
    %c0_47 = arith.constant 0 : index
    %147 = vector.load %arg16[%c0_46, %c0_47] : memref<64x256xf32, #tpu.memory_space<vmem>>, vector<64x256xf32>
    tpu.vector_store %arg16[%c0_46, %c0_47], %146 {strides = array<i32>} : memref<64x256xf32, #tpu.memory_space<vmem>>, vector<64x256xf32>,
    %c0_48 = arith.constant 0 : index
    %c0_49 = arith.constant 0 : index
    %c0_50 = arith.constant 0 : index
    %148 = vector.load %arg8[%c0_48, %c0_49, %c0_50] : memref<3x32x256xf32, #tpu.memory_space<vmem>>, vector<1x32x256xf32>
    %149 = vector.shape_cast %148 : vector<1x32x256xf32> to vector<32x256xf32>
    %cst_51 = arith.constant 0.000000e+00 : f32
    %150 = vector.broadcast %cst_51 : f32 to vector<16x32xf32>
    %c0_52 = arith.constant 0 : index
    %c0_53 = arith.constant 0 : index
    %151 = vector.load %arg16[%c0_52, %c0_53] : memref<64x256xf32, #tpu.memory_space<vmem>>, vector<8x128xf32>
    %c56_54 = arith.constant 56 : index
    %c128 = arith.constant 128 : index
    %152 = vector.load %arg16[%c56_54, %c128] : memref<64x256xf32, #tpu.memory_space<vmem>>, vector<8x128xf32>
    %153 = tpu.concatenate %151, %152 in 0 : vector<8x128xf32>, vector<8x128xf32> -> vector<16x128xf32>
    %154 = arith.negf %153 : vector<16x128xf32>
    %155 = math.exp %154 : vector<16x128xf32>
    %cst_55 = arith.constant 1.000000e+00 : f32
    %156 = vector.broadcast %cst_55 : f32 to vector<16x128xf32>
    %157 = arith.addf %156, %155 : vector<16x128xf32>
    %158 = arith.divf %156, %157 : vector<16x128xf32>
    %159 = math.tanh %153 : vector<16x128xf32>
    %160 = vector.extract_strided_slice %158 {offsets = [0, 32], sizes = [16, 32], strides = [1, 1]} : vector<16x128xf32> to vector<16x32xf32>
    %161 = arith.mulf %160, %150 : vector<16x32xf32>
    %162 = vector.extract_strided_slice %158 {offsets = [0, 0], sizes = [16, 32], strides = [1, 1]} : vector<16x128xf32> to vector<16x32xf32>
    %163 = vector.extract_strided_slice %159 {offsets = [0, 64], sizes = [16, 32], strides = [1, 1]} : vector<16x128xf32> to vector<16x32xf32>
    %164 = arith.mulf %162, %163 : vector<16x32xf32>
    %165 = arith.addf %161, %164 : vector<16x32xf32>
    %166 = vector.extract_strided_slice %158 {offsets = [0, 96], sizes = [16, 32], strides = [1, 1]} : vector<16x128xf32> to vector<16x32xf32>
    %167 = math.tanh %165 : vector<16x32xf32>
    %168 = arith.mulf %166, %167 : vector<16x32xf32>
    %169 = vector.extract_strided_slice %168 {offsets = [0, 0], sizes = [8, 32], strides = [1, 1]} : vector<16x32xf32> to vector<8x32xf32>
    %170 = vector.extract_strided_slice %168 {offsets = [8, 0], sizes = [8, 32], strides = [1, 1]} : vector<16x32xf32> to vector<8x32xf32>
    %c8 = arith.constant 8 : index
    %c0_56 = arith.constant 0 : index
    %171 = vector.load %arg16[%c8, %c0_56] : memref<64x256xf32, #tpu.memory_space<vmem>>, vector<8x128xf32>
    %c48 = arith.constant 48 : index
    %c128_57 = arith.constant 128 : index
    %172 = vector.load %arg16[%c48, %c128_57] : memref<64x256xf32, #tpu.memory_space<vmem>>, vector<8x128xf32>
    %173 = tpu.concatenate %171, %172 in 0 : vector<8x128xf32>, vector<8x128xf32> -> vector<16x128xf32>
    %cst_58 = arith.constant dense<0.000000e+00> : vector<16x256xf32>
    %174 = tpu.matmul %168, %149, %cst_58 {dimension_numbers = #tpu.dot_dimension_numbers<[1], [0], [0], [1], [0, 0, 1, 1], [], []>} : vector<16x32xf32>, vector<32x256xf32>, vector<16x256xf32> -> vector<16x256xf32>
    %175 = vector.extract_strided_slice %174 {offsets = [0, 0], sizes = [8, 128], strides = [1, 1]} : vector<16x256xf32> to vector<8x128xf32>
    %176 = vector.extract_strided_slice %174 {offsets = [8, 128], sizes = [8, 128], strides = [1, 1]} : vector<16x256xf32> to vector<8x128xf32>
    %177 = tpu.concatenate %175, %176 in 0 : vector<8x128xf32>, vector<8x128xf32> -> vector<16x128xf32>
    %178 = arith.addf %173, %177 : vector<16x128xf32>
    %179 = arith.negf %178 : vector<16x128xf32>
    %180 = math.exp %179 : vector<16x128xf32>
    %cst_59 = arith.constant 1.000000e+00 : f32
    %181 = vector.broadcast %cst_59 : f32 to vector<16x128xf32>
    %182 = arith.addf %181, %180 : vector<16x128xf32>
    %183 = arith.divf %181, %182 : vector<16x128xf32>
    %184 = math.tanh %178 : vector<16x128xf32>
    %185 = vector.extract_strided_slice %183 {offsets = [0, 32], sizes = [16, 32], strides = [1, 1]} : vector<16x128xf32> to vector<16x32xf32>
    %186 = arith.mulf %185, %165 : vector<16x32xf32>
    %187 = vector.extract_strided_slice %183 {offsets = [0, 0], sizes = [16, 32], strides = [1, 1]} : vector<16x128xf32> to vector<16x32xf32>
    %188 = vector.extract_strided_slice %184 {offsets = [0, 64], sizes = [16, 32], strides = [1, 1]} : vector<16x128xf32> to vector<16x32xf32>
    %189 = arith.mulf %187, %188 : vector<16x32xf32>
    %190 = arith.addf %186, %189 : vector<16x32xf32>
    %191 = vector.extract_strided_slice %183 {offsets = [0, 96], sizes = [16, 32], strides = [1, 1]} : vector<16x128xf32> to vector<16x32xf32>
    %192 = math.tanh %190 : vector<16x32xf32>
    %193 = arith.mulf %191, %192 : vector<16x32xf32>
    %194 = vector.extract_strided_slice %193 {offsets = [0, 0], sizes = [8, 32], strides = [1, 1]} : vector<16x32xf32> to vector<8x32xf32>
    %195 = vector.extract_strided_slice %193 {offsets = [8, 0], sizes = [8, 32], strides = [1, 1]} : vector<16x32xf32> to vector<8x32xf32>
    %c16 = arith.constant 16 : index
    %c0_60 = arith.constant 0 : index
    %196 = vector.load %arg16[%c16, %c0_60] : memref<64x256xf32, #tpu.memory_space<vmem>>, vector<8x128xf32>
    %c40 = arith.constant 40 : index
    %c128_61 = arith.constant 128 : index
    %197 = vector.load %arg16[%c40, %c128_61] : memref<64x256xf32, #tpu.memory_space<vmem>>, vector<8x128xf32>
    %198 = tpu.concatenate %196, %197 in 0 : vector<8x128xf32>, vector<8x128xf32> -> vector<16x128xf32>
    %cst_62 = arith.constant dense<0.000000e+00> : vector<16x256xf32>
    %199 = tpu.matmul %193, %149, %cst_62 {dimension_numbers = #tpu.dot_dimension_numbers<[1], [0], [0], [1], [0, 0, 1, 1], [], []>} : vector<16x32xf32>, vector<32x256xf32>, vector<16x256xf32> -> vector<16x256xf32>
    %200 = vector.extract_strided_slice %199 {offsets = [0, 0], sizes = [8, 128], strides = [1, 1]} : vector<16x256xf32> to vector<8x128xf32>
    %201 = vector.extract_strided_slice %199 {offsets = [8, 128], sizes = [8, 128], strides = [1, 1]} : vector<16x256xf32> to vector<8x128xf32>
    %202 = tpu.concatenate %200, %201 in 0 : vector<8x128xf32>, vector<8x128xf32> -> vector<16x128xf32>
    %203 = arith.addf %198, %202 : vector<16x128xf32>
    %204 = arith.negf %203 : vector<16x128xf32>
    %205 = math.exp %204 : vector<16x128xf32>
    %cst_63 = arith.constant 1.000000e+00 : f32
    %206 = vector.broadcast %cst_63 : f32 to vector<16x128xf32>
    %207 = arith.addf %206, %205 : vector<16x128xf32>
    %208 = arith.divf %206, %207 : vector<16x128xf32>
    %209 = math.tanh %203 : vector<16x128xf32>
    %210 = vector.extract_strided_slice %208 {offsets = [0, 32], sizes = [16, 32], strides = [1, 1]} : vector<16x128xf32> to vector<16x32xf32>
    %211 = arith.mulf %210, %190 : vector<16x32xf32>
    %212 = vector.extract_strided_slice %208 {offsets = [0, 0], sizes = [16, 32], strides = [1, 1]} : vector<16x128xf32> to vector<16x32xf32>
    %213 = vector.extract_strided_slice %209 {offsets = [0, 64], sizes = [16, 32], strides = [1, 1]} : vector<16x128xf32> to vector<16x32xf32>
    %214 = arith.mulf %212, %213 : vector<16x32xf32>
    %215 = arith.addf %211, %214 : vector<16x32xf32>
    %216 = vector.extract_strided_slice %208 {offsets = [0, 96], sizes = [16, 32], strides = [1, 1]} : vector<16x128xf32> to vector<16x32xf32>
    %217 = math.tanh %215 : vector<16x32xf32>
    %218 = arith.mulf %216, %217 : vector<16x32xf32>
    %219 = vector.extract_strided_slice %218 {offsets = [0, 0], sizes = [8, 32], strides = [1, 1]} : vector<16x32xf32> to vector<8x32xf32>
    %220 = vector.extract_strided_slice %218 {offsets = [8, 0], sizes = [8, 32], strides = [1, 1]} : vector<16x32xf32> to vector<8x32xf32>
    %c24 = arith.constant 24 : index
    %c0_64 = arith.constant 0 : index
    %221 = vector.load %arg16[%c24, %c0_64] : memref<64x256xf32, #tpu.memory_space<vmem>>, vector<8x128xf32>
    %c32 = arith.constant 32 : index
    %c128_65 = arith.constant 128 : index
    %222 = vector.load %arg16[%c32, %c128_65] : memref<64x256xf32, #tpu.memory_space<vmem>>, vector<8x128xf32>
    %223 = tpu.concatenate %221, %222 in 0 : vector<8x128xf32>, vector<8x128xf32> -> vector<16x128xf32>
    %cst_66 = arith.constant dense<0.000000e+00> : vector<16x256xf32>
    %224 = tpu.matmul %218, %149, %cst_66 {dimension_numbers = #tpu.dot_dimension_numbers<[1], [0], [0], [1], [0, 0, 1, 1], [], []>} : vector<16x32xf32>, vector<32x256xf32>, vector<16x256xf32> -> vector<16x256xf32>
    %225 = vector.extract_strided_slice %224 {offsets = [0, 0], sizes = [8, 128], strides = [1, 1]} : vector<16x256xf32> to vector<8x128xf32>
    %226 = vector.extract_strided_slice %224 {offsets = [8, 128], sizes = [8, 128], strides = [1, 1]} : vector<16x256xf32> to vector<8x128xf32>
    %227 = tpu.concatenate %225, %226 in 0 : vector<8x128xf32>, vector<8x128xf32> -> vector<16x128xf32>
    %228 = arith.addf %223, %227 : vector<16x128xf32>
    %229 = arith.negf %228 : vector<16x128xf32>
    %230 = math.exp %229 : vector<16x128xf32>
    %cst_67 = arith.constant 1.000000e+00 : f32
    %231 = vector.broadcast %cst_67 : f32 to vector<16x128xf32>
    %232 = arith.addf %231, %230 : vector<16x128xf32>
    %233 = arith.divf %231, %232 : vector<16x128xf32>
    %234 = math.tanh %228 : vector<16x128xf32>
    %235 = vector.extract_strided_slice %233 {offsets = [0, 32], sizes = [16, 32], strides = [1, 1]} : vector<16x128xf32> to vector<16x32xf32>
    %236 = arith.mulf %235, %215 : vector<16x32xf32>
    %237 = vector.extract_strided_slice %233 {offsets = [0, 0], sizes = [16, 32], strides = [1, 1]} : vector<16x128xf32> to vector<16x32xf32>
    %238 = vector.extract_strided_slice %234 {offsets = [0, 64], sizes = [16, 32], strides = [1, 1]} : vector<16x128xf32> to vector<16x32xf32>
    %239 = arith.mulf %237, %238 : vector<16x32xf32>
    %240 = arith.addf %236, %239 : vector<16x32xf32>
    %241 = vector.extract_strided_slice %233 {offsets = [0, 96], sizes = [16, 32], strides = [1, 1]} : vector<16x128xf32> to vector<16x32xf32>
    %242 = math.tanh %240 : vector<16x32xf32>
    %243 = arith.mulf %241, %242 : vector<16x32xf32>
    %244 = vector.extract_strided_slice %243 {offsets = [0, 0], sizes = [8, 32], strides = [1, 1]} : vector<16x32xf32> to vector<8x32xf32>
    %245 = vector.extract_strided_slice %243 {offsets = [8, 0], sizes = [8, 32], strides = [1, 1]} : vector<16x32xf32> to vector<8x32xf32>
    %c32_68 = arith.constant 32 : index
    %c0_69 = arith.constant 0 : index
    %246 = vector.load %arg16[%c32_68, %c0_69] : memref<64x256xf32, #tpu.memory_space<vmem>>, vector<8x128xf32>
    %c24_70 = arith.constant 24 : index
    %c128_71 = arith.constant 128 : index
    %247 = vector.load %arg16[%c24_70, %c128_71] : memref<64x256xf32, #tpu.memory_space<vmem>>, vector<8x128xf32>
    %248 = tpu.concatenate %246, %247 in 0 : vector<8x128xf32>, vector<8x128xf32> -> vector<16x128xf32>
    %cst_72 = arith.constant dense<0.000000e+00> : vector<16x256xf32>
    %249 = tpu.matmul %243, %149, %cst_72 {dimension_numbers = #tpu.dot_dimension_numbers<[1], [0], [0], [1], [0, 0, 1, 1], [], []>} : vector<16x32xf32>, vector<32x256xf32>, vector<16x256xf32> -> vector<16x256xf32>
    %250 = vector.extract_strided_slice %249 {offsets = [0, 0], sizes = [8, 128], strides = [1, 1]} : vector<16x256xf32> to vector<8x128xf32>
    %251 = vector.extract_strided_slice %249 {offsets = [8, 128], sizes = [8, 128], strides = [1, 1]} : vector<16x256xf32> to vector<8x128xf32>
    %252 = tpu.concatenate %250, %251 in 0 : vector<8x128xf32>, vector<8x128xf32> -> vector<16x128xf32>
    %253 = arith.addf %248, %252 : vector<16x128xf32>
    %254 = arith.negf %253 : vector<16x128xf32>
    %255 = math.exp %254 : vector<16x128xf32>
    %cst_73 = arith.constant 1.000000e+00 : f32
    %256 = vector.broadcast %cst_73 : f32 to vector<16x128xf32>
    %257 = arith.addf %256, %255 : vector<16x128xf32>
    %258 = arith.divf %256, %257 : vector<16x128xf32>
    %259 = math.tanh %253 : vector<16x128xf32>
    %260 = vector.extract_strided_slice %258 {offsets = [0, 32], sizes = [16, 32], strides = [1, 1]} : vector<16x128xf32> to vector<16x32xf32>
    %261 = arith.mulf %260, %240 : vector<16x32xf32>
    %262 = vector.extract_strided_slice %258 {offsets = [0, 0], sizes = [16, 32], strides = [1, 1]} : vector<16x128xf32> to vector<16x32xf32>
    %263 = vector.extract_strided_slice %259 {offsets = [0, 64], sizes = [16, 32], strides = [1, 1]} : vector<16x128xf32> to vector<16x32xf32>
    %264 = arith.mulf %262, %263 : vector<16x32xf32>
    %265 = arith.addf %261, %264 : vector<16x32xf32>
    %266 = vector.extract_strided_slice %258 {offsets = [0, 96], sizes = [16, 32], strides = [1, 1]} : vector<16x128xf32> to vector<16x32xf32>
    %267 = math.tanh %265 : vector<16x32xf32>
    %268 = arith.mulf %266, %267 : vector<16x32xf32>
    %269 = vector.extract_strided_slice %268 {offsets = [0, 0], sizes = [8, 32], strides = [1, 1]} : vector<16x32xf32> to vector<8x32xf32>
    %270 = vector.extract_strided_slice %268 {offsets = [8, 0], sizes = [8, 32], strides = [1, 1]} : vector<16x32xf32> to vector<8x32xf32>
    %c40_74 = arith.constant 40 : index
    %c0_75 = arith.constant 0 : index
    %271 = vector.load %arg16[%c40_74, %c0_75] : memref<64x256xf32, #tpu.memory_space<vmem>>, vector<8x128xf32>
    %c16_76 = arith.constant 16 : index
    %c128_77 = arith.constant 128 : index
    %272 = vector.load %arg16[%c16_76, %c128_77] : memref<64x256xf32, #tpu.memory_space<vmem>>, vector<8x128xf32>
    %273 = tpu.concatenate %271, %272 in 0 : vector<8x128xf32>, vector<8x128xf32> -> vector<16x128xf32>
    %cst_78 = arith.constant dense<0.000000e+00> : vector<16x256xf32>
    %274 = tpu.matmul %268, %149, %cst_78 {dimension_numbers = #tpu.dot_dimension_numbers<[1], [0], [0], [1], [0, 0, 1, 1], [], []>} : vector<16x32xf32>, vector<32x256xf32>, vector<16x256xf32> -> vector<16x256xf32>
    %275 = vector.extract_strided_slice %274 {offsets = [0, 0], sizes = [8, 128], strides = [1, 1]} : vector<16x256xf32> to vector<8x128xf32>
    %276 = vector.extract_strided_slice %274 {offsets = [8, 128], sizes = [8, 128], strides = [1, 1]} : vector<16x256xf32> to vector<8x128xf32>
    %277 = tpu.concatenate %275, %276 in 0 : vector<8x128xf32>, vector<8x128xf32> -> vector<16x128xf32>
    %278 = arith.addf %273, %277 : vector<16x128xf32>
    %279 = arith.negf %278 : vector<16x128xf32>
    %280 = math.exp %279 : vector<16x128xf32>
    %cst_79 = arith.constant 1.000000e+00 : f32
    %281 = vector.broadcast %cst_79 : f32 to vector<16x128xf32>
    %282 = arith.addf %281, %280 : vector<16x128xf32>
    %283 = arith.divf %281, %282 : vector<16x128xf32>
    %284 = math.tanh %278 : vector<16x128xf32>
    %285 = vector.extract_strided_slice %283 {offsets = [0, 32], sizes = [16, 32], strides = [1, 1]} : vector<16x128xf32> to vector<16x32xf32>
    %286 = arith.mulf %285, %265 : vector<16x32xf32>
    %287 = vector.extract_strided_slice %283 {offsets = [0, 0], sizes = [16, 32], strides = [1, 1]} : vector<16x128xf32> to vector<16x32xf32>
    %288 = vector.extract_strided_slice %284 {offsets = [0, 64], sizes = [16, 32], strides = [1, 1]} : vector<16x128xf32> to vector<16x32xf32>
    %289 = arith.mulf %287, %288 : vector<16x32xf32>
    %290 = arith.addf %286, %289 : vector<16x32xf32>
    %291 = vector.extract_strided_slice %283 {offsets = [0, 96], sizes = [16, 32], strides = [1, 1]} : vector<16x128xf32> to vector<16x32xf32>
    %292 = math.tanh %290 : vector<16x32xf32>
    %293 = arith.mulf %291, %292 : vector<16x32xf32>
    %294 = vector.extract_strided_slice %293 {offsets = [0, 0], sizes = [8, 32], strides = [1, 1]} : vector<16x32xf32> to vector<8x32xf32>
    %295 = vector.extract_strided_slice %293 {offsets = [8, 0], sizes = [8, 32], strides = [1, 1]} : vector<16x32xf32> to vector<8x32xf32>
    %c48_80 = arith.constant 48 : index
    %c0_81 = arith.constant 0 : index
    %296 = vector.load %arg16[%c48_80, %c0_81] : memref<64x256xf32, #tpu.memory_space<vmem>>, vector<8x128xf32>
    %c8_82 = arith.constant 8 : index
    %c128_83 = arith.constant 128 : index
    %297 = vector.load %arg16[%c8_82, %c128_83] : memref<64x256xf32, #tpu.memory_space<vmem>>, vector<8x128xf32>
    %298 = tpu.concatenate %296, %297 in 0 : vector<8x128xf32>, vector<8x128xf32> -> vector<16x128xf32>
    %cst_84 = arith.constant dense<0.000000e+00> : vector<16x256xf32>
    %299 = tpu.matmul %293, %149, %cst_84 {dimension_numbers = #tpu.dot_dimension_numbers<[1], [0], [0], [1], [0, 0, 1, 1], [], []>} : vector<16x32xf32>, vector<32x256xf32>, vector<16x256xf32> -> vector<16x256xf32>
    %300 = vector.extract_strided_slice %299 {offsets = [0, 0], sizes = [8, 128], strides = [1, 1]} : vector<16x256xf32> to vector<8x128xf32>
    %301 = vector.extract_strided_slice %299 {offsets = [8, 128], sizes = [8, 128], strides = [1, 1]} : vector<16x256xf32> to vector<8x128xf32>
    %302 = tpu.concatenate %300, %301 in 0 : vector<8x128xf32>, vector<8x128xf32> -> vector<16x128xf32>
    %303 = arith.addf %298, %302 : vector<16x128xf32>
    %304 = arith.negf %303 : vector<16x128xf32>
    %305 = math.exp %304 : vector<16x128xf32>
    %cst_85 = arith.constant 1.000000e+00 : f32
    %306 = vector.broadcast %cst_85 : f32 to vector<16x128xf32>
    %307 = arith.addf %306, %305 : vector<16x128xf32>
    %308 = arith.divf %306, %307 : vector<16x128xf32>
    %309 = math.tanh %303 : vector<16x128xf32>
    %310 = vector.extract_strided_slice %308 {offsets = [0, 32], sizes = [16, 32], strides = [1, 1]} : vector<16x128xf32> to vector<16x32xf32>
    %311 = arith.mulf %310, %290 : vector<16x32xf32>
    %312 = vector.extract_strided_slice %308 {offsets = [0, 0], sizes = [16, 32], strides = [1, 1]} : vector<16x128xf32> to vector<16x32xf32>
    %313 = vector.extract_strided_slice %309 {offsets = [0, 64], sizes = [16, 32], strides = [1, 1]} : vector<16x128xf32> to vector<16x32xf32>
    %314 = arith.mulf %312, %313 : vector<16x32xf32>
    %315 = arith.addf %311, %314 : vector<16x32xf32>
    %316 = vector.extract_strided_slice %308 {offsets = [0, 96], sizes = [16, 32], strides = [1, 1]} : vector<16x128xf32> to vector<16x32xf32>
    %317 = math.tanh %315 : vector<16x32xf32>
    %318 = arith.mulf %316, %317 : vector<16x32xf32>
    %319 = vector.extract_strided_slice %318 {offsets = [0, 0], sizes = [8, 32], strides = [1, 1]} : vector<16x32xf32> to vector<8x32xf32>
    %320 = vector.extract_strided_slice %318 {offsets = [8, 0], sizes = [8, 32], strides = [1, 1]} : vector<16x32xf32> to vector<8x32xf32>
    %c56_86 = arith.constant 56 : index
    %c0_87 = arith.constant 0 : index
    %321 = vector.load %arg16[%c56_86, %c0_87] : memref<64x256xf32, #tpu.memory_space<vmem>>, vector<8x128xf32>
    %c0_88 = arith.constant 0 : index
    %c128_89 = arith.constant 128 : index
    %322 = vector.load %arg16[%c0_88, %c128_89] : memref<64x256xf32, #tpu.memory_space<vmem>>, vector<8x128xf32>
    %323 = tpu.concatenate %321, %322 in 0 : vector<8x128xf32>, vector<8x128xf32> -> vector<16x128xf32>
    %cst_90 = arith.constant dense<0.000000e+00> : vector<16x256xf32>
    %324 = tpu.matmul %318, %149, %cst_90 {dimension_numbers = #tpu.dot_dimension_numbers<[1], [0], [0], [1], [0, 0, 1, 1], [], []>} : vector<16x32xf32>, vector<32x256xf32>, vector<16x256xf32> -> vector<16x256xf32>
    %325 = vector.extract_strided_slice %324 {offsets = [0, 0], sizes = [8, 128], strides = [1, 1]} : vector<16x256xf32> to vector<8x128xf32>
    %326 = vector.extract_strided_slice %324 {offsets = [8, 128], sizes = [8, 128], strides = [1, 1]} : vector<16x256xf32> to vector<8x128xf32>
    %327 = tpu.concatenate %325, %326 in 0 : vector<8x128xf32>, vector<8x128xf32> -> vector<16x128xf32>
    %328 = arith.addf %323, %327 : vector<16x128xf32>
    %329 = arith.negf %328 : vector<16x128xf32>
    %330 = math.exp %329 : vector<16x128xf32>
    %cst_91 = arith.constant 1.000000e+00 : f32
    %331 = vector.broadcast %cst_91 : f32 to vector<16x128xf32>
    %332 = arith.addf %331, %330 : vector<16x128xf32>
    %333 = arith.divf %331, %332 : vector<16x128xf32>
    %334 = math.tanh %328 : vector<16x128xf32>
    %335 = vector.extract_strided_slice %333 {offsets = [0, 32], sizes = [16, 32], strides = [1, 1]} : vector<16x128xf32> to vector<16x32xf32>
    %336 = arith.mulf %335, %315 : vector<16x32xf32>
    %337 = vector.extract_strided_slice %333 {offsets = [0, 0], sizes = [16, 32], strides = [1, 1]} : vector<16x128xf32> to vector<16x32xf32>
    %338 = vector.extract_strided_slice %334 {offsets = [0, 64], sizes = [16, 32], strides = [1, 1]} : vector<16x128xf32> to vector<16x32xf32>
    %339 = arith.mulf %337, %338 : vector<16x32xf32>
    %340 = arith.addf %336, %339 : vector<16x32xf32>
    %341 = vector.extract_strided_slice %333 {offsets = [0, 96], sizes = [16, 32], strides = [1, 1]} : vector<16x128xf32> to vector<16x32xf32>
    %342 = math.tanh %340 : vector<16x32xf32>
    %343 = arith.mulf %341, %342 : vector<16x32xf32>
    %344 = vector.extract_strided_slice %343 {offsets = [0, 0], sizes = [8, 32], strides = [1, 1]} : vector<16x32xf32> to vector<8x32xf32>
    %345 = vector.extract_strided_slice %343 {offsets = [8, 0], sizes = [8, 32], strides = [1, 1]} : vector<16x32xf32> to vector<8x32xf32>
    %346 = tpu.concatenate %169, %194, %219, %244, %269, %294, %319, %344 in 0 : vector<8x32xf32>, vector<8x32xf32>, vector<8x32xf32>, vector<8x32xf32>, vector<8x32xf32>, vector<8x32xf32>, vector<8x32xf32>, vector<8x32xf32> -> vector<64x32xf32>
    %347 = tpu.concatenate %345, %320, %295, %270, %245, %220, %195, %170 in 0 : vector<8x32xf32>, vector<8x32xf32>, vector<8x32xf32>, vector<8x32xf32>, vector<8x32xf32>, vector<8x32xf32>, vector<8x32xf32>, vector<8x32xf32> -> vector<64x32xf32>
    %c0_92 = arith.constant 0 : index
    %c0_93 = arith.constant 0 : index
    %c0_94 = arith.constant 0 : index
    %348 = vector.load %arg7[%c0_92, %c0_93, %c0_94] : memref<2x64x256xf32, #tpu.memory_space<vmem>>, vector<1x64x256xf32>
    %349 = vector.shape_cast %348 : vector<1x64x256xf32> to vector<64x256xf32>
    %350 = vector.extract_strided_slice %349 {offsets = [0, 0], sizes = [32, 256], strides = [1, 1]} : vector<64x256xf32> to vector<32x256xf32>
    %cst_95 = arith.constant dense<0.000000e+00> : vector<64x256xf32>
    %351 = tpu.matmul %346, %350, %cst_95 {dimension_numbers = #tpu.dot_dimension_numbers<[1], [0], [0], [1], [0, 0, 1, 1], [], []>} : vector<64x32xf32>, vector<32x256xf32>, vector<64x256xf32> -> vector<64x256xf32>
    %352 = vector.extract_strided_slice %349 {offsets = [32, 0], sizes = [32, 256], strides = [1, 1]} : vector<64x256xf32> to vector<32x256xf32>
    %cst_96 = arith.constant dense<0.000000e+00> : vector<64x256xf32>
    %353 = tpu.matmul %347, %352, %cst_96 {dimension_numbers = #tpu.dot_dimension_numbers<[1], [0], [0], [1], [0, 0, 1, 1], [], []>} : vector<64x32xf32>, vector<32x256xf32>, vector<64x256xf32> -> vector<64x256xf32>
    %354 = arith.addf %351, %353 : vector<64x256xf32>
    %c1_97 = arith.constant 1 : index
    %c0_98 = arith.constant 0 : index
    %c0_99 = arith.constant 0 : index
    %355 = vector.load %arg9[%c1_97, %c0_98, %c0_99] : memref<3x1x256xf32, #tpu.memory_space<vmem>>, vector<1x1x256xf32>
    %356 = vector.shape_cast %355 : vector<1x1x256xf32> to vector<1x256xf32>
    %357 = vector.broadcast %356 : vector<1x256xf32> to vector<64x256xf32>
    %358 = arith.addf %354, %357 : vector<64x256xf32>
    %c0_100 = arith.constant 0 : index
    %c0_101 = arith.constant 0 : index
    %359 = vector.load %arg16[%c0_100, %c0_101] : memref<64x256xf32, #tpu.memory_space<vmem>>, vector<64x256xf32>
    tpu.vector_store %arg16[%c0_100, %c0_101], %358 {strides = array<i32>} : memref<64x256xf32, #tpu.memory_space<vmem>>, vector<64x256xf32>,
    %c1_102 = arith.constant 1 : index
    %c0_103 = arith.constant 0 : index
    %c0_104 = arith.constant 0 : index
    %360 = vector.load %arg8[%c1_102, %c0_103, %c0_104] : memref<3x32x256xf32, #tpu.memory_space<vmem>>, vector<1x32x256xf32>
    %361 = vector.shape_cast %360 : vector<1x32x256xf32> to vector<32x256xf32>
    %cst_105 = arith.constant 0.000000e+00 : f32
    %362 = vector.broadcast %cst_105 : f32 to vector<16x32xf32>
    %c0_106 = arith.constant 0 : index
    %c0_107 = arith.constant 0 : index
    %363 = vector.load %arg16[%c0_106, %c0_107] : memref<64x256xf32, #tpu.memory_space<vmem>>, vector<8x128xf32>
    %c56_108 = arith.constant 56 : index
    %c128_109 = arith.constant 128 : index
    %364 = vector.load %arg16[%c56_108, %c128_109] : memref<64x256xf32, #tpu.memory_space<vmem>>, vector<8x128xf32>
    %365 = tpu.concatenate %363, %364 in 0 : vector<8x128xf32>, vector<8x128xf32> -> vector<16x128xf32>
    %366 = arith.negf %365 : vector<16x128xf32>
    %367 = math.exp %366 : vector<16x128xf32>
    %cst_110 = arith.constant 1.000000e+00 : f32
    %368 = vector.broadcast %cst_110 : f32 to vector<16x128xf32>
    %369 = arith.addf %368, %367 : vector<16x128xf32>
    %370 = arith.divf %368, %369 : vector<16x128xf32>
    %371 = math.tanh %365 : vector<16x128xf32>
    %372 = vector.extract_strided_slice %370 {offsets = [0, 32], sizes = [16, 32], strides = [1, 1]} : vector<16x128xf32> to vector<16x32xf32>
    %373 = arith.mulf %372, %362 : vector<16x32xf32>
    %374 = vector.extract_strided_slice %370 {offsets = [0, 0], sizes = [16, 32], strides = [1, 1]} : vector<16x128xf32> to vector<16x32xf32>
    %375 = vector.extract_strided_slice %371 {offsets = [0, 64], sizes = [16, 32], strides = [1, 1]} : vector<16x128xf32> to vector<16x32xf32>
    %376 = arith.mulf %374, %375 : vector<16x32xf32>
    %377 = arith.addf %373, %376 : vector<16x32xf32>
    %378 = vector.extract_strided_slice %370 {offsets = [0, 96], sizes = [16, 32], strides = [1, 1]} : vector<16x128xf32> to vector<16x32xf32>
    %379 = math.tanh %377 : vector<16x32xf32>
    %380 = arith.mulf %378, %379 : vector<16x32xf32>
    %381 = vector.extract_strided_slice %380 {offsets = [0, 0], sizes = [8, 32], strides = [1, 1]} : vector<16x32xf32> to vector<8x32xf32>
    %382 = vector.extract_strided_slice %380 {offsets = [8, 0], sizes = [8, 32], strides = [1, 1]} : vector<16x32xf32> to vector<8x32xf32>
    %c8_111 = arith.constant 8 : index
    %c0_112 = arith.constant 0 : index
    %383 = vector.load %arg16[%c8_111, %c0_112] : memref<64x256xf32, #tpu.memory_space<vmem>>, vector<8x128xf32>
    %c48_113 = arith.constant 48 : index
    %c128_114 = arith.constant 128 : index
    %384 = vector.load %arg16[%c48_113, %c128_114] : memref<64x256xf32, #tpu.memory_space<vmem>>, vector<8x128xf32>
    %385 = tpu.concatenate %383, %384 in 0 : vector<8x128xf32>, vector<8x128xf32> -> vector<16x128xf32>
    %cst_115 = arith.constant dense<0.000000e+00> : vector<16x256xf32>
    %386 = tpu.matmul %380, %361, %cst_115 {dimension_numbers = #tpu.dot_dimension_numbers<[1], [0], [0], [1], [0, 0, 1, 1], [], []>} : vector<16x32xf32>, vector<32x256xf32>, vector<16x256xf32> -> vector<16x256xf32>
    %387 = vector.extract_strided_slice %386 {offsets = [0, 0], sizes = [8, 128], strides = [1, 1]} : vector<16x256xf32> to vector<8x128xf32>
    %388 = vector.extract_strided_slice %386 {offsets = [8, 128], sizes = [8, 128], strides = [1, 1]} : vector<16x256xf32> to vector<8x128xf32>
    %389 = tpu.concatenate %387, %388 in 0 : vector<8x128xf32>, vector<8x128xf32> -> vector<16x128xf32>
    %390 = arith.addf %385, %389 : vector<16x128xf32>
    %391 = arith.negf %390 : vector<16x128xf32>
    %392 = math.exp %391 : vector<16x128xf32>
    %cst_116 = arith.constant 1.000000e+00 : f32
    %393 = vector.broadcast %cst_116 : f32 to vector<16x128xf32>
    %394 = arith.addf %393, %392 : vector<16x128xf32>
    %395 = arith.divf %393, %394 : vector<16x128xf32>
    %396 = math.tanh %390 : vector<16x128xf32>
    %397 = vector.extract_strided_slice %395 {offsets = [0, 32], sizes = [16, 32], strides = [1, 1]} : vector<16x128xf32> to vector<16x32xf32>
    %398 = arith.mulf %397, %377 : vector<16x32xf32>
    %399 = vector.extract_strided_slice %395 {offsets = [0, 0], sizes = [16, 32], strides = [1, 1]} : vector<16x128xf32> to vector<16x32xf32>
    %400 = vector.extract_strided_slice %396 {offsets = [0, 64], sizes = [16, 32], strides = [1, 1]} : vector<16x128xf32> to vector<16x32xf32>
    %401 = arith.mulf %399, %400 : vector<16x32xf32>
    %402 = arith.addf %398, %401 : vector<16x32xf32>
    %403 = vector.extract_strided_slice %395 {offsets = [0, 96], sizes = [16, 32], strides = [1, 1]} : vector<16x128xf32> to vector<16x32xf32>
    %404 = math.tanh %402 : vector<16x32xf32>
    %405 = arith.mulf %403, %404 : vector<16x32xf32>
    %406 = vector.extract_strided_slice %405 {offsets = [0, 0], sizes = [8, 32], strides = [1, 1]} : vector<16x32xf32> to vector<8x32xf32>
    %407 = vector.extract_strided_slice %405 {offsets = [8, 0], sizes = [8, 32], strides = [1, 1]} : vector<16x32xf32> to vector<8x32xf32>
    %c16_117 = arith.constant 16 : index
    %c0_118 = arith.constant 0 : index
    %408 = vector.load %arg16[%c16_117, %c0_118] : memref<64x256xf32, #tpu.memory_space<vmem>>, vector<8x128xf32>
    %c40_119 = arith.constant 40 : index
    %c128_120 = arith.constant 128 : index
    %409 = vector.load %arg16[%c40_119, %c128_120] : memref<64x256xf32, #tpu.memory_space<vmem>>, vector<8x128xf32>
    %410 = tpu.concatenate %408, %409 in 0 : vector<8x128xf32>, vector<8x128xf32> -> vector<16x128xf32>
    %cst_121 = arith.constant dense<0.000000e+00> : vector<16x256xf32>
    %411 = tpu.matmul %405, %361, %cst_121 {dimension_numbers = #tpu.dot_dimension_numbers<[1], [0], [0], [1], [0, 0, 1, 1], [], []>} : vector<16x32xf32>, vector<32x256xf32>, vector<16x256xf32> -> vector<16x256xf32>
    %412 = vector.extract_strided_slice %411 {offsets = [0, 0], sizes = [8, 128], strides = [1, 1]} : vector<16x256xf32> to vector<8x128xf32>
    %413 = vector.extract_strided_slice %411 {offsets = [8, 128], sizes = [8, 128], strides = [1, 1]} : vector<16x256xf32> to vector<8x128xf32>
    %414 = tpu.concatenate %412, %413 in 0 : vector<8x128xf32>, vector<8x128xf32> -> vector<16x128xf32>
    %415 = arith.addf %410, %414 : vector<16x128xf32>
    %416 = arith.negf %415 : vector<16x128xf32>
    %417 = math.exp %416 : vector<16x128xf32>
    %cst_122 = arith.constant 1.000000e+00 : f32
    %418 = vector.broadcast %cst_122 : f32 to vector<16x128xf32>
    %419 = arith.addf %418, %417 : vector<16x128xf32>
    %420 = arith.divf %418, %419 : vector<16x128xf32>
    %421 = math.tanh %415 : vector<16x128xf32>
    %422 = vector.extract_strided_slice %420 {offsets = [0, 32], sizes = [16, 32], strides = [1, 1]} : vector<16x128xf32> to vector<16x32xf32>
    %423 = arith.mulf %422, %402 : vector<16x32xf32>
    %424 = vector.extract_strided_slice %420 {offsets = [0, 0], sizes = [16, 32], strides = [1, 1]} : vector<16x128xf32> to vector<16x32xf32>
    %425 = vector.extract_strided_slice %421 {offsets = [0, 64], sizes = [16, 32], strides = [1, 1]} : vector<16x128xf32> to vector<16x32xf32>
    %426 = arith.mulf %424, %425 : vector<16x32xf32>
    %427 = arith.addf %423, %426 : vector<16x32xf32>
    %428 = vector.extract_strided_slice %420 {offsets = [0, 96], sizes = [16, 32], strides = [1, 1]} : vector<16x128xf32> to vector<16x32xf32>
    %429 = math.tanh %427 : vector<16x32xf32>
    %430 = arith.mulf %428, %429 : vector<16x32xf32>
    %431 = vector.extract_strided_slice %430 {offsets = [0, 0], sizes = [8, 32], strides = [1, 1]} : vector<16x32xf32> to vector<8x32xf32>
    %432 = vector.extract_strided_slice %430 {offsets = [8, 0], sizes = [8, 32], strides = [1, 1]} : vector<16x32xf32> to vector<8x32xf32>
    %c24_123 = arith.constant 24 : index
    %c0_124 = arith.constant 0 : index
    %433 = vector.load %arg16[%c24_123, %c0_124] : memref<64x256xf32, #tpu.memory_space<vmem>>, vector<8x128xf32>
    %c32_125 = arith.constant 32 : index
    %c128_126 = arith.constant 128 : index
    %434 = vector.load %arg16[%c32_125, %c128_126] : memref<64x256xf32, #tpu.memory_space<vmem>>, vector<8x128xf32>
    %435 = tpu.concatenate %433, %434 in 0 : vector<8x128xf32>, vector<8x128xf32> -> vector<16x128xf32>
    %cst_127 = arith.constant dense<0.000000e+00> : vector<16x256xf32>
    %436 = tpu.matmul %430, %361, %cst_127 {dimension_numbers = #tpu.dot_dimension_numbers<[1], [0], [0], [1], [0, 0, 1, 1], [], []>} : vector<16x32xf32>, vector<32x256xf32>, vector<16x256xf32> -> vector<16x256xf32>
    %437 = vector.extract_strided_slice %436 {offsets = [0, 0], sizes = [8, 128], strides = [1, 1]} : vector<16x256xf32> to vector<8x128xf32>
    %438 = vector.extract_strided_slice %436 {offsets = [8, 128], sizes = [8, 128], strides = [1, 1]} : vector<16x256xf32> to vector<8x128xf32>
    %439 = tpu.concatenate %437, %438 in 0 : vector<8x128xf32>, vector<8x128xf32> -> vector<16x128xf32>
    %440 = arith.addf %435, %439 : vector<16x128xf32>
    %441 = arith.negf %440 : vector<16x128xf32>
    %442 = math.exp %441 : vector<16x128xf32>
    %cst_128 = arith.constant 1.000000e+00 : f32
    %443 = vector.broadcast %cst_128 : f32 to vector<16x128xf32>
    %444 = arith.addf %443, %442 : vector<16x128xf32>
    %445 = arith.divf %443, %444 : vector<16x128xf32>
    %446 = math.tanh %440 : vector<16x128xf32>
    %447 = vector.extract_strided_slice %445 {offsets = [0, 32], sizes = [16, 32], strides = [1, 1]} : vector<16x128xf32> to vector<16x32xf32>
    %448 = arith.mulf %447, %427 : vector<16x32xf32>
    %449 = vector.extract_strided_slice %445 {offsets = [0, 0], sizes = [16, 32], strides = [1, 1]} : vector<16x128xf32> to vector<16x32xf32>
    %450 = vector.extract_strided_slice %446 {offsets = [0, 64], sizes = [16, 32], strides = [1, 1]} : vector<16x128xf32> to vector<16x32xf32>
    %451 = arith.mulf %449, %450 : vector<16x32xf32>
    %452 = arith.addf %448, %451 : vector<16x32xf32>
    %453 = vector.extract_strided_slice %445 {offsets = [0, 96], sizes = [16, 32], strides = [1, 1]} : vector<16x128xf32> to vector<16x32xf32>
    %454 = math.tanh %452 : vector<16x32xf32>
    %455 = arith.mulf %453, %454 : vector<16x32xf32>
    %456 = vector.extract_strided_slice %455 {offsets = [0, 0], sizes = [8, 32], strides = [1, 1]} : vector<16x32xf32> to vector<8x32xf32>
    %457 = vector.extract_strided_slice %455 {offsets = [8, 0], sizes = [8, 32], strides = [1, 1]} : vector<16x32xf32> to vector<8x32xf32>
    %c32_129 = arith.constant 32 : index
    %c0_130 = arith.constant 0 : index
    %458 = vector.load %arg16[%c32_129, %c0_130] : memref<64x256xf32, #tpu.memory_space<vmem>>, vector<8x128xf32>
    %c24_131 = arith.constant 24 : index
    %c128_132 = arith.constant 128 : index
    %459 = vector.load %arg16[%c24_131, %c128_132] : memref<64x256xf32, #tpu.memory_space<vmem>>, vector<8x128xf32>
    %460 = tpu.concatenate %458, %459 in 0 : vector<8x128xf32>, vector<8x128xf32> -> vector<16x128xf32>
    %cst_133 = arith.constant dense<0.000000e+00> : vector<16x256xf32>
    %461 = tpu.matmul %455, %361, %cst_133 {dimension_numbers = #tpu.dot_dimension_numbers<[1], [0], [0], [1], [0, 0, 1, 1], [], []>} : vector<16x32xf32>, vector<32x256xf32>, vector<16x256xf32> -> vector<16x256xf32>
    %462 = vector.extract_strided_slice %461 {offsets = [0, 0], sizes = [8, 128], strides = [1, 1]} : vector<16x256xf32> to vector<8x128xf32>
    %463 = vector.extract_strided_slice %461 {offsets = [8, 128], sizes = [8, 128], strides = [1, 1]} : vector<16x256xf32> to vector<8x128xf32>
    %464 = tpu.concatenate %462, %463 in 0 : vector<8x128xf32>, vector<8x128xf32> -> vector<16x128xf32>
    %465 = arith.addf %460, %464 : vector<16x128xf32>
    %466 = arith.negf %465 : vector<16x128xf32>
    %467 = math.exp %466 : vector<16x128xf32>
    %cst_134 = arith.constant 1.000000e+00 : f32
    %468 = vector.broadcast %cst_134 : f32 to vector<16x128xf32>
    %469 = arith.addf %468, %467 : vector<16x128xf32>
    %470 = arith.divf %468, %469 : vector<16x128xf32>
    %471 = math.tanh %465 : vector<16x128xf32>
    %472 = vector.extract_strided_slice %470 {offsets = [0, 32], sizes = [16, 32], strides = [1, 1]} : vector<16x128xf32> to vector<16x32xf32>
    %473 = arith.mulf %472, %452 : vector<16x32xf32>
    %474 = vector.extract_strided_slice %470 {offsets = [0, 0], sizes = [16, 32], strides = [1, 1]} : vector<16x128xf32> to vector<16x32xf32>
    %475 = vector.extract_strided_slice %471 {offsets = [0, 64], sizes = [16, 32], strides = [1, 1]} : vector<16x128xf32> to vector<16x32xf32>
    %476 = arith.mulf %474, %475 : vector<16x32xf32>
    %477 = arith.addf %473, %476 : vector<16x32xf32>
    %478 = vector.extract_strided_slice %470 {offsets = [0, 96], sizes = [16, 32], strides = [1, 1]} : vector<16x128xf32> to vector<16x32xf32>
    %479 = math.tanh %477 : vector<16x32xf32>
    %480 = arith.mulf %478, %479 : vector<16x32xf32>
    %481 = vector.extract_strided_slice %480 {offsets = [0, 0], sizes = [8, 32], strides = [1, 1]} : vector<16x32xf32> to vector<8x32xf32>
    %482 = vector.extract_strided_slice %480 {offsets = [8, 0], sizes = [8, 32], strides = [1, 1]} : vector<16x32xf32> to vector<8x32xf32>
    %c40_135 = arith.constant 40 : index
    %c0_136 = arith.constant 0 : index
    %483 = vector.load %arg16[%c40_135, %c0_136] : memref<64x256xf32, #tpu.memory_space<vmem>>, vector<8x128xf32>
    %c16_137 = arith.constant 16 : index
    %c128_138 = arith.constant 128 : index
    %484 = vector.load %arg16[%c16_137, %c128_138] : memref<64x256xf32, #tpu.memory_space<vmem>>, vector<8x128xf32>
    %485 = tpu.concatenate %483, %484 in 0 : vector<8x128xf32>, vector<8x128xf32> -> vector<16x128xf32>
    %cst_139 = arith.constant dense<0.000000e+00> : vector<16x256xf32>
    %486 = tpu.matmul %480, %361, %cst_139 {dimension_numbers = #tpu.dot_dimension_numbers<[1], [0], [0], [1], [0, 0, 1, 1], [], []>} : vector<16x32xf32>, vector<32x256xf32>, vector<16x256xf32> -> vector<16x256xf32>
    %487 = vector.extract_strided_slice %486 {offsets = [0, 0], sizes = [8, 128], strides = [1, 1]} : vector<16x256xf32> to vector<8x128xf32>
    %488 = vector.extract_strided_slice %486 {offsets = [8, 128], sizes = [8, 128], strides = [1, 1]} : vector<16x256xf32> to vector<8x128xf32>
    %489 = tpu.concatenate %487, %488 in 0 : vector<8x128xf32>, vector<8x128xf32> -> vector<16x128xf32>
    %490 = arith.addf %485, %489 : vector<16x128xf32>
    %491 = arith.negf %490 : vector<16x128xf32>
    %492 = math.exp %491 : vector<16x128xf32>
    %cst_140 = arith.constant 1.000000e+00 : f32
    %493 = vector.broadcast %cst_140 : f32 to vector<16x128xf32>
    %494 = arith.addf %493, %492 : vector<16x128xf32>
    %495 = arith.divf %493, %494 : vector<16x128xf32>
    %496 = math.tanh %490 : vector<16x128xf32>
    %497 = vector.extract_strided_slice %495 {offsets = [0, 32], sizes = [16, 32], strides = [1, 1]} : vector<16x128xf32> to vector<16x32xf32>
    %498 = arith.mulf %497, %477 : vector<16x32xf32>
    %499 = vector.extract_strided_slice %495 {offsets = [0, 0], sizes = [16, 32], strides = [1, 1]} : vector<16x128xf32> to vector<16x32xf32>
    %500 = vector.extract_strided_slice %496 {offsets = [0, 64], sizes = [16, 32], strides = [1, 1]} : vector<16x128xf32> to vector<16x32xf32>
    %501 = arith.mulf %499, %500 : vector<16x32xf32>
    %502 = arith.addf %498, %501 : vector<16x32xf32>
    %503 = vector.extract_strided_slice %495 {offsets = [0, 96], sizes = [16, 32], strides = [1, 1]} : vector<16x128xf32> to vector<16x32xf32>
    %504 = math.tanh %502 : vector<16x32xf32>
    %505 = arith.mulf %503, %504 : vector<16x32xf32>
    %506 = vector.extract_strided_slice %505 {offsets = [0, 0], sizes = [8, 32], strides = [1, 1]} : vector<16x32xf32> to vector<8x32xf32>
    %507 = vector.extract_strided_slice %505 {offsets = [8, 0], sizes = [8, 32], strides = [1, 1]} : vector<16x32xf32> to vector<8x32xf32>
    %c48_141 = arith.constant 48 : index
    %c0_142 = arith.constant 0 : index
    %508 = vector.load %arg16[%c48_141, %c0_142] : memref<64x256xf32, #tpu.memory_space<vmem>>, vector<8x128xf32>
    %c8_143 = arith.constant 8 : index
    %c128_144 = arith.constant 128 : index
    %509 = vector.load %arg16[%c8_143, %c128_144] : memref<64x256xf32, #tpu.memory_space<vmem>>, vector<8x128xf32>
    %510 = tpu.concatenate %508, %509 in 0 : vector<8x128xf32>, vector<8x128xf32> -> vector<16x128xf32>
    %cst_145 = arith.constant dense<0.000000e+00> : vector<16x256xf32>
    %511 = tpu.matmul %505, %361, %cst_145 {dimension_numbers = #tpu.dot_dimension_numbers<[1], [0], [0], [1], [0, 0, 1, 1], [], []>} : vector<16x32xf32>, vector<32x256xf32>, vector<16x256xf32> -> vector<16x256xf32>
    %512 = vector.extract_strided_slice %511 {offsets = [0, 0], sizes = [8, 128], strides = [1, 1]} : vector<16x256xf32> to vector<8x128xf32>
    %513 = vector.extract_strided_slice %511 {offsets = [8, 128], sizes = [8, 128], strides = [1, 1]} : vector<16x256xf32> to vector<8x128xf32>
    %514 = tpu.concatenate %512, %513 in 0 : vector<8x128xf32>, vector<8x128xf32> -> vector<16x128xf32>
    %515 = arith.addf %510, %514 : vector<16x128xf32>
    %516 = arith.negf %515 : vector<16x128xf32>
    %517 = math.exp %516 : vector<16x128xf32>
    %cst_146 = arith.constant 1.000000e+00 : f32
    %518 = vector.broadcast %cst_146 : f32 to vector<16x128xf32>
    %519 = arith.addf %518, %517 : vector<16x128xf32>
    %520 = arith.divf %518, %519 : vector<16x128xf32>
    %521 = math.tanh %515 : vector<16x128xf32>
    %522 = vector.extract_strided_slice %520 {offsets = [0, 32], sizes = [16, 32], strides = [1, 1]} : vector<16x128xf32> to vector<16x32xf32>
    %523 = arith.mulf %522, %502 : vector<16x32xf32>
    %524 = vector.extract_strided_slice %520 {offsets = [0, 0], sizes = [16, 32], strides = [1, 1]} : vector<16x128xf32> to vector<16x32xf32>
    %525 = vector.extract_strided_slice %521 {offsets = [0, 64], sizes = [16, 32], strides = [1, 1]} : vector<16x128xf32> to vector<16x32xf32>
    %526 = arith.mulf %524, %525 : vector<16x32xf32>
    %527 = arith.addf %523, %526 : vector<16x32xf32>
    %528 = vector.extract_strided_slice %520 {offsets = [0, 96], sizes = [16, 32], strides = [1, 1]} : vector<16x128xf32> to vector<16x32xf32>
    %529 = math.tanh %527 : vector<16x32xf32>
    %530 = arith.mulf %528, %529 : vector<16x32xf32>
    %531 = vector.extract_strided_slice %530 {offsets = [0, 0], sizes = [8, 32], strides = [1, 1]} : vector<16x32xf32> to vector<8x32xf32>
    %532 = vector.extract_strided_slice %530 {offsets = [8, 0], sizes = [8, 32], strides = [1, 1]} : vector<16x32xf32> to vector<8x32xf32>
    %c56_147 = arith.constant 56 : index
    %c0_148 = arith.constant 0 : index
    %533 = vector.load %arg16[%c56_147, %c0_148] : memref<64x256xf32, #tpu.memory_space<vmem>>, vector<8x128xf32>
    %c0_149 = arith.constant 0 : index
    %c128_150 = arith.constant 128 : index
    %534 = vector.load %arg16[%c0_149, %c128_150] : memref<64x256xf32, #tpu.memory_space<vmem>>, vector<8x128xf32>
    %535 = tpu.concatenate %533, %534 in 0 : vector<8x128xf32>, vector<8x128xf32> -> vector<16x128xf32>
    %cst_151 = arith.constant dense<0.000000e+00> : vector<16x256xf32>
    %536 = tpu.matmul %530, %361, %cst_151 {dimension_numbers = #tpu.dot_dimension_numbers<[1], [0], [0], [1], [0, 0, 1, 1], [], []>} : vector<16x32xf32>, vector<32x256xf32>, vector<16x256xf32> -> vector<16x256xf32>
    %537 = vector.extract_strided_slice %536 {offsets = [0, 0], sizes = [8, 128], strides = [1, 1]} : vector<16x256xf32> to vector<8x128xf32>
    %538 = vector.extract_strided_slice %536 {offsets = [8, 128], sizes = [8, 128], strides = [1, 1]} : vector<16x256xf32> to vector<8x128xf32>
    %539 = tpu.concatenate %537, %538 in 0 : vector<8x128xf32>, vector<8x128xf32> -> vector<16x128xf32>
    %540 = arith.addf %535, %539 : vector<16x128xf32>
    %541 = arith.negf %540 : vector<16x128xf32>
    %542 = math.exp %541 : vector<16x128xf32>
    %cst_152 = arith.constant 1.000000e+00 : f32
    %543 = vector.broadcast %cst_152 : f32 to vector<16x128xf32>
    %544 = arith.addf %543, %542 : vector<16x128xf32>
    %545 = arith.divf %543, %544 : vector<16x128xf32>
    %546 = math.tanh %540 : vector<16x128xf32>
    %547 = vector.extract_strided_slice %545 {offsets = [0, 32], sizes = [16, 32], strides = [1, 1]} : vector<16x128xf32> to vector<16x32xf32>
    %548 = arith.mulf %547, %527 : vector<16x32xf32>
    %549 = vector.extract_strided_slice %545 {offsets = [0, 0], sizes = [16, 32], strides = [1, 1]} : vector<16x128xf32> to vector<16x32xf32>
    %550 = vector.extract_strided_slice %546 {offsets = [0, 64], sizes = [16, 32], strides = [1, 1]} : vector<16x128xf32> to vector<16x32xf32>
    %551 = arith.mulf %549, %550 : vector<16x32xf32>
    %552 = arith.addf %548, %551 : vector<16x32xf32>
    %553 = vector.extract_strided_slice %545 {offsets = [0, 96], sizes = [16, 32], strides = [1, 1]} : vector<16x128xf32> to vector<16x32xf32>
    %554 = math.tanh %552 : vector<16x32xf32>
    %555 = arith.mulf %553, %554 : vector<16x32xf32>
    %556 = vector.extract_strided_slice %555 {offsets = [0, 0], sizes = [8, 32], strides = [1, 1]} : vector<16x32xf32> to vector<8x32xf32>
    %557 = vector.extract_strided_slice %555 {offsets = [8, 0], sizes = [8, 32], strides = [1, 1]} : vector<16x32xf32> to vector<8x32xf32>
    %558 = tpu.concatenate %381, %406, %431, %456, %481, %506, %531, %556 in 0 : vector<8x32xf32>, vector<8x32xf32>, vector<8x32xf32>, vector<8x32xf32>, vector<8x32xf32>, vector<8x32xf32>, vector<8x32xf32>, vector<8x32xf32> -> vector<64x32xf32>
    %559 = tpu.concatenate %557, %532, %507, %482, %457, %432, %407, %382 in 0 : vector<8x32xf32>, vector<8x32xf32>, vector<8x32xf32>, vector<8x32xf32>, vector<8x32xf32>, vector<8x32xf32>, vector<8x32xf32>, vector<8x32xf32> -> vector<64x32xf32>
    %c1_153 = arith.constant 1 : index
    %c0_154 = arith.constant 0 : index
    %c0_155 = arith.constant 0 : index
    %560 = vector.load %arg7[%c1_153, %c0_154, %c0_155] : memref<2x64x256xf32, #tpu.memory_space<vmem>>, vector<1x64x256xf32>
    %561 = vector.shape_cast %560 : vector<1x64x256xf32> to vector<64x256xf32>
    %562 = vector.extract_strided_slice %561 {offsets = [0, 0], sizes = [32, 256], strides = [1, 1]} : vector<64x256xf32> to vector<32x256xf32>
    %cst_156 = arith.constant dense<0.000000e+00> : vector<64x256xf32>
    %563 = tpu.matmul %558, %562, %cst_156 {dimension_numbers = #tpu.dot_dimension_numbers<[1], [0], [0], [1], [0, 0, 1, 1], [], []>} : vector<64x32xf32>, vector<32x256xf32>, vector<64x256xf32> -> vector<64x256xf32>
    %564 = vector.extract_strided_slice %561 {offsets = [32, 0], sizes = [32, 256], strides = [1, 1]} : vector<64x256xf32> to vector<32x256xf32>
    %cst_157 = arith.constant dense<0.000000e+00> : vector<64x256xf32>
    %565 = tpu.matmul %559, %564, %cst_157 {dimension_numbers = #tpu.dot_dimension_numbers<[1], [0], [0], [1], [0, 0, 1, 1], [], []>} : vector<64x32xf32>, vector<32x256xf32>, vector<64x256xf32> -> vector<64x256xf32>
    %566 = arith.addf %563, %565 : vector<64x256xf32>
    %c2_158 = arith.constant 2 : index
    %c0_159 = arith.constant 0 : index
    %c0_160 = arith.constant 0 : index
    %567 = vector.load %arg9[%c2_158, %c0_159, %c0_160] : memref<3x1x256xf32, #tpu.memory_space<vmem>>, vector<1x1x256xf32>
    %568 = vector.shape_cast %567 : vector<1x1x256xf32> to vector<1x256xf32>
    %569 = vector.broadcast %568 : vector<1x256xf32> to vector<64x256xf32>
    %570 = arith.addf %566, %569 : vector<64x256xf32>
    %c0_161 = arith.constant 0 : index
    %c0_162 = arith.constant 0 : index
    %571 = vector.load %arg16[%c0_161, %c0_162] : memref<64x256xf32, #tpu.memory_space<vmem>>, vector<64x256xf32>
    tpu.vector_store %arg16[%c0_161, %c0_162], %570 {strides = array<i32>} : memref<64x256xf32, #tpu.memory_space<vmem>>, vector<64x256xf32>,
    %c2_163 = arith.constant 2 : index
    %c0_164 = arith.constant 0 : index
    %c0_165 = arith.constant 0 : index
    %572 = vector.load %arg8[%c2_163, %c0_164, %c0_165] : memref<3x32x256xf32, #tpu.memory_space<vmem>>, vector<1x32x256xf32>
    %573 = vector.shape_cast %572 : vector<1x32x256xf32> to vector<32x256xf32>
    %cst_166 = arith.constant 0.000000e+00 : f32
    %574 = vector.broadcast %cst_166 : f32 to vector<16x32xf32>
    %c0_167 = arith.constant 0 : index
    %c0_168 = arith.constant 0 : index
    %575 = vector.load %arg16[%c0_167, %c0_168] : memref<64x256xf32, #tpu.memory_space<vmem>>, vector<8x128xf32>
    %c56_169 = arith.constant 56 : index
    %c128_170 = arith.constant 128 : index
    %576 = vector.load %arg16[%c56_169, %c128_170] : memref<64x256xf32, #tpu.memory_space<vmem>>, vector<8x128xf32>
    %577 = tpu.concatenate %575, %576 in 0 : vector<8x128xf32>, vector<8x128xf32> -> vector<16x128xf32>
    %578 = arith.negf %577 : vector<16x128xf32>
    %579 = math.exp %578 : vector<16x128xf32>
    %cst_171 = arith.constant 1.000000e+00 : f32
    %580 = vector.broadcast %cst_171 : f32 to vector<16x128xf32>
    %581 = arith.addf %580, %579 : vector<16x128xf32>
    %582 = arith.divf %580, %581 : vector<16x128xf32>
    %583 = math.tanh %577 : vector<16x128xf32>
    %584 = vector.extract_strided_slice %582 {offsets = [0, 32], sizes = [16, 32], strides = [1, 1]} : vector<16x128xf32> to vector<16x32xf32>
    %585 = arith.mulf %584, %574 : vector<16x32xf32>
    %586 = vector.extract_strided_slice %582 {offsets = [0, 0], sizes = [16, 32], strides = [1, 1]} : vector<16x128xf32> to vector<16x32xf32>
    %587 = vector.extract_strided_slice %583 {offsets = [0, 64], sizes = [16, 32], strides = [1, 1]} : vector<16x128xf32> to vector<16x32xf32>
    %588 = arith.mulf %586, %587 : vector<16x32xf32>
    %589 = arith.addf %585, %588 : vector<16x32xf32>
    %590 = vector.extract_strided_slice %582 {offsets = [0, 96], sizes = [16, 32], strides = [1, 1]} : vector<16x128xf32> to vector<16x32xf32>
    %591 = math.tanh %589 : vector<16x32xf32>
    %592 = arith.mulf %590, %591 : vector<16x32xf32>
    %593 = vector.extract_strided_slice %592 {offsets = [0, 0], sizes = [8, 32], strides = [1, 1]} : vector<16x32xf32> to vector<8x32xf32>
    %594 = vector.extract_strided_slice %592 {offsets = [8, 0], sizes = [8, 32], strides = [1, 1]} : vector<16x32xf32> to vector<8x32xf32>
    %c8_172 = arith.constant 8 : index
    %c0_173 = arith.constant 0 : index
    %595 = vector.load %arg16[%c8_172, %c0_173] : memref<64x256xf32, #tpu.memory_space<vmem>>, vector<8x128xf32>
    %c48_174 = arith.constant 48 : index
    %c128_175 = arith.constant 128 : index
    %596 = vector.load %arg16[%c48_174, %c128_175] : memref<64x256xf32, #tpu.memory_space<vmem>>, vector<8x128xf32>
    %597 = tpu.concatenate %595, %596 in 0 : vector<8x128xf32>, vector<8x128xf32> -> vector<16x128xf32>
    %cst_176 = arith.constant dense<0.000000e+00> : vector<16x256xf32>
    %598 = tpu.matmul %592, %573, %cst_176 {dimension_numbers = #tpu.dot_dimension_numbers<[1], [0], [0], [1], [0, 0, 1, 1], [], []>} : vector<16x32xf32>, vector<32x256xf32>, vector<16x256xf32> -> vector<16x256xf32>
    %599 = vector.extract_strided_slice %598 {offsets = [0, 0], sizes = [8, 128], strides = [1, 1]} : vector<16x256xf32> to vector<8x128xf32>
    %600 = vector.extract_strided_slice %598 {offsets = [8, 128], sizes = [8, 128], strides = [1, 1]} : vector<16x256xf32> to vector<8x128xf32>
    %601 = tpu.concatenate %599, %600 in 0 : vector<8x128xf32>, vector<8x128xf32> -> vector<16x128xf32>
    %602 = arith.addf %597, %601 : vector<16x128xf32>
    %603 = arith.negf %602 : vector<16x128xf32>
    %604 = math.exp %603 : vector<16x128xf32>
    %cst_177 = arith.constant 1.000000e+00 : f32
    %605 = vector.broadcast %cst_177 : f32 to vector<16x128xf32>
    %606 = arith.addf %605, %604 : vector<16x128xf32>
    %607 = arith.divf %605, %606 : vector<16x128xf32>
    %608 = math.tanh %602 : vector<16x128xf32>
    %609 = vector.extract_strided_slice %607 {offsets = [0, 32], sizes = [16, 32], strides = [1, 1]} : vector<16x128xf32> to vector<16x32xf32>
    %610 = arith.mulf %609, %589 : vector<16x32xf32>
    %611 = vector.extract_strided_slice %607 {offsets = [0, 0], sizes = [16, 32], strides = [1, 1]} : vector<16x128xf32> to vector<16x32xf32>
    %612 = vector.extract_strided_slice %608 {offsets = [0, 64], sizes = [16, 32], strides = [1, 1]} : vector<16x128xf32> to vector<16x32xf32>
    %613 = arith.mulf %611, %612 : vector<16x32xf32>
    %614 = arith.addf %610, %613 : vector<16x32xf32>
    %615 = vector.extract_strided_slice %607 {offsets = [0, 96], sizes = [16, 32], strides = [1, 1]} : vector<16x128xf32> to vector<16x32xf32>
    %616 = math.tanh %614 : vector<16x32xf32>
    %617 = arith.mulf %615, %616 : vector<16x32xf32>
    %618 = vector.extract_strided_slice %617 {offsets = [0, 0], sizes = [8, 32], strides = [1, 1]} : vector<16x32xf32> to vector<8x32xf32>
    %619 = vector.extract_strided_slice %617 {offsets = [8, 0], sizes = [8, 32], strides = [1, 1]} : vector<16x32xf32> to vector<8x32xf32>
    %c16_178 = arith.constant 16 : index
    %c0_179 = arith.constant 0 : index
    %620 = vector.load %arg16[%c16_178, %c0_179] : memref<64x256xf32, #tpu.memory_space<vmem>>, vector<8x128xf32>
    %c40_180 = arith.constant 40 : index
    %c128_181 = arith.constant 128 : index
    %621 = vector.load %arg16[%c40_180, %c128_181] : memref<64x256xf32, #tpu.memory_space<vmem>>, vector<8x128xf32>
    %622 = tpu.concatenate %620, %621 in 0 : vector<8x128xf32>, vector<8x128xf32> -> vector<16x128xf32>
    %cst_182 = arith.constant dense<0.000000e+00> : vector<16x256xf32>
    %623 = tpu.matmul %617, %573, %cst_182 {dimension_numbers = #tpu.dot_dimension_numbers<[1], [0], [0], [1], [0, 0, 1, 1], [], []>} : vector<16x32xf32>, vector<32x256xf32>, vector<16x256xf32> -> vector<16x256xf32>
    %624 = vector.extract_strided_slice %623 {offsets = [0, 0], sizes = [8, 128], strides = [1, 1]} : vector<16x256xf32> to vector<8x128xf32>
    %625 = vector.extract_strided_slice %623 {offsets = [8, 128], sizes = [8, 128], strides = [1, 1]} : vector<16x256xf32> to vector<8x128xf32>
    %626 = tpu.concatenate %624, %625 in 0 : vector<8x128xf32>, vector<8x128xf32> -> vector<16x128xf32>
    %627 = arith.addf %622, %626 : vector<16x128xf32>
    %628 = arith.negf %627 : vector<16x128xf32>
    %629 = math.exp %628 : vector<16x128xf32>
    %cst_183 = arith.constant 1.000000e+00 : f32
    %630 = vector.broadcast %cst_183 : f32 to vector<16x128xf32>
    %631 = arith.addf %630, %629 : vector<16x128xf32>
    %632 = arith.divf %630, %631 : vector<16x128xf32>
    %633 = math.tanh %627 : vector<16x128xf32>
    %634 = vector.extract_strided_slice %632 {offsets = [0, 32], sizes = [16, 32], strides = [1, 1]} : vector<16x128xf32> to vector<16x32xf32>
    %635 = arith.mulf %634, %614 : vector<16x32xf32>
    %636 = vector.extract_strided_slice %632 {offsets = [0, 0], sizes = [16, 32], strides = [1, 1]} : vector<16x128xf32> to vector<16x32xf32>
    %637 = vector.extract_strided_slice %633 {offsets = [0, 64], sizes = [16, 32], strides = [1, 1]} : vector<16x128xf32> to vector<16x32xf32>
    %638 = arith.mulf %636, %637 : vector<16x32xf32>
    %639 = arith.addf %635, %638 : vector<16x32xf32>
    %640 = vector.extract_strided_slice %632 {offsets = [0, 96], sizes = [16, 32], strides = [1, 1]} : vector<16x128xf32> to vector<16x32xf32>
    %641 = math.tanh %639 : vector<16x32xf32>
    %642 = arith.mulf %640, %641 : vector<16x32xf32>
    %643 = vector.extract_strided_slice %642 {offsets = [0, 0], sizes = [8, 32], strides = [1, 1]} : vector<16x32xf32> to vector<8x32xf32>
    %644 = vector.extract_strided_slice %642 {offsets = [8, 0], sizes = [8, 32], strides = [1, 1]} : vector<16x32xf32> to vector<8x32xf32>
    %c24_184 = arith.constant 24 : index
    %c0_185 = arith.constant 0 : index
    %645 = vector.load %arg16[%c24_184, %c0_185] : memref<64x256xf32, #tpu.memory_space<vmem>>, vector<8x128xf32>
    %c32_186 = arith.constant 32 : index
    %c128_187 = arith.constant 128 : index
    %646 = vector.load %arg16[%c32_186, %c128_187] : memref<64x256xf32, #tpu.memory_space<vmem>>, vector<8x128xf32>
    %647 = tpu.concatenate %645, %646 in 0 : vector<8x128xf32>, vector<8x128xf32> -> vector<16x128xf32>
    %cst_188 = arith.constant dense<0.000000e+00> : vector<16x256xf32>
    %648 = tpu.matmul %642, %573, %cst_188 {dimension_numbers = #tpu.dot_dimension_numbers<[1], [0], [0], [1], [0, 0, 1, 1], [], []>} : vector<16x32xf32>, vector<32x256xf32>, vector<16x256xf32> -> vector<16x256xf32>
    %649 = vector.extract_strided_slice %648 {offsets = [0, 0], sizes = [8, 128], strides = [1, 1]} : vector<16x256xf32> to vector<8x128xf32>
    %650 = vector.extract_strided_slice %648 {offsets = [8, 128], sizes = [8, 128], strides = [1, 1]} : vector<16x256xf32> to vector<8x128xf32>
    %651 = tpu.concatenate %649, %650 in 0 : vector<8x128xf32>, vector<8x128xf32> -> vector<16x128xf32>
    %652 = arith.addf %647, %651 : vector<16x128xf32>
    %653 = arith.negf %652 : vector<16x128xf32>
    %654 = math.exp %653 : vector<16x128xf32>
    %cst_189 = arith.constant 1.000000e+00 : f32
    %655 = vector.broadcast %cst_189 : f32 to vector<16x128xf32>
    %656 = arith.addf %655, %654 : vector<16x128xf32>
    %657 = arith.divf %655, %656 : vector<16x128xf32>
    %658 = math.tanh %652 : vector<16x128xf32>
    %659 = vector.extract_strided_slice %657 {offsets = [0, 32], sizes = [16, 32], strides = [1, 1]} : vector<16x128xf32> to vector<16x32xf32>
    %660 = arith.mulf %659, %639 : vector<16x32xf32>
    %661 = vector.extract_strided_slice %657 {offsets = [0, 0], sizes = [16, 32], strides = [1, 1]} : vector<16x128xf32> to vector<16x32xf32>
    %662 = vector.extract_strided_slice %658 {offsets = [0, 64], sizes = [16, 32], strides = [1, 1]} : vector<16x128xf32> to vector<16x32xf32>
    %663 = arith.mulf %661, %662 : vector<16x32xf32>
    %664 = arith.addf %660, %663 : vector<16x32xf32>
    %665 = vector.extract_strided_slice %657 {offsets = [0, 96], sizes = [16, 32], strides = [1, 1]} : vector<16x128xf32> to vector<16x32xf32>
    %666 = math.tanh %664 : vector<16x32xf32>
    %667 = arith.mulf %665, %666 : vector<16x32xf32>
    %668 = vector.extract_strided_slice %667 {offsets = [0, 0], sizes = [8, 32], strides = [1, 1]} : vector<16x32xf32> to vector<8x32xf32>
    %669 = vector.extract_strided_slice %667 {offsets = [8, 0], sizes = [8, 32], strides = [1, 1]} : vector<16x32xf32> to vector<8x32xf32>
    %c32_190 = arith.constant 32 : index
    %c0_191 = arith.constant 0 : index
    %670 = vector.load %arg16[%c32_190, %c0_191] : memref<64x256xf32, #tpu.memory_space<vmem>>, vector<8x128xf32>
    %c24_192 = arith.constant 24 : index
    %c128_193 = arith.constant 128 : index
    %671 = vector.load %arg16[%c24_192, %c128_193] : memref<64x256xf32, #tpu.memory_space<vmem>>, vector<8x128xf32>
    %672 = tpu.concatenate %670, %671 in 0 : vector<8x128xf32>, vector<8x128xf32> -> vector<16x128xf32>
    %cst_194 = arith.constant dense<0.000000e+00> : vector<16x256xf32>
    %673 = tpu.matmul %667, %573, %cst_194 {dimension_numbers = #tpu.dot_dimension_numbers<[1], [0], [0], [1], [0, 0, 1, 1], [], []>} : vector<16x32xf32>, vector<32x256xf32>, vector<16x256xf32> -> vector<16x256xf32>
    %674 = vector.extract_strided_slice %673 {offsets = [0, 0], sizes = [8, 128], strides = [1, 1]} : vector<16x256xf32> to vector<8x128xf32>
    %675 = vector.extract_strided_slice %673 {offsets = [8, 128], sizes = [8, 128], strides = [1, 1]} : vector<16x256xf32> to vector<8x128xf32>
    %676 = tpu.concatenate %674, %675 in 0 : vector<8x128xf32>, vector<8x128xf32> -> vector<16x128xf32>
    %677 = arith.addf %672, %676 : vector<16x128xf32>
    %678 = arith.negf %677 : vector<16x128xf32>
    %679 = math.exp %678 : vector<16x128xf32>
    %cst_195 = arith.constant 1.000000e+00 : f32
    %680 = vector.broadcast %cst_195 : f32 to vector<16x128xf32>
    %681 = arith.addf %680, %679 : vector<16x128xf32>
    %682 = arith.divf %680, %681 : vector<16x128xf32>
    %683 = math.tanh %677 : vector<16x128xf32>
    %684 = vector.extract_strided_slice %682 {offsets = [0, 32], sizes = [16, 32], strides = [1, 1]} : vector<16x128xf32> to vector<16x32xf32>
    %685 = arith.mulf %684, %664 : vector<16x32xf32>
    %686 = vector.extract_strided_slice %682 {offsets = [0, 0], sizes = [16, 32], strides = [1, 1]} : vector<16x128xf32> to vector<16x32xf32>
    %687 = vector.extract_strided_slice %683 {offsets = [0, 64], sizes = [16, 32], strides = [1, 1]} : vector<16x128xf32> to vector<16x32xf32>
    %688 = arith.mulf %686, %687 : vector<16x32xf32>
    %689 = arith.addf %685, %688 : vector<16x32xf32>
    %690 = vector.extract_strided_slice %682 {offsets = [0, 96], sizes = [16, 32], strides = [1, 1]} : vector<16x128xf32> to vector<16x32xf32>
    %691 = math.tanh %689 : vector<16x32xf32>
    %692 = arith.mulf %690, %691 : vector<16x32xf32>
    %693 = vector.extract_strided_slice %692 {offsets = [0, 0], sizes = [8, 32], strides = [1, 1]} : vector<16x32xf32> to vector<8x32xf32>
    %694 = vector.extract_strided_slice %692 {offsets = [8, 0], sizes = [8, 32], strides = [1, 1]} : vector<16x32xf32> to vector<8x32xf32>
    %c40_196 = arith.constant 40 : index
    %c0_197 = arith.constant 0 : index
    %695 = vector.load %arg16[%c40_196, %c0_197] : memref<64x256xf32, #tpu.memory_space<vmem>>, vector<8x128xf32>
    %c16_198 = arith.constant 16 : index
    %c128_199 = arith.constant 128 : index
    %696 = vector.load %arg16[%c16_198, %c128_199] : memref<64x256xf32, #tpu.memory_space<vmem>>, vector<8x128xf32>
    %697 = tpu.concatenate %695, %696 in 0 : vector<8x128xf32>, vector<8x128xf32> -> vector<16x128xf32>
    %cst_200 = arith.constant dense<0.000000e+00> : vector<16x256xf32>
    %698 = tpu.matmul %692, %573, %cst_200 {dimension_numbers = #tpu.dot_dimension_numbers<[1], [0], [0], [1], [0, 0, 1, 1], [], []>} : vector<16x32xf32>, vector<32x256xf32>, vector<16x256xf32> -> vector<16x256xf32>
    %699 = vector.extract_strided_slice %698 {offsets = [0, 0], sizes = [8, 128], strides = [1, 1]} : vector<16x256xf32> to vector<8x128xf32>
    %700 = vector.extract_strided_slice %698 {offsets = [8, 128], sizes = [8, 128], strides = [1, 1]} : vector<16x256xf32> to vector<8x128xf32>
    %701 = tpu.concatenate %699, %700 in 0 : vector<8x128xf32>, vector<8x128xf32> -> vector<16x128xf32>
    %702 = arith.addf %697, %701 : vector<16x128xf32>
    %703 = arith.negf %702 : vector<16x128xf32>
    %704 = math.exp %703 : vector<16x128xf32>
    %cst_201 = arith.constant 1.000000e+00 : f32
    %705 = vector.broadcast %cst_201 : f32 to vector<16x128xf32>
    %706 = arith.addf %705, %704 : vector<16x128xf32>
    %707 = arith.divf %705, %706 : vector<16x128xf32>
    %708 = math.tanh %702 : vector<16x128xf32>
    %709 = vector.extract_strided_slice %707 {offsets = [0, 32], sizes = [16, 32], strides = [1, 1]} : vector<16x128xf32> to vector<16x32xf32>
    %710 = arith.mulf %709, %689 : vector<16x32xf32>
    %711 = vector.extract_strided_slice %707 {offsets = [0, 0], sizes = [16, 32], strides = [1, 1]} : vector<16x128xf32> to vector<16x32xf32>
    %712 = vector.extract_strided_slice %708 {offsets = [0, 64], sizes = [16, 32], strides = [1, 1]} : vector<16x128xf32> to vector<16x32xf32>
    %713 = arith.mulf %711, %712 : vector<16x32xf32>
    %714 = arith.addf %710, %713 : vector<16x32xf32>
    %715 = vector.extract_strided_slice %707 {offsets = [0, 96], sizes = [16, 32], strides = [1, 1]} : vector<16x128xf32> to vector<16x32xf32>
    %716 = math.tanh %714 : vector<16x32xf32>
    %717 = arith.mulf %715, %716 : vector<16x32xf32>
    %718 = vector.extract_strided_slice %717 {offsets = [0, 0], sizes = [8, 32], strides = [1, 1]} : vector<16x32xf32> to vector<8x32xf32>
    %719 = vector.extract_strided_slice %717 {offsets = [8, 0], sizes = [8, 32], strides = [1, 1]} : vector<16x32xf32> to vector<8x32xf32>
    %c48_202 = arith.constant 48 : index
    %c0_203 = arith.constant 0 : index
    %720 = vector.load %arg16[%c48_202, %c0_203] : memref<64x256xf32, #tpu.memory_space<vmem>>, vector<8x128xf32>
    %c8_204 = arith.constant 8 : index
    %c128_205 = arith.constant 128 : index
    %721 = vector.load %arg16[%c8_204, %c128_205] : memref<64x256xf32, #tpu.memory_space<vmem>>, vector<8x128xf32>
    %722 = tpu.concatenate %720, %721 in 0 : vector<8x128xf32>, vector<8x128xf32> -> vector<16x128xf32>
    %cst_206 = arith.constant dense<0.000000e+00> : vector<16x256xf32>
    %723 = tpu.matmul %717, %573, %cst_206 {dimension_numbers = #tpu.dot_dimension_numbers<[1], [0], [0], [1], [0, 0, 1, 1], [], []>} : vector<16x32xf32>, vector<32x256xf32>, vector<16x256xf32> -> vector<16x256xf32>
    %724 = vector.extract_strided_slice %723 {offsets = [0, 0], sizes = [8, 128], strides = [1, 1]} : vector<16x256xf32> to vector<8x128xf32>
    %725 = vector.extract_strided_slice %723 {offsets = [8, 128], sizes = [8, 128], strides = [1, 1]} : vector<16x256xf32> to vector<8x128xf32>
    %726 = tpu.concatenate %724, %725 in 0 : vector<8x128xf32>, vector<8x128xf32> -> vector<16x128xf32>
    %727 = arith.addf %722, %726 : vector<16x128xf32>
    %728 = arith.negf %727 : vector<16x128xf32>
    %729 = math.exp %728 : vector<16x128xf32>
    %cst_207 = arith.constant 1.000000e+00 : f32
    %730 = vector.broadcast %cst_207 : f32 to vector<16x128xf32>
    %731 = arith.addf %730, %729 : vector<16x128xf32>
    %732 = arith.divf %730, %731 : vector<16x128xf32>
    %733 = math.tanh %727 : vector<16x128xf32>
    %734 = vector.extract_strided_slice %732 {offsets = [0, 32], sizes = [16, 32], strides = [1, 1]} : vector<16x128xf32> to vector<16x32xf32>
    %735 = arith.mulf %734, %714 : vector<16x32xf32>
    %736 = vector.extract_strided_slice %732 {offsets = [0, 0], sizes = [16, 32], strides = [1, 1]} : vector<16x128xf32> to vector<16x32xf32>
    %737 = vector.extract_strided_slice %733 {offsets = [0, 64], sizes = [16, 32], strides = [1, 1]} : vector<16x128xf32> to vector<16x32xf32>
    %738 = arith.mulf %736, %737 : vector<16x32xf32>
    %739 = arith.addf %735, %738 : vector<16x32xf32>
    %740 = vector.extract_strided_slice %732 {offsets = [0, 96], sizes = [16, 32], strides = [1, 1]} : vector<16x128xf32> to vector<16x32xf32>
    %741 = math.tanh %739 : vector<16x32xf32>
    %742 = arith.mulf %740, %741 : vector<16x32xf32>
    %743 = vector.extract_strided_slice %742 {offsets = [0, 0], sizes = [8, 32], strides = [1, 1]} : vector<16x32xf32> to vector<8x32xf32>
    %744 = vector.extract_strided_slice %742 {offsets = [8, 0], sizes = [8, 32], strides = [1, 1]} : vector<16x32xf32> to vector<8x32xf32>
    %c56_208 = arith.constant 56 : index
    %c0_209 = arith.constant 0 : index
    %745 = vector.load %arg16[%c56_208, %c0_209] : memref<64x256xf32, #tpu.memory_space<vmem>>, vector<8x128xf32>
    %c0_210 = arith.constant 0 : index
    %c128_211 = arith.constant 128 : index
    %746 = vector.load %arg16[%c0_210, %c128_211] : memref<64x256xf32, #tpu.memory_space<vmem>>, vector<8x128xf32>
    %747 = tpu.concatenate %745, %746 in 0 : vector<8x128xf32>, vector<8x128xf32> -> vector<16x128xf32>
    %cst_212 = arith.constant dense<0.000000e+00> : vector<16x256xf32>
    %748 = tpu.matmul %742, %573, %cst_212 {dimension_numbers = #tpu.dot_dimension_numbers<[1], [0], [0], [1], [0, 0, 1, 1], [], []>} : vector<16x32xf32>, vector<32x256xf32>, vector<16x256xf32> -> vector<16x256xf32>
    %749 = vector.extract_strided_slice %748 {offsets = [0, 0], sizes = [8, 128], strides = [1, 1]} : vector<16x256xf32> to vector<8x128xf32>
    %750 = vector.extract_strided_slice %748 {offsets = [8, 128], sizes = [8, 128], strides = [1, 1]} : vector<16x256xf32> to vector<8x128xf32>
    %751 = tpu.concatenate %749, %750 in 0 : vector<8x128xf32>, vector<8x128xf32> -> vector<16x128xf32>
    %752 = arith.addf %747, %751 : vector<16x128xf32>
    %753 = arith.negf %752 : vector<16x128xf32>
    %754 = math.exp %753 : vector<16x128xf32>
    %cst_213 = arith.constant 1.000000e+00 : f32
    %755 = vector.broadcast %cst_213 : f32 to vector<16x128xf32>
    %756 = arith.addf %755, %754 : vector<16x128xf32>
    %757 = arith.divf %755, %756 : vector<16x128xf32>
    %758 = math.tanh %752 : vector<16x128xf32>
    %759 = vector.extract_strided_slice %757 {offsets = [0, 32], sizes = [16, 32], strides = [1, 1]} : vector<16x128xf32> to vector<16x32xf32>
    %760 = arith.mulf %759, %739 : vector<16x32xf32>
    %761 = vector.extract_strided_slice %757 {offsets = [0, 0], sizes = [16, 32], strides = [1, 1]} : vector<16x128xf32> to vector<16x32xf32>
    %762 = vector.extract_strided_slice %758 {offsets = [0, 64], sizes = [16, 32], strides = [1, 1]} : vector<16x128xf32> to vector<16x32xf32>
    %763 = arith.mulf %761, %762 : vector<16x32xf32>
    %764 = arith.addf %760, %763 : vector<16x32xf32>
    %765 = vector.extract_strided_slice %757 {offsets = [0, 96], sizes = [16, 32], strides = [1, 1]} : vector<16x128xf32> to vector<16x32xf32>
    %766 = math.tanh %764 : vector<16x32xf32>
    %767 = arith.mulf %765, %766 : vector<16x32xf32>
    %768 = vector.extract_strided_slice %767 {offsets = [0, 0], sizes = [8, 32], strides = [1, 1]} : vector<16x32xf32> to vector<8x32xf32>
    %769 = vector.extract_strided_slice %767 {offsets = [8, 0], sizes = [8, 32], strides = [1, 1]} : vector<16x32xf32> to vector<8x32xf32>
    %c0_214 = arith.constant 0 : index
    %c0_215 = arith.constant 0 : index
    %770 = vector.load %arg17[%c0_214, %c0_215] : memref<8x576xf32, #tpu.memory_space<vmem>>, vector<8x32xf32>
    tpu.vector_store %arg17[%c0_214, %c0_215], %593 {strides = array<i32>} : memref<8x576xf32, #tpu.memory_space<vmem>>, vector<8x32xf32>,
    %c0_216 = arith.constant 0 : index
    %c32_217 = arith.constant 32 : index
    %771 = vector.load %arg17[%c0_216, %c32_217] : memref<8x576xf32, #tpu.memory_space<vmem>>, vector<8x32xf32>
    tpu.vector_store %arg17[%c0_216, %c32_217], %769 {strides = array<i32>} : memref<8x576xf32, #tpu.memory_space<vmem>>, vector<8x32xf32>,
    %c0_218 = arith.constant 0 : index
    %c64 = arith.constant 64 : index
    %772 = vector.load %arg17[%c0_218, %c64] : memref<8x576xf32, #tpu.memory_space<vmem>>, vector<8x32xf32>
    tpu.vector_store %arg17[%c0_218, %c64], %618 {strides = array<i32>} : memref<8x576xf32, #tpu.memory_space<vmem>>, vector<8x32xf32>,
    %c0_219 = arith.constant 0 : index
    %c96 = arith.constant 96 : index
    %773 = vector.load %arg17[%c0_219, %c96] : memref<8x576xf32, #tpu.memory_space<vmem>>, vector<8x32xf32>
    tpu.vector_store %arg17[%c0_219, %c96], %744 {strides = array<i32>} : memref<8x576xf32, #tpu.memory_space<vmem>>, vector<8x32xf32>,
    %c0_220 = arith.constant 0 : index
    %c128_221 = arith.constant 128 : index
    %774 = vector.load %arg17[%c0_220, %c128_221] : memref<8x576xf32, #tpu.memory_space<vmem>>, vector<8x32xf32>
    tpu.vector_store %arg17[%c0_220, %c128_221], %643 {strides = array<i32>} : memref<8x576xf32, #tpu.memory_space<vmem>>, vector<8x32xf32>,
    %c0_222 = arith.constant 0 : index
    %c160 = arith.constant 160 : index
    %775 = vector.load %arg17[%c0_222, %c160] : memref<8x576xf32, #tpu.memory_space<vmem>>, vector<8x32xf32>
    tpu.vector_store %arg17[%c0_222, %c160], %719 {strides = array<i32>} : memref<8x576xf32, #tpu.memory_space<vmem>>, vector<8x32xf32>,
    %c0_223 = arith.constant 0 : index
    %c192 = arith.constant 192 : index
    %776 = vector.load %arg17[%c0_223, %c192] : memref<8x576xf32, #tpu.memory_space<vmem>>, vector<8x32xf32>
    tpu.vector_store %arg17[%c0_223, %c192], %668 {strides = array<i32>} : memref<8x576xf32, #tpu.memory_space<vmem>>, vector<8x32xf32>,
    %c0_224 = arith.constant 0 : index
    %c224 = arith.constant 224 : index
    %777 = vector.load %arg17[%c0_224, %c224] : memref<8x576xf32, #tpu.memory_space<vmem>>, vector<8x32xf32>
    tpu.vector_store %arg17[%c0_224, %c224], %694 {strides = array<i32>} : memref<8x576xf32, #tpu.memory_space<vmem>>, vector<8x32xf32>,
    %c0_225 = arith.constant 0 : index
    %c256 = arith.constant 256 : index
    %778 = vector.load %arg17[%c0_225, %c256] : memref<8x576xf32, #tpu.memory_space<vmem>>, vector<8x32xf32>
    tpu.vector_store %arg17[%c0_225, %c256], %693 {strides = array<i32>} : memref<8x576xf32, #tpu.memory_space<vmem>>, vector<8x32xf32>,
    %c0_226 = arith.constant 0 : index
    %c288 = arith.constant 288 : index
    %779 = vector.load %arg17[%c0_226, %c288] : memref<8x576xf32, #tpu.memory_space<vmem>>, vector<8x32xf32>
    tpu.vector_store %arg17[%c0_226, %c288], %669 {strides = array<i32>} : memref<8x576xf32, #tpu.memory_space<vmem>>, vector<8x32xf32>,
    %c0_227 = arith.constant 0 : index
    %c320 = arith.constant 320 : index
    %780 = vector.load %arg17[%c0_227, %c320] : memref<8x576xf32, #tpu.memory_space<vmem>>, vector<8x32xf32>
    tpu.vector_store %arg17[%c0_227, %c320], %718 {strides = array<i32>} : memref<8x576xf32, #tpu.memory_space<vmem>>, vector<8x32xf32>,
    %c0_228 = arith.constant 0 : index
    %c352 = arith.constant 352 : index
    %781 = vector.load %arg17[%c0_228, %c352] : memref<8x576xf32, #tpu.memory_space<vmem>>, vector<8x32xf32>
    tpu.vector_store %arg17[%c0_228, %c352], %644 {strides = array<i32>} : memref<8x576xf32, #tpu.memory_space<vmem>>, vector<8x32xf32>,
    %c0_229 = arith.constant 0 : index
    %c384 = arith.constant 384 : index
    %782 = vector.load %arg17[%c0_229, %c384] : memref<8x576xf32, #tpu.memory_space<vmem>>, vector<8x32xf32>
    tpu.vector_store %arg17[%c0_229, %c384], %743 {strides = array<i32>} : memref<8x576xf32, #tpu.memory_space<vmem>>, vector<8x32xf32>,
    %c0_230 = arith.constant 0 : index
    %c416 = arith.constant 416 : index
    %783 = vector.load %arg17[%c0_230, %c416] : memref<8x576xf32, #tpu.memory_space<vmem>>, vector<8x32xf32>
    tpu.vector_store %arg17[%c0_230, %c416], %619 {strides = array<i32>} : memref<8x576xf32, #tpu.memory_space<vmem>>, vector<8x32xf32>,
    %c0_231 = arith.constant 0 : index
    %c448 = arith.constant 448 : index
    %784 = vector.load %arg17[%c0_231, %c448] : memref<8x576xf32, #tpu.memory_space<vmem>>, vector<8x32xf32>
    tpu.vector_store %arg17[%c0_231, %c448], %768 {strides = array<i32>} : memref<8x576xf32, #tpu.memory_space<vmem>>, vector<8x32xf32>,
    %c0_232 = arith.constant 0 : index
    %c480 = arith.constant 480 : index
    %785 = vector.load %arg17[%c0_232, %c480] : memref<8x576xf32, #tpu.memory_space<vmem>>, vector<8x32xf32>
    tpu.vector_store %arg17[%c0_232, %c480], %594 {strides = array<i32>} : memref<8x576xf32, #tpu.memory_space<vmem>>, vector<8x32xf32>,
    %c0_233 = arith.constant 0 : index
    %c512 = arith.constant 512 : index
    %786 = vector.load %arg17[%c0_233, %c512] : memref<8x576xf32, #tpu.memory_space<vmem>>, vector<8x32xf32>
    tpu.vector_store %arg17[%c0_233, %c512], %116 {strides = array<i32>} : memref<8x576xf32, #tpu.memory_space<vmem>>, vector<8x32xf32>,
    %c0_234 = arith.constant 0 : index
    %c544 = arith.constant 544 : index
    %787 = vector.load %arg17[%c0_234, %c544] : memref<8x576xf32, #tpu.memory_space<vmem>>, vector<8x32xf32>
    tpu.vector_store %arg17[%c0_234, %c544], %132 {strides = array<i32>} : memref<8x576xf32, #tpu.memory_space<vmem>>, vector<8x32xf32>,
    %c0_235 = arith.constant 0 : index
    %c0_236 = arith.constant 0 : index
    %788 = vector.load %arg17[%c0_235, %c0_236] : memref<8x576xf32, #tpu.memory_space<vmem>>, vector<8x576xf32>
    %c0_237 = arith.constant 0 : index
    %c0_238 = arith.constant 0 : index
    %789 = vector.load %arg13[%c0_237, %c0_238] : memref<576x16xf32, #tpu.memory_space<vmem>>, vector<576x16xf32>
    %cst_239 = arith.constant dense<0.000000e+00> : vector<8x16xf32>
    %790 = tpu.matmul %788, %789, %cst_239 {dimension_numbers = #tpu.dot_dimension_numbers<[1], [0], [0], [1], [0, 0, 1, 1], [], []>} : vector<8x576xf32>, vector<576x16xf32>, vector<8x16xf32> -> vector<8x16xf32>
    %c0_240 = arith.constant 0 : index
    %c0_241 = arith.constant 0 : index
    %791 = vector.load %arg14[%c0_240, %c0_241] : memref<1x16xf32, #tpu.memory_space<vmem>>, vector<1x16xf32>
    %792 = vector.broadcast %791 : vector<1x16xf32> to vector<8x16xf32>
    %793 = arith.addf %790, %792 : vector<8x16xf32>
    %c0_242 = arith.constant 0 : index
    %c0_243 = arith.constant 0 : index
    %794 = vector.load %arg15[%c0_242, %c0_243] : memref<8x16xf32, #tpu.memory_space<vmem>>, vector<8x16xf32>
    tpu.vector_store %arg15[%c0_242, %c0_243], %793 {strides = array<i32>} : memref<8x16xf32, #tpu.memory_space<vmem>>, vector<8x16xf32>,
    return
  }
  func.func @transform_0(%arg0: i32) -> (i32, i32) {
    %c0_i32 = arith.constant 0 : i32
    %c0_i32_0 = arith.constant 0 : i32
    return %arg0, %c0_i32 : i32, i32
  }
  func.func @transform_1(%arg0: i32) -> (i32, i32) {
    %c0_i32 = arith.constant 0 : i32
    %c0_i32_0 = arith.constant 0 : i32
    %c0_i32_1 = arith.constant 0 : i32
    return %c0_i32, %c0_i32_0 : i32, i32
  }
  func.func @transform_2(%arg0: i32) -> (i32, i32) {
    %c0_i32 = arith.constant 0 : i32
    %c0_i32_0 = arith.constant 0 : i32
    %c0_i32_1 = arith.constant 0 : i32
    return %c0_i32, %c0_i32_0 : i32, i32
  }
  func.func @transform_3(%arg0: i32) -> (i32, i32) {
    %c0_i32 = arith.constant 0 : i32
    %c0_i32_0 = arith.constant 0 : i32
    %c0_i32_1 = arith.constant 0 : i32
    return %c0_i32, %c0_i32_0 : i32, i32
  }
  func.func @transform_4(%arg0: i32) -> (i32, i32) {
    %c0_i32 = arith.constant 0 : i32
    %c0_i32_0 = arith.constant 0 : i32
    %c0_i32_1 = arith.constant 0 : i32
    return %c0_i32, %c0_i32_0 : i32, i32
  }
  func.func @transform_5(%arg0: i32) -> (i32, i32) {
    %c0_i32 = arith.constant 0 : i32
    %c0_i32_0 = arith.constant 0 : i32
    %c0_i32_1 = arith.constant 0 : i32
    return %c0_i32, %c0_i32_0 : i32, i32
  }
  func.func @transform_6(%arg0: i32) -> (i32, i32, i32) {
    %c0_i32 = arith.constant 0 : i32
    %c0_i32_0 = arith.constant 0 : i32
    %c0_i32_1 = arith.constant 0 : i32
    %c0_i32_2 = arith.constant 0 : i32
    return %c0_i32, %c0_i32_0, %c0_i32_1 : i32, i32, i32
  }
  func.func @transform_7(%arg0: i32) -> (i32, i32, i32) {
    %c0_i32 = arith.constant 0 : i32
    %c0_i32_0 = arith.constant 0 : i32
    %c0_i32_1 = arith.constant 0 : i32
    %c0_i32_2 = arith.constant 0 : i32
    return %c0_i32, %c0_i32_0, %c0_i32_1 : i32, i32, i32
  }
  func.func @transform_8(%arg0: i32) -> (i32, i32, i32) {
    %c0_i32 = arith.constant 0 : i32
    %c0_i32_0 = arith.constant 0 : i32
    %c0_i32_1 = arith.constant 0 : i32
    %c0_i32_2 = arith.constant 0 : i32
    return %c0_i32, %c0_i32_0, %c0_i32_1 : i32, i32, i32
  }
  func.func @transform_9(%arg0: i32) -> (i32, i32) {
    %c0_i32 = arith.constant 0 : i32
    %c0_i32_0 = arith.constant 0 : i32
    %c0_i32_1 = arith.constant 0 : i32
    return %c0_i32, %c0_i32_0 : i32, i32
  }
  func.func @transform_10(%arg0: i32) -> (i32, i32, i32) {
    %c0_i32 = arith.constant 0 : i32
    %c0_i32_0 = arith.constant 0 : i32
    %c0_i32_1 = arith.constant 0 : i32
    %c0_i32_2 = arith.constant 0 : i32
    return %c0_i32, %c0_i32_0, %c0_i32_1 : i32, i32, i32
  }
  func.func @transform_11(%arg0: i32) -> (i32, i32, i32) {
    %c0_i32 = arith.constant 0 : i32
    %c0_i32_0 = arith.constant 0 : i32
    %c0_i32_1 = arith.constant 0 : i32
    %c0_i32_2 = arith.constant 0 : i32
    return %c0_i32, %c0_i32_0, %c0_i32_1 : i32, i32, i32
  }
  func.func @transform_12(%arg0: i32) -> (i32, i32) {
    %c0_i32 = arith.constant 0 : i32
    %c0_i32_0 = arith.constant 0 : i32
    %c0_i32_1 = arith.constant 0 : i32
    return %c0_i32, %c0_i32_0 : i32, i32
  }
  func.func @transform_13(%arg0: i32) -> (i32, i32) {
    %c0_i32 = arith.constant 0 : i32
    %c0_i32_0 = arith.constant 0 : i32
    %c0_i32_1 = arith.constant 0 : i32
    return %c0_i32, %c0_i32_0 : i32, i32
  }
  func.func @transform_14(%arg0: i32) -> (i32, i32) {
    %c0_i32 = arith.constant 0 : i32
    %c0_i32_0 = arith.constant 0 : i32
    return %arg0, %c0_i32 : i32, i32
  }
}

</mosaic_0001>

<llo_original>
// kernel: tpu_custom_call.1
$region0: #{tpu_custom_call.1}
  #allocation0 [shape = 'u32[]', space=smem, size = 0x4, offset = 0x4, fixed_abs, tag = 'smem constant byte address 0x4 - core index']
  #allocation1 [shape = 'u32[144,128]{1,0:T(1,128)}', space=vmem, size = 0x12000, scoped, tag = 'internal scratch']
  #allocation2 [shape = 'f32[64,256]{1,0:T(8,128)}', space=vmem, size = 0x10000, scoped, tag = 'scratch operand']
  #allocation3 [shape = 'f32[8,576]{1,0:T(8,128)}', space=vmem, size = 0x5000, scoped, tag = 'scratch operand']
  %s0 = inlined_call_operand.vmem [shape: f32[128,2], index: 0, kind: input, shape index: {}]
  %s1 = inlined_call_operand.vmem [shape: f32[2,16], index: 1, kind: input, shape index: {}]
  %s2 = inlined_call_operand.vmem [shape: f32[1,16], index: 2, kind: input, shape index: {}]
  %s3 = inlined_call_operand.vmem [shape: f32[2,16], index: 3, kind: input, shape index: {}]
  %s4 = inlined_call_operand.vmem [shape: f32[1,16], index: 4, kind: input, shape index: {}]
  %s5 = inlined_call_operand.hbm [shape: f32[16,256], index: 5, kind: input, shape index: {}]
  %s6 = inlined_call_operand.vmem [shape: f32[2,64,256], index: 6, kind: input, shape index: {}]
  %s7 = inlined_call_operand.vmem [shape: f32[3,32,256], index: 7, kind: input, shape index: {}]
  %s8 = inlined_call_operand.vmem [shape: f32[3,1,256], index: 8, kind: input, shape index: {}]
  %s9 = inlined_call_operand.hbm [shape: f32[16,256], index: 9, kind: input, shape index: {}]
  %s10 = inlined_call_operand.vmem [shape: f32[2,64,256], index: 10, kind: input, shape index: {}]
  %s11 = inlined_call_operand.vmem [shape: f32[3,1,256], index: 11, kind: input, shape index: {}]
  %s12 = inlined_call_operand.vmem [shape: f32[576,16], index: 12, kind: input, shape index: {}]
  %s13 = inlined_call_operand.vmem [shape: f32[1,16], index: 13, kind: input, shape index: {}]
  %s14 = inlined_call_operand.hbm [shape: f32[16,16], index: 14, kind: output, shape index: {}]
  %s15 = sld [smem:[#allocation0]]
  $region97: #{tpu_custom_call.1} parent=0
    _
  %s17 = ssub.s32 1, %s15
  %s18 = scalar_select 0, %s17, %s15
  $region1: #{tpu_custom_call.1} parent=0
    #allocation4 [shape = 'u8[16384]{0}', space=vmem, size = 0x4000, scoped, tag = 'input window, operand 5, single buffered']
    #allocation5 [shape = 's32[2]{0}', space=sflag, size = 0x8, scoped, tag = 'scoped memory for tpu_custom_call.1']
    #allocation6 [shape = 's32[2]{0}', space=sflag, size = 0x8, scoped, tag = 'scoped memory for tpu_custom_call.1']
    #allocation7 [shape = 'u8[16384]{0}', space=vmem, size = 0x4000, scoped, tag = 'input window, operand 9, single buffered']
    #allocation8 [shape = 's32[1]{0}', space=sflag, size = 0x4, scoped, tag = 'scoped memory for tpu_custom_call.1']
    #allocation9 [shape = 'u8[8192]{0}', space=vmem, size = 0x2000, scoped, tag = 'output window, operand 0']
    %19 = vsyncpa [#allocation5], 0
    %20 = vsyncpa [#allocation8], 0
    %21 = vsyncpa [#allocation6], 0
    %s22 = scalar_lea.sflag [#allocation6], 1
    %23 = vsyncpa %s22, 0
    loop: start=0, step=1, limit=4
    $region2: #{tpu_custom_call.1} parent=1 // loop_pre_header
      _
    $region3: #{tpu_custom_call.1} parent=1 // loop_header
      %s25 = sphi 0, %s29
      %p26 = scmp.ge.s32.totalorder %s25, 4
      %s35 = sphi 0, %s37
      %s38 = sphi 0, %s35
      %s39 = sphi 0, %s38
      %s55 = sphi 0, %s39
      %s59 = sphi 0, %s59
      %s61 = sphi 0, %s59
      %s62 = sphi 0, %s61
      %s76 = sphi 0, %s62
      %s80 = sphi 0, %s80
      %s82 = sphi 0, %s80
      %s83 = sphi 0, %s82
      %s97 = sphi 0, %s83
      %s101 = sphi 0, %s101
      %s103 = sphi 0, %s101
      %s104 = sphi 0, %s103
      %s118 = sphi 0, %s104
      %s122 = sphi 0, %s122
      %s124 = sphi 0, %s122
      %s125 = sphi 0, %s124
      %s139 = sphi 0, %s125
      %s143 = sphi 0, %s143
      %s145 = sphi 0, %s143
      %s146 = sphi 0, %s145
      %s160 = sphi 0, %s146
      %s164 = sphi 0, %s164
      %s166 = sphi 0, %s164
      %s167 = sphi 0, %s166
      %s181 = sphi 0, %s167
      %s185 = sphi 0, %s185
      %s187 = sphi 0, %s185
      %s188 = sphi 0, %s187
      %s202 = sphi 0, %s188
      %s206 = sphi 0, %s206
      %s208 = sphi 0, %s206
      %s209 = sphi 0, %s208
      %s223 = sphi 0, %s209
      %s227 = sphi 0, %s227
      %s229 = sphi 0, %s227
      %s230 = sphi 0, %s229
      %s244 = sphi 0, %s230
      %s248 = sphi 0, %s248
      %s250 = sphi 0, %s248
      %s251 = sphi 0, %s250
      %s265 = sphi 0, %s251
      %s269 = sphi 0, %s269
      %s271 = sphi 0, %s269
      %s272 = sphi 0, %s271
      %s286 = sphi 0, %s272
      %s290 = sphi 0, %s290
      %s292 = sphi 0, %s290
      %s293 = sphi 0, %s292
      %s307 = sphi 0, %s293
      %s311 = sphi 0, %s311
      %s313 = sphi 0, %s311
      %s314 = sphi 0, %s313
      %s328 = sphi 0, %s314
      %s334 = sphi 0, %s336
      %s337 = sphi 0, %s334
      %s338 = sphi 0, %s337
      %s354 = sphi 0, %s338
    $region4: #{tpu_custom_call.1} parent=1 // loop_header_branch
      %28 = sbr.rel (%p26) target = $region8
    $region5: #{tpu_custom_call.1} parent=1 // loop_body
      %s30 = ssub.s32 %s25, 1
      %s31 = ssub.s32 %s25, 2
      %s32 = sadd.s32 %s25, 1
      %s33 = ssub.s32 %s25, %s32
      %p34 = scmp.eq.s32.totalorder %s33, 0
      %s36 = sadd.s32 %s35, 1
      %s37 = scalar_select %p34, %s35, %s36
      %p40 = pneg %p34
      %p41 = scmp.eq.s32.totalorder %s25, 1
      %p42 = por %p40, %p41
      %p43 = scmp.ne.s32.totalorder %s35, %s38
      %p44 = scmp.eq.s32.totalorder %s25, 0
      %p45 = por %p43, %p44
      %p46 = scmp.ne.s32.totalorder %s35, %s38
      %p47 = scmp.eq.s32.totalorder %s30, 1
      %p48 = por %p46, %p47
      %p49 = scmp.ne.s32.totalorder %s38, %s39
      %p50 = scmp.eq.s32.totalorder %s30, 0
      %p51 = por %p49, %p50
      %p52 = scmp.ne.s32.totalorder %s38, %s39
      %p53 = scmp.eq.s32.totalorder %s31, 1
      %p54 = por %p52, %p53
      %p56 = scmp.ne.s32.totalorder %s39, %s55
      %p57 = scmp.eq.s32.totalorder %s31, 0
      %p58 = por %p56, %p57
      %s60 = sadd.s32 %s59, 1
      %p63 = scmp.eq.s32.totalorder %s25, 1
      %p64 = scmp.ne.s32.totalorder %s59, %s61
      %p65 = scmp.eq.s32.totalorder %s25, 0
      %p66 = por %p64, %p65
      %p67 = scmp.ne.s32.totalorder %s59, %s61
      %p68 = scmp.eq.s32.totalorder %s30, 1
      %p69 = por %p67, %p68
      %p70 = scmp.ne.s32.totalorder %s61, %s62
      %p71 = scmp.eq.s32.totalorder %s30, 0
      %p72 = por %p70, %p71
      %p73 = scmp.ne.s32.totalorder %s61, %s62
      %p74 = scmp.eq.s32.totalorder %s31, 1
      %p75 = por %p73, %p74
      %p77 = scmp.ne.s32.totalorder %s62, %s76
      %p78 = scmp.eq.s32.totalorder %s31, 0
      %p79 = por %p77, %p78
      %s81 = sadd.s32 %s80, 1
      %p84 = scmp.eq.s32.totalorder %s25, 1
      %p85 = scmp.ne.s32.totalorder %s80, %s82
      %p86 = scmp.eq.s32.totalorder %s25, 0
      %p87 = por %p85, %p86
      %p88 = scmp.ne.s32.totalorder %s80, %s82
      %p89 = scmp.eq.s32.totalorder %s30, 1
      %p90 = por %p88, %p89
      %p91 = scmp.ne.s32.totalorder %s82, %s83
      %p92 = scmp.eq.s32.totalorder %s30, 0
      %p93 = por %p91, %p92
      %p94 = scmp.ne.s32.totalorder %s82, %s83
      %p95 = scmp.eq.s32.totalorder %s31, 1
      %p96 = por %p94, %p95
      %p98 = scmp.ne.s32.totalorder %s83, %s97
      %p99 = scmp.eq.s32.totalorder %s31, 0
      %p100 = por %p98, %p99
      %s102 = sadd.s32 %s101, 1
      %p105 = scmp.eq.s32.totalorder %s25, 1
      %p106 = scmp.ne.s32.totalorder %s101, %s103
      %p107 = scmp.eq.s32.totalorder %s25, 0
      %p108 = por %p106, %p107
      %p109 = scmp.ne.s32.totalorder %s101, %s103
      %p110 = scmp.eq.s32.totalorder %s30, 1
      %p111 = por %p109, %p110
      %p112 = scmp.ne.s32.totalorder %s103, %s104
      %p113 = scmp.eq.s32.totalorder %s30, 0
      %p114 = por %p112, %p113
      %p115 = scmp.ne.s32.totalorder %s103, %s104
      %p116 = scmp.eq.s32.totalorder %s31, 1
      %p117 = por %p115, %p116
      %p119 = scmp.ne.s32.totalorder %s104, %s118
      %p120 = scmp.eq.s32.totalorder %s31, 0
      %p121 = por %p119, %p120
      %s123 = sadd.s32 %s122, 1
      %p126 = scmp.eq.s32.totalorder %s25, 1
      %p127 = scmp.ne.s32.totalorder %s122, %s124
      %p128 = scmp.eq.s32.totalorder %s25, 0
      %p129 = por %p127, %p128
      %p130 = scmp.ne.s32.totalorder %s122, %s124
      %p131 = scmp.eq.s32.totalorder %s30, 1
      %p132 = por %p130, %p131
      %p133 = scmp.ne.s32.totalorder %s124, %s125
      %p134 = scmp.eq.s32.totalorder %s30, 0
      %p135 = por %p133, %p134
      %p136 = scmp.ne.s32.totalorder %s124, %s125
      %p137 = scmp.eq.s32.totalorder %s31, 1
      %p138 = por %p136, %p137
      %p140 = scmp.ne.s32.totalorder %s125, %s139
      %p141 = scmp.eq.s32.totalorder %s31, 0
      %p142 = por %p140, %p141
      %s144 = sadd.s32 %s143, 1
      %p147 = scmp.eq.s32.totalorder %s25, 1
      %p148 = scmp.ne.s32.totalorder %s143, %s145
      %p149 = scmp.eq.s32.totalorder %s25, 0
      %p150 = por %p148, %p149
      %p151 = scmp.ne.s32.totalorder %s143, %s145
      %p152 = scmp.eq.s32.totalorder %s30, 1
      %p153 = por %p151, %p152
      %p154 = scmp.ne.s32.totalorder %s145, %s146
      %p155 = scmp.eq.s32.totalorder %s30, 0
      %p156 = por %p154, %p155
      %p157 = scmp.ne.s32.totalorder %s145, %s146
      %p158 = scmp.eq.s32.totalorder %s31, 1
      %p159 = por %p157, %p158
      %p161 = scmp.ne.s32.totalorder %s146, %s160
      %p162 = scmp.eq.s32.totalorder %s31, 0
      %p163 = por %p161, %p162
      %s165 = sadd.s32 %s164, 1
      %p168 = scmp.eq.s32.totalorder %s25, 1
      %p169 = scmp.ne.s32.totalorder %s164, %s166
      %p170 = scmp.eq.s32.totalorder %s25, 0
      %p171 = por %p169, %p170
      %p172 = scmp.ne.s32.totalorder %s164, %s166
      %p173 = scmp.eq.s32.totalorder %s30, 1
      %p174 = por %p172, %p173
      %p175 = scmp.ne.s32.totalorder %s166, %s167
      %p176 = scmp.eq.s32.totalorder %s30, 0
      %p177 = por %p175, %p176
      %p178 = scmp.ne.s32.totalorder %s166, %s167
      %p179 = scmp.eq.s32.totalorder %s31, 1
      %p180 = por %p178, %p179
      %p182 = scmp.ne.s32.totalorder %s167, %s181
      %p183 = scmp.eq.s32.totalorder %s31, 0
      %p184 = por %p182, %p183
      %s186 = sadd.s32 %s185, 1
      %p189 = scmp.eq.s32.totalorder %s25, 1
      %p190 = scmp.ne.s32.totalorder %s185, %s187
      %p191 = scmp.eq.s32.totalorder %s25, 0
      %p192 = por %p190, %p191
      %p193 = scmp.ne.s32.totalorder %s185, %s187
      %p194 = scmp.eq.s32.totalorder %s30, 1
      %p195 = por %p193, %p194
      %p196 = scmp.ne.s32.totalorder %s187, %s188
      %p197 = scmp.eq.s32.totalorder %s30, 0
      %p198 = por %p196, %p197
      %p199 = scmp.ne.s32.totalorder %s187, %s188
      %p200 = scmp.eq.s32.totalorder %s31, 1
      %p201 = por %p199, %p200
      %p203 = scmp.ne.s32.totalorder %s188, %s202
      %p204 = scmp.eq.s32.totalorder %s31, 0
      %p205 = por %p203, %p204
      %s207 = sadd.s32 %s206, 1
      %p210 = scmp.eq.s32.totalorder %s25, 1
      %p211 = scmp.ne.s32.totalorder %s206, %s208
      %p212 = scmp.eq.s32.totalorder %s25, 0
      %p213 = por %p211, %p212
      %p214 = scmp.ne.s32.totalorder %s206, %s208
      %p215 = scmp.eq.s32.totalorder %s30, 1
      %p216 = por %p214, %p215
      %p217 = scmp.ne.s32.totalorder %s208, %s209
      %p218 = scmp.eq.s32.totalorder %s30, 0
      %p219 = por %p217, %p218
      %p220 = scmp.ne.s32.totalorder %s208, %s209
      %p221 = scmp.eq.s32.totalorder %s31, 1
      %p222 = por %p220, %p221
      %p224 = scmp.ne.s32.totalorder %s209, %s223
      %p225 = scmp.eq.s32.totalorder %s31, 0
      %p226 = por %p224, %p225
      %s228 = sadd.s32 %s227, 1
      %p231 = scmp.eq.s32.totalorder %s25, 1
      %p232 = scmp.ne.s32.totalorder %s227, %s229
      %p233 = scmp.eq.s32.totalorder %s25, 0
      %p234 = por %p232, %p233
      %p235 = scmp.ne.s32.totalorder %s227, %s229
      %p236 = scmp.eq.s32.totalorder %s30, 1
      %p237 = por %p235, %p236
      %p238 = scmp.ne.s32.totalorder %s229, %s230
      %p239 = scmp.eq.s32.totalorder %s30, 0
      %p240 = por %p238, %p239
      %p241 = scmp.ne.s32.totalorder %s229, %s230
      %p242 = scmp.eq.s32.totalorder %s31, 1
      %p243 = por %p241, %p242
      %p245 = scmp.ne.s32.totalorder %s230, %s244
      %p246 = scmp.eq.s32.totalorder %s31, 0
      %p247 = por %p245, %p246
      %s249 = sadd.s32 %s248, 1
      %p252 = scmp.eq.s32.totalorder %s25, 1
      %p253 = scmp.ne.s32.totalorder %s248, %s250
      %p254 = scmp.eq.s32.totalorder %s25, 0
      %p255 = por %p253, %p254
      %p256 = scmp.ne.s32.totalorder %s248, %s250
      %p257 = scmp.eq.s32.totalorder %s30, 1
      %p258 = por %p256, %p257
      %p259 = scmp.ne.s32.totalorder %s250, %s251
      %p260 = scmp.eq.s32.totalorder %s30, 0
      %p261 = por %p259, %p260
      %p262 = scmp.ne.s32.totalorder %s250, %s251
      %p263 = scmp.eq.s32.totalorder %s31, 1
      %p264 = por %p262, %p263
      %p266 = scmp.ne.s32.totalorder %s251, %s265
      %p267 = scmp.eq.s32.totalorder %s31, 0
      %p268 = por %p266, %p267
      %s270 = sadd.s32 %s269, 1
      %p273 = scmp.eq.s32.totalorder %s25, 1
      %p274 = scmp.ne.s32.totalorder %s269, %s271
      %p275 = scmp.eq.s32.totalorder %s25, 0
      %p276 = por %p274, %p275
      %p277 = scmp.ne.s32.totalorder %s269, %s271
      %p278 = scmp.eq.s32.totalorder %s30, 1
      %p279 = por %p277, %p278
      %p280 = scmp.ne.s32.totalorder %s271, %s272
      %p281 = scmp.eq.s32.totalorder %s30, 0
      %p282 = por %p280, %p281
      %p283 = scmp.ne.s32.totalorder %s271, %s272
      %p284 = scmp.eq.s32.totalorder %s31, 1
      %p285 = por %p283, %p284
      %p287 = scmp.ne.s32.totalorder %s272, %s286
      %p288 = scmp.eq.s32.totalorder %s31, 0
      %p289 = por %p287, %p288
      %s291 = sadd.s32 %s290, 1
      %p294 = scmp.eq.s32.totalorder %s25, 1
      %p295 = scmp.ne.s32.totalorder %s290, %s292
      %p296 = scmp.eq.s32.totalorder %s25, 0
      %p297 = por %p295, %p296
      %p298 = scmp.ne.s32.totalorder %s290, %s292
      %p299 = scmp.eq.s32.totalorder %s30, 1
      %p300 = por %p298, %p299
      %p301 = scmp.ne.s32.totalorder %s292, %s293
      %p302 = scmp.eq.s32.totalorder %s30, 0
      %p303 = por %p301, %p302
      %p304 = scmp.ne.s32.totalorder %s292, %s293
      %p305 = scmp.eq.s32.totalorder %s31, 1
      %p306 = por %p304, %p305
      %p308 = scmp.ne.s32.totalorder %s293, %s307
      %p309 = scmp.eq.s32.totalorder %s31, 0
      %p310 = por %p308, %p309
      %s312 = sadd.s32 %s311, 1
      %p315 = scmp.eq.s32.totalorder %s25, 1
      %p316 = scmp.ne.s32.totalorder %s311, %s313
      %p317 = scmp.eq.s32.totalorder %s25, 0
      %p318 = por %p316, %p317
      %p319 = scmp.ne.s32.totalorder %s311, %s313
      %p320 = scmp.eq.s32.totalorder %s30, 1
      %p321 = por %p319, %p320
      %p322 = scmp.ne.s32.totalorder %s313, %s314
      %p323 = scmp.eq.s32.totalorder %s30, 0
      %p324 = por %p322, %p323
      %p325 = scmp.ne.s32.totalorder %s313, %s314
      %p326 = scmp.eq.s32.totalorder %s31, 1
      %p327 = por %p325, %p326
      %p329 = scmp.ne.s32.totalorder %s314, %s328
      %p330 = scmp.eq.s32.totalorder %s31, 0
      %p331 = por %p329, %p330
      %s332 = ssub.s32 %s25, %s32
      %p333 = scmp.eq.s32.totalorder %s332, 0
      %s335 = sadd.s32 %s334, 1
      %s336 = scalar_select %p333, %s334, %s335
      %p339 = pneg %p333
      %p340 = scmp.eq.s32.totalorder %s25, 1
      %p341 = por %p339, %p340
      %p342 = scmp.ne.s32.totalorder %s334, %s337
      %p343 = scmp.eq.s32.totalorder %s25, 0
      %p344 = por %p342, %p343
      %p345 = scmp.ne.s32.totalorder %s334, %s337
      %p346 = scmp.eq.s32.totalorder %s30, 1
      %p347 = por %p345, %p346
      %p348 = scmp.ne.s32.totalorder %s337, %s338
      %p349 = scmp.eq.s32.totalorder %s30, 0
      %p350 = por %p348, %p349
      %p351 = scmp.ne.s32.totalorder %s337, %s338
      %p352 = scmp.eq.s32.totalorder %s31, 1
      %p353 = por %p351, %p352
      %p355 = scmp.ne.s32.totalorder %s338, %s354
      %p356 = scmp.eq.s32.totalorder %s31, 0
      %p357 = por %p355, %p356
      %p358 = scmp.le.s32.totalorder 1, %s25
      %p359 = scmp.lt.s32.totalorder %s25, 3
      %p360 = pnand %p358, %p359
      %p361 = pneg %p360
      // Predicated region
      $region9: #{tpu_custom_call.1} parent=5 // pred_check
        _
      $region10: #{tpu_custom_call.1} parent=5 // pred_check_branch
        %363 = sbr.rel (%p360) target = $region12
      $region11: #{tpu_custom_call.1} parent=5 // pred_region
        %s364 = ssub.s32 %s25, 1
        // Predicated region
        $region13: #{tpu_custom_call.1} parent=11 // pred_check
          %p365 = pneg %p72
        $region14: #{tpu_custom_call.1} parent=11 // pred_check_branch
          %367 = sbr.rel (%p365) target = $region16
        $region15: #{tpu_custom_call.1} parent=11 // pred_region
          _
        $region16: #{tpu_custom_call.1} parent=11 // pred_fallthru
          _
        // Predicated region
        $region17: #{tpu_custom_call.1} parent=11 // pred_check
          %p368 = pneg %p93
        $region18: #{tpu_custom_call.1} parent=11 // pred_check_branch
          %370 = sbr.rel (%p368) target = $region20
        $region19: #{tpu_custom_call.1} parent=11 // pred_region
          _
        $region20: #{tpu_custom_call.1} parent=11 // pred_fallthru
          _
        // Predicated region
        $region21: #{tpu_custom_call.1} parent=11 // pred_check
          %p371 = pneg %p114
        $region22: #{tpu_custom_call.1} parent=11 // pred_check_branch
          %373 = sbr.rel (%p371) target = $region24
        $region23: #{tpu_custom_call.1} parent=11 // pred_region
          _
        $region24: #{tpu_custom_call.1} parent=11 // pred_fallthru
          _
        // Predicated region
        $region25: #{tpu_custom_call.1} parent=11 // pred_check
          %p374 = pneg %p135
        $region26: #{tpu_custom_call.1} parent=11 // pred_check_branch
          %376 = sbr.rel (%p374) target = $region28
        $region27: #{tpu_custom_call.1} parent=11 // pred_region
          _
        $region28: #{tpu_custom_call.1} parent=11 // pred_fallthru
          _
        // Predicated region
        $region29: #{tpu_custom_call.1} parent=11 // pred_check
          %p377 = pneg %p156
        $region30: #{tpu_custom_call.1} parent=11 // pred_check_branch
          %379 = sbr.rel (%p377) target = $region32
        $region31: #{tpu_custom_call.1} parent=11 // pred_region
          %s381 = ssub.s32 512, 512
          %382 = vsyncadd [#allocation5], %s381
          %s383 = sshll.u32 [#allocation4], 4
          %s384 = int_to_ptr.vmem [resolvable:$true] %s383
          %389 = dma.hbm_to_vmem [thread:$0]  %s5, 512, %s384, [#allocation5], 256, 256, 16
        $region32: #{tpu_custom_call.1} parent=11 // pred_fallthru
          _
        // Predicated region
        $region33: #{tpu_custom_call.1} parent=11 // pred_check
          %p390 = pneg %p177
        $region34: #{tpu_custom_call.1} parent=11 // pred_check_branch
          %392 = sbr.rel (%p390) target = $region36
        $region35: #{tpu_custom_call.1} parent=11 // pred_region
          _
        $region36: #{tpu_custom_call.1} parent=11 // pred_fallthru
          _
        // Predicated region
        $region37: #{tpu_custom_call.1} parent=11 // pred_check
          %p393 = pneg %p198
        $region38: #{tpu_custom_call.1} parent=11 // pred_check_branch
          %395 = sbr.rel (%p393) target = $region40
        $region39: #{tpu_custom_call.1} parent=11 // pred_region
          _
        $region40: #{tpu_custom_call.1} parent=11 // pred_fallthru
          _
        // Predicated region
        $region41: #{tpu_custom_call.1} parent=11 // pred_check
          %p396 = pneg %p219
        $region42: #{tpu_custom_call.1} parent=11 // pred_check_branch
          %398 = sbr.rel (%p396) target = $region44
        $region43: #{tpu_custom_call.1} parent=11 // pred_region
          _
        $region44: #{tpu_custom_call.1} parent=11 // pred_fallthru
          _
        // Predicated region
        $region45: #{tpu_custom_call.1} parent=11 // pred_check
          %p399 = pneg %p240
        $region46: #{tpu_custom_call.1} parent=11 // pred_check_branch
          %401 = sbr.rel (%p399) target = $region48
        $region47: #{tpu_custom_call.1} parent=11 // pred_region
          %s403 = ssub.s32 512, 512
          %404 = vsyncadd [#allocation8], %s403
          %s405 = sshll.u32 [#allocation7], 4
          %s406 = int_to_ptr.vmem [resolvable:$true] %s405
          %411 = dma.hbm_to_vmem [thread:$0]  %s9, 512, %s406, [#allocation8], 256, 256, 16
        $region48: #{tpu_custom_call.1} parent=11 // pred_fallthru
          _
        // Predicated region
        $region49: #{tpu_custom_call.1} parent=11 // pred_check
          %p412 = pneg %p261
        $region50: #{tpu_custom_call.1} parent=11 // pred_check_branch
          %414 = sbr.rel (%p412) target = $region52
        $region51: #{tpu_custom_call.1} parent=11 // pred_region
          _
        $region52: #{tpu_custom_call.1} parent=11 // pred_fallthru
          _
        // Predicated region
        $region53: #{tpu_custom_call.1} parent=11 // pred_check
          %p415 = pneg %p282
        $region54: #{tpu_custom_call.1} parent=11 // pred_check_branch
          %417 = sbr.rel (%p415) target = $region56
        $region55: #{tpu_custom_call.1} parent=11 // pred_region
          _
        $region56: #{tpu_custom_call.1} parent=11 // pred_fallthru
          _
        // Predicated region
        $region57: #{tpu_custom_call.1} parent=11 // pred_check
          %p418 = pneg %p303
        $region58: #{tpu_custom_call.1} parent=11 // pred_check_branch
          %420 = sbr.rel (%p418) target = $region60
        $region59: #{tpu_custom_call.1} parent=11 // pred_region
          _
        $region60: #{tpu_custom_call.1} parent=11 // pred_fallthru
          _
        // Predicated region
        $region61: #{tpu_custom_call.1} parent=11 // pred_check
          %p421 = pneg %p324
        $region62: #{tpu_custom_call.1} parent=11 // pred_check_branch
          %423 = sbr.rel (%p421) target = $region64
        $region63: #{tpu_custom_call.1} parent=11 // pred_region
          _
        $region64: #{tpu_custom_call.1} parent=11 // pred_fallthru
          _
      $region12: #{tpu_custom_call.1} parent=5 // pred_fallthru
        _
      %p424 = scmp.lt.s32.totalorder %s25, 2
      // Predicated region
      $region65: #{tpu_custom_call.1} parent=5 // pred_check
        %p425 = pneg %p424
      $region66: #{tpu_custom_call.1} parent=5 // pred_check_branch
        %427 = sbr.rel (%p425) target = $region68
      $region67: #{tpu_custom_call.1} parent=5 // pred_region
        // Predicated region
        $region69: #{tpu_custom_call.1} parent=67 // pred_check
          %p428 = pneg %p45
        $region70: #{tpu_custom_call.1} parent=67 // pred_check_branch
          %430 = sbr.rel (%p428) target = $region72
        $region71: #{tpu_custom_call.1} parent=67 // pred_region
          %s431 = smul.u32 8, %s25
          %p432 = scmp.lt.s32.totalorder %s431, 15
          %s433 = scalar_select %p432, %s431, 15
          %s434 = smul.addr %s433, 8
          %s435 = scalar_lea.vmem %s0, %s434
          %s436 = smul.u32 8, %s25
        $region72: #{tpu_custom_call.1} parent=67 // pred_fallthru
          _
      $region68: #{tpu_custom_call.1} parent=5 // pred_fallthru
        _
      %p437 = scmp.le.s32.totalorder 1, %s25
      %p438 = scmp.lt.s32.totalorder %s25, 3
      %p439 = pnand %p437, %p438
      %p440 = pneg %p439
      // Predicated region
      $region73: #{tpu_custom_call.1} parent=5 // pred_check
        _
      $region74: #{tpu_custom_call.1} parent=5 // pred_check_branch
        %442 = sbr.rel (%p439) target = $region76
      $region75: #{tpu_custom_call.1} parent=5 // pred_region
        %s443 = ssub.s32 %s25, 1
        // Predicated region
        $region77: #{tpu_custom_call.1} parent=75 // pred_check
          %p444 = pneg %p156
        $region78: #{tpu_custom_call.1} parent=75 // pred_check_branch
          %446 = sbr.rel (%p444) target = $region80
        $region79: #{tpu_custom_call.1} parent=75 // pred_region
          %447 = dma.done [#allocation5], 512
        $region80: #{tpu_custom_call.1} parent=75 // pred_fallthru
          _
        // Predicated region
        $region81: #{tpu_custom_call.1} parent=75 // pred_check
          %p448 = pneg %p240
        $region82: #{tpu_custom_call.1} parent=75 // pred_check_branch
          %450 = sbr.rel (%p448) target = $region84
        $region83: #{tpu_custom_call.1} parent=75 // pred_region
          %451 = dma.done [#allocation8], 512
        $region84: #{tpu_custom_call.1} parent=75 // pred_fallthru
          _
        %s452 = smul.u32 8, %s30
        %p453 = scmp.lt.s32.totalorder %s452, 15
        %s454 = scalar_select %p453, %s452, 15
        %s455 = smul.addr %s454, 8
        %s456 = scalar_lea.vmem %s0, %s455
        %p457 = pneg %p51
        %p458 = pneg %p48
        %p459 = pneg %p72
        %p460 = pneg %p69
        %p461 = pneg %p93
        %p462 = pneg %p90
        %p463 = pneg %p114
        %p464 = pneg %p111
        %p465 = pneg %p135
        %p466 = pneg %p132
        %p467 = pneg %p156
        %p468 = pneg %p153
        %p469 = pneg %p177
        %p470 = pneg %p174
        %p471 = pneg %p198
        %p472 = pneg %p195
        %p473 = pneg %p219
        %p474 = pneg %p216
        %p475 = pneg %p240
        %p476 = pneg %p237
        %p477 = pneg %p261
        %p478 = pneg %p258
        %p479 = pneg %p282
        %p480 = pneg %p279
        %p481 = pneg %p303
        %p482 = pneg %p300
        %p483 = pneg %p324
        %p484 = pneg %p321
        %p485 = pneg %p350
        %p486 = pneg %p347
        %s487 = sand.u32 %s337, 1
        %s488 = scalar_lea.sflag [#allocation6], %s487
        %s489 = sand.u32 %s337, 1
        %s490 = smul.addr %s489, 8
        %s491 = scalar_lea.vmem [#allocation9], %s490
        %s492 = smul.u32 8, %s30
        %p493 = scmp.lt.s32.totalorder %s492, 15
        %s494 = scalar_select %p493, %s492, 15
        %s495 = smul.addr %s494, 8
        %s496 = scalar_lea.vmem %s0, %s495
        %s497 = smul.u32 8, %s30
        %v498 = vld [vmem:[%s496 + $0x38] sm:$0xff]
        %v499 = vld [vmem:[%s3] sm:$0x3]
        %v500 = vld [vmem:[%s4] sm:$0x1]
        %v502 = vlaneseq
        %v503 = vshrl.u32 %v502, 7
        %v504 = vsub.s32 0, %v503
        %v505 = vrot.slane %v500, %v504
        %vm507 = vcmask 15360
        %v509 = vsel %vm507, %v498, 0
        %vm511 = vcmask 1041408
        %v513 = vsel %vm511, %v499, 0
        %515 = vmatprep.subr.mxu0 0.0
        %516 = vmatpush1.msra.mxu0 0.0
        %517 = vmatprep.subr.mxu0 0.0
        %518 = vmatpush1.msra.mxu0 0.0
        %519 = vmatprep.subr.mxu0 0.0
        %520 = vmatpush1.msra.mxu0 0.0
        %521 = vmatprep.subr.mxu0 0.0
        %522 = vmatpush1.msra.mxu0 0.0
        %523 = vmatprep.subr.mxu0 0.0
        %524 = vmatpush1.msra.mxu0 0.0
        %525 = vmatprep.subr.mxu0 0.0
        %526 = vmatpush1.msra.mxu0 0.0
        %527 = vmatprep.subr.mxu0 0.0
        %528 = vmatpush1.msra.mxu0 0.0
        %529 = vmatprep.subr.mxu0 0.0
        %530 = vmatpush1.msra.mxu0 0.0
        %531 = vmatprep.subr.mxu0 0.0
        %532 = vmatpush1.msra.mxu0 0.0
        %533 = vmatprep.subr.mxu0 0.0
        %534 = vmatpush1.msra.mxu0 0.0
        %535 = vmatprep.subr.mxu0 0.0
        %536 = vmatpush1.msra.mxu0 0.0
        %537 = vmatprep.subr.mxu0 0.0
        %538 = vmatpush1.msra.mxu0 0.0
        %539 = vmatprep.subr.mxu0 0.0
        %540 = vmatpush1.msra.mxu0 0.0
        %541 = vmatprep.subr.mxu0 0.0
        %542 = vmatpush1.msra.mxu0 0.0
        %543 = vmatprep.subr.mxu0 0.0
        %544 = vmatpush1.msra.mxu0 0.0
        %545 = vmatprep.subr.mxu0 0.0
        %546 = vmatpush1.msra.mxu0 %v513
        %547 = vmatprep.subr.mxu0 0.0
        %548 = vmatpush2.msra.mxu0 0.0
        %549 = vmatprep.subr.mxu0 0.0
        %550 = vmatpush2.msra.mxu0 0.0
        %551 = vmatprep.subr.mxu0 0.0
        %552 = vmatpush2.msra.mxu0 0.0
        %553 = vmatprep.subr.mxu0 0.0
        %554 = vmatpush2.msra.mxu0 0.0
        %555 = vmatprep.subr.mxu0 0.0
        %556 = vmatpush2.msra.mxu0 0.0
        %557 = vmatprep.subr.mxu0 0.0
        %558 = vmatpush2.msra.mxu0 0.0
        %559 = vmatprep.subr.mxu0 0.0
        %560 = vmatpush2.msra.mxu0 0.0
        %561 = vmatprep.subr.mxu0 0.0
        %562 = vmatpush2.msra.mxu0 0.0
        %563 = vmatprep.subr.mxu0 0.0
        %564 = vmatpush2.msra.mxu0 0.0
        %565 = vmatprep.subr.mxu0 0.0
        %566 = vmatpush2.msra.mxu0 0.0
        %567 = vmatprep.subr.mxu0 0.0
        %568 = vmatpush2.msra.mxu0 0.0
        %569 = vmatprep.subr.mxu0 0.0
        %570 = vmatpush2.msra.mxu0 0.0
        %571 = vmatprep.subr.mxu0 0.0
        %572 = vmatpush2.msra.mxu0 0.0
        %573 = vmatprep.subr.mxu0 0.0
        %574 = vmatpush2.msra.mxu0 0.0
        %575 = vmatprep.subr.mxu0 0.0
        %576 = vmatpush2.msra.mxu0 0.0
        %577 = vmatprep.subr.mxu0 0.0
        %578 = vmatpush2.msra.mxu0 0.0
        %579 = vmatprep.mubr.f32.mxu0 0.0
        %580 = vmatmul.mubr.f32.gmra.mxu0 %v509
        %v581 = vpop.f32.mrf.mxu0
        %v582 = vadd.f32 %v505, %v581
        %v583 = vpop.f32.mrf.mxu0
        %584 = vdwg.mxu0
        %v585 = vmax.f32 %v582, 0.0
        %v586 = vld [vmem:[#allocation7] sm:$0xff]
        %v587 = vld [vmem:[#allocation7 + $0x8] sm:$0xff]
        %v588 = vld [vmem:[#allocation7 + $0x10] sm:$0xff]
        %v589 = vld [vmem:[#allocation7 + $0x18] sm:$0xff]
        %v590 = vld [vmem:[%s11] sm:$0x3]
        %v592 = vlaneseq
        %v593 = vshrl.u32 %v592, 7
        %v594 = vsub.s32 0, %v593
        %v595 = vrot.slane %v590, %v594
        %v596 = vlaneseq
        %v597 = vshrl.u32 %v596, 7
        %v598 = vsub.s32 1, %v597
        %v599 = vrot.slane %v590, %v598
        %vm602 = vcmask 130048
        %v604 = vsel %vm602, %v585, 0
        %606 = vmatprep.subr.mxu0 0.0
        %607 = vmatpush1.msra.mxu0 0.0
        %608 = vmatprep.subr.mxu0 0.0
        %609 = vmatpush1.msra.mxu0 0.0
        %610 = vmatprep.subr.mxu0 0.0
        %611 = vmatpush1.msra.mxu0 0.0
        %612 = vmatprep.subr.mxu0 0.0
        %613 = vmatpush1.msra.mxu0 0.0
        %614 = vmatprep.subr.mxu0 0.0
        %615 = vmatpush1.msra.mxu0 0.0
        %616 = vmatprep.subr.mxu0 0.0
        %617 = vmatpush1.msra.mxu0 0.0
        %618 = vmatprep.subr.mxu0 0.0
        %619 = vmatpush1.msra.mxu0 0.0
        %620 = vmatprep.subr.mxu0 0.0
        %621 = vmatpush1.msra.mxu0 0.0
        %622 = vmatprep.subr.mxu0 0.0
        %623 = vmatpush1.msra.mxu0 0.0
        %624 = vmatprep.subr.mxu0 0.0
        %625 = vmatpush1.msra.mxu0 0.0
        %626 = vmatprep.subr.mxu0 0.0
        %627 = vmatpush1.msra.mxu0 0.0
        %628 = vmatprep.subr.mxu0 0.0
        %629 = vmatpush1.msra.mxu0 0.0
        %630 = vmatprep.subr.mxu0 0.0
        %631 = vmatpush1.msra.mxu0 0.0
        %632 = vmatprep.subr.mxu0 0.0
        %633 = vmatpush1.msra.mxu0 0.0
        %634 = vmatprep.subr.mxu0 %v589
        %635 = vmatpush1.msra.mxu0 %v588
        %636 = vmatprep.subr.mxu0 %v587
        %637 = vmatpush1.msra.mxu0 %v586
        %638 = vmatprep.subr.mxu0 0.0
        %639 = vmatpush2.msra.mxu0 0.0
        %640 = vmatprep.subr.mxu0 0.0
        %641 = vmatpush2.msra.mxu0 0.0
        %642 = vmatprep.subr.mxu0 0.0
        %643 = vmatpush2.msra.mxu0 0.0
        %644 = vmatprep.subr.mxu0 0.0
        %645 = vmatpush2.msra.mxu0 0.0
        %646 = vmatprep.subr.mxu0 0.0
        %647 = vmatpush2.msra.mxu0 0.0
        %648 = vmatprep.subr.mxu0 0.0
        %649 = vmatpush2.msra.mxu0 0.0
        %650 = vmatprep.subr.mxu0 0.0
        %651 = vmatpush2.msra.mxu0 0.0
        %652 = vmatprep.subr.mxu0 0.0
        %653 = vmatpush2.msra.mxu0 0.0
        %654 = vmatprep.subr.mxu0 0.0
        %655 = vmatpush2.msra.mxu0 0.0
        %656 = vmatprep.subr.mxu0 0.0
        %657 = vmatpush2.msra.mxu0 0.0
        %658 = vmatprep.subr.mxu0 0.0
        %659 = vmatpush2.msra.mxu0 0.0
        %660 = vmatprep.subr.mxu0 0.0
        %661 = vmatpush2.msra.mxu0 0.0
        %662 = vmatprep.subr.mxu0 0.0
        %663 = vmatpush2.msra.mxu0 0.0
        %664 = vmatprep.subr.mxu0 0.0
        %665 = vmatpush2.msra.mxu0 0.0
        %666 = vmatprep.subr.mxu0 0.0
        %667 = vmatpush2.msra.mxu0 0.0
        %668 = vmatprep.subr.mxu0 0.0
        %669 = vmatpush2.msra.mxu0 0.0
        %670 = vmatprep.mubr.f32.mxu0 0.0
        %671 = vmatmul.mubr.f32.gmra.mxu0 %v604
        %v672 = vpop.f32.mrf.mxu0
        %v673 = vadd.f32 %v595, %v672
        %v674 = vpop.f32.mrf.mxu0
        %v675 = vadd.f32 %v599, %v674
        %676 = vdwg.mxu0
        %v677 = vxor.u32 %v673, 2147483648
        %v678 = vmul.f32 %v677, 1.442695
        %v679 = vpow.pop %v678
        %v680 = vadd.f32 %v679, 1.0
        %v681 = vrcp.pop %v680
        %v682 = vmul.f32 1.0, %v681
        %v683 = vtanh.pop %v673
        %v684 = vmul.f32 %v682, 0.0
        %686 = vrot.lane.b32.xlu0 %v683, 64
        %v687 = vpop.permute.xlu0 %686
        %v689 = vmul.f32 %v682, %v687
        %691 = vrot.lane.b32.xlu0 %v689, 32
        %v692 = vpop.permute.xlu0 %691
        %v694 = vadd.f32 %v684, %v692
        %v695 = vtanh.pop %v694
        %697 = vrot.lane.b32.xlu0 %v695, 64
        %v698 = vpop.permute.xlu0 %697
        %v700 = vmul.f32 %v682, %v698
        %v701 = vxor.u32 %v675, 2147483648
        %v702 = vmul.f32 %v701, 1.442695
        %v703 = vpow.pop %v702
        %v704 = vadd.f32 %v703, 1.0
        %v705 = vrcp.pop %v704
        %v706 = vmul.f32 1.0, %v705
        %v707 = vtanh.pop %v675
        %v708 = vmul.f32 %v706, 0.0
        %710 = vrot.lane.b32.xlu0 %v707, 64
        %v711 = vpop.permute.xlu0 %710
        %v713 = vmul.f32 %v706, %v711
        %715 = vrot.lane.b32.xlu0 %v713, 32
        %v716 = vpop.permute.xlu0 %715
        %v718 = vadd.f32 %v708, %v716
        %v719 = vtanh.pop %v718
        %721 = vrot.lane.b32.xlu0 %v719, 64
        %v722 = vpop.permute.xlu0 %721
        %v724 = vmul.f32 %v706, %v722
        %v725 = vld [vmem:[%s10] sm:$0xff]
        %v726 = vld [vmem:[%s10 + $0x8] sm:$0xff]
        %v727 = vld [vmem:[%s10 + $0x10] sm:$0xff]
        %v728 = vld [vmem:[%s10 + $0x18] sm:$0xff]
        %v729 = vld [vmem:[%s10 + $0x20] sm:$0xff]
        %v730 = vld [vmem:[%s10 + $0x28] sm:$0xff]
        %v731 = vld [vmem:[%s10 + $0x30] sm:$0xff]
        %v732 = vld [vmem:[%s10 + $0x38] sm:$0xff]
        %v733 = vld [vmem:[%s10 + $0x40] sm:$0xff]
        %v734 = vld [vmem:[%s10 + $0x48] sm:$0xff]
        %v735 = vld [vmem:[%s10 + $0x50] sm:$0xff]
        %v736 = vld [vmem:[%s10 + $0x58] sm:$0xff]
        %v737 = vld [vmem:[%s10 + $0x60] sm:$0xff]
        %v738 = vld [vmem:[%s10 + $0x68] sm:$0xff]
        %v739 = vld [vmem:[%s10 + $0x70] sm:$0xff]
        %v740 = vld [vmem:[%s10 + $0x78] sm:$0xff]
        %742 = vrot.lane.b32.xlu0 %v724, 32
        %v743 = vpop.permute.xlu0 %742
        %vm744 = vcmask 261120
        %v745 = vsel %vm744, %v743, 0
        %747 = vmatprep.subr.mxu0 0.0
        %748 = vmatpush1.msra.mxu0 0.0
        %749 = vmatprep.subr.mxu0 0.0
        %750 = vmatpush1.msra.mxu0 0.0
        %751 = vmatprep.subr.mxu0 0.0
        %752 = vmatpush1.msra.mxu0 0.0
        %753 = vmatprep.subr.mxu0 0.0
        %754 = vmatpush1.msra.mxu0 0.0
        %755 = vmatprep.subr.mxu0 0.0
        %756 = vmatpush1.msra.mxu0 0.0
        %757 = vmatprep.subr.mxu0 0.0
        %758 = vmatpush1.msra.mxu0 0.0
        %759 = vmatprep.subr.mxu0 0.0
        %760 = vmatpush1.msra.mxu0 0.0
        %761 = vmatprep.subr.mxu0 0.0
        %762 = vmatpush1.msra.mxu0 0.0
        %763 = vmatprep.subr.mxu0 0.0
        %764 = vmatpush1.msra.mxu0 0.0
        %765 = vmatprep.subr.mxu0 0.0
        %766 = vmatpush1.msra.mxu0 0.0
        %767 = vmatprep.subr.mxu0 0.0
        %768 = vmatpush1.msra.mxu0 0.0
        %769 = vmatprep.subr.mxu0 0.0
        %770 = vmatpush1.msra.mxu0 0.0
        %771 = vmatprep.subr.mxu0 %v740
        %772 = vmatpush1.msra.mxu0 %v739
        %773 = vmatprep.subr.mxu0 %v738
        %774 = vmatpush1.msra.mxu0 %v737
        %775 = vmatprep.subr.mxu0 %v736
        %776 = vmatpush1.msra.mxu0 %v735
        %777 = vmatprep.subr.mxu0 %v734
        %778 = vmatpush1.msra.mxu0 %v733
        %779 = vmatprep.subr.mxu0 0.0
        %780 = vmatpush2.msra.mxu0 0.0
        %781 = vmatprep.subr.mxu0 0.0
        %782 = vmatpush2.msra.mxu0 0.0
        %783 = vmatprep.subr.mxu0 0.0
        %784 = vmatpush2.msra.mxu0 0.0
        %785 = vmatprep.subr.mxu0 0.0
        %786 = vmatpush2.msra.mxu0 0.0
        %787 = vmatprep.subr.mxu0 0.0
        %788 = vmatpush2.msra.mxu0 0.0
        %789 = vmatprep.subr.mxu0 0.0
        %790 = vmatpush2.msra.mxu0 0.0
        %791 = vmatprep.subr.mxu0 0.0
        %792 = vmatpush2.msra.mxu0 0.0
        %793 = vmatprep.subr.mxu0 0.0
        %794 = vmatpush2.msra.mxu0 0.0
        %795 = vmatprep.subr.mxu0 0.0
        %796 = vmatpush2.msra.mxu0 0.0
        %797 = vmatprep.subr.mxu0 0.0
        %798 = vmatpush2.msra.mxu0 0.0
        %799 = vmatprep.subr.mxu0 0.0
        %800 = vmatpush2.msra.mxu0 0.0
        %801 = vmatprep.subr.mxu0 0.0
        %802 = vmatpush2.msra.mxu0 0.0
        %803 = vmatprep.subr.mxu0 0.0
        %804 = vmatpush2.msra.mxu0 0.0
        %805 = vmatprep.subr.mxu0 0.0
        %806 = vmatpush2.msra.mxu0 0.0
        %807 = vmatprep.subr.mxu0 0.0
        %808 = vmatpush2.msra.mxu0 0.0
        %809 = vmatprep.subr.mxu0 0.0
        %810 = vmatpush2.msra.mxu0 0.0
        %811 = vmatprep.mubr.f32.mxu0 0.0
        %812 = vmatmul.mubr.f32.gmra.mxu0 %v745
        %v813 = vpop.f32.mrf.mxu0
        %v814 = vadd.f32 0.0, %v813
        %v815 = vpop.f32.mrf.mxu0
        %v816 = vadd.f32 0.0, %v815
        %817 = vdwg.mxu0
        %819 = vrot.lane.b32.xlu0 %v700, 32
        %v820 = vpop.permute.xlu0 %819
        %v821 = vsel %vm744, %v820, 0
        %823 = vmatprep.subr.mxu0 0.0
        %824 = vmatpush1.msra.mxu0 0.0
        %825 = vmatprep.subr.mxu0 0.0
        %826 = vmatpush1.msra.mxu0 0.0
        %827 = vmatprep.subr.mxu0 0.0
        %828 = vmatpush1.msra.mxu0 0.0
        %829 = vmatprep.subr.mxu0 0.0
        %830 = vmatpush1.msra.mxu0 0.0
        %831 = vmatprep.subr.mxu0 0.0
        %832 = vmatpush1.msra.mxu0 0.0
        %833 = vmatprep.subr.mxu0 0.0
        %834 = vmatpush1.msra.mxu0 0.0
        %835 = vmatprep.subr.mxu0 0.0
        %836 = vmatpush1.msra.mxu0 0.0
        %837 = vmatprep.subr.mxu0 0.0
        %838 = vmatpush1.msra.mxu0 0.0
        %839 = vmatprep.subr.mxu0 0.0
        %840 = vmatpush1.msra.mxu0 0.0
        %841 = vmatprep.subr.mxu0 0.0
        %842 = vmatpush1.msra.mxu0 0.0
        %843 = vmatprep.subr.mxu0 0.0
        %844 = vmatpush1.msra.mxu0 0.0
        %845 = vmatprep.subr.mxu0 0.0
        %846 = vmatpush1.msra.mxu0 0.0
        %847 = vmatprep.subr.mxu0 %v732
        %848 = vmatpush1.msra.mxu0 %v731
        %849 = vmatprep.subr.mxu0 %v730
        %850 = vmatpush1.msra.mxu0 %v729
        %851 = vmatprep.subr.mxu0 %v728
        %852 = vmatpush1.msra.mxu0 %v727
        %853 = vmatprep.subr.mxu0 %v726
        %854 = vmatpush1.msra.mxu0 %v725
        %855 = vmatprep.subr.mxu0 0.0
        %856 = vmatpush2.msra.mxu0 0.0
        %857 = vmatprep.subr.mxu0 0.0
        %858 = vmatpush2.msra.mxu0 0.0
        %859 = vmatprep.subr.mxu0 0.0
        %860 = vmatpush2.msra.mxu0 0.0
        %861 = vmatprep.subr.mxu0 0.0
        %862 = vmatpush2.msra.mxu0 0.0
        %863 = vmatprep.subr.mxu0 0.0
        %864 = vmatpush2.msra.mxu0 0.0
        %865 = vmatprep.subr.mxu0 0.0
        %866 = vmatpush2.msra.mxu0 0.0
        %867 = vmatprep.subr.mxu0 0.0
        %868 = vmatpush2.msra.mxu0 0.0
        %869 = vmatprep.subr.mxu0 0.0
        %870 = vmatpush2.msra.mxu0 0.0
        %871 = vmatprep.subr.mxu0 0.0
        %872 = vmatpush2.msra.mxu0 0.0
        %873 = vmatprep.subr.mxu0 0.0
        %874 = vmatpush2.msra.mxu0 0.0
        %875 = vmatprep.subr.mxu0 0.0
        %876 = vmatpush2.msra.mxu0 0.0
        %877 = vmatprep.subr.mxu0 0.0
        %878 = vmatpush2.msra.mxu0 0.0
        %879 = vmatprep.subr.mxu0 0.0
        %880 = vmatpush2.msra.mxu0 0.0
        %881 = vmatprep.subr.mxu0 0.0
        %882 = vmatpush2.msra.mxu0 0.0
        %883 = vmatprep.subr.mxu0 0.0
        %884 = vmatpush2.msra.mxu0 0.0
        %885 = vmatprep.subr.mxu0 0.0
        %886 = vmatpush2.msra.mxu0 0.0
        %887 = vmatprep.mubr.f32.mxu0 0.0
        %888 = vmatmul.mubr.f32.gmra.mxu0 %v821
        %v889 = vpop.f32.mrf.mxu0
        %v890 = vadd.f32 %v814, %v889
        %v891 = vpop.f32.mrf.mxu0
        %v892 = vadd.f32 %v816, %v891
        %893 = vdwg.mxu0
        %s894 = scalar_lea.vmem %s11, 2
        %v895 = vld [vmem:[%s894] sm:$0x3]
        %v897 = vlaneseq
        %v898 = vshrl.u32 %v897, 7
        %v899 = vsub.s32 0, %v898
        %v900 = vrot.slane %v895, %v899
        %v901 = vlaneseq
        %v902 = vshrl.u32 %v901, 7
        %v903 = vsub.s32 1, %v902
        %v904 = vrot.slane %v895, %v903
        %v907 = vadd.f32 %v890, %v900
        %v908 = vadd.f32 %v892, %v904
        %v909 = vxor.u32 %v907, 2147483648
        %v910 = vmul.f32 %v909, 1.442695
        %v911 = vpow.pop %v910
        %v912 = vadd.f32 %v911, 1.0
        %v913 = vrcp.pop %v912
        %v914 = vmul.f32 1.0, %v913
        %v915 = vtanh.pop %v907
        %v916 = vmul.f32 %v914, 0.0
        %918 = vrot.lane.b32.xlu0 %v915, 64
        %v919 = vpop.permute.xlu0 %918
        %v921 = vmul.f32 %v914, %v919
        %923 = vrot.lane.b32.xlu0 %v921, 32
        %v924 = vpop.permute.xlu0 %923
        %v926 = vadd.f32 %v916, %v924
        %v927 = vtanh.pop %v926
        %929 = vrot.lane.b32.xlu0 %v927, 64
        %v930 = vpop.permute.xlu0 %929
        %v932 = vmul.f32 %v914, %v930
        %v933 = vxor.u32 %v908, 2147483648
        %v934 = vmul.f32 %v933, 1.442695
        %v935 = vpow.pop %v934
        %v936 = vadd.f32 %v935, 1.0
        %v937 = vrcp.pop %v936
        %v938 = vmul.f32 1.0, %v937
        %v939 = vtanh.pop %v908
        %v940 = vmul.f32 %v938, 0.0
        %942 = vrot.lane.b32.xlu0 %v939, 64
        %v943 = vpop.permute.xlu0 %942
        %v945 = vmul.f32 %v938, %v943
        %947 = vrot.lane.b32.xlu0 %v945, 32
        %v948 = vpop.permute.xlu0 %947
        %v950 = vadd.f32 %v940, %v948
        %v951 = vtanh.pop %v950
        %953 = vrot.lane.b32.xlu0 %v951, 64
        %v954 = vpop.permute.xlu0 %953
        %v956 = vmul.f32 %v938, %v954
        %s957 = scalar_lea.vmem %s10, 128
        %v958 = vld [vmem:[%s957] sm:$0xff]
        %v959 = vld [vmem:[%s957 + $0x8] sm:$0xff]
        %v960 = vld [vmem:[%s957 + $0x10] sm:$0xff]
        %v961 = vld [vmem:[%s957 + $0x18] sm:$0xff]
        %v962 = vld [vmem:[%s957 + $0x20] sm:$0xff]
        %v963 = vld [vmem:[%s957 + $0x28] sm:$0xff]
        %v964 = vld [vmem:[%s957 + $0x30] sm:$0xff]
        %v965 = vld [vmem:[%s957 + $0x38] sm:$0xff]
        %v966 = vld [vmem:[%s957 + $0x40] sm:$0xff]
        %v967 = vld [vmem:[%s957 + $0x48] sm:$0xff]
        %v968 = vld [vmem:[%s957 + $0x50] sm:$0xff]
        %v969 = vld [vmem:[%s957 + $0x58] sm:$0xff]
        %v970 = vld [vmem:[%s957 + $0x60] sm:$0xff]
        %v971 = vld [vmem:[%s957 + $0x68] sm:$0xff]
        %v972 = vld [vmem:[%s957 + $0x70] sm:$0xff]
        %v973 = vld [vmem:[%s957 + $0x78] sm:$0xff]
        %975 = vrot.lane.b32.xlu0 %v956, 32
        %v976 = vpop.permute.xlu0 %975
        %v977 = vsel %vm744, %v976, 0
        %979 = vmatprep.subr.mxu0 0.0
        %980 = vmatpush1.msra.mxu0 0.0
        %981 = vmatprep.subr.mxu0 0.0
        %982 = vmatpush1.msra.mxu0 0.0
        %983 = vmatprep.subr.mxu0 0.0
        %984 = vmatpush1.msra.mxu0 0.0
        %985 = vmatprep.subr.mxu0 0.0
        %986 = vmatpush1.msra.mxu0 0.0
        %987 = vmatprep.subr.mxu0 0.0
        %988 = vmatpush1.msra.mxu0 0.0
        %989 = vmatprep.subr.mxu0 0.0
        %990 = vmatpush1.msra.mxu0 0.0
        %991 = vmatprep.subr.mxu0 0.0
        %992 = vmatpush1.msra.mxu0 0.0
        %993 = vmatprep.subr.mxu0 0.0
        %994 = vmatpush1.msra.mxu0 0.0
        %995 = vmatprep.subr.mxu0 0.0
        %996 = vmatpush1.msra.mxu0 0.0
        %997 = vmatprep.subr.mxu0 0.0
        %998 = vmatpush1.msra.mxu0 0.0
        %999 = vmatprep.subr.mxu0 0.0
        %1000 = vmatpush1.msra.mxu0 0.0
        %1001 = vmatprep.subr.mxu0 0.0
        %1002 = vmatpush1.msra.mxu0 0.0
        %1003 = vmatprep.subr.mxu0 %v973
        %1004 = vmatpush1.msra.mxu0 %v972
        %1005 = vmatprep.subr.mxu0 %v971
        %1006 = vmatpush1.msra.mxu0 %v970
        %1007 = vmatprep.subr.mxu0 %v969
        %1008 = vmatpush1.msra.mxu0 %v968
        %1009 = vmatprep.subr.mxu0 %v967
        %1010 = vmatpush1.msra.mxu0 %v966
        %1011 = vmatprep.subr.mxu0 0.0
        %1012 = vmatpush2.msra.mxu0 0.0
        %1013 = vmatprep.subr.mxu0 0.0
        %1014 = vmatpush2.msra.mxu0 0.0
        %1015 = vmatprep.subr.mxu0 0.0
        %1016 = vmatpush2.msra.mxu0 0.0
        %1017 = vmatprep.subr.mxu0 0.0
        %1018 = vmatpush2.msra.mxu0 0.0
        %1019 = vmatprep.subr.mxu0 0.0
        %1020 = vmatpush2.msra.mxu0 0.0
        %1021 = vmatprep.subr.mxu0 0.0
        %1022 = vmatpush2.msra.mxu0 0.0
        %1023 = vmatprep.subr.mxu0 0.0
        %1024 = vmatpush2.msra.mxu0 0.0
        %1025 = vmatprep.subr.mxu0 0.0
        %1026 = vmatpush2.msra.mxu0 0.0
        %1027 = vmatprep.subr.mxu0 0.0
        %1028 = vmatpush2.msra.mxu0 0.0
        %1029 = vmatprep.subr.mxu0 0.0
        %1030 = vmatpush2.msra.mxu0 0.0
        %1031 = vmatprep.subr.mxu0 0.0
        %1032 = vmatpush2.msra.mxu0 0.0
        %1033 = vmatprep.subr.mxu0 0.0
        %1034 = vmatpush2.msra.mxu0 0.0
        %1035 = vmatprep.subr.mxu0 0.0
        %1036 = vmatpush2.msra.mxu0 0.0
        %1037 = vmatprep.subr.mxu0 0.0
        %1038 = vmatpush2.msra.mxu0 0.0
        %1039 = vmatprep.subr.mxu0 0.0
        %1040 = vmatpush2.msra.mxu0 0.0
        %1041 = vmatprep.subr.mxu0 0.0
        %1042 = vmatpush2.msra.mxu0 0.0
        %1043 = vmatprep.mubr.f32.mxu0 0.0
        %1044 = vmatmul.mubr.f32.gmra.mxu0 %v977
        %v1045 = vpop.f32.mrf.mxu0
        %v1046 = vadd.f32 0.0, %v1045
        %v1047 = vpop.f32.mrf.mxu0
        %v1048 = vadd.f32 0.0, %v1047
        %1049 = vdwg.mxu0
        %1051 = vrot.lane.b32.xlu0 %v932, 32
        %v1052 = vpop.permute.xlu0 %1051
        %v1053 = vsel %vm744, %v1052, 0
        %1055 = vmatprep.subr.mxu0 0.0
        %1056 = vmatpush1.msra.mxu0 0.0
        %1057 = vmatprep.subr.mxu0 0.0
        %1058 = vmatpush1.msra.mxu0 0.0
        %1059 = vmatprep.subr.mxu0 0.0
        %1060 = vmatpush1.msra.mxu0 0.0
        %1061 = vmatprep.subr.mxu0 0.0
        %1062 = vmatpush1.msra.mxu0 0.0
        %1063 = vmatprep.subr.mxu0 0.0
        %1064 = vmatpush1.msra.mxu0 0.0
        %1065 = vmatprep.subr.mxu0 0.0
        %1066 = vmatpush1.msra.mxu0 0.0
        %1067 = vmatprep.subr.mxu0 0.0
        %1068 = vmatpush1.msra.mxu0 0.0
        %1069 = vmatprep.subr.mxu0 0.0
        %1070 = vmatpush1.msra.mxu0 0.0
        %1071 = vmatprep.subr.mxu0 0.0
        %1072 = vmatpush1.msra.mxu0 0.0
        %1073 = vmatprep.subr.mxu0 0.0
        %1074 = vmatpush1.msra.mxu0 0.0
        %1075 = vmatprep.subr.mxu0 0.0
        %1076 = vmatpush1.msra.mxu0 0.0
        %1077 = vmatprep.subr.mxu0 0.0
        %1078 = vmatpush1.msra.mxu0 0.0
        %1079 = vmatprep.subr.mxu0 %v965
        %1080 = vmatpush1.msra.mxu0 %v964
        %1081 = vmatprep.subr.mxu0 %v963
        %1082 = vmatpush1.msra.mxu0 %v962
        %1083 = vmatprep.subr.mxu0 %v961
        %1084 = vmatpush1.msra.mxu0 %v960
        %1085 = vmatprep.subr.mxu0 %v959
        %1086 = vmatpush1.msra.mxu0 %v958
        %1087 = vmatprep.subr.mxu0 0.0
        %1088 = vmatpush2.msra.mxu0 0.0
        %1089 = vmatprep.subr.mxu0 0.0
        %1090 = vmatpush2.msra.mxu0 0.0
        %1091 = vmatprep.subr.mxu0 0.0
        %1092 = vmatpush2.msra.mxu0 0.0
        %1093 = vmatprep.subr.mxu0 0.0
        %1094 = vmatpush2.msra.mxu0 0.0
        %1095 = vmatprep.subr.mxu0 0.0
        %1096 = vmatpush2.msra.mxu0 0.0
        %1097 = vmatprep.subr.mxu0 0.0
        %1098 = vmatpush2.msra.mxu0 0.0
        %1099 = vmatprep.subr.mxu0 0.0
        %1100 = vmatpush2.msra.mxu0 0.0
        %1101 = vmatprep.subr.mxu0 0.0
        %1102 = vmatpush2.msra.mxu0 0.0
        %1103 = vmatprep.subr.mxu0 0.0
        %1104 = vmatpush2.msra.mxu0 0.0
        %1105 = vmatprep.subr.mxu0 0.0
        %1106 = vmatpush2.msra.mxu0 0.0
        %1107 = vmatprep.subr.mxu0 0.0
        %1108 = vmatpush2.msra.mxu0 0.0
        %1109 = vmatprep.subr.mxu0 0.0
        %1110 = vmatpush2.msra.mxu0 0.0
        %1111 = vmatprep.subr.mxu0 0.0
        %1112 = vmatpush2.msra.mxu0 0.0
        %1113 = vmatprep.subr.mxu0 0.0
        %1114 = vmatpush2.msra.mxu0 0.0
        %1115 = vmatprep.subr.mxu0 0.0
        %1116 = vmatpush2.msra.mxu0 0.0
        %1117 = vmatprep.subr.mxu0 0.0
        %1118 = vmatpush2.msra.mxu0 0.0
        %1119 = vmatprep.mubr.f32.mxu0 0.0
        %1120 = vmatmul.mubr.f32.gmra.mxu0 %v1053
        %v1121 = vpop.f32.mrf.mxu0
        %v1122 = vadd.f32 %v1046, %v1121
        %v1123 = vpop.f32.mrf.mxu0
        %v1124 = vadd.f32 %v1048, %v1123
        %1125 = vdwg.mxu0
        %s1126 = scalar_lea.vmem %s11, 4
        %v1127 = vld [vmem:[%s1126] sm:$0x3]
        %v1129 = vlaneseq
        %v1130 = vshrl.u32 %v1129, 7
        %v1131 = vsub.s32 0, %v1130
        %v1132 = vrot.slane %v1127, %v1131
        %v1133 = vlaneseq
        %v1134 = vshrl.u32 %v1133, 7
        %v1135 = vsub.s32 1, %v1134
        %v1136 = vrot.slane %v1127, %v1135
        %v1139 = vadd.f32 %v1122, %v1132
        %v1140 = vadd.f32 %v1124, %v1136
        %v1141 = vxor.u32 %v1139, 2147483648
        %v1142 = vmul.f32 %v1141, 1.442695
        %v1143 = vpow.pop %v1142
        %v1144 = vadd.f32 %v1143, 1.0
        %v1145 = vrcp.pop %v1144
        %v1146 = vmul.f32 1.0, %v1145
        %v1147 = vtanh.pop %v1139
        %v1148 = vmul.f32 %v1146, 0.0
        %1150 = vrot.lane.b32.xlu0 %v1147, 64
        %v1151 = vpop.permute.xlu0 %1150
        %v1153 = vmul.f32 %v1146, %v1151
        %1155 = vrot.lane.b32.xlu0 %v1153, 32
        %v1156 = vpop.permute.xlu0 %1155
        %v1158 = vadd.f32 %v1148, %v1156
        %v1159 = vtanh.pop %v1158
        %1161 = vrot.lane.b32.xlu0 %v1159, 64
        %v1162 = vpop.permute.xlu0 %1161
        %v1164 = vmul.f32 %v1146, %v1162
        %v1165 = vxor.u32 %v1140, 2147483648
        %v1166 = vmul.f32 %v1165, 1.442695
        %v1167 = vpow.pop %v1166
        %v1168 = vadd.f32 %v1167, 1.0
        %v1169 = vrcp.pop %v1168
        %v1170 = vmul.f32 1.0, %v1169
        %v1171 = vtanh.pop %v1140
        %v1172 = vmul.f32 %v1170, 0.0
        %1174 = vrot.lane.b32.xlu0 %v1171, 64
        %v1175 = vpop.permute.xlu0 %1174
        %v1177 = vmul.f32 %v1170, %v1175
        %1179 = vrot.lane.b32.xlu0 %v1177, 32
        %v1180 = vpop.permute.xlu0 %1179
        %v1182 = vadd.f32 %v1172, %v1180
        %v1183 = vtanh.pop %v1182
        %1185 = vrot.lane.b32.xlu0 %v1183, 64
        %v1186 = vpop.permute.xlu0 %1185
        %v1188 = vmul.f32 %v1170, %v1186
        %v1189 = vld [vmem:[%s496] sm:$0xff]
        %v1190 = vld [vmem:[%s496 + $0x8] sm:$0xff]
        %v1191 = vld [vmem:[%s496 + $0x10] sm:$0xff]
        %v1192 = vld [vmem:[%s496 + $0x18] sm:$0xff]
        %v1193 = vld [vmem:[%s496 + $0x20] sm:$0xff]
        %v1194 = vld [vmem:[%s496 + $0x28] sm:$0xff]
        %v1195 = vld [vmem:[%s496 + $0x30] sm:$0xff]
        %v1196 = vld [vmem:[%s1] sm:$0x3]
        %v1197 = vld [vmem:[%s2] sm:$0x1]
        %v1199 = vlaneseq
        %v1200 = vshrl.u32 %v1199, 7
        %v1201 = vsub.s32 0, %v1200
        %v1202 = vrot.slane %v1197, %v1201
        %v1205 = vsel %vm507, %v1189, 0
        %v1208 = vsel %vm507, %v1190, 0
        %v1211 = vsel %vm507, %v1191, 0
        %v1214 = vsel %vm507, %v1192, 0
        %v1217 = vsel %vm507, %v1193, 0
        %v1220 = vsel %vm507, %v1194, 0
        %v1223 = vsel %vm507, %v1195, 0
        %v1226 = vsel %vm511, %v1196, 0
        %1228 = vmatprep.subr.mxu0 0.0
        %1229 = vmatpush1.msra.mxu0 0.0
        %1230 = vmatprep.subr.mxu0 0.0
        %1231 = vmatpush1.msra.mxu0 0.0
        %1232 = vmatprep.subr.mxu0 0.0
        %1233 = vmatpush1.msra.mxu0 0.0
        %1234 = vmatprep.subr.mxu0 0.0
        %1235 = vmatpush1.msra.mxu0 0.0
        %1236 = vmatprep.subr.mxu0 0.0
        %1237 = vmatpush1.msra.mxu0 0.0
        %1238 = vmatprep.subr.mxu0 0.0
        %1239 = vmatpush1.msra.mxu0 0.0
        %1240 = vmatprep.subr.mxu0 0.0
        %1241 = vmatpush1.msra.mxu0 0.0
        %1242 = vmatprep.subr.mxu0 0.0
        %1243 = vmatpush1.msra.mxu0 0.0
        %1244 = vmatprep.subr.mxu0 0.0
        %1245 = vmatpush1.msra.mxu0 0.0
        %1246 = vmatprep.subr.mxu0 0.0
        %1247 = vmatpush1.msra.mxu0 0.0
        %1248 = vmatprep.subr.mxu0 0.0
        %1249 = vmatpush1.msra.mxu0 0.0
        %1250 = vmatprep.subr.mxu0 0.0
        %1251 = vmatpush1.msra.mxu0 0.0
        %1252 = vmatprep.subr.mxu0 0.0
        %1253 = vmatpush1.msra.mxu0 0.0
        %1254 = vmatprep.subr.mxu0 0.0
        %1255 = vmatpush1.msra.mxu0 0.0
        %1256 = vmatprep.subr.mxu0 0.0
        %1257 = vmatpush1.msra.mxu0 0.0
        %1258 = vmatprep.subr.mxu0 0.0
        %1259 = vmatpush1.msra.mxu0 %v1226
        %1260 = vmatprep.subr.mxu0 0.0
        %1261 = vmatpush2.msra.mxu0 0.0
        %1262 = vmatprep.subr.mxu0 0.0
        %1263 = vmatpush2.msra.mxu0 0.0
        %1264 = vmatprep.subr.mxu0 0.0
        %1265 = vmatpush2.msra.mxu0 0.0
        %1266 = vmatprep.subr.mxu0 0.0
        %1267 = vmatpush2.msra.mxu0 0.0
        %1268 = vmatprep.subr.mxu0 0.0
        %1269 = vmatpush2.msra.mxu0 0.0
        %1270 = vmatprep.subr.mxu0 0.0
        %1271 = vmatpush2.msra.mxu0 0.0
        %1272 = vmatprep.subr.mxu0 0.0
        %1273 = vmatpush2.msra.mxu0 0.0
        %1274 = vmatprep.subr.mxu0 0.0
        %1275 = vmatpush2.msra.mxu0 0.0
        %1276 = vmatprep.subr.mxu0 0.0
        %1277 = vmatpush2.msra.mxu0 0.0
        %1278 = vmatprep.subr.mxu0 0.0
        %1279 = vmatpush2.msra.mxu0 0.0
        %1280 = vmatprep.subr.mxu0 0.0
        %1281 = vmatpush2.msra.mxu0 0.0
        %1282 = vmatprep.subr.mxu0 0.0
        %1283 = vmatpush2.msra.mxu0 0.0
        %1284 = vmatprep.subr.mxu0 0.0
        %1285 = vmatpush2.msra.mxu0 0.0
        %1286 = vmatprep.subr.mxu0 0.0
        %1287 = vmatpush2.msra.mxu0 0.0
        %1288 = vmatprep.subr.mxu0 0.0
        %1289 = vmatpush2.msra.mxu0 0.0
        %1290 = vmatprep.subr.mxu0 0.0
        %1291 = vmatpush2.msra.mxu0 0.0
        %1292 = vmatprep.mubr.f32.mxu0 0.0
        %1293 = vmatmul.mubr.f32.gmra.mxu0 %v1205
        %v1294 = vpop.f32.mrf.mxu0
        %v1295 = vadd.f32 %v1202, %v1294
        %v1296 = vpop.f32.mrf.mxu0
        %1297 = vmatprep.mubr.f32.mxu0 0.0
        %1298 = vmatmul.mubr.f32.gmra.mxu0 %v1208
        %v1299 = vpop.f32.mrf.mxu0
        %v1300 = vadd.f32 %v1202, %v1299
        %v1301 = vpop.f32.mrf.mxu0
        %1302 = vmatprep.mubr.f32.mxu0 0.0
        %1303 = vmatmul.mubr.f32.gmra.mxu0 %v1211
        %v1304 = vpop.f32.mrf.mxu0
        %v1305 = vadd.f32 %v1202, %v1304
        %v1306 = vpop.f32.mrf.mxu0
        %1307 = vmatprep.mubr.f32.mxu0 0.0
        %1308 = vmatmul.mubr.f32.gmra.mxu0 %v1214
        %v1309 = vpop.f32.mrf.mxu0
        %v1310 = vadd.f32 %v1202, %v1309
        %v1311 = vpop.f32.mrf.mxu0
        %1312 = vmatprep.mubr.f32.mxu0 0.0
        %1313 = vmatmul.mubr.f32.gmra.mxu0 %v1217
        %v1314 = vpop.f32.mrf.mxu0
        %v1315 = vadd.f32 %v1202, %v1314
        %v1316 = vpop.f32.mrf.mxu0
        %1317 = vmatprep.mubr.f32.mxu0 0.0
        %1318 = vmatmul.mubr.f32.gmra.mxu0 %v1220
        %v1319 = vpop.f32.mrf.mxu0
        %v1320 = vadd.f32 %v1202, %v1319
        %v1321 = vpop.f32.mrf.mxu0
        %1322 = vmatprep.mubr.f32.mxu0 0.0
        %1323 = vmatmul.mubr.f32.gmra.mxu0 %v1223
        %v1324 = vpop.f32.mrf.mxu0
        %v1325 = vadd.f32 %v1202, %v1324
        %v1326 = vpop.f32.mrf.mxu0
        %1327 = vmatprep.mubr.f32.mxu0 0.0
        %1328 = vmatmul.mubr.f32.gmra.mxu0 %v509
        %v1329 = vpop.f32.mrf.mxu0
        %v1330 = vadd.f32 %v1202, %v1329
        %v1331 = vpop.f32.mrf.mxu0
        %1332 = vdwg.mxu0
        %v1333 = vmax.f32 %v1295, 0.0
        %v1334 = vmax.f32 %v1300, 0.0
        %v1335 = vmax.f32 %v1305, 0.0
        %v1336 = vmax.f32 %v1310, 0.0
        %v1337 = vmax.f32 %v1315, 0.0
        %v1338 = vmax.f32 %v1320, 0.0
        %v1339 = vmax.f32 %v1325, 0.0
        %v1340 = vmax.f32 %v1330, 0.0
        %v1341 = vld [vmem:[#allocation4] sm:$0xff]
        %v1342 = vld [vmem:[#allocation4 + $0x8] sm:$0xff]
        %v1343 = vld [vmem:[#allocation4 + $0x10] sm:$0xff]
        %v1344 = vld [vmem:[#allocation4 + $0x18] sm:$0xff]
        %v1345 = vld [vmem:[%s8] sm:$0x3]
        %v1347 = vlaneseq
        %v1348 = vshrl.u32 %v1347, 7
        %v1349 = vsub.s32 0, %v1348
        %v1350 = vrot.slane %v1345, %v1349
        %v1351 = vlaneseq
        %v1352 = vshrl.u32 %v1351, 7
        %v1353 = vsub.s32 1, %v1352
        %v1354 = vrot.slane %v1345, %v1353
        %v1358 = vsel %vm602, %v1333, 0
        %v1361 = vsel %vm602, %v1334, 0
        %v1364 = vsel %vm602, %v1335, 0
        %v1367 = vsel %vm602, %v1336, 0
        %v1370 = vsel %vm602, %v1337, 0
        %v1373 = vsel %vm602, %v1338, 0
        %v1376 = vsel %vm602, %v1339, 0
        %v1379 = vsel %vm602, %v1340, 0
        %1381 = vmatprep.subr.mxu0 0.0
        %1382 = vmatpush1.msra.mxu0 0.0
        %1383 = vmatprep.subr.mxu0 0.0
        %1384 = vmatpush1.msra.mxu0 0.0
        %1385 = vmatprep.subr.mxu0 0.0
        %1386 = vmatpush1.msra.mxu0 0.0
        %1387 = vmatprep.subr.mxu0 0.0
        %1388 = vmatpush1.msra.mxu0 0.0
        %1389 = vmatprep.subr.mxu0 0.0
        %1390 = vmatpush1.msra.mxu0 0.0
        %1391 = vmatprep.subr.mxu0 0.0
        %1392 = vmatpush1.msra.mxu0 0.0
        %1393 = vmatprep.subr.mxu0 0.0
        %1394 = vmatpush1.msra.mxu0 0.0
        %1395 = vmatprep.subr.mxu0 0.0
        %1396 = vmatpush1.msra.mxu0 0.0
        %1397 = vmatprep.subr.mxu0 0.0
        %1398 = vmatpush1.msra.mxu0 0.0
        %1399 = vmatprep.subr.mxu0 0.0
        %1400 = vmatpush1.msra.mxu0 0.0
        %1401 = vmatprep.subr.mxu0 0.0
        %1402 = vmatpush1.msra.mxu0 0.0
        %1403 = vmatprep.subr.mxu0 0.0
        %1404 = vmatpush1.msra.mxu0 0.0
        %1405 = vmatprep.subr.mxu0 0.0
        %1406 = vmatpush1.msra.mxu0 0.0
        %1407 = vmatprep.subr.mxu0 0.0
        %1408 = vmatpush1.msra.mxu0 0.0
        %1409 = vmatprep.subr.mxu0 %v1344
        %1410 = vmatpush1.msra.mxu0 %v1343
        %1411 = vmatprep.subr.mxu0 %v1342
        %1412 = vmatpush1.msra.mxu0 %v1341
        %1413 = vmatprep.subr.mxu0 0.0
        %1414 = vmatpush2.msra.mxu0 0.0
        %1415 = vmatprep.subr.mxu0 0.0
        %1416 = vmatpush2.msra.mxu0 0.0
        %1417 = vmatprep.subr.mxu0 0.0
        %1418 = vmatpush2.msra.mxu0 0.0
        %1419 = vmatprep.subr.mxu0 0.0
        %1420 = vmatpush2.msra.mxu0 0.0
        %1421 = vmatprep.subr.mxu0 0.0
        %1422 = vmatpush2.msra.mxu0 0.0
        %1423 = vmatprep.subr.mxu0 0.0
        %1424 = vmatpush2.msra.mxu0 0.0
        %1425 = vmatprep.subr.mxu0 0.0
        %1426 = vmatpush2.msra.mxu0 0.0
        %1427 = vmatprep.subr.mxu0 0.0
        %1428 = vmatpush2.msra.mxu0 0.0
        %1429 = vmatprep.subr.mxu0 0.0
        %1430 = vmatpush2.msra.mxu0 0.0
        %1431 = vmatprep.subr.mxu0 0.0
        %1432 = vmatpush2.msra.mxu0 0.0
        %1433 = vmatprep.subr.mxu0 0.0
        %1434 = vmatpush2.msra.mxu0 0.0
        %1435 = vmatprep.subr.mxu0 0.0
        %1436 = vmatpush2.msra.mxu0 0.0
        %1437 = vmatprep.subr.mxu0 0.0
        %1438 = vmatpush2.msra.mxu0 0.0
        %1439 = vmatprep.subr.mxu0 0.0
        %1440 = vmatpush2.msra.mxu0 0.0
        %1441 = vmatprep.subr.mxu0 0.0
        %1442 = vmatpush2.msra.mxu0 0.0
        %1443 = vmatprep.subr.mxu0 0.0
        %1444 = vmatpush2.msra.mxu0 0.0
        %1445 = vmatprep.mubr.f32.mxu0 0.0
        %1446 = vmatmul.mubr.f32.gmra.mxu0 %v1358
        %v1447 = vpop.f32.mrf.mxu0
        %v1448 = vadd.f32 %v1350, %v1447
        %v1449 = vpop.f32.mrf.mxu0
        %v1450 = vadd.f32 %v1354, %v1449
        %1451 = vmatprep.mubr.f32.mxu0 0.0
        %1452 = vmatmul.mubr.f32.gmra.mxu0 %v1361
        %v1453 = vpop.f32.mrf.mxu0
        %v1454 = vadd.f32 %v1350, %v1453
        %v1455 = vpop.f32.mrf.mxu0
        %v1456 = vadd.f32 %v1354, %v1455
        %1457 = vmatprep.mubr.f32.mxu0 0.0
        %1458 = vmatmul.mubr.f32.gmra.mxu0 %v1364
        %v1459 = vpop.f32.mrf.mxu0
        %v1460 = vadd.f32 %v1350, %v1459
        %v1461 = vpop.f32.mrf.mxu0
        %v1462 = vadd.f32 %v1354, %v1461
        %1463 = vmatprep.mubr.f32.mxu0 0.0
        %1464 = vmatmul.mubr.f32.gmra.mxu0 %v1367
        %v1465 = vpop.f32.mrf.mxu0
        %v1466 = vadd.f32 %v1350, %v1465
        %v1467 = vpop.f32.mrf.mxu0
        %v1468 = vadd.f32 %v1354, %v1467
        %1469 = vmatprep.mubr.f32.mxu0 0.0
        %1470 = vmatmul.mubr.f32.gmra.mxu0 %v1370
        %v1471 = vpop.f32.mrf.mxu0
        %v1472 = vadd.f32 %v1350, %v1471
        %v1473 = vpop.f32.mrf.mxu0
        %v1474 = vadd.f32 %v1354, %v1473
        %1475 = vmatprep.mubr.f32.mxu0 0.0
        %1476 = vmatmul.mubr.f32.gmra.mxu0 %v1373
        %v1477 = vpop.f32.mrf.mxu0
        %v1478 = vadd.f32 %v1350, %v1477
        %v1479 = vpop.f32.mrf.mxu0
        %v1480 = vadd.f32 %v1354, %v1479
        %1481 = vmatprep.mubr.f32.mxu0 0.0
        %1482 = vmatmul.mubr.f32.gmra.mxu0 %v1376
        %v1483 = vpop.f32.mrf.mxu0
        %v1484 = vadd.f32 %v1350, %v1483
        %v1485 = vpop.f32.mrf.mxu0
        %v1486 = vadd.f32 %v1354, %v1485
        %1487 = vmatprep.mubr.f32.mxu0 0.0
        %1488 = vmatmul.mubr.f32.gmra.mxu0 %v1379
        %v1489 = vpop.f32.mrf.mxu0
        %v1490 = vadd.f32 %v1350, %v1489
        %v1491 = vpop.f32.mrf.mxu0
        %v1492 = vadd.f32 %v1354, %v1491
        %1493 = vdwg.mxu0
        %1494 = vst [vmem:[#allocation2] sm:$0xff] %v1448
        %1495 = vst [vmem:[#allocation2 + $0x8] sm:$0xff] %v1450
        %1496 = vst [vmem:[#allocation2 + $0x10] sm:$0xff] %v1454
        %1497 = vst [vmem:[#allocation2 + $0x18] sm:$0xff] %v1456
        %1498 = vst [vmem:[#allocation2 + $0x20] sm:$0xff] %v1460
        %1499 = vst [vmem:[#allocation2 + $0x28] sm:$0xff] %v1462
        %1500 = vst [vmem:[#allocation2 + $0x30] sm:$0xff] %v1466
        %1501 = vst [vmem:[#allocation2 + $0x38] sm:$0xff] %v1468
        %1502 = vst [vmem:[#allocation2 + $0x40] sm:$0xff] %v1472
        %1503 = vst [vmem:[#allocation2 + $0x48] sm:$0xff] %v1474
        %1504 = vst [vmem:[#allocation2 + $0x50] sm:$0xff] %v1478
        %1505 = vst [vmem:[#allocation2 + $0x58] sm:$0xff] %v1480
        %1506 = vst [vmem:[#allocation2 + $0x60] sm:$0xff] %v1484
        %1507 = vst [vmem:[#allocation2 + $0x68] sm:$0xff] %v1486
        %1508 = vst [vmem:[#allocation2 + $0x70] sm:$0xff] %v1490
        %1509 = vst [vmem:[#allocation2 + $0x78] sm:$0xff] %v1492
        %v1510 = vld [vmem:[%s7] sm:$0xff]
        %v1511 = vld [vmem:[%s7 + $0x8] sm:$0xff]
        %v1512 = vld [vmem:[%s7 + $0x10] sm:$0xff]
        %v1513 = vld [vmem:[%s7 + $0x18] sm:$0xff]
        %v1514 = vld [vmem:[%s7 + $0x20] sm:$0xff]
        %v1515 = vld [vmem:[%s7 + $0x28] sm:$0xff]
        %v1516 = vld [vmem:[%s7 + $0x30] sm:$0xff]
        %v1517 = vld [vmem:[%s7 + $0x38] sm:$0xff]
        %v1518 = vld [vmem:[#allocation2] sm:$0xff]
        %v1519 = vld [vmem:[#allocation2 + $0x78] sm:$0xff]
        %v1520 = vxor.u32 %v1518, 2147483648
        %v1521 = vxor.u32 %v1519, 2147483648
        %v1522 = vmul.f32 %v1520, 1.442695
        %v1523 = vpow.pop %v1522
        %v1524 = vmul.f32 %v1521, 1.442695
        %v1525 = vpow.pop %v1524
        %v1526 = vadd.f32 %v1523, 1.0
        %v1527 = vadd.f32 %v1525, 1.0
        %v1528 = vrcp.pop %v1526
        %v1529 = vmul.f32 1.0, %v1528
        %v1530 = vrcp.pop %v1527
        %v1531 = vmul.f32 1.0, %v1530
        %v1532 = vtanh.pop %v1518
        %v1533 = vtanh.pop %v1519
        %v1534 = vmul.f32 %v1529, 0.0
        %v1535 = vmul.f32 %v1531, 0.0
        %1538 = vrot.lane.b32.xlu0 %v1532, 64
        %v1539 = vpop.permute.xlu0 %1538
        %1540 = vrot.lane.b32.xlu0 %v1533, 64
        %v1541 = vpop.permute.xlu0 %1540
        %v1544 = vmul.f32 %v1529, %v1539
        %v1545 = vmul.f32 %v1531, %v1541
        %1548 = vrot.lane.b32.xlu0 %v1544, 32
        %v1549 = vpop.permute.xlu0 %1548
        %1550 = vrot.lane.b32.xlu0 %v1545, 32
        %v1551 = vpop.permute.xlu0 %1550
        %v1554 = vadd.f32 %v1534, %v1549
        %v1555 = vadd.f32 %v1535, %v1551
        %v1556 = vtanh.pop %v1554
        %v1557 = vtanh.pop %v1555
        %1560 = vrot.lane.b32.xlu0 %v1556, 64
        %v1561 = vpop.permute.xlu0 %1560
        %1562 = vrot.lane.b32.xlu0 %v1557, 64
        %v1563 = vpop.permute.xlu0 %1562
        %v1566 = vmul.f32 %v1529, %v1561
        %v1567 = vmul.f32 %v1531, %v1563
        %v1568 = vld [vmem:[#allocation2 + $0x10] sm:$0xff]
        %v1569 = vld [vmem:[#allocation2 + $0x68] sm:$0xff]
        %1572 = vrot.lane.b32.xlu0 %v1566, 32
        %v1573 = vpop.permute.xlu0 %1572
        %1574 = vrot.lane.b32.xlu0 %v1567, 32
        %v1575 = vpop.permute.xlu0 %1574
        %v1576 = vsel %vm744, %v1573, 0
        %v1578 = vsel %vm744, %v1575, 0
        %1580 = vmatprep.subr.mxu0 0.0
        %1581 = vmatpush1.msra.mxu0 0.0
        %1582 = vmatprep.subr.mxu0 0.0
        %1583 = vmatpush1.msra.mxu0 0.0
        %1584 = vmatprep.subr.mxu0 0.0
        %1585 = vmatpush1.msra.mxu0 0.0
        %1586 = vmatprep.subr.mxu0 0.0
        %1587 = vmatpush1.msra.mxu0 0.0
        %1588 = vmatprep.subr.mxu0 0.0
        %1589 = vmatpush1.msra.mxu0 0.0
        %1590 = vmatprep.subr.mxu0 0.0
        %1591 = vmatpush1.msra.mxu0 0.0
        %1592 = vmatprep.subr.mxu0 0.0
        %1593 = vmatpush1.msra.mxu0 0.0
        %1594 = vmatprep.subr.mxu0 0.0
        %1595 = vmatpush1.msra.mxu0 0.0
        %1596 = vmatprep.subr.mxu0 0.0
        %1597 = vmatpush1.msra.mxu0 0.0
        %1598 = vmatprep.subr.mxu0 0.0
        %1599 = vmatpush1.msra.mxu0 0.0
        %1600 = vmatprep.subr.mxu0 0.0
        %1601 = vmatpush1.msra.mxu0 0.0
        %1602 = vmatprep.subr.mxu0 0.0
        %1603 = vmatpush1.msra.mxu0 0.0
        %1604 = vmatprep.subr.mxu0 %v1517
        %1605 = vmatpush1.msra.mxu0 %v1516
        %1606 = vmatprep.subr.mxu0 %v1515
        %1607 = vmatpush1.msra.mxu0 %v1514
        %1608 = vmatprep.subr.mxu0 %v1513
        %1609 = vmatpush1.msra.mxu0 %v1512
        %1610 = vmatprep.subr.mxu0 %v1511
        %1611 = vmatpush1.msra.mxu0 %v1510
        %1612 = vmatprep.subr.mxu0 0.0
        %1613 = vmatpush2.msra.mxu0 0.0
        %1614 = vmatprep.subr.mxu0 0.0
        %1615 = vmatpush2.msra.mxu0 0.0
        %1616 = vmatprep.subr.mxu0 0.0
        %1617 = vmatpush2.msra.mxu0 0.0
        %1618 = vmatprep.subr.mxu0 0.0
        %1619 = vmatpush2.msra.mxu0 0.0
        %1620 = vmatprep.subr.mxu0 0.0
        %1621 = vmatpush2.msra.mxu0 0.0
        %1622 = vmatprep.subr.mxu0 0.0
        %1623 = vmatpush2.msra.mxu0 0.0
        %1624 = vmatprep.subr.mxu0 0.0
        %1625 = vmatpush2.msra.mxu0 0.0
        %1626 = vmatprep.subr.mxu0 0.0
        %1627 = vmatpush2.msra.mxu0 0.0
        %1628 = vmatprep.subr.mxu0 0.0
        %1629 = vmatpush2.msra.mxu0 0.0
        %1630 = vmatprep.subr.mxu0 0.0
        %1631 = vmatpush2.msra.mxu0 0.0
        %1632 = vmatprep.subr.mxu0 0.0
        %1633 = vmatpush2.msra.mxu0 0.0
        %1634 = vmatprep.subr.mxu0 0.0
        %1635 = vmatpush2.msra.mxu0 0.0
        %1636 = vmatprep.subr.mxu0 0.0
        %1637 = vmatpush2.msra.mxu0 0.0
        %1638 = vmatprep.subr.mxu0 0.0
        %1639 = vmatpush2.msra.mxu0 0.0
        %1640 = vmatprep.subr.mxu0 0.0
        %1641 = vmatpush2.msra.mxu0 0.0
        %1642 = vmatprep.subr.mxu0 0.0
        %1643 = vmatpush2.msra.mxu0 0.0
        %1644 = vmatprep.mubr.f32.mxu0 0.0
        %1645 = vmatmul.mubr.f32.gmra.mxu0 %v1576
        %v1646 = vpop.f32.mrf.mxu0
        %v1647 = vadd.f32 0.0, %v1646
        %v1648 = vpop.f32.mrf.mxu0
        %1649 = vmatprep.mubr.f32.mxu0 0.0
        %1650 = vmatmul.mubr.f32.gmra.mxu0 %v1578
        %v1651 = vpop.f32.mrf.mxu0
        %v1652 = vpop.f32.mrf.mxu0
        %v1653 = vadd.f32 0.0, %v1652
        %1654 = vdwg.mxu0
        %v1655 = vadd.f32 %v1568, %v1647
        %v1656 = vadd.f32 %v1569, %v1653
        %v1657 = vxor.u32 %v1655, 2147483648
        %v1658 = vxor.u32 %v1656, 2147483648
        %v1659 = vmul.f32 %v1657, 1.442695
        %v1660 = vpow.pop %v1659
        %v1661 = vmul.f32 %v1658, 1.442695
        %v1662 = vpow.pop %v1661
        %v1663 = vadd.f32 %v1660, 1.0
        %v1664 = vadd.f32 %v1662, 1.0
        %v1665 = vrcp.pop %v1663
        %v1666 = vmul.f32 1.0, %v1665
        %v1667 = vrcp.pop %v1664
        %v1668 = vmul.f32 1.0, %v1667
        %v1669 = vtanh.pop %v1655
        %v1670 = vtanh.pop %v1656
        %v1671 = vmul.f32 %v1666, %v1554
        %v1672 = vmul.f32 %v1668, %v1555
        %1675 = vrot.lane.b32.xlu0 %v1669, 64
        %v1676 = vpop.permute.xlu0 %1675
        %1677 = vrot.lane.b32.xlu0 %v1670, 64
        %v1678 = vpop.permute.xlu0 %1677
        %v1681 = vmul.f32 %v1666, %v1676
        %v1682 = vmul.f32 %v1668, %v1678
        %1685 = vrot.lane.b32.xlu0 %v1681, 32
        %v1686 = vpop.permute.xlu0 %1685
        %1687 = vrot.lane.b32.xlu0 %v1682, 32
        %v1688 = vpop.permute.xlu0 %1687
        %v1691 = vadd.f32 %v1671, %v1686
        %v1692 = vadd.f32 %v1672, %v1688
        %v1693 = vtanh.pop %v1691
        %v1694 = vtanh.pop %v1692
        %1697 = vrot.lane.b32.xlu0 %v1693, 64
        %v1698 = vpop.permute.xlu0 %1697
        %1699 = vrot.lane.b32.xlu0 %v1694, 64
        %v1700 = vpop.permute.xlu0 %1699
        %v1703 = vmul.f32 %v1666, %v1698
        %v1704 = vmul.f32 %v1668, %v1700
        %v1705 = vld [vmem:[#allocation2 + $0x20] sm:$0xff]
        %v1706 = vld [vmem:[#allocation2 + $0x58] sm:$0xff]
        %1709 = vrot.lane.b32.xlu0 %v1703, 32
        %v1710 = vpop.permute.xlu0 %1709
        %1711 = vrot.lane.b32.xlu0 %v1704, 32
        %v1712 = vpop.permute.xlu0 %1711
        %v1713 = vsel %vm744, %v1710, 0
        %v1715 = vsel %vm744, %v1712, 0
        %1717 = vmatprep.subr.mxu0 0.0
        %1718 = vmatpush1.msra.mxu0 0.0
        %1719 = vmatprep.subr.mxu0 0.0
        %1720 = vmatpush1.msra.mxu0 0.0
        %1721 = vmatprep.subr.mxu0 0.0
        %1722 = vmatpush1.msra.mxu0 0.0
        %1723 = vmatprep.subr.mxu0 0.0
        %1724 = vmatpush1.msra.mxu0 0.0
        %1725 = vmatprep.subr.mxu0 0.0
        %1726 = vmatpush1.msra.mxu0 0.0
        %1727 = vmatprep.subr.mxu0 0.0
        %1728 = vmatpush1.msra.mxu0 0.0
        %1729 = vmatprep.subr.mxu0 0.0
        %1730 = vmatpush1.msra.mxu0 0.0
        %1731 = vmatprep.subr.mxu0 0.0
        %1732 = vmatpush1.msra.mxu0 0.0
        %1733 = vmatprep.subr.mxu0 0.0
        %1734 = vmatpush1.msra.mxu0 0.0
        %1735 = vmatprep.subr.mxu0 0.0
        %1736 = vmatpush1.msra.mxu0 0.0
        %1737 = vmatprep.subr.mxu0 0.0
        %1738 = vmatpush1.msra.mxu0 0.0
        %1739 = vmatprep.subr.mxu0 0.0
        %1740 = vmatpush1.msra.mxu0 0.0
        %1741 = vmatprep.subr.mxu0 %v1517
        %1742 = vmatpush1.msra.mxu0 %v1516
        %1743 = vmatprep.subr.mxu0 %v1515
        %1744 = vmatpush1.msra.mxu0 %v1514
        %1745 = vmatprep.subr.mxu0 %v1513
        %1746 = vmatpush1.msra.mxu0 %v1512
        %1747 = vmatprep.subr.mxu0 %v1511
        %1748 = vmatpush1.msra.mxu0 %v1510
        %1749 = vmatprep.subr.mxu0 0.0
        %1750 = vmatpush2.msra.mxu0 0.0
        %1751 = vmatprep.subr.mxu0 0.0
        %1752 = vmatpush2.msra.mxu0 0.0
        %1753 = vmatprep.subr.mxu0 0.0
        %1754 = vmatpush2.msra.mxu0 0.0
        %1755 = vmatprep.subr.mxu0 0.0
        %1756 = vmatpush2.msra.mxu0 0.0
        %1757 = vmatprep.subr.mxu0 0.0
        %1758 = vmatpush2.msra.mxu0 0.0
        %1759 = vmatprep.subr.mxu0 0.0
        %1760 = vmatpush2.msra.mxu0 0.0
        %1761 = vmatprep.subr.mxu0 0.0
        %1762 = vmatpush2.msra.mxu0 0.0
        %1763 = vmatprep.subr.mxu0 0.0
        %1764 = vmatpush2.msra.mxu0 0.0
        %1765 = vmatprep.subr.mxu0 0.0
        %1766 = vmatpush2.msra.mxu0 0.0
        %1767 = vmatprep.subr.mxu0 0.0
        %1768 = vmatpush2.msra.mxu0 0.0
        %1769 = vmatprep.subr.mxu0 0.0
        %1770 = vmatpush2.msra.mxu0 0.0
        %1771 = vmatprep.subr.mxu0 0.0
        %1772 = vmatpush2.msra.mxu0 0.0
        %1773 = vmatprep.subr.mxu0 0.0
        %1774 = vmatpush2.msra.mxu0 0.0
        %1775 = vmatprep.subr.mxu0 0.0
        %1776 = vmatpush2.msra.mxu0 0.0
        %1777 = vmatprep.subr.mxu0 0.0
        %1778 = vmatpush2.msra.mxu0 0.0
        %1779 = vmatprep.subr.mxu0 0.0
        %1780 = vmatpush2.msra.mxu0 0.0
        %1781 = vmatprep.mubr.f32.mxu0 0.0
        %1782 = vmatmul.mubr.f32.gmra.mxu0 %v1713
        %v1783 = vpop.f32.mrf.mxu0
        %v1784 = vadd.f32 0.0, %v1783
        %v1785 = vpop.f32.mrf.mxu0
        %1786 = vmatprep.mubr.f32.mxu0 0.0
        %1787 = vmatmul.mubr.f32.gmra.mxu0 %v1715
        %v1788 = vpop.f32.mrf.mxu0
        %v1789 = vpop.f32.mrf.mxu0
        %v1790 = vadd.f32 0.0, %v1789
        %1791 = vdwg.mxu0
        %v1792 = vadd.f32 %v1705, %v1784
        %v1793 = vadd.f32 %v1706, %v1790
        %v1794 = vxor.u32 %v1792, 2147483648
        %v1795 = vxor.u32 %v1793, 2147483648
        %v1796 = vmul.f32 %v1794, 1.442695
        %v1797 = vpow.pop %v1796
        %v1798 = vmul.f32 %v1795, 1.442695
        %v1799 = vpow.pop %v1798
        %v1800 = vadd.f32 %v1797, 1.0
        %v1801 = vadd.f32 %v1799, 1.0
        %v1802 = vrcp.pop %v1800
        %v1803 = vmul.f32 1.0, %v1802
        %v1804 = vrcp.pop %v1801
        %v1805 = vmul.f32 1.0, %v1804
        %v1806 = vtanh.pop %v1792
        %v1807 = vtanh.pop %v1793
        %v1808 = vmul.f32 %v1803, %v1691
        %v1809 = vmul.f32 %v1805, %v1692
        %1812 = vrot.lane.b32.xlu0 %v1806, 64
        %v1813 = vpop.permute.xlu0 %1812
        %1814 = vrot.lane.b32.xlu0 %v1807, 64
        %v1815 = vpop.permute.xlu0 %1814
        %v1818 = vmul.f32 %v1803, %v1813
        %v1819 = vmul.f32 %v1805, %v1815
        %1822 = vrot.lane.b32.xlu0 %v1818, 32
        %v1823 = vpop.permute.xlu0 %1822
        %1824 = vrot.lane.b32.xlu0 %v1819, 32
        %v1825 = vpop.permute.xlu0 %1824
        %v1828 = vadd.f32 %v1808, %v1823
        %v1829 = vadd.f32 %v1809, %v1825
        %v1830 = vtanh.pop %v1828
        %v1831 = vtanh.pop %v1829
        %1834 = vrot.lane.b32.xlu0 %v1830, 64
        %v1835 = vpop.permute.xlu0 %1834
        %1836 = vrot.lane.b32.xlu0 %v1831, 64
        %v1837 = vpop.permute.xlu0 %1836
        %v1840 = vmul.f32 %v1803, %v1835
        %v1841 = vmul.f32 %v1805, %v1837
        %v1842 = vld [vmem:[#allocation2 + $0x30] sm:$0xff]
        %v1843 = vld [vmem:[#allocation2 + $0x48] sm:$0xff]
        %1846 = vrot.lane.b32.xlu0 %v1840, 32
        %v1847 = vpop.permute.xlu0 %1846
        %1848 = vrot.lane.b32.xlu0 %v1841, 32
        %v1849 = vpop.permute.xlu0 %1848
        %v1850 = vsel %vm744, %v1847, 0
        %v1852 = vsel %vm744, %v1849, 0
        %1854 = vmatprep.subr.mxu0 0.0
        %1855 = vmatpush1.msra.mxu0 0.0
        %1856 = vmatprep.subr.mxu0 0.0
        %1857 = vmatpush1.msra.mxu0 0.0
        %1858 = vmatprep.subr.mxu0 0.0
        %1859 = vmatpush1.msra.mxu0 0.0
        %1860 = vmatprep.subr.mxu0 0.0
        %1861 = vmatpush1.msra.mxu0 0.0
        %1862 = vmatprep.subr.mxu0 0.0
        %1863 = vmatpush1.msra.mxu0 0.0
        %1864 = vmatprep.subr.mxu0 0.0
        %1865 = vmatpush1.msra.mxu0 0.0
        %1866 = vmatprep.subr.mxu0 0.0
        %1867 = vmatpush1.msra.mxu0 0.0
        %1868 = vmatprep.subr.mxu0 0.0
        %1869 = vmatpush1.msra.mxu0 0.0
        %1870 = vmatprep.subr.mxu0 0.0
        %1871 = vmatpush1.msra.mxu0 0.0
        %1872 = vmatprep.subr.mxu0 0.0
        %1873 = vmatpush1.msra.mxu0 0.0
        %1874 = vmatprep.subr.mxu0 0.0
        %1875 = vmatpush1.msra.mxu0 0.0
        %1876 = vmatprep.subr.mxu0 0.0
        %1877 = vmatpush1.msra.mxu0 0.0
        %1878 = vmatprep.subr.mxu0 %v1517
        %1879 = vmatpush1.msra.mxu0 %v1516
        %1880 = vmatprep.subr.mxu0 %v1515
        %1881 = vmatpush1.msra.mxu0 %v1514
        %1882 = vmatprep.subr.mxu0 %v1513
        %1883 = vmatpush1.msra.mxu0 %v1512
        %1884 = vmatprep.subr.mxu0 %v1511
        %1885 = vmatpush1.msra.mxu0 %v1510
        %1886 = vmatprep.subr.mxu0 0.0
        %1887 = vmatpush2.msra.mxu0 0.0
        %1888 = vmatprep.subr.mxu0 0.0
        %1889 = vmatpush2.msra.mxu0 0.0
        %1890 = vmatprep.subr.mxu0 0.0
        %1891 = vmatpush2.msra.mxu0 0.0
        %1892 = vmatprep.subr.mxu0 0.0
        %1893 = vmatpush2.msra.mxu0 0.0
        %1894 = vmatprep.subr.mxu0 0.0
        %1895 = vmatpush2.msra.mxu0 0.0
        %1896 = vmatprep.subr.mxu0 0.0
        %1897 = vmatpush2.msra.mxu0 0.0
        %1898 = vmatprep.subr.mxu0 0.0
        %1899 = vmatpush2.msra.mxu0 0.0
        %1900 = vmatprep.subr.mxu0 0.0
        %1901 = vmatpush2.msra.mxu0 0.0
        %1902 = vmatprep.subr.mxu0 0.0
        %1903 = vmatpush2.msra.mxu0 0.0
        %1904 = vmatprep.subr.mxu0 0.0
        %1905 = vmatpush2.msra.mxu0 0.0
        %1906 = vmatprep.subr.mxu0 0.0
        %1907 = vmatpush2.msra.mxu0 0.0
        %1908 = vmatprep.subr.mxu0 0.0
        %1909 = vmatpush2.msra.mxu0 0.0
        %1910 = vmatprep.subr.mxu0 0.0
        %1911 = vmatpush2.msra.mxu0 0.0
        %1912 = vmatprep.subr.mxu0 0.0
        %1913 = vmatpush2.msra.mxu0 0.0
        %1914 = vmatprep.subr.mxu0 0.0
        %1915 = vmatpush2.msra.mxu0 0.0
        %1916 = vmatprep.subr.mxu0 0.0
        %1917 = vmatpush2.msra.mxu0 0.0
        %1918 = vmatprep.mubr.f32.mxu0 0.0
        %1919 = vmatmul.mubr.f32.gmra.mxu0 %v1850
        %v1920 = vpop.f32.mrf.mxu0
        %v1921 = vadd.f32 0.0, %v1920
        %v1922 = vpop.f32.mrf.mxu0
        %1923 = vmatprep.mubr.f32.mxu0 0.0
        %1924 = vmatmul.mubr.f32.gmra.mxu0 %v1852
        %v1925 = vpop.f32.mrf.mxu0
        %v1926 = vpop.f32.mrf.mxu0
        %v1927 = vadd.f32 0.0, %v1926
        %1928 = vdwg.mxu0
        %v1929 = vadd.f32 %v1842, %v1921
        %v1930 = vadd.f32 %v1843, %v1927
        %v1931 = vxor.u32 %v1929, 2147483648
        %v1932 = vxor.u32 %v1930, 2147483648
        %v1933 = vmul.f32 %v1931, 1.442695
        %v1934 = vpow.pop %v1933
        %v1935 = vmul.f32 %v1932, 1.442695
        %v1936 = vpow.pop %v1935
        %v1937 = vadd.f32 %v1934, 1.0
        %v1938 = vadd.f32 %v1936, 1.0
        %v1939 = vrcp.pop %v1937
        %v1940 = vmul.f32 1.0, %v1939
        %v1941 = vrcp.pop %v1938
        %v1942 = vmul.f32 1.0, %v1941
        %v1943 = vtanh.pop %v1929
        %v1944 = vtanh.pop %v1930
        %v1945 = vmul.f32 %v1940, %v1828
        %v1946 = vmul.f32 %v1942, %v1829
        %1949 = vrot.lane.b32.xlu0 %v1943, 64
        %v1950 = vpop.permute.xlu0 %1949
        %1951 = vrot.lane.b32.xlu0 %v1944, 64
        %v1952 = vpop.permute.xlu0 %1951
        %v1955 = vmul.f32 %v1940, %v1950
        %v1956 = vmul.f32 %v1942, %v1952
        %1959 = vrot.lane.b32.xlu0 %v1955, 32
        %v1960 = vpop.permute.xlu0 %1959
        %1961 = vrot.lane.b32.xlu0 %v1956, 32
        %v1962 = vpop.permute.xlu0 %1961
        %v1965 = vadd.f32 %v1945, %v1960
        %v1966 = vadd.f32 %v1946, %v1962
        %v1967 = vtanh.pop %v1965
        %v1968 = vtanh.pop %v1966
        %1971 = vrot.lane.b32.xlu0 %v1967, 64
        %v1972 = vpop.permute.xlu0 %1971
        %1973 = vrot.lane.b32.xlu0 %v1968, 64
        %v1974 = vpop.permute.xlu0 %1973
        %v1977 = vmul.f32 %v1940, %v1972
        %v1978 = vmul.f32 %v1942, %v1974
        %v1979 = vld [vmem:[#allocation2 + $0x40] sm:$0xff]
        %v1980 = vld [vmem:[#allocation2 + $0x38] sm:$0xff]
        %1983 = vrot.lane.b32.xlu0 %v1977, 32
        %v1984 = vpop.permute.xlu0 %1983
        %1985 = vrot.lane.b32.xlu0 %v1978, 32
        %v1986 = vpop.permute.xlu0 %1985
        %v1987 = vsel %vm744, %v1984, 0
        %v1989 = vsel %vm744, %v1986, 0
        %1991 = vmatprep.subr.mxu0 0.0
        %1992 = vmatpush1.msra.mxu0 0.0
        %1993 = vmatprep.subr.mxu0 0.0
        %1994 = vmatpush1.msra.mxu0 0.0
        %1995 = vmatprep.subr.mxu0 0.0
        %1996 = vmatpush1.msra.mxu0 0.0
        %1997 = vmatprep.subr.mxu0 0.0
        %1998 = vmatpush1.msra.mxu0 0.0
        %1999 = vmatprep.subr.mxu0 0.0
        %2000 = vmatpush1.msra.mxu0 0.0
        %2001 = vmatprep.subr.mxu0 0.0
        %2002 = vmatpush1.msra.mxu0 0.0
        %2003 = vmatprep.subr.mxu0 0.0
        %2004 = vmatpush1.msra.mxu0 0.0
        %2005 = vmatprep.subr.mxu0 0.0
        %2006 = vmatpush1.msra.mxu0 0.0
        %2007 = vmatprep.subr.mxu0 0.0
        %2008 = vmatpush1.msra.mxu0 0.0
        %2009 = vmatprep.subr.mxu0 0.0
        %2010 = vmatpush1.msra.mxu0 0.0
        %2011 = vmatprep.subr.mxu0 0.0
        %2012 = vmatpush1.msra.mxu0 0.0
        %2013 = vmatprep.subr.mxu0 0.0
        %2014 = vmatpush1.msra.mxu0 0.0
        %2015 = vmatprep.subr.mxu0 %v1517
        %2016 = vmatpush1.msra.mxu0 %v1516
        %2017 = vmatprep.subr.mxu0 %v1515
        %2018 = vmatpush1.msra.mxu0 %v1514
        %2019 = vmatprep.subr.mxu0 %v1513
        %2020 = vmatpush1.msra.mxu0 %v1512
        %2021 = vmatprep.subr.mxu0 %v1511
        %2022 = vmatpush1.msra.mxu0 %v1510
        %2023 = vmatprep.subr.mxu0 0.0
        %2024 = vmatpush2.msra.mxu0 0.0
        %2025 = vmatprep.subr.mxu0 0.0
        %2026 = vmatpush2.msra.mxu0 0.0
        %2027 = vmatprep.subr.mxu0 0.0
        %2028 = vmatpush2.msra.mxu0 0.0
        %2029 = vmatprep.subr.mxu0 0.0
        %2030 = vmatpush2.msra.mxu0 0.0
        %2031 = vmatprep.subr.mxu0 0.0
        %2032 = vmatpush2.msra.mxu0 0.0
        %2033 = vmatprep.subr.mxu0 0.0
        %2034 = vmatpush2.msra.mxu0 0.0
        %2035 = vmatprep.subr.mxu0 0.0
        %2036 = vmatpush2.msra.mxu0 0.0
        %2037 = vmatprep.subr.mxu0 0.0
        %2038 = vmatpush2.msra.mxu0 0.0
        %2039 = vmatprep.subr.mxu0 0.0
        %2040 = vmatpush2.msra.mxu0 0.0
        %2041 = vmatprep.subr.mxu0 0.0
        %2042 = vmatpush2.msra.mxu0 0.0
        %2043 = vmatprep.subr.mxu0 0.0
        %2044 = vmatpush2.msra.mxu0 0.0
        %2045 = vmatprep.subr.mxu0 0.0
        %2046 = vmatpush2.msra.mxu0 0.0
        %2047 = vmatprep.subr.mxu0 0.0
        %2048 = vmatpush2.msra.mxu0 0.0
        %2049 = vmatprep.subr.mxu0 0.0
        %2050 = vmatpush2.msra.mxu0 0.0
        %2051 = vmatprep.subr.mxu0 0.0
        %2052 = vmatpush2.msra.mxu0 0.0
        %2053 = vmatprep.subr.mxu0 0.0
        %2054 = vmatpush2.msra.mxu0 0.0
        %2055 = vmatprep.mubr.f32.mxu0 0.0
        %2056 = vmatmul.mubr.f32.gmra.mxu0 %v1987
        %v2057 = vpop.f32.mrf.mxu0
        %v2058 = vadd.f32 0.0, %v2057
        %v2059 = vpop.f32.mrf.mxu0
        %2060 = vmatprep.mubr.f32.mxu0 0.0
        %2061 = vmatmul.mubr.f32.gmra.mxu0 %v1989
        %v2062 = vpop.f32.mrf.mxu0
        %v2063 = vpop.f32.mrf.mxu0
        %v2064 = vadd.f32 0.0, %v2063
        %2065 = vdwg.mxu0
        %v2066 = vadd.f32 %v1979, %v2058
        %v2067 = vadd.f32 %v1980, %v2064
        %v2068 = vxor.u32 %v2066, 2147483648
        %v2069 = vxor.u32 %v2067, 2147483648
        %v2070 = vmul.f32 %v2068, 1.442695
        %v2071 = vpow.pop %v2070
        %v2072 = vmul.f32 %v2069, 1.442695
        %v2073 = vpow.pop %v2072
        %v2074 = vadd.f32 %v2071, 1.0
        %v2075 = vadd.f32 %v2073, 1.0
        %v2076 = vrcp.pop %v2074
        %v2077 = vmul.f32 1.0, %v2076
        %v2078 = vrcp.pop %v2075
        %v2079 = vmul.f32 1.0, %v2078
        %v2080 = vtanh.pop %v2066
        %v2081 = vtanh.pop %v2067
        %v2082 = vmul.f32 %v2077, %v1965
        %v2083 = vmul.f32 %v2079, %v1966
        %2086 = vrot.lane.b32.xlu0 %v2080, 64
        %v2087 = vpop.permute.xlu0 %2086
        %2088 = vrot.lane.b32.xlu0 %v2081, 64
        %v2089 = vpop.permute.xlu0 %2088
        %v2092 = vmul.f32 %v2077, %v2087
        %v2093 = vmul.f32 %v2079, %v2089
        %2096 = vrot.lane.b32.xlu0 %v2092, 32
        %v2097 = vpop.permute.xlu0 %2096
        %2098 = vrot.lane.b32.xlu0 %v2093, 32
        %v2099 = vpop.permute.xlu0 %2098
        %v2102 = vadd.f32 %v2082, %v2097
        %v2103 = vadd.f32 %v2083, %v2099
        %v2104 = vtanh.pop %v2102
        %v2105 = vtanh.pop %v2103
        %2108 = vrot.lane.b32.xlu0 %v2104, 64
        %v2109 = vpop.permute.xlu0 %2108
        %2110 = vrot.lane.b32.xlu0 %v2105, 64
        %v2111 = vpop.permute.xlu0 %2110
        %v2114 = vmul.f32 %v2077, %v2109
        %v2115 = vmul.f32 %v2079, %v2111
        %v2116 = vld [vmem:[#allocation2 + $0x50] sm:$0xff]
        %v2117 = vld [vmem:[#allocation2 + $0x28] sm:$0xff]
        %2120 = vrot.lane.b32.xlu0 %v2114, 32
        %v2121 = vpop.permute.xlu0 %2120
        %2122 = vrot.lane.b32.xlu0 %v2115, 32
        %v2123 = vpop.permute.xlu0 %2122
        %v2124 = vsel %vm744, %v2121, 0
        %v2126 = vsel %vm744, %v2123, 0
        %2128 = vmatprep.subr.mxu0 0.0
        %2129 = vmatpush1.msra.mxu0 0.0
        %2130 = vmatprep.subr.mxu0 0.0
        %2131 = vmatpush1.msra.mxu0 0.0
        %2132 = vmatprep.subr.mxu0 0.0
        %2133 = vmatpush1.msra.mxu0 0.0
        %2134 = vmatprep.subr.mxu0 0.0
        %2135 = vmatpush1.msra.mxu0 0.0
        %2136 = vmatprep.subr.mxu0 0.0
        %2137 = vmatpush1.msra.mxu0 0.0
        %2138 = vmatprep.subr.mxu0 0.0
        %2139 = vmatpush1.msra.mxu0 0.0
        %2140 = vmatprep.subr.mxu0 0.0
        %2141 = vmatpush1.msra.mxu0 0.0
        %2142 = vmatprep.subr.mxu0 0.0
        %2143 = vmatpush1.msra.mxu0 0.0
        %2144 = vmatprep.subr.mxu0 0.0
        %2145 = vmatpush1.msra.mxu0 0.0
        %2146 = vmatprep.subr.mxu0 0.0
        %2147 = vmatpush1.msra.mxu0 0.0
        %2148 = vmatprep.subr.mxu0 0.0
        %2149 = vmatpush1.msra.mxu0 0.0
        %2150 = vmatprep.subr.mxu0 0.0
        %2151 = vmatpush1.msra.mxu0 0.0
        %2152 = vmatprep.subr.mxu0 %v1517
        %2153 = vmatpush1.msra.mxu0 %v1516
        %2154 = vmatprep.subr.mxu0 %v1515
        %2155 = vmatpush1.msra.mxu0 %v1514
        %2156 = vmatprep.subr.mxu0 %v1513
        %2157 = vmatpush1.msra.mxu0 %v1512
        %2158 = vmatprep.subr.mxu0 %v1511
        %2159 = vmatpush1.msra.mxu0 %v1510
        %2160 = vmatprep.subr.mxu0 0.0
        %2161 = vmatpush2.msra.mxu0 0.0
        %2162 = vmatprep.subr.mxu0 0.0
        %2163 = vmatpush2.msra.mxu0 0.0
        %2164 = vmatprep.subr.mxu0 0.0
        %2165 = vmatpush2.msra.mxu0 0.0
        %2166 = vmatprep.subr.mxu0 0.0
        %2167 = vmatpush2.msra.mxu0 0.0
        %2168 = vmatprep.subr.mxu0 0.0
        %2169 = vmatpush2.msra.mxu0 0.0
        %2170 = vmatprep.subr.mxu0 0.0
        %2171 = vmatpush2.msra.mxu0 0.0
        %2172 = vmatprep.subr.mxu0 0.0
        %2173 = vmatpush2.msra.mxu0 0.0
        %2174 = vmatprep.subr.mxu0 0.0
        %2175 = vmatpush2.msra.mxu0 0.0
        %2176 = vmatprep.subr.mxu0 0.0
        %2177 = vmatpush2.msra.mxu0 0.0
        %2178 = vmatprep.subr.mxu0 0.0
        %2179 = vmatpush2.msra.mxu0 0.0
        %2180 = vmatprep.subr.mxu0 0.0
        %2181 = vmatpush2.msra.mxu0 0.0
        %2182 = vmatprep.subr.mxu0 0.0
        %2183 = vmatpush2.msra.mxu0 0.0
        %2184 = vmatprep.subr.mxu0 0.0
        %2185 = vmatpush2.msra.mxu0 0.0
        %2186 = vmatprep.subr.mxu0 0.0
        %2187 = vmatpush2.msra.mxu0 0.0
        %2188 = vmatprep.subr.mxu0 0.0
        %2189 = vmatpush2.msra.mxu0 0.0
        %2190 = vmatprep.subr.mxu0 0.0
        %2191 = vmatpush2.msra.mxu0 0.0
        %2192 = vmatprep.mubr.f32.mxu0 0.0
        %2193 = vmatmul.mubr.f32.gmra.mxu0 %v2124
        %v2194 = vpop.f32.mrf.mxu0
        %v2195 = vadd.f32 0.0, %v2194
        %v2196 = vpop.f32.mrf.mxu0
        %2197 = vmatprep.mubr.f32.mxu0 0.0
        %2198 = vmatmul.mubr.f32.gmra.mxu0 %v2126
        %v2199 = vpop.f32.mrf.mxu0
        %v2200 = vpop.f32.mrf.mxu0
        %v2201 = vadd.f32 0.0, %v2200
        %2202 = vdwg.mxu0
        %v2203 = vadd.f32 %v2116, %v2195
        %v2204 = vadd.f32 %v2117, %v2201
        %v2205 = vxor.u32 %v2203, 2147483648
        %v2206 = vxor.u32 %v2204, 2147483648
        %v2207 = vmul.f32 %v2205, 1.442695
        %v2208 = vpow.pop %v2207
        %v2209 = vmul.f32 %v2206, 1.442695
        %v2210 = vpow.pop %v2209
        %v2211 = vadd.f32 %v2208, 1.0
        %v2212 = vadd.f32 %v2210, 1.0
        %v2213 = vrcp.pop %v2211
        %v2214 = vmul.f32 1.0, %v2213
        %v2215 = vrcp.pop %v2212
        %v2216 = vmul.f32 1.0, %v2215
        %v2217 = vtanh.pop %v2203
        %v2218 = vtanh.pop %v2204
        %v2219 = vmul.f32 %v2214, %v2102
        %v2220 = vmul.f32 %v2216, %v2103
        %2223 = vrot.lane.b32.xlu0 %v2217, 64
        %v2224 = vpop.permute.xlu0 %2223
        %2225 = vrot.lane.b32.xlu0 %v2218, 64
        %v2226 = vpop.permute.xlu0 %2225
        %v2229 = vmul.f32 %v2214, %v2224
        %v2230 = vmul.f32 %v2216, %v2226
        %2233 = vrot.lane.b32.xlu0 %v2229, 32
        %v2234 = vpop.permute.xlu0 %2233
        %2235 = vrot.lane.b32.xlu0 %v2230, 32
        %v2236 = vpop.permute.xlu0 %2235
        %v2239 = vadd.f32 %v2219, %v2234
        %v2240 = vadd.f32 %v2220, %v2236
        %v2241 = vtanh.pop %v2239
        %v2242 = vtanh.pop %v2240
        %2245 = vrot.lane.b32.xlu0 %v2241, 64
        %v2246 = vpop.permute.xlu0 %2245
        %2247 = vrot.lane.b32.xlu0 %v2242, 64
        %v2248 = vpop.permute.xlu0 %2247
        %v2251 = vmul.f32 %v2214, %v2246
        %v2252 = vmul.f32 %v2216, %v2248
        %v2253 = vld [vmem:[#allocation2 + $0x60] sm:$0xff]
        %v2254 = vld [vmem:[#allocation2 + $0x18] sm:$0xff]
        %2257 = vrot.lane.b32.xlu0 %v2251, 32
        %v2258 = vpop.permute.xlu0 %2257
        %2259 = vrot.lane.b32.xlu0 %v2252, 32
        %v2260 = vpop.permute.xlu0 %2259
        %v2261 = vsel %vm744, %v2258, 0
        %v2263 = vsel %vm744, %v2260, 0
        %2265 = vmatprep.subr.mxu0 0.0
        %2266 = vmatpush1.msra.mxu0 0.0
        %2267 = vmatprep.subr.mxu0 0.0
        %2268 = vmatpush1.msra.mxu0 0.0
        %2269 = vmatprep.subr.mxu0 0.0
        %2270 = vmatpush1.msra.mxu0 0.0
        %2271 = vmatprep.subr.mxu0 0.0
        %2272 = vmatpush1.msra.mxu0 0.0
        %2273 = vmatprep.subr.mxu0 0.0
        %2274 = vmatpush1.msra.mxu0 0.0
        %2275 = vmatprep.subr.mxu0 0.0
        %2276 = vmatpush1.msra.mxu0 0.0
        %2277 = vmatprep.subr.mxu0 0.0
        %2278 = vmatpush1.msra.mxu0 0.0
        %2279 = vmatprep.subr.mxu0 0.0
        %2280 = vmatpush1.msra.mxu0 0.0
        %2281 = vmatprep.subr.mxu0 0.0
        %2282 = vmatpush1.msra.mxu0 0.0
        %2283 = vmatprep.subr.mxu0 0.0
        %2284 = vmatpush1.msra.mxu0 0.0
        %2285 = vmatprep.subr.mxu0 0.0
        %2286 = vmatpush1.msra.mxu0 0.0
        %2287 = vmatprep.subr.mxu0 0.0
        %2288 = vmatpush1.msra.mxu0 0.0
        %2289 = vmatprep.subr.mxu0 %v1517
        %2290 = vmatpush1.msra.mxu0 %v1516
        %2291 = vmatprep.subr.mxu0 %v1515
        %2292 = vmatpush1.msra.mxu0 %v1514
        %2293 = vmatprep.subr.mxu0 %v1513
        %2294 = vmatpush1.msra.mxu0 %v1512
        %2295 = vmatprep.subr.mxu0 %v1511
        %2296 = vmatpush1.msra.mxu0 %v1510
        %2297 = vmatprep.subr.mxu0 0.0
        %2298 = vmatpush2.msra.mxu0 0.0
        %2299 = vmatprep.subr.mxu0 0.0
        %2300 = vmatpush2.msra.mxu0 0.0
        %2301 = vmatprep.subr.mxu0 0.0
        %2302 = vmatpush2.msra.mxu0 0.0
        %2303 = vmatprep.subr.mxu0 0.0
        %2304 = vmatpush2.msra.mxu0 0.0
        %2305 = vmatprep.subr.mxu0 0.0
        %2306 = vmatpush2.msra.mxu0 0.0
        %2307 = vmatprep.subr.mxu0 0.0
        %2308 = vmatpush2.msra.mxu0 0.0
        %2309 = vmatprep.subr.mxu0 0.0
        %2310 = vmatpush2.msra.mxu0 0.0
        %2311 = vmatprep.subr.mxu0 0.0
        %2312 = vmatpush2.msra.mxu0 0.0
        %2313 = vmatprep.subr.mxu0 0.0
        %2314 = vmatpush2.msra.mxu0 0.0
        %2315 = vmatprep.subr.mxu0 0.0
        %2316 = vmatpush2.msra.mxu0 0.0
        %2317 = vmatprep.subr.mxu0 0.0
        %2318 = vmatpush2.msra.mxu0 0.0
        %2319 = vmatprep.subr.mxu0 0.0
        %2320 = vmatpush2.msra.mxu0 0.0
        %2321 = vmatprep.subr.mxu0 0.0
        %2322 = vmatpush2.msra.mxu0 0.0
        %2323 = vmatprep.subr.mxu0 0.0
        %2324 = vmatpush2.msra.mxu0 0.0
        %2325 = vmatprep.subr.mxu0 0.0
        %2326 = vmatpush2.msra.mxu0 0.0
        %2327 = vmatprep.subr.mxu0 0.0
        %2328 = vmatpush2.msra.mxu0 0.0
        %2329 = vmatprep.mubr.f32.mxu0 0.0
        %2330 = vmatmul.mubr.f32.gmra.mxu0 %v2261
        %v2331 = vpop.f32.mrf.mxu0
        %v2332 = vadd.f32 0.0, %v2331
        %v2333 = vpop.f32.mrf.mxu0
        %2334 = vmatprep.mubr.f32.mxu0 0.0
        %2335 = vmatmul.mubr.f32.gmra.mxu0 %v2263
        %v2336 = vpop.f32.mrf.mxu0
        %v2337 = vpop.f32.mrf.mxu0
        %v2338 = vadd.f32 0.0, %v2337
        %2339 = vdwg.mxu0
        %v2340 = vadd.f32 %v2253, %v2332
        %v2341 = vadd.f32 %v2254, %v2338
        %v2342 = vxor.u32 %v2340, 2147483648
        %v2343 = vxor.u32 %v2341, 2147483648
        %v2344 = vmul.f32 %v2342, 1.442695
        %v2345 = vpow.pop %v2344
        %v2346 = vmul.f32 %v2343, 1.442695
        %v2347 = vpow.pop %v2346
        %v2348 = vadd.f32 %v2345, 1.0
        %v2349 = vadd.f32 %v2347, 1.0
        %v2350 = vrcp.pop %v2348
        %v2351 = vmul.f32 1.0, %v2350
        %v2352 = vrcp.pop %v2349
        %v2353 = vmul.f32 1.0, %v2352
        %v2354 = vtanh.pop %v2340
        %v2355 = vtanh.pop %v2341
        %v2356 = vmul.f32 %v2351, %v2239
        %v2357 = vmul.f32 %v2353, %v2240
        %2360 = vrot.lane.b32.xlu0 %v2354, 64
        %v2361 = vpop.permute.xlu0 %2360
        %2362 = vrot.lane.b32.xlu0 %v2355, 64
        %v2363 = vpop.permute.xlu0 %2362
        %v2366 = vmul.f32 %v2351, %v2361
        %v2367 = vmul.f32 %v2353, %v2363
        %2370 = vrot.lane.b32.xlu0 %v2366, 32
        %v2371 = vpop.permute.xlu0 %2370
        %2372 = vrot.lane.b32.xlu0 %v2367, 32
        %v2373 = vpop.permute.xlu0 %2372
        %v2376 = vadd.f32 %v2356, %v2371
        %v2377 = vadd.f32 %v2357, %v2373
        %v2378 = vtanh.pop %v2376
        %v2379 = vtanh.pop %v2377
        %2382 = vrot.lane.b32.xlu0 %v2378, 64
        %v2383 = vpop.permute.xlu0 %2382
        %2384 = vrot.lane.b32.xlu0 %v2379, 64
        %v2385 = vpop.permute.xlu0 %2384
        %v2388 = vmul.f32 %v2351, %v2383
        %v2389 = vmul.f32 %v2353, %v2385
        %v2390 = vld [vmem:[#allocation2 + $0x70] sm:$0xff]
        %v2391 = vld [vmem:[#allocation2 + $0x8] sm:$0xff]
        %2394 = vrot.lane.b32.xlu0 %v2388, 32
        %v2395 = vpop.permute.xlu0 %2394
        %2396 = vrot.lane.b32.xlu0 %v2389, 32
        %v2397 = vpop.permute.xlu0 %2396
        %v2398 = vsel %vm744, %v2395, 0
        %v2400 = vsel %vm744, %v2397, 0
        %2402 = vmatprep.subr.mxu0 0.0
        %2403 = vmatpush1.msra.mxu0 0.0
        %2404 = vmatprep.subr.mxu0 0.0
        %2405 = vmatpush1.msra.mxu0 0.0
        %2406 = vmatprep.subr.mxu0 0.0
        %2407 = vmatpush1.msra.mxu0 0.0
        %2408 = vmatprep.subr.mxu0 0.0
        %2409 = vmatpush1.msra.mxu0 0.0
        %2410 = vmatprep.subr.mxu0 0.0
        %2411 = vmatpush1.msra.mxu0 0.0
        %2412 = vmatprep.subr.mxu0 0.0
        %2413 = vmatpush1.msra.mxu0 0.0
        %2414 = vmatprep.subr.mxu0 0.0
        %2415 = vmatpush1.msra.mxu0 0.0
        %2416 = vmatprep.subr.mxu0 0.0
        %2417 = vmatpush1.msra.mxu0 0.0
        %2418 = vmatprep.subr.mxu0 0.0
        %2419 = vmatpush1.msra.mxu0 0.0
        %2420 = vmatprep.subr.mxu0 0.0
        %2421 = vmatpush1.msra.mxu0 0.0
        %2422 = vmatprep.subr.mxu0 0.0
        %2423 = vmatpush1.msra.mxu0 0.0
        %2424 = vmatprep.subr.mxu0 0.0
        %2425 = vmatpush1.msra.mxu0 0.0
        %2426 = vmatprep.subr.mxu0 %v1517
        %2427 = vmatpush1.msra.mxu0 %v1516
        %2428 = vmatprep.subr.mxu0 %v1515
        %2429 = vmatpush1.msra.mxu0 %v1514
        %2430 = vmatprep.subr.mxu0 %v1513
        %2431 = vmatpush1.msra.mxu0 %v1512
        %2432 = vmatprep.subr.mxu0 %v1511
        %2433 = vmatpush1.msra.mxu0 %v1510
        %2434 = vmatprep.subr.mxu0 0.0
        %2435 = vmatpush2.msra.mxu0 0.0
        %2436 = vmatprep.subr.mxu0 0.0
        %2437 = vmatpush2.msra.mxu0 0.0
        %2438 = vmatprep.subr.mxu0 0.0
        %2439 = vmatpush2.msra.mxu0 0.0
        %2440 = vmatprep.subr.mxu0 0.0
        %2441 = vmatpush2.msra.mxu0 0.0
        %2442 = vmatprep.subr.mxu0 0.0
        %2443 = vmatpush2.msra.mxu0 0.0
        %2444 = vmatprep.subr.mxu0 0.0
        %2445 = vmatpush2.msra.mxu0 0.0
        %2446 = vmatprep.subr.mxu0 0.0
        %2447 = vmatpush2.msra.mxu0 0.0
        %2448 = vmatprep.subr.mxu0 0.0
        %2449 = vmatpush2.msra.mxu0 0.0
        %2450 = vmatprep.subr.mxu0 0.0
        %2451 = vmatpush2.msra.mxu0 0.0
        %2452 = vmatprep.subr.mxu0 0.0
        %2453 = vmatpush2.msra.mxu0 0.0
        %2454 = vmatprep.subr.mxu0 0.0
        %2455 = vmatpush2.msra.mxu0 0.0
        %2456 = vmatprep.subr.mxu0 0.0
        %2457 = vmatpush2.msra.mxu0 0.0
        %2458 = vmatprep.subr.mxu0 0.0
        %2459 = vmatpush2.msra.mxu0 0.0
        %2460 = vmatprep.subr.mxu0 0.0
        %2461 = vmatpush2.msra.mxu0 0.0
        %2462 = vmatprep.subr.mxu0 0.0
        %2463 = vmatpush2.msra.mxu0 0.0
        %2464 = vmatprep.subr.mxu0 0.0
        %2465 = vmatpush2.msra.mxu0 0.0
        %2466 = vmatprep.mubr.f32.mxu0 0.0
        %2467 = vmatmul.mubr.f32.gmra.mxu0 %v2398
        %v2468 = vpop.f32.mrf.mxu0
        %v2469 = vadd.f32 0.0, %v2468
        %v2470 = vpop.f32.mrf.mxu0
        %2471 = vmatprep.mubr.f32.mxu0 0.0
        %2472 = vmatmul.mubr.f32.gmra.mxu0 %v2400
        %v2473 = vpop.f32.mrf.mxu0
        %v2474 = vpop.f32.mrf.mxu0
        %v2475 = vadd.f32 0.0, %v2474
        %2476 = vdwg.mxu0
        %v2477 = vadd.f32 %v2390, %v2469
        %v2478 = vadd.f32 %v2391, %v2475
        %v2479 = vxor.u32 %v2477, 2147483648
        %v2480 = vxor.u32 %v2478, 2147483648
        %v2481 = vmul.f32 %v2479, 1.442695
        %v2482 = vpow.pop %v2481
        %v2483 = vmul.f32 %v2480, 1.442695
        %v2484 = vpow.pop %v2483
        %v2485 = vadd.f32 %v2482, 1.0
        %v2486 = vadd.f32 %v2484, 1.0
        %v2487 = vrcp.pop %v2485
        %v2488 = vmul.f32 1.0, %v2487
        %v2489 = vrcp.pop %v2486
        %v2490 = vmul.f32 1.0, %v2489
        %v2491 = vtanh.pop %v2477
        %v2492 = vtanh.pop %v2478
        %v2493 = vmul.f32 %v2488, %v2376
        %v2494 = vmul.f32 %v2490, %v2377
        %2497 = vrot.lane.b32.xlu0 %v2491, 64
        %v2498 = vpop.permute.xlu0 %2497
        %2499 = vrot.lane.b32.xlu0 %v2492, 64
        %v2500 = vpop.permute.xlu0 %2499
        %v2503 = vmul.f32 %v2488, %v2498
        %v2504 = vmul.f32 %v2490, %v2500
        %2507 = vrot.lane.b32.xlu0 %v2503, 32
        %v2508 = vpop.permute.xlu0 %2507
        %2509 = vrot.lane.b32.xlu0 %v2504, 32
        %v2510 = vpop.permute.xlu0 %2509
        %v2513 = vadd.f32 %v2493, %v2508
        %v2514 = vadd.f32 %v2494, %v2510
        %v2515 = vtanh.pop %v2513
        %v2516 = vtanh.pop %v2514
        %2519 = vrot.lane.b32.xlu0 %v2515, 64
        %v2520 = vpop.permute.xlu0 %2519
        %2521 = vrot.lane.b32.xlu0 %v2516, 64
        %v2522 = vpop.permute.xlu0 %2521
        %v2525 = vmul.f32 %v2488, %v2520
        %v2526 = vmul.f32 %v2490, %v2522
        %v2527 = vld [vmem:[%s6] sm:$0xff]
        %v2528 = vld [vmem:[%s6 + $0x8] sm:$0xff]
        %v2529 = vld [vmem:[%s6 + $0x10] sm:$0xff]
        %v2530 = vld [vmem:[%s6 + $0x18] sm:$0xff]
        %v2531 = vld [vmem:[%s6 + $0x20] sm:$0xff]
        %v2532 = vld [vmem:[%s6 + $0x28] sm:$0xff]
        %v2533 = vld [vmem:[%s6 + $0x30] sm:$0xff]
        %v2534 = vld [vmem:[%s6 + $0x38] sm:$0xff]
        %v2535 = vld [vmem:[%s6 + $0x40] sm:$0xff]
        %v2536 = vld [vmem:[%s6 + $0x48] sm:$0xff]
        %v2537 = vld [vmem:[%s6 + $0x50] sm:$0xff]
        %v2538 = vld [vmem:[%s6 + $0x58] sm:$0xff]
        %v2539 = vld [vmem:[%s6 + $0x60] sm:$0xff]
        %v2540 = vld [vmem:[%s6 + $0x68] sm:$0xff]
        %v2541 = vld [vmem:[%s6 + $0x70] sm:$0xff]
        %v2542 = vld [vmem:[%s6 + $0x78] sm:$0xff]
        %2544 = vrot.lane.b32.xlu0 %v2526, 32
        %v2545 = vpop.permute.xlu0 %2544
        %v2546 = vsel %vm744, %v2545, 0
        %2548 = vmatprep.subr.mxu0 0.0
        %2549 = vmatpush1.msra.mxu0 0.0
        %2550 = vmatprep.subr.mxu0 0.0
        %2551 = vmatpush1.msra.mxu0 0.0
        %2552 = vmatprep.subr.mxu0 0.0
        %2553 = vmatpush1.msra.mxu0 0.0
        %2554 = vmatprep.subr.mxu0 0.0
        %2555 = vmatpush1.msra.mxu0 0.0
        %2556 = vmatprep.subr.mxu0 0.0
        %2557 = vmatpush1.msra.mxu0 0.0
        %2558 = vmatprep.subr.mxu0 0.0
        %2559 = vmatpush1.msra.mxu0 0.0
        %2560 = vmatprep.subr.mxu0 0.0
        %2561 = vmatpush1.msra.mxu0 0.0
        %2562 = vmatprep.subr.mxu0 0.0
        %2563 = vmatpush1.msra.mxu0 0.0
        %2564 = vmatprep.subr.mxu0 0.0
        %2565 = vmatpush1.msra.mxu0 0.0
        %2566 = vmatprep.subr.mxu0 0.0
        %2567 = vmatpush1.msra.mxu0 0.0
        %2568 = vmatprep.subr.mxu0 0.0
        %2569 = vmatpush1.msra.mxu0 0.0
        %2570 = vmatprep.subr.mxu0 0.0
        %2571 = vmatpush1.msra.mxu0 0.0
        %2572 = vmatprep.subr.mxu0 %v2542
        %2573 = vmatpush1.msra.mxu0 %v2541
        %2574 = vmatprep.subr.mxu0 %v2540
        %2575 = vmatpush1.msra.mxu0 %v2539
        %2576 = vmatprep.subr.mxu0 %v2538
        %2577 = vmatpush1.msra.mxu0 %v2537
        %2578 = vmatprep.subr.mxu0 %v2536
        %2579 = vmatpush1.msra.mxu0 %v2535
        %2580 = vmatprep.subr.mxu0 0.0
        %2581 = vmatpush2.msra.mxu0 0.0
        %2582 = vmatprep.subr.mxu0 0.0
        %2583 = vmatpush2.msra.mxu0 0.0
        %2584 = vmatprep.subr.mxu0 0.0
        %2585 = vmatpush2.msra.mxu0 0.0
        %2586 = vmatprep.subr.mxu0 0.0
        %2587 = vmatpush2.msra.mxu0 0.0
        %2588 = vmatprep.subr.mxu0 0.0
        %2589 = vmatpush2.msra.mxu0 0.0
        %2590 = vmatprep.subr.mxu0 0.0
        %2591 = vmatpush2.msra.mxu0 0.0
        %2592 = vmatprep.subr.mxu0 0.0
        %2593 = vmatpush2.msra.mxu0 0.0
        %2594 = vmatprep.subr.mxu0 0.0
        %2595 = vmatpush2.msra.mxu0 0.0
        %2596 = vmatprep.subr.mxu0 0.0
        %2597 = vmatpush2.msra.mxu0 0.0
        %2598 = vmatprep.subr.mxu0 0.0
        %2599 = vmatpush2.msra.mxu0 0.0
        %2600 = vmatprep.subr.mxu0 0.0
        %2601 = vmatpush2.msra.mxu0 0.0
        %2602 = vmatprep.subr.mxu0 0.0
        %2603 = vmatpush2.msra.mxu0 0.0
        %2604 = vmatprep.subr.mxu0 0.0
        %2605 = vmatpush2.msra.mxu0 0.0
        %2606 = vmatprep.subr.mxu0 0.0
        %2607 = vmatpush2.msra.mxu0 0.0
        %2608 = vmatprep.subr.mxu0 0.0
        %2609 = vmatpush2.msra.mxu0 0.0
        %2610 = vmatprep.subr.mxu0 0.0
        %2611 = vmatpush2.msra.mxu0 0.0
        %2612 = vmatprep.mubr.f32.mxu0 0.0
        %2613 = vmatmul.mubr.f32.gmra.mxu0 %v2546
        %v2614 = vpop.f32.mrf.mxu0
        %v2615 = vadd.f32 0.0, %v2614
        %v2616 = vpop.f32.mrf.mxu0
        %v2617 = vadd.f32 0.0, %v2616
        %2618 = vmatprep.mubr.f32.mxu0 0.0
        %2619 = vmatmul.mubr.f32.gmra.mxu0 %v2400
        %v2620 = vpop.f32.mrf.mxu0
        %v2621 = vadd.f32 0.0, %v2620
        %v2622 = vpop.f32.mrf.mxu0
        %v2623 = vadd.f32 0.0, %v2622
        %2624 = vmatprep.mubr.f32.mxu0 0.0
        %2625 = vmatmul.mubr.f32.gmra.mxu0 %v2263
        %v2626 = vpop.f32.mrf.mxu0
        %v2627 = vadd.f32 0.0, %v2626
        %v2628 = vpop.f32.mrf.mxu0
        %v2629 = vadd.f32 0.0, %v2628
        %2630 = vmatprep.mubr.f32.mxu0 0.0
        %2631 = vmatmul.mubr.f32.gmra.mxu0 %v2126
        %v2632 = vpop.f32.mrf.mxu0
        %v2633 = vadd.f32 0.0, %v2632
        %v2634 = vpop.f32.mrf.mxu0
        %v2635 = vadd.f32 0.0, %v2634
        %2636 = vmatprep.mubr.f32.mxu0 0.0
        %2637 = vmatmul.mubr.f32.gmra.mxu0 %v1989
        %v2638 = vpop.f32.mrf.mxu0
        %v2639 = vadd.f32 0.0, %v2638
        %v2640 = vpop.f32.mrf.mxu0
        %v2641 = vadd.f32 0.0, %v2640
        %2642 = vmatprep.mubr.f32.mxu0 0.0
        %2643 = vmatmul.mubr.f32.gmra.mxu0 %v1852
        %v2644 = vpop.f32.mrf.mxu0
        %v2645 = vadd.f32 0.0, %v2644
        %v2646 = vpop.f32.mrf.mxu0
        %v2647 = vadd.f32 0.0, %v2646
        %2648 = vmatprep.mubr.f32.mxu0 0.0
        %2649 = vmatmul.mubr.f32.gmra.mxu0 %v1715
        %v2650 = vpop.f32.mrf.mxu0
        %v2651 = vadd.f32 0.0, %v2650
        %v2652 = vpop.f32.mrf.mxu0
        %v2653 = vadd.f32 0.0, %v2652
        %2654 = vmatprep.mubr.f32.mxu0 0.0
        %2655 = vmatmul.mubr.f32.gmra.mxu0 %v1578
        %v2656 = vpop.f32.mrf.mxu0
        %v2657 = vadd.f32 0.0, %v2656
        %v2658 = vpop.f32.mrf.mxu0
        %v2659 = vadd.f32 0.0, %v2658
        %2660 = vdwg.mxu0
        %2662 = vrot.lane.b32.xlu0 %v2525, 32
        %v2663 = vpop.permute.xlu0 %2662
        %v2664 = vsel %vm744, %v2663, 0
        %2666 = vmatprep.subr.mxu0 0.0
        %2667 = vmatpush1.msra.mxu0 0.0
        %2668 = vmatprep.subr.mxu0 0.0
        %2669 = vmatpush1.msra.mxu0 0.0
        %2670 = vmatprep.subr.mxu0 0.0
        %2671 = vmatpush1.msra.mxu0 0.0
        %2672 = vmatprep.subr.mxu0 0.0
        %2673 = vmatpush1.msra.mxu0 0.0
        %2674 = vmatprep.subr.mxu0 0.0
        %2675 = vmatpush1.msra.mxu0 0.0
        %2676 = vmatprep.subr.mxu0 0.0
        %2677 = vmatpush1.msra.mxu0 0.0
        %2678 = vmatprep.subr.mxu0 0.0
        %2679 = vmatpush1.msra.mxu0 0.0
        %2680 = vmatprep.subr.mxu0 0.0
        %2681 = vmatpush1.msra.mxu0 0.0
        %2682 = vmatprep.subr.mxu0 0.0
        %2683 = vmatpush1.msra.mxu0 0.0
        %2684 = vmatprep.subr.mxu0 0.0
        %2685 = vmatpush1.msra.mxu0 0.0
        %2686 = vmatprep.subr.mxu0 0.0
        %2687 = vmatpush1.msra.mxu0 0.0
        %2688 = vmatprep.subr.mxu0 0.0
        %2689 = vmatpush1.msra.mxu0 0.0
        %2690 = vmatprep.subr.mxu0 %v2534
        %2691 = vmatpush1.msra.mxu0 %v2533
        %2692 = vmatprep.subr.mxu0 %v2532
        %2693 = vmatpush1.msra.mxu0 %v2531
        %2694 = vmatprep.subr.mxu0 %v2530
        %2695 = vmatpush1.msra.mxu0 %v2529
        %2696 = vmatprep.subr.mxu0 %v2528
        %2697 = vmatpush1.msra.mxu0 %v2527
        %2698 = vmatprep.subr.mxu0 0.0
        %2699 = vmatpush2.msra.mxu0 0.0
        %2700 = vmatprep.subr.mxu0 0.0
        %2701 = vmatpush2.msra.mxu0 0.0
        %2702 = vmatprep.subr.mxu0 0.0
        %2703 = vmatpush2.msra.mxu0 0.0
        %2704 = vmatprep.subr.mxu0 0.0
        %2705 = vmatpush2.msra.mxu0 0.0
        %2706 = vmatprep.subr.mxu0 0.0
        %2707 = vmatpush2.msra.mxu0 0.0
        %2708 = vmatprep.subr.mxu0 0.0
        %2709 = vmatpush2.msra.mxu0 0.0
        %2710 = vmatprep.subr.mxu0 0.0
        %2711 = vmatpush2.msra.mxu0 0.0
        %2712 = vmatprep.subr.mxu0 0.0
        %2713 = vmatpush2.msra.mxu0 0.0
        %2714 = vmatprep.subr.mxu0 0.0
        %2715 = vmatpush2.msra.mxu0 0.0
        %2716 = vmatprep.subr.mxu0 0.0
        %2717 = vmatpush2.msra.mxu0 0.0
        %2718 = vmatprep.subr.mxu0 0.0
        %2719 = vmatpush2.msra.mxu0 0.0
        %2720 = vmatprep.subr.mxu0 0.0
        %2721 = vmatpush2.msra.mxu0 0.0
        %2722 = vmatprep.subr.mxu0 0.0
        %2723 = vmatpush2.msra.mxu0 0.0
        %2724 = vmatprep.subr.mxu0 0.0
        %2725 = vmatpush2.msra.mxu0 0.0
        %2726 = vmatprep.subr.mxu0 0.0
        %2727 = vmatpush2.msra.mxu0 0.0
        %2728 = vmatprep.subr.mxu0 0.0
        %2729 = vmatpush2.msra.mxu0 0.0
        %2730 = vmatprep.mubr.f32.mxu0 0.0
        %2731 = vmatmul.mubr.f32.gmra.mxu0 %v1576
        %v2732 = vpop.f32.mrf.mxu0
        %v2733 = vadd.f32 %v2615, %v2732
        %v2734 = vpop.f32.mrf.mxu0
        %v2735 = vadd.f32 %v2617, %v2734
        %2736 = vmatprep.mubr.f32.mxu0 0.0
        %2737 = vmatmul.mubr.f32.gmra.mxu0 %v1713
        %v2738 = vpop.f32.mrf.mxu0
        %v2739 = vadd.f32 %v2621, %v2738
        %v2740 = vpop.f32.mrf.mxu0
        %v2741 = vadd.f32 %v2623, %v2740
        %2742 = vmatprep.mubr.f32.mxu0 0.0
        %2743 = vmatmul.mubr.f32.gmra.mxu0 %v1850
        %v2744 = vpop.f32.mrf.mxu0
        %v2745 = vadd.f32 %v2627, %v2744
        %v2746 = vpop.f32.mrf.mxu0
        %v2747 = vadd.f32 %v2629, %v2746
        %2748 = vmatprep.mubr.f32.mxu0 0.0
        %2749 = vmatmul.mubr.f32.gmra.mxu0 %v1987
        %v2750 = vpop.f32.mrf.mxu0
        %v2751 = vadd.f32 %v2633, %v2750
        %v2752 = vpop.f32.mrf.mxu0
        %v2753 = vadd.f32 %v2635, %v2752
        %2754 = vmatprep.mubr.f32.mxu0 0.0
        %2755 = vmatmul.mubr.f32.gmra.mxu0 %v2124
        %v2756 = vpop.f32.mrf.mxu0
        %v2757 = vadd.f32 %v2639, %v2756
        %v2758 = vpop.f32.mrf.mxu0
        %v2759 = vadd.f32 %v2641, %v2758
        %2760 = vmatprep.mubr.f32.mxu0 0.0
        %2761 = vmatmul.mubr.f32.gmra.mxu0 %v2261
        %v2762 = vpop.f32.mrf.mxu0
        %v2763 = vadd.f32 %v2645, %v2762
        %v2764 = vpop.f32.mrf.mxu0
        %v2765 = vadd.f32 %v2647, %v2764
        %2766 = vmatprep.mubr.f32.mxu0 0.0
        %2767 = vmatmul.mubr.f32.gmra.mxu0 %v2398
        %v2768 = vpop.f32.mrf.mxu0
        %v2769 = vadd.f32 %v2651, %v2768
        %v2770 = vpop.f32.mrf.mxu0
        %v2771 = vadd.f32 %v2653, %v2770
        %2772 = vmatprep.mubr.f32.mxu0 0.0
        %2773 = vmatmul.mubr.f32.gmra.mxu0 %v2664
        %v2774 = vpop.f32.mrf.mxu0
        %v2775 = vadd.f32 %v2657, %v2774
        %v2776 = vpop.f32.mrf.mxu0
        %v2777 = vadd.f32 %v2659, %v2776
        %2778 = vdwg.mxu0
        %s2779 = scalar_lea.vmem %s8, 2
        %v2780 = vld [vmem:[%s2779] sm:$0x3]
        %v2782 = vlaneseq
        %v2783 = vshrl.u32 %v2782, 7
        %v2784 = vsub.s32 0, %v2783
        %v2785 = vrot.slane %v2780, %v2784
        %v2786 = vlaneseq
        %v2787 = vshrl.u32 %v2786, 7
        %v2788 = vsub.s32 1, %v2787
        %v2789 = vrot.slane %v2780, %v2788
        %v2792 = vadd.f32 %v2733, %v2785
        %v2793 = vadd.f32 %v2735, %v2789
        %v2794 = vadd.f32 %v2739, %v2785
        %v2795 = vadd.f32 %v2741, %v2789
        %v2796 = vadd.f32 %v2745, %v2785
        %v2797 = vadd.f32 %v2747, %v2789
        %v2798 = vadd.f32 %v2751, %v2785
        %v2799 = vadd.f32 %v2753, %v2789
        %v2800 = vadd.f32 %v2757, %v2785
        %v2801 = vadd.f32 %v2759, %v2789
        %v2802 = vadd.f32 %v2763, %v2785
        %v2803 = vadd.f32 %v2765, %v2789
        %v2804 = vadd.f32 %v2769, %v2785
        %v2805 = vadd.f32 %v2771, %v2789
        %v2806 = vadd.f32 %v2775, %v2785
        %v2807 = vadd.f32 %v2777, %v2789
        %2808 = vst [vmem:[#allocation2] sm:$0xff] %v2792
        %2809 = vst [vmem:[#allocation2 + $0x8] sm:$0xff] %v2793
        %2810 = vst [vmem:[#allocation2 + $0x10] sm:$0xff] %v2794
        %2811 = vst [vmem:[#allocation2 + $0x18] sm:$0xff] %v2795
        %2812 = vst [vmem:[#allocation2 + $0x20] sm:$0xff] %v2796
        %2813 = vst [vmem:[#allocation2 + $0x28] sm:$0xff] %v2797
        %2814 = vst [vmem:[#allocation2 + $0x30] sm:$0xff] %v2798
        %2815 = vst [vmem:[#allocation2 + $0x38] sm:$0xff] %v2799
        %2816 = vst [vmem:[#allocation2 + $0x40] sm:$0xff] %v2800
        %2817 = vst [vmem:[#allocation2 + $0x48] sm:$0xff] %v2801
        %2818 = vst [vmem:[#allocation2 + $0x50] sm:$0xff] %v2802
        %2819 = vst [vmem:[#allocation2 + $0x58] sm:$0xff] %v2803
        %2820 = vst [vmem:[#allocation2 + $0x60] sm:$0xff] %v2804
        %2821 = vst [vmem:[#allocation2 + $0x68] sm:$0xff] %v2805
        %2822 = vst [vmem:[#allocation2 + $0x70] sm:$0xff] %v2806
        %2823 = vst [vmem:[#allocation2 + $0x78] sm:$0xff] %v2807
        %s2824 = scalar_lea.vmem %s7, 64
        %v2825 = vld [vmem:[%s2824] sm:$0xff]
        %v2826 = vld [vmem:[%s2824 + $0x8] sm:$0xff]
        %v2827 = vld [vmem:[%s2824 + $0x10] sm:$0xff]
        %v2828 = vld [vmem:[%s2824 + $0x18] sm:$0xff]
        %v2829 = vld [vmem:[%s2824 + $0x20] sm:$0xff]
        %v2830 = vld [vmem:[%s2824 + $0x28] sm:$0xff]
        %v2831 = vld [vmem:[%s2824 + $0x30] sm:$0xff]
        %v2832 = vld [vmem:[%s2824 + $0x38] sm:$0xff]
        %v2833 = vld [vmem:[#allocation2] sm:$0xff]
        %v2834 = vld [vmem:[#allocation2 + $0x78] sm:$0xff]
        %v2835 = vxor.u32 %v2833, 2147483648
        %v2836 = vxor.u32 %v2834, 2147483648
        %v2837 = vmul.f32 %v2835, 1.442695
        %v2838 = vpow.pop %v2837
        %v2839 = vmul.f32 %v2836, 1.442695
        %v2840 = vpow.pop %v2839
        %v2841 = vadd.f32 %v2838, 1.0
        %v2842 = vadd.f32 %v2840, 1.0
        %v2843 = vrcp.pop %v2841
        %v2844 = vmul.f32 1.0, %v2843
        %v2845 = vrcp.pop %v2842
        %v2846 = vmul.f32 1.0, %v2845
        %v2847 = vtanh.pop %v2833
        %v2848 = vtanh.pop %v2834
        %v2849 = vmul.f32 %v2844, 0.0
        %v2850 = vmul.f32 %v2846, 0.0
        %2853 = vrot.lane.b32.xlu0 %v2847, 64
        %v2854 = vpop.permute.xlu0 %2853
        %2855 = vrot.lane.b32.xlu0 %v2848, 64
        %v2856 = vpop.permute.xlu0 %2855
        %v2859 = vmul.f32 %v2844, %v2854
        %v2860 = vmul.f32 %v2846, %v2856
        %2863 = vrot.lane.b32.xlu0 %v2859, 32
        %v2864 = vpop.permute.xlu0 %2863
        %2865 = vrot.lane.b32.xlu0 %v2860, 32
        %v2866 = vpop.permute.xlu0 %2865
        %v2869 = vadd.f32 %v2849, %v2864
        %v2870 = vadd.f32 %v2850, %v2866
        %v2871 = vtanh.pop %v2869
        %v2872 = vtanh.pop %v2870
        %2875 = vrot.lane.b32.xlu0 %v2871, 64
        %v2876 = vpop.permute.xlu0 %2875
        %2877 = vrot.lane.b32.xlu0 %v2872, 64
        %v2878 = vpop.permute.xlu0 %2877
        %v2881 = vmul.f32 %v2844, %v2876
        %v2882 = vmul.f32 %v2846, %v2878
        %v2883 = vld [vmem:[#allocation2 + $0x10] sm:$0xff]
        %v2884 = vld [vmem:[#allocation2 + $0x68] sm:$0xff]
        %2887 = vrot.lane.b32.xlu0 %v2881, 32
        %v2888 = vpop.permute.xlu0 %2887
        %2889 = vrot.lane.b32.xlu0 %v2882, 32
        %v2890 = vpop.permute.xlu0 %2889
        %v2891 = vsel %vm744, %v2888, 0
        %v2893 = vsel %vm744, %v2890, 0
        %2895 = vmatprep.subr.mxu0 0.0
        %2896 = vmatpush1.msra.mxu0 0.0
        %2897 = vmatprep.subr.mxu0 0.0
        %2898 = vmatpush1.msra.mxu0 0.0
        %2899 = vmatprep.subr.mxu0 0.0
        %2900 = vmatpush1.msra.mxu0 0.0
        %2901 = vmatprep.subr.mxu0 0.0
        %2902 = vmatpush1.msra.mxu0 0.0
        %2903 = vmatprep.subr.mxu0 0.0
        %2904 = vmatpush1.msra.mxu0 0.0
        %2905 = vmatprep.subr.mxu0 0.0
        %2906 = vmatpush1.msra.mxu0 0.0
        %2907 = vmatprep.subr.mxu0 0.0
        %2908 = vmatpush1.msra.mxu0 0.0
        %2909 = vmatprep.subr.mxu0 0.0
        %2910 = vmatpush1.msra.mxu0 0.0
        %2911 = vmatprep.subr.mxu0 0.0
        %2912 = vmatpush1.msra.mxu0 0.0
        %2913 = vmatprep.subr.mxu0 0.0
        %2914 = vmatpush1.msra.mxu0 0.0
        %2915 = vmatprep.subr.mxu0 0.0
        %2916 = vmatpush1.msra.mxu0 0.0
        %2917 = vmatprep.subr.mxu0 0.0
        %2918 = vmatpush1.msra.mxu0 0.0
        %2919 = vmatprep.subr.mxu0 %v2832
        %2920 = vmatpush1.msra.mxu0 %v2831
        %2921 = vmatprep.subr.mxu0 %v2830
        %2922 = vmatpush1.msra.mxu0 %v2829
        %2923 = vmatprep.subr.mxu0 %v2828
        %2924 = vmatpush1.msra.mxu0 %v2827
        %2925 = vmatprep.subr.mxu0 %v2826
        %2926 = vmatpush1.msra.mxu0 %v2825
        %2927 = vmatprep.subr.mxu0 0.0
        %2928 = vmatpush2.msra.mxu0 0.0
        %2929 = vmatprep.subr.mxu0 0.0
        %2930 = vmatpush2.msra.mxu0 0.0
        %2931 = vmatprep.subr.mxu0 0.0
        %2932 = vmatpush2.msra.mxu0 0.0
        %2933 = vmatprep.subr.mxu0 0.0
        %2934 = vmatpush2.msra.mxu0 0.0
        %2935 = vmatprep.subr.mxu0 0.0
        %2936 = vmatpush2.msra.mxu0 0.0
        %2937 = vmatprep.subr.mxu0 0.0
        %2938 = vmatpush2.msra.mxu0 0.0
        %2939 = vmatprep.subr.mxu0 0.0
        %2940 = vmatpush2.msra.mxu0 0.0
        %2941 = vmatprep.subr.mxu0 0.0
        %2942 = vmatpush2.msra.mxu0 0.0
        %2943 = vmatprep.subr.mxu0 0.0
        %2944 = vmatpush2.msra.mxu0 0.0
        %2945 = vmatprep.subr.mxu0 0.0
        %2946 = vmatpush2.msra.mxu0 0.0
        %2947 = vmatprep.subr.mxu0 0.0
        %2948 = vmatpush2.msra.mxu0 0.0
        %2949 = vmatprep.subr.mxu0 0.0
        %2950 = vmatpush2.msra.mxu0 0.0
        %2951 = vmatprep.subr.mxu0 0.0
        %2952 = vmatpush2.msra.mxu0 0.0
        %2953 = vmatprep.subr.mxu0 0.0
        %2954 = vmatpush2.msra.mxu0 0.0
        %2955 = vmatprep.subr.mxu0 0.0
        %2956 = vmatpush2.msra.mxu0 0.0
        %2957 = vmatprep.subr.mxu0 0.0
        %2958 = vmatpush2.msra.mxu0 0.0
        %2959 = vmatprep.mubr.f32.mxu0 0.0
        %2960 = vmatmul.mubr.f32.gmra.mxu0 %v2891
        %v2961 = vpop.f32.mrf.mxu0
        %v2962 = vadd.f32 0.0, %v2961
        %v2963 = vpop.f32.mrf.mxu0
        %2964 = vmatprep.mubr.f32.mxu0 0.0
        %2965 = vmatmul.mubr.f32.gmra.mxu0 %v2893
        %v2966 = vpop.f32.mrf.mxu0
        %v2967 = vpop.f32.mrf.mxu0
        %v2968 = vadd.f32 0.0, %v2967
        %2969 = vdwg.mxu0
        %v2970 = vadd.f32 %v2883, %v2962
        %v2971 = vadd.f32 %v2884, %v2968
        %v2972 = vxor.u32 %v2970, 2147483648
        %v2973 = vxor.u32 %v2971, 2147483648
        %v2974 = vmul.f32 %v2972, 1.442695
        %v2975 = vpow.pop %v2974
        %v2976 = vmul.f32 %v2973, 1.442695
        %v2977 = vpow.pop %v2976
        %v2978 = vadd.f32 %v2975, 1.0
        %v2979 = vadd.f32 %v2977, 1.0
        %v2980 = vrcp.pop %v2978
        %v2981 = vmul.f32 1.0, %v2980
        %v2982 = vrcp.pop %v2979
        %v2983 = vmul.f32 1.0, %v2982
        %v2984 = vtanh.pop %v2970
        %v2985 = vtanh.pop %v2971
        %v2986 = vmul.f32 %v2981, %v2869
        %v2987 = vmul.f32 %v2983, %v2870
        %2990 = vrot.lane.b32.xlu0 %v2984, 64
        %v2991 = vpop.permute.xlu0 %2990
        %2992 = vrot.lane.b32.xlu0 %v2985, 64
        %v2993 = vpop.permute.xlu0 %2992
        %v2996 = vmul.f32 %v2981, %v2991
        %v2997 = vmul.f32 %v2983, %v2993
        %3000 = vrot.lane.b32.xlu0 %v2996, 32
        %v3001 = vpop.permute.xlu0 %3000
        %3002 = vrot.lane.b32.xlu0 %v2997, 32
        %v3003 = vpop.permute.xlu0 %3002
        %v3006 = vadd.f32 %v2986, %v3001
        %v3007 = vadd.f32 %v2987, %v3003
        %v3008 = vtanh.pop %v3006
        %v3009 = vtanh.pop %v3007
        %3012 = vrot.lane.b32.xlu0 %v3008, 64
        %v3013 = vpop.permute.xlu0 %3012
        %3014 = vrot.lane.b32.xlu0 %v3009, 64
        %v3015 = vpop.permute.xlu0 %3014
        %v3018 = vmul.f32 %v2981, %v3013
        %v3019 = vmul.f32 %v2983, %v3015
        %v3020 = vld [vmem:[#allocation2 + $0x20] sm:$0xff]
        %v3021 = vld [vmem:[#allocation2 + $0x58] sm:$0xff]
        %3024 = vrot.lane.b32.xlu0 %v3018, 32
        %v3025 = vpop.permute.xlu0 %3024
        %3026 = vrot.lane.b32.xlu0 %v3019, 32
        %v3027 = vpop.permute.xlu0 %3026
        %v3028 = vsel %vm744, %v3025, 0
        %v3030 = vsel %vm744, %v3027, 0
        %3032 = vmatprep.subr.mxu0 0.0
        %3033 = vmatpush1.msra.mxu0 0.0
        %3034 = vmatprep.subr.mxu0 0.0
        %3035 = vmatpush1.msra.mxu0 0.0
        %3036 = vmatprep.subr.mxu0 0.0
        %3037 = vmatpush1.msra.mxu0 0.0
        %3038 = vmatprep.subr.mxu0 0.0
        %3039 = vmatpush1.msra.mxu0 0.0
        %3040 = vmatprep.subr.mxu0 0.0
        %3041 = vmatpush1.msra.mxu0 0.0
        %3042 = vmatprep.subr.mxu0 0.0
        %3043 = vmatpush1.msra.mxu0 0.0
        %3044 = vmatprep.subr.mxu0 0.0
        %3045 = vmatpush1.msra.mxu0 0.0
        %3046 = vmatprep.subr.mxu0 0.0
        %3047 = vmatpush1.msra.mxu0 0.0
        %3048 = vmatprep.subr.mxu0 0.0
        %3049 = vmatpush1.msra.mxu0 0.0
        %3050 = vmatprep.subr.mxu0 0.0
        %3051 = vmatpush1.msra.mxu0 0.0
        %3052 = vmatprep.subr.mxu0 0.0
        %3053 = vmatpush1.msra.mxu0 0.0
        %3054 = vmatprep.subr.mxu0 0.0
        %3055 = vmatpush1.msra.mxu0 0.0
        %3056 = vmatprep.subr.mxu0 %v2832
        %3057 = vmatpush1.msra.mxu0 %v2831
        %3058 = vmatprep.subr.mxu0 %v2830
        %3059 = vmatpush1.msra.mxu0 %v2829
        %3060 = vmatprep.subr.mxu0 %v2828
        %3061 = vmatpush1.msra.mxu0 %v2827
        %3062 = vmatprep.subr.mxu0 %v2826
        %3063 = vmatpush1.msra.mxu0 %v2825
        %3064 = vmatprep.subr.mxu0 0.0
        %3065 = vmatpush2.msra.mxu0 0.0
        %3066 = vmatprep.subr.mxu0 0.0
        %3067 = vmatpush2.msra.mxu0 0.0
        %3068 = vmatprep.subr.mxu0 0.0
        %3069 = vmatpush2.msra.mxu0 0.0
        %3070 = vmatprep.subr.mxu0 0.0
        %3071 = vmatpush2.msra.mxu0 0.0
        %3072 = vmatprep.subr.mxu0 0.0
        %3073 = vmatpush2.msra.mxu0 0.0
        %3074 = vmatprep.subr.mxu0 0.0
        %3075 = vmatpush2.msra.mxu0 0.0
        %3076 = vmatprep.subr.mxu0 0.0
        %3077 = vmatpush2.msra.mxu0 0.0
        %3078 = vmatprep.subr.mxu0 0.0
        %3079 = vmatpush2.msra.mxu0 0.0
        %3080 = vmatprep.subr.mxu0 0.0
        %3081 = vmatpush2.msra.mxu0 0.0
        %3082 = vmatprep.subr.mxu0 0.0
        %3083 = vmatpush2.msra.mxu0 0.0
        %3084 = vmatprep.subr.mxu0 0.0
        %3085 = vmatpush2.msra.mxu0 0.0
        %3086 = vmatprep.subr.mxu0 0.0
        %3087 = vmatpush2.msra.mxu0 0.0
        %3088 = vmatprep.subr.mxu0 0.0
        %3089 = vmatpush2.msra.mxu0 0.0
        %3090 = vmatprep.subr.mxu0 0.0
        %3091 = vmatpush2.msra.mxu0 0.0
        %3092 = vmatprep.subr.mxu0 0.0
        %3093 = vmatpush2.msra.mxu0 0.0
        %3094 = vmatprep.subr.mxu0 0.0
        %3095 = vmatpush2.msra.mxu0 0.0
        %3096 = vmatprep.mubr.f32.mxu0 0.0
        %3097 = vmatmul.mubr.f32.gmra.mxu0 %v3028
        %v3098 = vpop.f32.mrf.mxu0
        %v3099 = vadd.f32 0.0, %v3098
        %v3100 = vpop.f32.mrf.mxu0
        %3101 = vmatprep.mubr.f32.mxu0 0.0
        %3102 = vmatmul.mubr.f32.gmra.mxu0 %v3030
        %v3103 = vpop.f32.mrf.mxu0
        %v3104 = vpop.f32.mrf.mxu0
        %v3105 = vadd.f32 0.0, %v3104
        %3106 = vdwg.mxu0
        %v3107 = vadd.f32 %v3020, %v3099
        %v3108 = vadd.f32 %v3021, %v3105
        %v3109 = vxor.u32 %v3107, 2147483648
        %v3110 = vxor.u32 %v3108, 2147483648
        %v3111 = vmul.f32 %v3109, 1.442695
        %v3112 = vpow.pop %v3111
        %v3113 = vmul.f32 %v3110, 1.442695
        %v3114 = vpow.pop %v3113
        %v3115 = vadd.f32 %v3112, 1.0
        %v3116 = vadd.f32 %v3114, 1.0
        %v3117 = vrcp.pop %v3115
        %v3118 = vmul.f32 1.0, %v3117
        %v3119 = vrcp.pop %v3116
        %v3120 = vmul.f32 1.0, %v3119
        %v3121 = vtanh.pop %v3107
        %v3122 = vtanh.pop %v3108
        %v3123 = vmul.f32 %v3118, %v3006
        %v3124 = vmul.f32 %v3120, %v3007
        %3127 = vrot.lane.b32.xlu0 %v3121, 64
        %v3128 = vpop.permute.xlu0 %3127
        %3129 = vrot.lane.b32.xlu0 %v3122, 64
        %v3130 = vpop.permute.xlu0 %3129
        %v3133 = vmul.f32 %v3118, %v3128
        %v3134 = vmul.f32 %v3120, %v3130
        %3137 = vrot.lane.b32.xlu0 %v3133, 32
        %v3138 = vpop.permute.xlu0 %3137
        %3139 = vrot.lane.b32.xlu0 %v3134, 32
        %v3140 = vpop.permute.xlu0 %3139
        %v3143 = vadd.f32 %v3123, %v3138
        %v3144 = vadd.f32 %v3124, %v3140
        %v3145 = vtanh.pop %v3143
        %v3146 = vtanh.pop %v3144
        %3149 = vrot.lane.b32.xlu0 %v3145, 64
        %v3150 = vpop.permute.xlu0 %3149
        %3151 = vrot.lane.b32.xlu0 %v3146, 64
        %v3152 = vpop.permute.xlu0 %3151
        %v3155 = vmul.f32 %v3118, %v3150
        %v3156 = vmul.f32 %v3120, %v3152
        %v3157 = vld [vmem:[#allocation2 + $0x30] sm:$0xff]
        %v3158 = vld [vmem:[#allocation2 + $0x48] sm:$0xff]
        %3161 = vrot.lane.b32.xlu0 %v3155, 32
        %v3162 = vpop.permute.xlu0 %3161
        %3163 = vrot.lane.b32.xlu0 %v3156, 32
        %v3164 = vpop.permute.xlu0 %3163
        %v3165 = vsel %vm744, %v3162, 0
        %v3167 = vsel %vm744, %v3164, 0
        %3169 = vmatprep.subr.mxu0 0.0
        %3170 = vmatpush1.msra.mxu0 0.0
        %3171 = vmatprep.subr.mxu0 0.0
        %3172 = vmatpush1.msra.mxu0 0.0
        %3173 = vmatprep.subr.mxu0 0.0
        %3174 = vmatpush1.msra.mxu0 0.0
        %3175 = vmatprep.subr.mxu0 0.0
        %3176 = vmatpush1.msra.mxu0 0.0
        %3177 = vmatprep.subr.mxu0 0.0
        %3178 = vmatpush1.msra.mxu0 0.0
        %3179 = vmatprep.subr.mxu0 0.0
        %3180 = vmatpush1.msra.mxu0 0.0
        %3181 = vmatprep.subr.mxu0 0.0
        %3182 = vmatpush1.msra.mxu0 0.0
        %3183 = vmatprep.subr.mxu0 0.0
        %3184 = vmatpush1.msra.mxu0 0.0
        %3185 = vmatprep.subr.mxu0 0.0
        %3186 = vmatpush1.msra.mxu0 0.0
        %3187 = vmatprep.subr.mxu0 0.0
        %3188 = vmatpush1.msra.mxu0 0.0
        %3189 = vmatprep.subr.mxu0 0.0
        %3190 = vmatpush1.msra.mxu0 0.0
        %3191 = vmatprep.subr.mxu0 0.0
        %3192 = vmatpush1.msra.mxu0 0.0
        %3193 = vmatprep.subr.mxu0 %v2832
        %3194 = vmatpush1.msra.mxu0 %v2831
        %3195 = vmatprep.subr.mxu0 %v2830
        %3196 = vmatpush1.msra.mxu0 %v2829
        %3197 = vmatprep.subr.mxu0 %v2828
        %3198 = vmatpush1.msra.mxu0 %v2827
        %3199 = vmatprep.subr.mxu0 %v2826
        %3200 = vmatpush1.msra.mxu0 %v2825
        %3201 = vmatprep.subr.mxu0 0.0
        %3202 = vmatpush2.msra.mxu0 0.0
        %3203 = vmatprep.subr.mxu0 0.0
        %3204 = vmatpush2.msra.mxu0 0.0
        %3205 = vmatprep.subr.mxu0 0.0
        %3206 = vmatpush2.msra.mxu0 0.0
        %3207 = vmatprep.subr.mxu0 0.0
        %3208 = vmatpush2.msra.mxu0 0.0
        %3209 = vmatprep.subr.mxu0 0.0
        %3210 = vmatpush2.msra.mxu0 0.0
        %3211 = vmatprep.subr.mxu0 0.0
        %3212 = vmatpush2.msra.mxu0 0.0
        %3213 = vmatprep.subr.mxu0 0.0
        %3214 = vmatpush2.msra.mxu0 0.0
        %3215 = vmatprep.subr.mxu0 0.0
        %3216 = vmatpush2.msra.mxu0 0.0
        %3217 = vmatprep.subr.mxu0 0.0
        %3218 = vmatpush2.msra.mxu0 0.0
        %3219 = vmatprep.subr.mxu0 0.0
        %3220 = vmatpush2.msra.mxu0 0.0
        %3221 = vmatprep.subr.mxu0 0.0
        %3222 = vmatpush2.msra.mxu0 0.0
        %3223 = vmatprep.subr.mxu0 0.0
        %3224 = vmatpush2.msra.mxu0 0.0
        %3225 = vmatprep.subr.mxu0 0.0
        %3226 = vmatpush2.msra.mxu0 0.0
        %3227 = vmatprep.subr.mxu0 0.0
        %3228 = vmatpush2.msra.mxu0 0.0
        %3229 = vmatprep.subr.mxu0 0.0
        %3230 = vmatpush2.msra.mxu0 0.0
        %3231 = vmatprep.subr.mxu0 0.0
        %3232 = vmatpush2.msra.mxu0 0.0
        %3233 = vmatprep.mubr.f32.mxu0 0.0
        %3234 = vmatmul.mubr.f32.gmra.mxu0 %v3165
        %v3235 = vpop.f32.mrf.mxu0
        %v3236 = vadd.f32 0.0, %v3235
        %v3237 = vpop.f32.mrf.mxu0
        %3238 = vmatprep.mubr.f32.mxu0 0.0
        %3239 = vmatmul.mubr.f32.gmra.mxu0 %v3167
        %v3240 = vpop.f32.mrf.mxu0
        %v3241 = vpop.f32.mrf.mxu0
        %v3242 = vadd.f32 0.0, %v3241
        %3243 = vdwg.mxu0
        %v3244 = vadd.f32 %v3157, %v3236
        %v3245 = vadd.f32 %v3158, %v3242
        %v3246 = vxor.u32 %v3244, 2147483648
        %v3247 = vxor.u32 %v3245, 2147483648
        %v3248 = vmul.f32 %v3246, 1.442695
        %v3249 = vpow.pop %v3248
        %v3250 = vmul.f32 %v3247, 1.442695
        %v3251 = vpow.pop %v3250
        %v3252 = vadd.f32 %v3249, 1.0
        %v3253 = vadd.f32 %v3251, 1.0
        %v3254 = vrcp.pop %v3252
        %v3255 = vmul.f32 1.0, %v3254
        %v3256 = vrcp.pop %v3253
        %v3257 = vmul.f32 1.0, %v3256
        %v3258 = vtanh.pop %v3244
        %v3259 = vtanh.pop %v3245
        %v3260 = vmul.f32 %v3255, %v3143
        %v3261 = vmul.f32 %v3257, %v3144
        %3264 = vrot.lane.b32.xlu0 %v3258, 64
        %v3265 = vpop.permute.xlu0 %3264
        %3266 = vrot.lane.b32.xlu0 %v3259, 64
        %v3267 = vpop.permute.xlu0 %3266
        %v3270 = vmul.f32 %v3255, %v3265
        %v3271 = vmul.f32 %v3257, %v3267
        %3274 = vrot.lane.b32.xlu0 %v3270, 32
        %v3275 = vpop.permute.xlu0 %3274
        %3276 = vrot.lane.b32.xlu0 %v3271, 32
        %v3277 = vpop.permute.xlu0 %3276
        %v3280 = vadd.f32 %v3260, %v3275
        %v3281 = vadd.f32 %v3261, %v3277
        %v3282 = vtanh.pop %v3280
        %v3283 = vtanh.pop %v3281
        %3286 = vrot.lane.b32.xlu0 %v3282, 64
        %v3287 = vpop.permute.xlu0 %3286
        %3288 = vrot.lane.b32.xlu0 %v3283, 64
        %v3289 = vpop.permute.xlu0 %3288
        %v3292 = vmul.f32 %v3255, %v3287
        %v3293 = vmul.f32 %v3257, %v3289
        %v3294 = vld [vmem:[#allocation2 + $0x40] sm:$0xff]
        %v3295 = vld [vmem:[#allocation2 + $0x38] sm:$0xff]
        %3298 = vrot.lane.b32.xlu0 %v3292, 32
        %v3299 = vpop.permute.xlu0 %3298
        %3300 = vrot.lane.b32.xlu0 %v3293, 32
        %v3301 = vpop.permute.xlu0 %3300
        %v3302 = vsel %vm744, %v3299, 0
        %v3304 = vsel %vm744, %v3301, 0
        %3306 = vmatprep.subr.mxu0 0.0
        %3307 = vmatpush1.msra.mxu0 0.0
        %3308 = vmatprep.subr.mxu0 0.0
        %3309 = vmatpush1.msra.mxu0 0.0
        %3310 = vmatprep.subr.mxu0 0.0
        %3311 = vmatpush1.msra.mxu0 0.0
        %3312 = vmatprep.subr.mxu0 0.0
        %3313 = vmatpush1.msra.mxu0 0.0
        %3314 = vmatprep.subr.mxu0 0.0
        %3315 = vmatpush1.msra.mxu0 0.0
        %3316 = vmatprep.subr.mxu0 0.0
        %3317 = vmatpush1.msra.mxu0 0.0
        %3318 = vmatprep.subr.mxu0 0.0
        %3319 = vmatpush1.msra.mxu0 0.0
        %3320 = vmatprep.subr.mxu0 0.0
        %3321 = vmatpush1.msra.mxu0 0.0
        %3322 = vmatprep.subr.mxu0 0.0
        %3323 = vmatpush1.msra.mxu0 0.0
        %3324 = vmatprep.subr.mxu0 0.0
        %3325 = vmatpush1.msra.mxu0 0.0
        %3326 = vmatprep.subr.mxu0 0.0
        %3327 = vmatpush1.msra.mxu0 0.0
        %3328 = vmatprep.subr.mxu0 0.0
        %3329 = vmatpush1.msra.mxu0 0.0
        %3330 = vmatprep.subr.mxu0 %v2832
        %3331 = vmatpush1.msra.mxu0 %v2831
        %3332 = vmatprep.subr.mxu0 %v2830
        %3333 = vmatpush1.msra.mxu0 %v2829
        %3334 = vmatprep.subr.mxu0 %v2828
        %3335 = vmatpush1.msra.mxu0 %v2827
        %3336 = vmatprep.subr.mxu0 %v2826
        %3337 = vmatpush1.msra.mxu0 %v2825
        %3338 = vmatprep.subr.mxu0 0.0
        %3339 = vmatpush2.msra.mxu0 0.0
        %3340 = vmatprep.subr.mxu0 0.0
        %3341 = vmatpush2.msra.mxu0 0.0
        %3342 = vmatprep.subr.mxu0 0.0
        %3343 = vmatpush2.msra.mxu0 0.0
        %3344 = vmatprep.subr.mxu0 0.0
        %3345 = vmatpush2.msra.mxu0 0.0
        %3346 = vmatprep.subr.mxu0 0.0
        %3347 = vmatpush2.msra.mxu0 0.0
        %3348 = vmatprep.subr.mxu0 0.0
        %3349 = vmatpush2.msra.mxu0 0.0
        %3350 = vmatprep.subr.mxu0 0.0
        %3351 = vmatpush2.msra.mxu0 0.0
        %3352 = vmatprep.subr.mxu0 0.0
        %3353 = vmatpush2.msra.mxu0 0.0
        %3354 = vmatprep.subr.mxu0 0.0
        %3355 = vmatpush2.msra.mxu0 0.0
        %3356 = vmatprep.subr.mxu0 0.0
        %3357 = vmatpush2.msra.mxu0 0.0
        %3358 = vmatprep.subr.mxu0 0.0
        %3359 = vmatpush2.msra.mxu0 0.0
        %3360 = vmatprep.subr.mxu0 0.0
        %3361 = vmatpush2.msra.mxu0 0.0
        %3362 = vmatprep.subr.mxu0 0.0
        %3363 = vmatpush2.msra.mxu0 0.0
        %3364 = vmatprep.subr.mxu0 0.0
        %3365 = vmatpush2.msra.mxu0 0.0
        %3366 = vmatprep.subr.mxu0 0.0
        %3367 = vmatpush2.msra.mxu0 0.0
        %3368 = vmatprep.subr.mxu0 0.0
        %3369 = vmatpush2.msra.mxu0 0.0
        %3370 = vmatprep.mubr.f32.mxu0 0.0
        %3371 = vmatmul.mubr.f32.gmra.mxu0 %v3302
        %v3372 = vpop.f32.mrf.mxu0
        %v3373 = vadd.f32 0.0, %v3372
        %v3374 = vpop.f32.mrf.mxu0
        %3375 = vmatprep.mubr.f32.mxu0 0.0
        %3376 = vmatmul.mubr.f32.gmra.mxu0 %v3304
        %v3377 = vpop.f32.mrf.mxu0
        %v3378 = vpop.f32.mrf.mxu0
        %v3379 = vadd.f32 0.0, %v3378
        %3380 = vdwg.mxu0
        %v3381 = vadd.f32 %v3294, %v3373
        %v3382 = vadd.f32 %v3295, %v3379
        %v3383 = vxor.u32 %v3381, 2147483648
        %v3384 = vxor.u32 %v3382, 2147483648
        %v3385 = vmul.f32 %v3383, 1.442695
        %v3386 = vpow.pop %v3385
        %v3387 = vmul.f32 %v3384, 1.442695
        %v3388 = vpow.pop %v3387
        %v3389 = vadd.f32 %v3386, 1.0
        %v3390 = vadd.f32 %v3388, 1.0
        %v3391 = vrcp.pop %v3389
        %v3392 = vmul.f32 1.0, %v3391
        %v3393 = vrcp.pop %v3390
        %v3394 = vmul.f32 1.0, %v3393
        %v3395 = vtanh.pop %v3381
        %v3396 = vtanh.pop %v3382
        %v3397 = vmul.f32 %v3392, %v3280
        %v3398 = vmul.f32 %v3394, %v3281
        %3401 = vrot.lane.b32.xlu0 %v3395, 64
        %v3402 = vpop.permute.xlu0 %3401
        %3403 = vrot.lane.b32.xlu0 %v3396, 64
        %v3404 = vpop.permute.xlu0 %3403
        %v3407 = vmul.f32 %v3392, %v3402
        %v3408 = vmul.f32 %v3394, %v3404
        %3411 = vrot.lane.b32.xlu0 %v3407, 32
        %v3412 = vpop.permute.xlu0 %3411
        %3413 = vrot.lane.b32.xlu0 %v3408, 32
        %v3414 = vpop.permute.xlu0 %3413
        %v3417 = vadd.f32 %v3397, %v3412
        %v3418 = vadd.f32 %v3398, %v3414
        %v3419 = vtanh.pop %v3417
        %v3420 = vtanh.pop %v3418
        %3423 = vrot.lane.b32.xlu0 %v3419, 64
        %v3424 = vpop.permute.xlu0 %3423
        %3425 = vrot.lane.b32.xlu0 %v3420, 64
        %v3426 = vpop.permute.xlu0 %3425
        %v3429 = vmul.f32 %v3392, %v3424
        %v3430 = vmul.f32 %v3394, %v3426
        %v3431 = vld [vmem:[#allocation2 + $0x50] sm:$0xff]
        %v3432 = vld [vmem:[#allocation2 + $0x28] sm:$0xff]
        %3435 = vrot.lane.b32.xlu0 %v3429, 32
        %v3436 = vpop.permute.xlu0 %3435
        %3437 = vrot.lane.b32.xlu0 %v3430, 32
        %v3438 = vpop.permute.xlu0 %3437
        %v3439 = vsel %vm744, %v3436, 0
        %v3441 = vsel %vm744, %v3438, 0
        %3443 = vmatprep.subr.mxu0 0.0
        %3444 = vmatpush1.msra.mxu0 0.0
        %3445 = vmatprep.subr.mxu0 0.0
        %3446 = vmatpush1.msra.mxu0 0.0
        %3447 = vmatprep.subr.mxu0 0.0
        %3448 = vmatpush1.msra.mxu0 0.0
        %3449 = vmatprep.subr.mxu0 0.0
        %3450 = vmatpush1.msra.mxu0 0.0
        %3451 = vmatprep.subr.mxu0 0.0
        %3452 = vmatpush1.msra.mxu0 0.0
        %3453 = vmatprep.subr.mxu0 0.0
        %3454 = vmatpush1.msra.mxu0 0.0
        %3455 = vmatprep.subr.mxu0 0.0
        %3456 = vmatpush1.msra.mxu0 0.0
        %3457 = vmatprep.subr.mxu0 0.0
        %3458 = vmatpush1.msra.mxu0 0.0
        %3459 = vmatprep.subr.mxu0 0.0
        %3460 = vmatpush1.msra.mxu0 0.0
        %3461 = vmatprep.subr.mxu0 0.0
        %3462 = vmatpush1.msra.mxu0 0.0
        %3463 = vmatprep.subr.mxu0 0.0
        %3464 = vmatpush1.msra.mxu0 0.0
        %3465 = vmatprep.subr.mxu0 0.0
        %3466 = vmatpush1.msra.mxu0 0.0
        %3467 = vmatprep.subr.mxu0 %v2832
        %3468 = vmatpush1.msra.mxu0 %v2831
        %3469 = vmatprep.subr.mxu0 %v2830
        %3470 = vmatpush1.msra.mxu0 %v2829
        %3471 = vmatprep.subr.mxu0 %v2828
        %3472 = vmatpush1.msra.mxu0 %v2827
        %3473 = vmatprep.subr.mxu0 %v2826
        %3474 = vmatpush1.msra.mxu0 %v2825
        %3475 = vmatprep.subr.mxu0 0.0
        %3476 = vmatpush2.msra.mxu0 0.0
        %3477 = vmatprep.subr.mxu0 0.0
        %3478 = vmatpush2.msra.mxu0 0.0
        %3479 = vmatprep.subr.mxu0 0.0
        %3480 = vmatpush2.msra.mxu0 0.0
        %3481 = vmatprep.subr.mxu0 0.0
        %3482 = vmatpush2.msra.mxu0 0.0
        %3483 = vmatprep.subr.mxu0 0.0
        %3484 = vmatpush2.msra.mxu0 0.0
        %3485 = vmatprep.subr.mxu0 0.0
        %3486 = vmatpush2.msra.mxu0 0.0
        %3487 = vmatprep.subr.mxu0 0.0
        %3488 = vmatpush2.msra.mxu0 0.0
        %3489 = vmatprep.subr.mxu0 0.0
        %3490 = vmatpush2.msra.mxu0 0.0
        %3491 = vmatprep.subr.mxu0 0.0
        %3492 = vmatpush2.msra.mxu0 0.0
        %3493 = vmatprep.subr.mxu0 0.0
        %3494 = vmatpush2.msra.mxu0 0.0
        %3495 = vmatprep.subr.mxu0 0.0
        %3496 = vmatpush2.msra.mxu0 0.0
        %3497 = vmatprep.subr.mxu0 0.0
        %3498 = vmatpush2.msra.mxu0 0.0
        %3499 = vmatprep.subr.mxu0 0.0
        %3500 = vmatpush2.msra.mxu0 0.0
        %3501 = vmatprep.subr.mxu0 0.0
        %3502 = vmatpush2.msra.mxu0 0.0
        %3503 = vmatprep.subr.mxu0 0.0
        %3504 = vmatpush2.msra.mxu0 0.0
        %3505 = vmatprep.subr.mxu0 0.0
        %3506 = vmatpush2.msra.mxu0 0.0
        %3507 = vmatprep.mubr.f32.mxu0 0.0
        %3508 = vmatmul.mubr.f32.gmra.mxu0 %v3439
        %v3509 = vpop.f32.mrf.mxu0
        %v3510 = vadd.f32 0.0, %v3509
        %v3511 = vpop.f32.mrf.mxu0
        %3512 = vmatprep.mubr.f32.mxu0 0.0
        %3513 = vmatmul.mubr.f32.gmra.mxu0 %v3441
        %v3514 = vpop.f32.mrf.mxu0
        %v3515 = vpop.f32.mrf.mxu0
        %v3516 = vadd.f32 0.0, %v3515
        %3517 = vdwg.mxu0
        %v3518 = vadd.f32 %v3431, %v3510
        %v3519 = vadd.f32 %v3432, %v3516
        %v3520 = vxor.u32 %v3518, 2147483648
        %v3521 = vxor.u32 %v3519, 2147483648
        %v3522 = vmul.f32 %v3520, 1.442695
        %v3523 = vpow.pop %v3522
        %v3524 = vmul.f32 %v3521, 1.442695
        %v3525 = vpow.pop %v3524
        %v3526 = vadd.f32 %v3523, 1.0
        %v3527 = vadd.f32 %v3525, 1.0
        %v3528 = vrcp.pop %v3526
        %v3529 = vmul.f32 1.0, %v3528
        %v3530 = vrcp.pop %v3527
        %v3531 = vmul.f32 1.0, %v3530
        %v3532 = vtanh.pop %v3518
        %v3533 = vtanh.pop %v3519
        %v3534 = vmul.f32 %v3529, %v3417
        %v3535 = vmul.f32 %v3531, %v3418
        %3538 = vrot.lane.b32.xlu0 %v3532, 64
        %v3539 = vpop.permute.xlu0 %3538
        %3540 = vrot.lane.b32.xlu0 %v3533, 64
        %v3541 = vpop.permute.xlu0 %3540
        %v3544 = vmul.f32 %v3529, %v3539
        %v3545 = vmul.f32 %v3531, %v3541
        %3548 = vrot.lane.b32.xlu0 %v3544, 32
        %v3549 = vpop.permute.xlu0 %3548
        %3550 = vrot.lane.b32.xlu0 %v3545, 32
        %v3551 = vpop.permute.xlu0 %3550
        %v3554 = vadd.f32 %v3534, %v3549
        %v3555 = vadd.f32 %v3535, %v3551
        %v3556 = vtanh.pop %v3554
        %v3557 = vtanh.pop %v3555
        %3560 = vrot.lane.b32.xlu0 %v3556, 64
        %v3561 = vpop.permute.xlu0 %3560
        %3562 = vrot.lane.b32.xlu0 %v3557, 64
        %v3563 = vpop.permute.xlu0 %3562
        %v3566 = vmul.f32 %v3529, %v3561
        %v3567 = vmul.f32 %v3531, %v3563
        %v3568 = vld [vmem:[#allocation2 + $0x60] sm:$0xff]
        %v3569 = vld [vmem:[#allocation2 + $0x18] sm:$0xff]
        %3572 = vrot.lane.b32.xlu0 %v3566, 32
        %v3573 = vpop.permute.xlu0 %3572
        %3574 = vrot.lane.b32.xlu0 %v3567, 32
        %v3575 = vpop.permute.xlu0 %3574
        %v3576 = vsel %vm744, %v3573, 0
        %v3578 = vsel %vm744, %v3575, 0
        %3580 = vmatprep.subr.mxu0 0.0
        %3581 = vmatpush1.msra.mxu0 0.0
        %3582 = vmatprep.subr.mxu0 0.0
        %3583 = vmatpush1.msra.mxu0 0.0
        %3584 = vmatprep.subr.mxu0 0.0
        %3585 = vmatpush1.msra.mxu0 0.0
        %3586 = vmatprep.subr.mxu0 0.0
        %3587 = vmatpush1.msra.mxu0 0.0
        %3588 = vmatprep.subr.mxu0 0.0
        %3589 = vmatpush1.msra.mxu0 0.0
        %3590 = vmatprep.subr.mxu0 0.0
        %3591 = vmatpush1.msra.mxu0 0.0
        %3592 = vmatprep.subr.mxu0 0.0
        %3593 = vmatpush1.msra.mxu0 0.0
        %3594 = vmatprep.subr.mxu0 0.0
        %3595 = vmatpush1.msra.mxu0 0.0
        %3596 = vmatprep.subr.mxu0 0.0
        %3597 = vmatpush1.msra.mxu0 0.0
        %3598 = vmatprep.subr.mxu0 0.0
        %3599 = vmatpush1.msra.mxu0 0.0
        %3600 = vmatprep.subr.mxu0 0.0
        %3601 = vmatpush1.msra.mxu0 0.0
        %3602 = vmatprep.subr.mxu0 0.0
        %3603 = vmatpush1.msra.mxu0 0.0
        %3604 = vmatprep.subr.mxu0 %v2832
        %3605 = vmatpush1.msra.mxu0 %v2831
        %3606 = vmatprep.subr.mxu0 %v2830
        %3607 = vmatpush1.msra.mxu0 %v2829
        %3608 = vmatprep.subr.mxu0 %v2828
        %3609 = vmatpush1.msra.mxu0 %v2827
        %3610 = vmatprep.subr.mxu0 %v2826
        %3611 = vmatpush1.msra.mxu0 %v2825
        %3612 = vmatprep.subr.mxu0 0.0
        %3613 = vmatpush2.msra.mxu0 0.0
        %3614 = vmatprep.subr.mxu0 0.0
        %3615 = vmatpush2.msra.mxu0 0.0
        %3616 = vmatprep.subr.mxu0 0.0
        %3617 = vmatpush2.msra.mxu0 0.0
        %3618 = vmatprep.subr.mxu0 0.0
        %3619 = vmatpush2.msra.mxu0 0.0
        %3620 = vmatprep.subr.mxu0 0.0
        %3621 = vmatpush2.msra.mxu0 0.0
        %3622 = vmatprep.subr.mxu0 0.0
        %3623 = vmatpush2.msra.mxu0 0.0
        %3624 = vmatprep.subr.mxu0 0.0
        %3625 = vmatpush2.msra.mxu0 0.0
        %3626 = vmatprep.subr.mxu0 0.0
        %3627 = vmatpush2.msra.mxu0 0.0
        %3628 = vmatprep.subr.mxu0 0.0
        %3629 = vmatpush2.msra.mxu0 0.0
        %3630 = vmatprep.subr.mxu0 0.0
        %3631 = vmatpush2.msra.mxu0 0.0
        %3632 = vmatprep.subr.mxu0 0.0
        %3633 = vmatpush2.msra.mxu0 0.0
        %3634 = vmatprep.subr.mxu0 0.0
        %3635 = vmatpush2.msra.mxu0 0.0
        %3636 = vmatprep.subr.mxu0 0.0
        %3637 = vmatpush2.msra.mxu0 0.0
        %3638 = vmatprep.subr.mxu0 0.0
        %3639 = vmatpush2.msra.mxu0 0.0
        %3640 = vmatprep.subr.mxu0 0.0
        %3641 = vmatpush2.msra.mxu0 0.0
        %3642 = vmatprep.subr.mxu0 0.0
        %3643 = vmatpush2.msra.mxu0 0.0
        %3644 = vmatprep.mubr.f32.mxu0 0.0
        %3645 = vmatmul.mubr.f32.gmra.mxu0 %v3576
        %v3646 = vpop.f32.mrf.mxu0
        %v3647 = vadd.f32 0.0, %v3646
        %v3648 = vpop.f32.mrf.mxu0
        %3649 = vmatprep.mubr.f32.mxu0 0.0
        %3650 = vmatmul.mubr.f32.gmra.mxu0 %v3578
        %v3651 = vpop.f32.mrf.mxu0
        %v3652 = vpop.f32.mrf.mxu0
        %v3653 = vadd.f32 0.0, %v3652
        %3654 = vdwg.mxu0
        %v3655 = vadd.f32 %v3568, %v3647
        %v3656 = vadd.f32 %v3569, %v3653
        %v3657 = vxor.u32 %v3655, 2147483648
        %v3658 = vxor.u32 %v3656, 2147483648
        %v3659 = vmul.f32 %v3657, 1.442695
        %v3660 = vpow.pop %v3659
        %v3661 = vmul.f32 %v3658, 1.442695
        %v3662 = vpow.pop %v3661
        %v3663 = vadd.f32 %v3660, 1.0
        %v3664 = vadd.f32 %v3662, 1.0
        %v3665 = vrcp.pop %v3663
        %v3666 = vmul.f32 1.0, %v3665
        %v3667 = vrcp.pop %v3664
        %v3668 = vmul.f32 1.0, %v3667
        %v3669 = vtanh.pop %v3655
        %v3670 = vtanh.pop %v3656
        %v3671 = vmul.f32 %v3666, %v3554
        %v3672 = vmul.f32 %v3668, %v3555
        %3675 = vrot.lane.b32.xlu0 %v3669, 64
        %v3676 = vpop.permute.xlu0 %3675
        %3677 = vrot.lane.b32.xlu0 %v3670, 64
        %v3678 = vpop.permute.xlu0 %3677
        %v3681 = vmul.f32 %v3666, %v3676
        %v3682 = vmul.f32 %v3668, %v3678
        %3685 = vrot.lane.b32.xlu0 %v3681, 32
        %v3686 = vpop.permute.xlu0 %3685
        %3687 = vrot.lane.b32.xlu0 %v3682, 32
        %v3688 = vpop.permute.xlu0 %3687
        %v3691 = vadd.f32 %v3671, %v3686
        %v3692 = vadd.f32 %v3672, %v3688
        %v3693 = vtanh.pop %v3691
        %v3694 = vtanh.pop %v3692
        %3697 = vrot.lane.b32.xlu0 %v3693, 64
        %v3698 = vpop.permute.xlu0 %3697
        %3699 = vrot.lane.b32.xlu0 %v3694, 64
        %v3700 = vpop.permute.xlu0 %3699
        %v3703 = vmul.f32 %v3666, %v3698
        %v3704 = vmul.f32 %v3668, %v3700
        %v3705 = vld [vmem:[#allocation2 + $0x70] sm:$0xff]
        %v3706 = vld [vmem:[#allocation2 + $0x8] sm:$0xff]
        %3709 = vrot.lane.b32.xlu0 %v3703, 32
        %v3710 = vpop.permute.xlu0 %3709
        %3711 = vrot.lane.b32.xlu0 %v3704, 32
        %v3712 = vpop.permute.xlu0 %3711
        %v3713 = vsel %vm744, %v3710, 0
        %v3715 = vsel %vm744, %v3712, 0
        %3717 = vmatprep.subr.mxu0 0.0
        %3718 = vmatpush1.msra.mxu0 0.0
        %3719 = vmatprep.subr.mxu0 0.0
        %3720 = vmatpush1.msra.mxu0 0.0
        %3721 = vmatprep.subr.mxu0 0.0
        %3722 = vmatpush1.msra.mxu0 0.0
        %3723 = vmatprep.subr.mxu0 0.0
        %3724 = vmatpush1.msra.mxu0 0.0
        %3725 = vmatprep.subr.mxu0 0.0
        %3726 = vmatpush1.msra.mxu0 0.0
        %3727 = vmatprep.subr.mxu0 0.0
        %3728 = vmatpush1.msra.mxu0 0.0
        %3729 = vmatprep.subr.mxu0 0.0
        %3730 = vmatpush1.msra.mxu0 0.0
        %3731 = vmatprep.subr.mxu0 0.0
        %3732 = vmatpush1.msra.mxu0 0.0
        %3733 = vmatprep.subr.mxu0 0.0
        %3734 = vmatpush1.msra.mxu0 0.0
        %3735 = vmatprep.subr.mxu0 0.0
        %3736 = vmatpush1.msra.mxu0 0.0
        %3737 = vmatprep.subr.mxu0 0.0
        %3738 = vmatpush1.msra.mxu0 0.0
        %3739 = vmatprep.subr.mxu0 0.0
        %3740 = vmatpush1.msra.mxu0 0.0
        %3741 = vmatprep.subr.mxu0 %v2832
        %3742 = vmatpush1.msra.mxu0 %v2831
        %3743 = vmatprep.subr.mxu0 %v2830
        %3744 = vmatpush1.msra.mxu0 %v2829
        %3745 = vmatprep.subr.mxu0 %v2828
        %3746 = vmatpush1.msra.mxu0 %v2827
        %3747 = vmatprep.subr.mxu0 %v2826
        %3748 = vmatpush1.msra.mxu0 %v2825
        %3749 = vmatprep.subr.mxu0 0.0
        %3750 = vmatpush2.msra.mxu0 0.0
        %3751 = vmatprep.subr.mxu0 0.0
        %3752 = vmatpush2.msra.mxu0 0.0
        %3753 = vmatprep.subr.mxu0 0.0
        %3754 = vmatpush2.msra.mxu0 0.0
        %3755 = vmatprep.subr.mxu0 0.0
        %3756 = vmatpush2.msra.mxu0 0.0
        %3757 = vmatprep.subr.mxu0 0.0
        %3758 = vmatpush2.msra.mxu0 0.0
        %3759 = vmatprep.subr.mxu0 0.0
        %3760 = vmatpush2.msra.mxu0 0.0
        %3761 = vmatprep.subr.mxu0 0.0
        %3762 = vmatpush2.msra.mxu0 0.0
        %3763 = vmatprep.subr.mxu0 0.0
        %3764 = vmatpush2.msra.mxu0 0.0
        %3765 = vmatprep.subr.mxu0 0.0
        %3766 = vmatpush2.msra.mxu0 0.0
        %3767 = vmatprep.subr.mxu0 0.0
        %3768 = vmatpush2.msra.mxu0 0.0
        %3769 = vmatprep.subr.mxu0 0.0
        %3770 = vmatpush2.msra.mxu0 0.0
        %3771 = vmatprep.subr.mxu0 0.0
        %3772 = vmatpush2.msra.mxu0 0.0
        %3773 = vmatprep.subr.mxu0 0.0
        %3774 = vmatpush2.msra.mxu0 0.0
        %3775 = vmatprep.subr.mxu0 0.0
        %3776 = vmatpush2.msra.mxu0 0.0
        %3777 = vmatprep.subr.mxu0 0.0
        %3778 = vmatpush2.msra.mxu0 0.0
        %3779 = vmatprep.subr.mxu0 0.0
        %3780 = vmatpush2.msra.mxu0 0.0
        %3781 = vmatprep.mubr.f32.mxu0 0.0
        %3782 = vmatmul.mubr.f32.gmra.mxu0 %v3713
        %v3783 = vpop.f32.mrf.mxu0
        %v3784 = vadd.f32 0.0, %v3783
        %v3785 = vpop.f32.mrf.mxu0
        %3786 = vmatprep.mubr.f32.mxu0 0.0
        %3787 = vmatmul.mubr.f32.gmra.mxu0 %v3715
        %v3788 = vpop.f32.mrf.mxu0
        %v3789 = vpop.f32.mrf.mxu0
        %v3790 = vadd.f32 0.0, %v3789
        %3791 = vdwg.mxu0
        %v3792 = vadd.f32 %v3705, %v3784
        %v3793 = vadd.f32 %v3706, %v3790
        %v3794 = vxor.u32 %v3792, 2147483648
        %v3795 = vxor.u32 %v3793, 2147483648
        %v3796 = vmul.f32 %v3794, 1.442695
        %v3797 = vpow.pop %v3796
        %v3798 = vmul.f32 %v3795, 1.442695
        %v3799 = vpow.pop %v3798
        %v3800 = vadd.f32 %v3797, 1.0
        %v3801 = vadd.f32 %v3799, 1.0
        %v3802 = vrcp.pop %v3800
        %v3803 = vmul.f32 1.0, %v3802
        %v3804 = vrcp.pop %v3801
        %v3805 = vmul.f32 1.0, %v3804
        %v3806 = vtanh.pop %v3792
        %v3807 = vtanh.pop %v3793
        %v3808 = vmul.f32 %v3803, %v3691
        %v3809 = vmul.f32 %v3805, %v3692
        %3812 = vrot.lane.b32.xlu0 %v3806, 64
        %v3813 = vpop.permute.xlu0 %3812
        %3814 = vrot.lane.b32.xlu0 %v3807, 64
        %v3815 = vpop.permute.xlu0 %3814
        %v3818 = vmul.f32 %v3803, %v3813
        %v3819 = vmul.f32 %v3805, %v3815
        %3822 = vrot.lane.b32.xlu0 %v3818, 32
        %v3823 = vpop.permute.xlu0 %3822
        %3824 = vrot.lane.b32.xlu0 %v3819, 32
        %v3825 = vpop.permute.xlu0 %3824
        %v3828 = vadd.f32 %v3808, %v3823
        %v3829 = vadd.f32 %v3809, %v3825
        %v3830 = vtanh.pop %v3828
        %v3831 = vtanh.pop %v3829
        %3834 = vrot.lane.b32.xlu0 %v3830, 64
        %v3835 = vpop.permute.xlu0 %3834
        %3836 = vrot.lane.b32.xlu0 %v3831, 64
        %v3837 = vpop.permute.xlu0 %3836
        %v3840 = vmul.f32 %v3803, %v3835
        %v3841 = vmul.f32 %v3805, %v3837
        %s3842 = scalar_lea.vmem %s6, 128
        %v3843 = vld [vmem:[%s3842] sm:$0xff]
        %v3844 = vld [vmem:[%s3842 + $0x8] sm:$0xff]
        %v3845 = vld [vmem:[%s3842 + $0x10] sm:$0xff]
        %v3846 = vld [vmem:[%s3842 + $0x18] sm:$0xff]
        %v3847 = vld [vmem:[%s3842 + $0x20] sm:$0xff]
        %v3848 = vld [vmem:[%s3842 + $0x28] sm:$0xff]
        %v3849 = vld [vmem:[%s3842 + $0x30] sm:$0xff]
        %v3850 = vld [vmem:[%s3842 + $0x38] sm:$0xff]
        %v3851 = vld [vmem:[%s3842 + $0x40] sm:$0xff]
        %v3852 = vld [vmem:[%s3842 + $0x48] sm:$0xff]
        %v3853 = vld [vmem:[%s3842 + $0x50] sm:$0xff]
        %v3854 = vld [vmem:[%s3842 + $0x58] sm:$0xff]
        %v3855 = vld [vmem:[%s3842 + $0x60] sm:$0xff]
        %v3856 = vld [vmem:[%s3842 + $0x68] sm:$0xff]
        %v3857 = vld [vmem:[%s3842 + $0x70] sm:$0xff]
        %v3858 = vld [vmem:[%s3842 + $0x78] sm:$0xff]
        %3860 = vrot.lane.b32.xlu0 %v3841, 32
        %v3861 = vpop.permute.xlu0 %3860
        %v3862 = vsel %vm744, %v3861, 0
        %3864 = vmatprep.subr.mxu0 0.0
        %3865 = vmatpush1.msra.mxu0 0.0
        %3866 = vmatprep.subr.mxu0 0.0
        %3867 = vmatpush1.msra.mxu0 0.0
        %3868 = vmatprep.subr.mxu0 0.0
        %3869 = vmatpush1.msra.mxu0 0.0
        %3870 = vmatprep.subr.mxu0 0.0
        %3871 = vmatpush1.msra.mxu0 0.0
        %3872 = vmatprep.subr.mxu0 0.0
        %3873 = vmatpush1.msra.mxu0 0.0
        %3874 = vmatprep.subr.mxu0 0.0
        %3875 = vmatpush1.msra.mxu0 0.0
        %3876 = vmatprep.subr.mxu0 0.0
        %3877 = vmatpush1.msra.mxu0 0.0
        %3878 = vmatprep.subr.mxu0 0.0
        %3879 = vmatpush1.msra.mxu0 0.0
        %3880 = vmatprep.subr.mxu0 0.0
        %3881 = vmatpush1.msra.mxu0 0.0
        %3882 = vmatprep.subr.mxu0 0.0
        %3883 = vmatpush1.msra.mxu0 0.0
        %3884 = vmatprep.subr.mxu0 0.0
        %3885 = vmatpush1.msra.mxu0 0.0
        %3886 = vmatprep.subr.mxu0 0.0
        %3887 = vmatpush1.msra.mxu0 0.0
        %3888 = vmatprep.subr.mxu0 %v3858
        %3889 = vmatpush1.msra.mxu0 %v3857
        %3890 = vmatprep.subr.mxu0 %v3856
        %3891 = vmatpush1.msra.mxu0 %v3855
        %3892 = vmatprep.subr.mxu0 %v3854
        %3893 = vmatpush1.msra.mxu0 %v3853
        %3894 = vmatprep.subr.mxu0 %v3852
        %3895 = vmatpush1.msra.mxu0 %v3851
        %3896 = vmatprep.subr.mxu0 0.0
        %3897 = vmatpush2.msra.mxu0 0.0
        %3898 = vmatprep.subr.mxu0 0.0
        %3899 = vmatpush2.msra.mxu0 0.0
        %3900 = vmatprep.subr.mxu0 0.0
        %3901 = vmatpush2.msra.mxu0 0.0
        %3902 = vmatprep.subr.mxu0 0.0
        %3903 = vmatpush2.msra.mxu0 0.0
        %3904 = vmatprep.subr.mxu0 0.0
        %3905 = vmatpush2.msra.mxu0 0.0
        %3906 = vmatprep.subr.mxu0 0.0
        %3907 = vmatpush2.msra.mxu0 0.0
        %3908 = vmatprep.subr.mxu0 0.0
        %3909 = vmatpush2.msra.mxu0 0.0
        %3910 = vmatprep.subr.mxu0 0.0
        %3911 = vmatpush2.msra.mxu0 0.0
        %3912 = vmatprep.subr.mxu0 0.0
        %3913 = vmatpush2.msra.mxu0 0.0
        %3914 = vmatprep.subr.mxu0 0.0
        %3915 = vmatpush2.msra.mxu0 0.0
        %3916 = vmatprep.subr.mxu0 0.0
        %3917 = vmatpush2.msra.mxu0 0.0
        %3918 = vmatprep.subr.mxu0 0.0
        %3919 = vmatpush2.msra.mxu0 0.0
        %3920 = vmatprep.subr.mxu0 0.0
        %3921 = vmatpush2.msra.mxu0 0.0
        %3922 = vmatprep.subr.mxu0 0.0
        %3923 = vmatpush2.msra.mxu0 0.0
        %3924 = vmatprep.subr.mxu0 0.0
        %3925 = vmatpush2.msra.mxu0 0.0
        %3926 = vmatprep.subr.mxu0 0.0
        %3927 = vmatpush2.msra.mxu0 0.0
        %3928 = vmatprep.mubr.f32.mxu0 0.0
        %3929 = vmatmul.mubr.f32.gmra.mxu0 %v3862
        %v3930 = vpop.f32.mrf.mxu0
        %v3931 = vadd.f32 0.0, %v3930
        %v3932 = vpop.f32.mrf.mxu0
        %v3933 = vadd.f32 0.0, %v3932
        %3934 = vmatprep.mubr.f32.mxu0 0.0
        %3935 = vmatmul.mubr.f32.gmra.mxu0 %v3715
        %v3936 = vpop.f32.mrf.mxu0
        %v3937 = vadd.f32 0.0, %v3936
        %v3938 = vpop.f32.mrf.mxu0
        %v3939 = vadd.f32 0.0, %v3938
        %3940 = vmatprep.mubr.f32.mxu0 0.0
        %3941 = vmatmul.mubr.f32.gmra.mxu0 %v3578
        %v3942 = vpop.f32.mrf.mxu0
        %v3943 = vadd.f32 0.0, %v3942
        %v3944 = vpop.f32.mrf.mxu0
        %v3945 = vadd.f32 0.0, %v3944
        %3946 = vmatprep.mubr.f32.mxu0 0.0
        %3947 = vmatmul.mubr.f32.gmra.mxu0 %v3441
        %v3948 = vpop.f32.mrf.mxu0
        %v3949 = vadd.f32 0.0, %v3948
        %v3950 = vpop.f32.mrf.mxu0
        %v3951 = vadd.f32 0.0, %v3950
        %3952 = vmatprep.mubr.f32.mxu0 0.0
        %3953 = vmatmul.mubr.f32.gmra.mxu0 %v3304
        %v3954 = vpop.f32.mrf.mxu0
        %v3955 = vadd.f32 0.0, %v3954
        %v3956 = vpop.f32.mrf.mxu0
        %v3957 = vadd.f32 0.0, %v3956
        %3958 = vmatprep.mubr.f32.mxu0 0.0
        %3959 = vmatmul.mubr.f32.gmra.mxu0 %v3167
        %v3960 = vpop.f32.mrf.mxu0
        %v3961 = vadd.f32 0.0, %v3960
        %v3962 = vpop.f32.mrf.mxu0
        %v3963 = vadd.f32 0.0, %v3962
        %3964 = vmatprep.mubr.f32.mxu0 0.0
        %3965 = vmatmul.mubr.f32.gmra.mxu0 %v3030
        %v3966 = vpop.f32.mrf.mxu0
        %v3967 = vadd.f32 0.0, %v3966
        %v3968 = vpop.f32.mrf.mxu0
        %v3969 = vadd.f32 0.0, %v3968
        %3970 = vmatprep.mubr.f32.mxu0 0.0
        %3971 = vmatmul.mubr.f32.gmra.mxu0 %v2893
        %v3972 = vpop.f32.mrf.mxu0
        %v3973 = vadd.f32 0.0, %v3972
        %v3974 = vpop.f32.mrf.mxu0
        %v3975 = vadd.f32 0.0, %v3974
        %3976 = vdwg.mxu0
        %3978 = vrot.lane.b32.xlu0 %v3840, 32
        %v3979 = vpop.permute.xlu0 %3978
        %v3980 = vsel %vm744, %v3979, 0
        %3982 = vmatprep.subr.mxu0 0.0
        %3983 = vmatpush1.msra.mxu0 0.0
        %3984 = vmatprep.subr.mxu0 0.0
        %3985 = vmatpush1.msra.mxu0 0.0
        %3986 = vmatprep.subr.mxu0 0.0
        %3987 = vmatpush1.msra.mxu0 0.0
        %3988 = vmatprep.subr.mxu0 0.0
        %3989 = vmatpush1.msra.mxu0 0.0
        %3990 = vmatprep.subr.mxu0 0.0
        %3991 = vmatpush1.msra.mxu0 0.0
        %3992 = vmatprep.subr.mxu0 0.0
        %3993 = vmatpush1.msra.mxu0 0.0
        %3994 = vmatprep.subr.mxu0 0.0
        %3995 = vmatpush1.msra.mxu0 0.0
        %3996 = vmatprep.subr.mxu0 0.0
        %3997 = vmatpush1.msra.mxu0 0.0
        %3998 = vmatprep.subr.mxu0 0.0
        %3999 = vmatpush1.msra.mxu0 0.0
        %4000 = vmatprep.subr.mxu0 0.0
        %4001 = vmatpush1.msra.mxu0 0.0
        %4002 = vmatprep.subr.mxu0 0.0
        %4003 = vmatpush1.msra.mxu0 0.0
        %4004 = vmatprep.subr.mxu0 0.0
        %4005 = vmatpush1.msra.mxu0 0.0
        %4006 = vmatprep.subr.mxu0 %v3850
        %4007 = vmatpush1.msra.mxu0 %v3849
        %4008 = vmatprep.subr.mxu0 %v3848
        %4009 = vmatpush1.msra.mxu0 %v3847
        %4010 = vmatprep.subr.mxu0 %v3846
        %4011 = vmatpush1.msra.mxu0 %v3845
        %4012 = vmatprep.subr.mxu0 %v3844
        %4013 = vmatpush1.msra.mxu0 %v3843
        %4014 = vmatprep.subr.mxu0 0.0
        %4015 = vmatpush2.msra.mxu0 0.0
        %4016 = vmatprep.subr.mxu0 0.0
        %4017 = vmatpush2.msra.mxu0 0.0
        %4018 = vmatprep.subr.mxu0 0.0
        %4019 = vmatpush2.msra.mxu0 0.0
        %4020 = vmatprep.subr.mxu0 0.0
        %4021 = vmatpush2.msra.mxu0 0.0
        %4022 = vmatprep.subr.mxu0 0.0
        %4023 = vmatpush2.msra.mxu0 0.0
        %4024 = vmatprep.subr.mxu0 0.0
        %4025 = vmatpush2.msra.mxu0 0.0
        %4026 = vmatprep.subr.mxu0 0.0
        %4027 = vmatpush2.msra.mxu0 0.0
        %4028 = vmatprep.subr.mxu0 0.0
        %4029 = vmatpush2.msra.mxu0 0.0
        %4030 = vmatprep.subr.mxu0 0.0
        %4031 = vmatpush2.msra.mxu0 0.0
        %4032 = vmatprep.subr.mxu0 0.0
        %4033 = vmatpush2.msra.mxu0 0.0
        %4034 = vmatprep.subr.mxu0 0.0
        %4035 = vmatpush2.msra.mxu0 0.0
        %4036 = vmatprep.subr.mxu0 0.0
        %4037 = vmatpush2.msra.mxu0 0.0
        %4038 = vmatprep.subr.mxu0 0.0
        %4039 = vmatpush2.msra.mxu0 0.0
        %4040 = vmatprep.subr.mxu0 0.0
        %4041 = vmatpush2.msra.mxu0 0.0
        %4042 = vmatprep.subr.mxu0 0.0
        %4043 = vmatpush2.msra.mxu0 0.0
        %4044 = vmatprep.subr.mxu0 0.0
        %4045 = vmatpush2.msra.mxu0 0.0
        %4046 = vmatprep.mubr.f32.mxu0 0.0
        %4047 = vmatmul.mubr.f32.gmra.mxu0 %v2891
        %v4048 = vpop.f32.mrf.mxu0
        %v4049 = vadd.f32 %v3931, %v4048
        %v4050 = vpop.f32.mrf.mxu0
        %v4051 = vadd.f32 %v3933, %v4050
        %4052 = vmatprep.mubr.f32.mxu0 0.0
        %4053 = vmatmul.mubr.f32.gmra.mxu0 %v3028
        %v4054 = vpop.f32.mrf.mxu0
        %v4055 = vadd.f32 %v3937, %v4054
        %v4056 = vpop.f32.mrf.mxu0
        %v4057 = vadd.f32 %v3939, %v4056
        %4058 = vmatprep.mubr.f32.mxu0 0.0
        %4059 = vmatmul.mubr.f32.gmra.mxu0 %v3165
        %v4060 = vpop.f32.mrf.mxu0
        %v4061 = vadd.f32 %v3943, %v4060
        %v4062 = vpop.f32.mrf.mxu0
        %v4063 = vadd.f32 %v3945, %v4062
        %4064 = vmatprep.mubr.f32.mxu0 0.0
        %4065 = vmatmul.mubr.f32.gmra.mxu0 %v3302
        %v4066 = vpop.f32.mrf.mxu0
        %v4067 = vadd.f32 %v3949, %v4066
        %v4068 = vpop.f32.mrf.mxu0
        %v4069 = vadd.f32 %v3951, %v4068
        %4070 = vmatprep.mubr.f32.mxu0 0.0
        %4071 = vmatmul.mubr.f32.gmra.mxu0 %v3439
        %v4072 = vpop.f32.mrf.mxu0
        %v4073 = vadd.f32 %v3955, %v4072
        %v4074 = vpop.f32.mrf.mxu0
        %v4075 = vadd.f32 %v3957, %v4074
        %4076 = vmatprep.mubr.f32.mxu0 0.0
        %4077 = vmatmul.mubr.f32.gmra.mxu0 %v3576
        %v4078 = vpop.f32.mrf.mxu0
        %v4079 = vadd.f32 %v3961, %v4078
        %v4080 = vpop.f32.mrf.mxu0
        %v4081 = vadd.f32 %v3963, %v4080
        %4082 = vmatprep.mubr.f32.mxu0 0.0
        %4083 = vmatmul.mubr.f32.gmra.mxu0 %v3713
        %v4084 = vpop.f32.mrf.mxu0
        %v4085 = vadd.f32 %v3967, %v4084
        %v4086 = vpop.f32.mrf.mxu0
        %v4087 = vadd.f32 %v3969, %v4086
        %4088 = vmatprep.mubr.f32.mxu0 0.0
        %4089 = vmatmul.mubr.f32.gmra.mxu0 %v3980
        %v4090 = vpop.f32.mrf.mxu0
        %v4091 = vadd.f32 %v3973, %v4090
        %v4092 = vpop.f32.mrf.mxu0
        %v4093 = vadd.f32 %v3975, %v4092
        %4094 = vdwg.mxu0
        %s4095 = scalar_lea.vmem %s8, 4
        %v4096 = vld [vmem:[%s4095] sm:$0x3]
        %v4098 = vlaneseq
        %v4099 = vshrl.u32 %v4098, 7
        %v4100 = vsub.s32 0, %v4099
        %v4101 = vrot.slane %v4096, %v4100
        %v4102 = vlaneseq
        %v4103 = vshrl.u32 %v4102, 7
        %v4104 = vsub.s32 1, %v4103
        %v4105 = vrot.slane %v4096, %v4104
        %v4108 = vadd.f32 %v4049, %v4101
        %v4109 = vadd.f32 %v4051, %v4105
        %v4110 = vadd.f32 %v4055, %v4101
        %v4111 = vadd.f32 %v4057, %v4105
        %v4112 = vadd.f32 %v4061, %v4101
        %v4113 = vadd.f32 %v4063, %v4105
        %v4114 = vadd.f32 %v4067, %v4101
        %v4115 = vadd.f32 %v4069, %v4105
        %v4116 = vadd.f32 %v4073, %v4101
        %v4117 = vadd.f32 %v4075, %v4105
        %v4118 = vadd.f32 %v4079, %v4101
        %v4119 = vadd.f32 %v4081, %v4105
        %v4120 = vadd.f32 %v4085, %v4101
        %v4121 = vadd.f32 %v4087, %v4105
        %v4122 = vadd.f32 %v4091, %v4101
        %v4123 = vadd.f32 %v4093, %v4105
        %4124 = vst [vmem:[#allocation2] sm:$0xff] %v4108
        %4125 = vst [vmem:[#allocation2 + $0x8] sm:$0xff] %v4109
        %4126 = vst [vmem:[#allocation2 + $0x10] sm:$0xff] %v4110
        %4127 = vst [vmem:[#allocation2 + $0x18] sm:$0xff] %v4111
        %4128 = vst [vmem:[#allocation2 + $0x20] sm:$0xff] %v4112
        %4129 = vst [vmem:[#allocation2 + $0x28] sm:$0xff] %v4113
        %4130 = vst [vmem:[#allocation2 + $0x30] sm:$0xff] %v4114
        %4131 = vst [vmem:[#allocation2 + $0x38] sm:$0xff] %v4115
        %4132 = vst [vmem:[#allocation2 + $0x40] sm:$0xff] %v4116
        %4133 = vst [vmem:[#allocation2 + $0x48] sm:$0xff] %v4117
        %4134 = vst [vmem:[#allocation2 + $0x50] sm:$0xff] %v4118
        %4135 = vst [vmem:[#allocation2 + $0x58] sm:$0xff] %v4119
        %4136 = vst [vmem:[#allocation2 + $0x60] sm:$0xff] %v4120
        %4137 = vst [vmem:[#allocation2 + $0x68] sm:$0xff] %v4121
        %4138 = vst [vmem:[#allocation2 + $0x70] sm:$0xff] %v4122
        %4139 = vst [vmem:[#allocation2 + $0x78] sm:$0xff] %v4123
        %s4140 = scalar_lea.vmem %s7, 128
        %v4141 = vld [vmem:[%s4140] sm:$0xff]
        %v4142 = vld [vmem:[%s4140 + $0x8] sm:$0xff]
        %v4143 = vld [vmem:[%s4140 + $0x10] sm:$0xff]
        %v4144 = vld [vmem:[%s4140 + $0x18] sm:$0xff]
        %v4145 = vld [vmem:[%s4140 + $0x20] sm:$0xff]
        %v4146 = vld [vmem:[%s4140 + $0x28] sm:$0xff]
        %v4147 = vld [vmem:[%s4140 + $0x30] sm:$0xff]
        %v4148 = vld [vmem:[%s4140 + $0x38] sm:$0xff]
        %v4149 = vld [vmem:[#allocation2] sm:$0xff]
        %v4150 = vld [vmem:[#allocation2 + $0x78] sm:$0xff]
        %v4151 = vxor.u32 %v4149, 2147483648
        %v4152 = vxor.u32 %v4150, 2147483648
        %v4153 = vmul.f32 %v4151, 1.442695
        %v4154 = vpow.pop %v4153
        %v4155 = vmul.f32 %v4152, 1.442695
        %v4156 = vpow.pop %v4155
        %v4157 = vadd.f32 %v4154, 1.0
        %v4158 = vadd.f32 %v4156, 1.0
        %v4159 = vrcp.pop %v4157
        %v4160 = vmul.f32 1.0, %v4159
        %v4161 = vrcp.pop %v4158
        %v4162 = vmul.f32 1.0, %v4161
        %v4163 = vtanh.pop %v4149
        %v4164 = vtanh.pop %v4150
        %v4165 = vmul.f32 %v4160, 0.0
        %v4166 = vmul.f32 %v4162, 0.0
        %4169 = vrot.lane.b32.xlu0 %v4163, 64
        %v4170 = vpop.permute.xlu0 %4169
        %4171 = vrot.lane.b32.xlu0 %v4164, 64
        %v4172 = vpop.permute.xlu0 %4171
        %v4175 = vmul.f32 %v4160, %v4170
        %v4176 = vmul.f32 %v4162, %v4172
        %4179 = vrot.lane.b32.xlu0 %v4175, 32
        %v4180 = vpop.permute.xlu0 %4179
        %4181 = vrot.lane.b32.xlu0 %v4176, 32
        %v4182 = vpop.permute.xlu0 %4181
        %v4185 = vadd.f32 %v4165, %v4180
        %v4186 = vadd.f32 %v4166, %v4182
        %v4187 = vtanh.pop %v4185
        %v4188 = vtanh.pop %v4186
        %4191 = vrot.lane.b32.xlu0 %v4187, 64
        %v4192 = vpop.permute.xlu0 %4191
        %4193 = vrot.lane.b32.xlu0 %v4188, 64
        %v4194 = vpop.permute.xlu0 %4193
        %v4197 = vmul.f32 %v4160, %v4192
        %v4198 = vmul.f32 %v4162, %v4194
        %v4199 = vld [vmem:[#allocation2 + $0x10] sm:$0xff]
        %v4200 = vld [vmem:[#allocation2 + $0x68] sm:$0xff]
        %4203 = vrot.lane.b32.xlu0 %v4197, 32
        %v4204 = vpop.permute.xlu0 %4203
        %4205 = vrot.lane.b32.xlu0 %v4198, 32
        %v4206 = vpop.permute.xlu0 %4205
        %v4207 = vsel %vm744, %v4204, 0
        %v4209 = vsel %vm744, %v4206, 0
        %4211 = vmatprep.subr.mxu0 0.0
        %4212 = vmatpush1.msra.mxu0 0.0
        %4213 = vmatprep.subr.mxu0 0.0
        %4214 = vmatpush1.msra.mxu0 0.0
        %4215 = vmatprep.subr.mxu0 0.0
        %4216 = vmatpush1.msra.mxu0 0.0
        %4217 = vmatprep.subr.mxu0 0.0
        %4218 = vmatpush1.msra.mxu0 0.0
        %4219 = vmatprep.subr.mxu0 0.0
        %4220 = vmatpush1.msra.mxu0 0.0
        %4221 = vmatprep.subr.mxu0 0.0
        %4222 = vmatpush1.msra.mxu0 0.0
        %4223 = vmatprep.subr.mxu0 0.0
        %4224 = vmatpush1.msra.mxu0 0.0
        %4225 = vmatprep.subr.mxu0 0.0
        %4226 = vmatpush1.msra.mxu0 0.0
        %4227 = vmatprep.subr.mxu0 0.0
        %4228 = vmatpush1.msra.mxu0 0.0
        %4229 = vmatprep.subr.mxu0 0.0
        %4230 = vmatpush1.msra.mxu0 0.0
        %4231 = vmatprep.subr.mxu0 0.0
        %4232 = vmatpush1.msra.mxu0 0.0
        %4233 = vmatprep.subr.mxu0 0.0
        %4234 = vmatpush1.msra.mxu0 0.0
        %4235 = vmatprep.subr.mxu0 %v4148
        %4236 = vmatpush1.msra.mxu0 %v4147
        %4237 = vmatprep.subr.mxu0 %v4146
        %4238 = vmatpush1.msra.mxu0 %v4145
        %4239 = vmatprep.subr.mxu0 %v4144
        %4240 = vmatpush1.msra.mxu0 %v4143
        %4241 = vmatprep.subr.mxu0 %v4142
        %4242 = vmatpush1.msra.mxu0 %v4141
        %4243 = vmatprep.subr.mxu0 0.0
        %4244 = vmatpush2.msra.mxu0 0.0
        %4245 = vmatprep.subr.mxu0 0.0
        %4246 = vmatpush2.msra.mxu0 0.0
        %4247 = vmatprep.subr.mxu0 0.0
        %4248 = vmatpush2.msra.mxu0 0.0
        %4249 = vmatprep.subr.mxu0 0.0
        %4250 = vmatpush2.msra.mxu0 0.0
        %4251 = vmatprep.subr.mxu0 0.0
        %4252 = vmatpush2.msra.mxu0 0.0
        %4253 = vmatprep.subr.mxu0 0.0
        %4254 = vmatpush2.msra.mxu0 0.0
        %4255 = vmatprep.subr.mxu0 0.0
        %4256 = vmatpush2.msra.mxu0 0.0
        %4257 = vmatprep.subr.mxu0 0.0
        %4258 = vmatpush2.msra.mxu0 0.0
        %4259 = vmatprep.subr.mxu0 0.0
        %4260 = vmatpush2.msra.mxu0 0.0
        %4261 = vmatprep.subr.mxu0 0.0
        %4262 = vmatpush2.msra.mxu0 0.0
        %4263 = vmatprep.subr.mxu0 0.0
        %4264 = vmatpush2.msra.mxu0 0.0
        %4265 = vmatprep.subr.mxu0 0.0
        %4266 = vmatpush2.msra.mxu0 0.0
        %4267 = vmatprep.subr.mxu0 0.0
        %4268 = vmatpush2.msra.mxu0 0.0
        %4269 = vmatprep.subr.mxu0 0.0
        %4270 = vmatpush2.msra.mxu0 0.0
        %4271 = vmatprep.subr.mxu0 0.0
        %4272 = vmatpush2.msra.mxu0 0.0
        %4273 = vmatprep.subr.mxu0 0.0
        %4274 = vmatpush2.msra.mxu0 0.0
        %4275 = vmatprep.mubr.f32.mxu0 0.0
        %4276 = vmatmul.mubr.f32.gmra.mxu0 %v4207
        %v4277 = vpop.f32.mrf.mxu0
        %v4278 = vadd.f32 0.0, %v4277
        %v4279 = vpop.f32.mrf.mxu0
        %4280 = vmatprep.mubr.f32.mxu0 0.0
        %4281 = vmatmul.mubr.f32.gmra.mxu0 %v4209
        %v4282 = vpop.f32.mrf.mxu0
        %v4283 = vpop.f32.mrf.mxu0
        %v4284 = vadd.f32 0.0, %v4283
        %4285 = vdwg.mxu0
        %v4286 = vadd.f32 %v4199, %v4278
        %v4287 = vadd.f32 %v4200, %v4284
        %v4288 = vxor.u32 %v4286, 2147483648
        %v4289 = vxor.u32 %v4287, 2147483648
        %v4290 = vmul.f32 %v4288, 1.442695
        %v4291 = vpow.pop %v4290
        %v4292 = vmul.f32 %v4289, 1.442695
        %v4293 = vpow.pop %v4292
        %v4294 = vadd.f32 %v4291, 1.0
        %v4295 = vadd.f32 %v4293, 1.0
        %v4296 = vrcp.pop %v4294
        %v4297 = vmul.f32 1.0, %v4296
        %v4298 = vrcp.pop %v4295
        %v4299 = vmul.f32 1.0, %v4298
        %v4300 = vtanh.pop %v4286
        %v4301 = vtanh.pop %v4287
        %v4302 = vmul.f32 %v4297, %v4185
        %v4303 = vmul.f32 %v4299, %v4186
        %4306 = vrot.lane.b32.xlu0 %v4300, 64
        %v4307 = vpop.permute.xlu0 %4306
        %4308 = vrot.lane.b32.xlu0 %v4301, 64
        %v4309 = vpop.permute.xlu0 %4308
        %v4312 = vmul.f32 %v4297, %v4307
        %v4313 = vmul.f32 %v4299, %v4309
        %4316 = vrot.lane.b32.xlu0 %v4312, 32
        %v4317 = vpop.permute.xlu0 %4316
        %4318 = vrot.lane.b32.xlu0 %v4313, 32
        %v4319 = vpop.permute.xlu0 %4318
        %v4322 = vadd.f32 %v4302, %v4317
        %v4323 = vadd.f32 %v4303, %v4319
        %v4324 = vtanh.pop %v4322
        %v4325 = vtanh.pop %v4323
        %4328 = vrot.lane.b32.xlu0 %v4324, 64
        %v4329 = vpop.permute.xlu0 %4328
        %4330 = vrot.lane.b32.xlu0 %v4325, 64
        %v4331 = vpop.permute.xlu0 %4330
        %v4334 = vmul.f32 %v4297, %v4329
        %v4335 = vmul.f32 %v4299, %v4331
        %v4336 = vld [vmem:[#allocation2 + $0x20] sm:$0xff]
        %v4337 = vld [vmem:[#allocation2 + $0x58] sm:$0xff]
        %4340 = vrot.lane.b32.xlu0 %v4334, 32
        %v4341 = vpop.permute.xlu0 %4340
        %4342 = vrot.lane.b32.xlu0 %v4335, 32
        %v4343 = vpop.permute.xlu0 %4342
        %v4344 = vsel %vm744, %v4341, 0
        %v4346 = vsel %vm744, %v4343, 0
        %4348 = vmatprep.subr.mxu0 0.0
        %4349 = vmatpush1.msra.mxu0 0.0
        %4350 = vmatprep.subr.mxu0 0.0
        %4351 = vmatpush1.msra.mxu0 0.0
        %4352 = vmatprep.subr.mxu0 0.0
        %4353 = vmatpush1.msra.mxu0 0.0
        %4354 = vmatprep.subr.mxu0 0.0
        %4355 = vmatpush1.msra.mxu0 0.0
        %4356 = vmatprep.subr.mxu0 0.0
        %4357 = vmatpush1.msra.mxu0 0.0
        %4358 = vmatprep.subr.mxu0 0.0
        %4359 = vmatpush1.msra.mxu0 0.0
        %4360 = vmatprep.subr.mxu0 0.0
        %4361 = vmatpush1.msra.mxu0 0.0
        %4362 = vmatprep.subr.mxu0 0.0
        %4363 = vmatpush1.msra.mxu0 0.0
        %4364 = vmatprep.subr.mxu0 0.0
        %4365 = vmatpush1.msra.mxu0 0.0
        %4366 = vmatprep.subr.mxu0 0.0
        %4367 = vmatpush1.msra.mxu0 0.0
        %4368 = vmatprep.subr.mxu0 0.0
        %4369 = vmatpush1.msra.mxu0 0.0
        %4370 = vmatprep.subr.mxu0 0.0
        %4371 = vmatpush1.msra.mxu0 0.0
        %4372 = vmatprep.subr.mxu0 %v4148
        %4373 = vmatpush1.msra.mxu0 %v4147
        %4374 = vmatprep.subr.mxu0 %v4146
        %4375 = vmatpush1.msra.mxu0 %v4145
        %4376 = vmatprep.subr.mxu0 %v4144
        %4377 = vmatpush1.msra.mxu0 %v4143
        %4378 = vmatprep.subr.mxu0 %v4142
        %4379 = vmatpush1.msra.mxu0 %v4141
        %4380 = vmatprep.subr.mxu0 0.0
        %4381 = vmatpush2.msra.mxu0 0.0
        %4382 = vmatprep.subr.mxu0 0.0
        %4383 = vmatpush2.msra.mxu0 0.0
        %4384 = vmatprep.subr.mxu0 0.0
        %4385 = vmatpush2.msra.mxu0 0.0
        %4386 = vmatprep.subr.mxu0 0.0
        %4387 = vmatpush2.msra.mxu0 0.0
        %4388 = vmatprep.subr.mxu0 0.0
        %4389 = vmatpush2.msra.mxu0 0.0
        %4390 = vmatprep.subr.mxu0 0.0
        %4391 = vmatpush2.msra.mxu0 0.0
        %4392 = vmatprep.subr.mxu0 0.0
        %4393 = vmatpush2.msra.mxu0 0.0
        %4394 = vmatprep.subr.mxu0 0.0
        %4395 = vmatpush2.msra.mxu0 0.0
        %4396 = vmatprep.subr.mxu0 0.0
        %4397 = vmatpush2.msra.mxu0 0.0
        %4398 = vmatprep.subr.mxu0 0.0
        %4399 = vmatpush2.msra.mxu0 0.0
        %4400 = vmatprep.subr.mxu0 0.0
        %4401 = vmatpush2.msra.mxu0 0.0
        %4402 = vmatprep.subr.mxu0 0.0
        %4403 = vmatpush2.msra.mxu0 0.0
        %4404 = vmatprep.subr.mxu0 0.0
        %4405 = vmatpush2.msra.mxu0 0.0
        %4406 = vmatprep.subr.mxu0 0.0
        %4407 = vmatpush2.msra.mxu0 0.0
        %4408 = vmatprep.subr.mxu0 0.0
        %4409 = vmatpush2.msra.mxu0 0.0
        %4410 = vmatprep.subr.mxu0 0.0
        %4411 = vmatpush2.msra.mxu0 0.0
        %4412 = vmatprep.mubr.f32.mxu0 0.0
        %4413 = vmatmul.mubr.f32.gmra.mxu0 %v4344
        %v4414 = vpop.f32.mrf.mxu0
        %v4415 = vadd.f32 0.0, %v4414
        %v4416 = vpop.f32.mrf.mxu0
        %4417 = vmatprep.mubr.f32.mxu0 0.0
        %4418 = vmatmul.mubr.f32.gmra.mxu0 %v4346
        %v4419 = vpop.f32.mrf.mxu0
        %v4420 = vpop.f32.mrf.mxu0
        %v4421 = vadd.f32 0.0, %v4420
        %4422 = vdwg.mxu0
        %v4423 = vadd.f32 %v4336, %v4415
        %v4424 = vadd.f32 %v4337, %v4421
        %v4425 = vxor.u32 %v4423, 2147483648
        %v4426 = vxor.u32 %v4424, 2147483648
        %v4427 = vmul.f32 %v4425, 1.442695
        %v4428 = vpow.pop %v4427
        %v4429 = vmul.f32 %v4426, 1.442695
        %v4430 = vpow.pop %v4429
        %v4431 = vadd.f32 %v4428, 1.0
        %v4432 = vadd.f32 %v4430, 1.0
        %v4433 = vrcp.pop %v4431
        %v4434 = vmul.f32 1.0, %v4433
        %v4435 = vrcp.pop %v4432
        %v4436 = vmul.f32 1.0, %v4435
        %v4437 = vtanh.pop %v4423
        %v4438 = vtanh.pop %v4424
        %v4439 = vmul.f32 %v4434, %v4322
        %v4440 = vmul.f32 %v4436, %v4323
        %4443 = vrot.lane.b32.xlu0 %v4437, 64
        %v4444 = vpop.permute.xlu0 %4443
        %4445 = vrot.lane.b32.xlu0 %v4438, 64
        %v4446 = vpop.permute.xlu0 %4445
        %v4449 = vmul.f32 %v4434, %v4444
        %v4450 = vmul.f32 %v4436, %v4446
        %4453 = vrot.lane.b32.xlu0 %v4449, 32
        %v4454 = vpop.permute.xlu0 %4453
        %4455 = vrot.lane.b32.xlu0 %v4450, 32
        %v4456 = vpop.permute.xlu0 %4455
        %v4459 = vadd.f32 %v4439, %v4454
        %v4460 = vadd.f32 %v4440, %v4456
        %v4461 = vtanh.pop %v4459
        %v4462 = vtanh.pop %v4460
        %4465 = vrot.lane.b32.xlu0 %v4461, 64
        %v4466 = vpop.permute.xlu0 %4465
        %4467 = vrot.lane.b32.xlu0 %v4462, 64
        %v4468 = vpop.permute.xlu0 %4467
        %v4471 = vmul.f32 %v4434, %v4466
        %v4472 = vmul.f32 %v4436, %v4468
        %v4473 = vld [vmem:[#allocation2 + $0x30] sm:$0xff]
        %v4474 = vld [vmem:[#allocation2 + $0x48] sm:$0xff]
        %4477 = vrot.lane.b32.xlu0 %v4471, 32
        %v4478 = vpop.permute.xlu0 %4477
        %4479 = vrot.lane.b32.xlu0 %v4472, 32
        %v4480 = vpop.permute.xlu0 %4479
        %v4481 = vsel %vm744, %v4478, 0
        %v4483 = vsel %vm744, %v4480, 0
        %4485 = vmatprep.subr.mxu0 0.0
        %4486 = vmatpush1.msra.mxu0 0.0
        %4487 = vmatprep.subr.mxu0 0.0
        %4488 = vmatpush1.msra.mxu0 0.0
        %4489 = vmatprep.subr.mxu0 0.0
        %4490 = vmatpush1.msra.mxu0 0.0
        %4491 = vmatprep.subr.mxu0 0.0
        %4492 = vmatpush1.msra.mxu0 0.0
        %4493 = vmatprep.subr.mxu0 0.0
        %4494 = vmatpush1.msra.mxu0 0.0
        %4495 = vmatprep.subr.mxu0 0.0
        %4496 = vmatpush1.msra.mxu0 0.0
        %4497 = vmatprep.subr.mxu0 0.0
        %4498 = vmatpush1.msra.mxu0 0.0
        %4499 = vmatprep.subr.mxu0 0.0
        %4500 = vmatpush1.msra.mxu0 0.0
        %4501 = vmatprep.subr.mxu0 0.0
        %4502 = vmatpush1.msra.mxu0 0.0
        %4503 = vmatprep.subr.mxu0 0.0
        %4504 = vmatpush1.msra.mxu0 0.0
        %4505 = vmatprep.subr.mxu0 0.0
        %4506 = vmatpush1.msra.mxu0 0.0
        %4507 = vmatprep.subr.mxu0 0.0
        %4508 = vmatpush1.msra.mxu0 0.0
        %4509 = vmatprep.subr.mxu0 %v4148
        %4510 = vmatpush1.msra.mxu0 %v4147
        %4511 = vmatprep.subr.mxu0 %v4146
        %4512 = vmatpush1.msra.mxu0 %v4145
        %4513 = vmatprep.subr.mxu0 %v4144
        %4514 = vmatpush1.msra.mxu0 %v4143
        %4515 = vmatprep.subr.mxu0 %v4142
        %4516 = vmatpush1.msra.mxu0 %v4141
        %4517 = vmatprep.subr.mxu0 0.0
        %4518 = vmatpush2.msra.mxu0 0.0
        %4519 = vmatprep.subr.mxu0 0.0
        %4520 = vmatpush2.msra.mxu0 0.0
        %4521 = vmatprep.subr.mxu0 0.0
        %4522 = vmatpush2.msra.mxu0 0.0
        %4523 = vmatprep.subr.mxu0 0.0
        %4524 = vmatpush2.msra.mxu0 0.0
        %4525 = vmatprep.subr.mxu0 0.0
        %4526 = vmatpush2.msra.mxu0 0.0
        %4527 = vmatprep.subr.mxu0 0.0
        %4528 = vmatpush2.msra.mxu0 0.0
        %4529 = vmatprep.subr.mxu0 0.0
        %4530 = vmatpush2.msra.mxu0 0.0
        %4531 = vmatprep.subr.mxu0 0.0
        %4532 = vmatpush2.msra.mxu0 0.0
        %4533 = vmatprep.subr.mxu0 0.0
        %4534 = vmatpush2.msra.mxu0 0.0
        %4535 = vmatprep.subr.mxu0 0.0
        %4536 = vmatpush2.msra.mxu0 0.0
        %4537 = vmatprep.subr.mxu0 0.0
        %4538 = vmatpush2.msra.mxu0 0.0
        %4539 = vmatprep.subr.mxu0 0.0
        %4540 = vmatpush2.msra.mxu0 0.0
        %4541 = vmatprep.subr.mxu0 0.0
        %4542 = vmatpush2.msra.mxu0 0.0
        %4543 = vmatprep.subr.mxu0 0.0
        %4544 = vmatpush2.msra.mxu0 0.0
        %4545 = vmatprep.subr.mxu0 0.0
        %4546 = vmatpush2.msra.mxu0 0.0
        %4547 = vmatprep.subr.mxu0 0.0
        %4548 = vmatpush2.msra.mxu0 0.0
        %4549 = vmatprep.mubr.f32.mxu0 0.0
        %4550 = vmatmul.mubr.f32.gmra.mxu0 %v4481
        %v4551 = vpop.f32.mrf.mxu0
        %v4552 = vadd.f32 0.0, %v4551
        %v4553 = vpop.f32.mrf.mxu0
        %4554 = vmatprep.mubr.f32.mxu0 0.0
        %4555 = vmatmul.mubr.f32.gmra.mxu0 %v4483
        %v4556 = vpop.f32.mrf.mxu0
        %v4557 = vpop.f32.mrf.mxu0
        %v4558 = vadd.f32 0.0, %v4557
        %4559 = vdwg.mxu0
        %v4560 = vadd.f32 %v4473, %v4552
        %v4561 = vadd.f32 %v4474, %v4558
        %v4562 = vxor.u32 %v4560, 2147483648
        %v4563 = vxor.u32 %v4561, 2147483648
        %v4564 = vmul.f32 %v4562, 1.442695
        %v4565 = vpow.pop %v4564
        %v4566 = vmul.f32 %v4563, 1.442695
        %v4567 = vpow.pop %v4566
        %v4568 = vadd.f32 %v4565, 1.0
        %v4569 = vadd.f32 %v4567, 1.0
        %v4570 = vrcp.pop %v4568
        %v4571 = vmul.f32 1.0, %v4570
        %v4572 = vrcp.pop %v4569
        %v4573 = vmul.f32 1.0, %v4572
        %v4574 = vtanh.pop %v4560
        %v4575 = vtanh.pop %v4561
        %v4576 = vmul.f32 %v4571, %v4459
        %v4577 = vmul.f32 %v4573, %v4460
        %4580 = vrot.lane.b32.xlu0 %v4574, 64
        %v4581 = vpop.permute.xlu0 %4580
        %4582 = vrot.lane.b32.xlu0 %v4575, 64
        %v4583 = vpop.permute.xlu0 %4582
        %v4586 = vmul.f32 %v4571, %v4581
        %v4587 = vmul.f32 %v4573, %v4583
        %4590 = vrot.lane.b32.xlu0 %v4586, 32
        %v4591 = vpop.permute.xlu0 %4590
        %4592 = vrot.lane.b32.xlu0 %v4587, 32
        %v4593 = vpop.permute.xlu0 %4592
        %v4596 = vadd.f32 %v4576, %v4591
        %v4597 = vadd.f32 %v4577, %v4593
        %v4598 = vtanh.pop %v4596
        %v4599 = vtanh.pop %v4597
        %4602 = vrot.lane.b32.xlu0 %v4598, 64
        %v4603 = vpop.permute.xlu0 %4602
        %4604 = vrot.lane.b32.xlu0 %v4599, 64
        %v4605 = vpop.permute.xlu0 %4604
        %v4608 = vmul.f32 %v4571, %v4603
        %v4609 = vmul.f32 %v4573, %v4605
        %v4610 = vld [vmem:[#allocation2 + $0x40] sm:$0xff]
        %v4611 = vld [vmem:[#allocation2 + $0x38] sm:$0xff]
        %4614 = vrot.lane.b32.xlu0 %v4608, 32
        %v4615 = vpop.permute.xlu0 %4614
        %4616 = vrot.lane.b32.xlu0 %v4609, 32
        %v4617 = vpop.permute.xlu0 %4616
        %v4618 = vsel %vm744, %v4615, 0
        %v4620 = vsel %vm744, %v4617, 0
        %4622 = vmatprep.subr.mxu0 0.0
        %4623 = vmatpush1.msra.mxu0 0.0
        %4624 = vmatprep.subr.mxu0 0.0
        %4625 = vmatpush1.msra.mxu0 0.0
        %4626 = vmatprep.subr.mxu0 0.0
        %4627 = vmatpush1.msra.mxu0 0.0
        %4628 = vmatprep.subr.mxu0 0.0
        %4629 = vmatpush1.msra.mxu0 0.0
        %4630 = vmatprep.subr.mxu0 0.0
        %4631 = vmatpush1.msra.mxu0 0.0
        %4632 = vmatprep.subr.mxu0 0.0
        %4633 = vmatpush1.msra.mxu0 0.0
        %4634 = vmatprep.subr.mxu0 0.0
        %4635 = vmatpush1.msra.mxu0 0.0
        %4636 = vmatprep.subr.mxu0 0.0
        %4637 = vmatpush1.msra.mxu0 0.0
        %4638 = vmatprep.subr.mxu0 0.0
        %4639 = vmatpush1.msra.mxu0 0.0
        %4640 = vmatprep.subr.mxu0 0.0
        %4641 = vmatpush1.msra.mxu0 0.0
        %4642 = vmatprep.subr.mxu0 0.0
        %4643 = vmatpush1.msra.mxu0 0.0
        %4644 = vmatprep.subr.mxu0 0.0
        %4645 = vmatpush1.msra.mxu0 0.0
        %4646 = vmatprep.subr.mxu0 %v4148
        %4647 = vmatpush1.msra.mxu0 %v4147
        %4648 = vmatprep.subr.mxu0 %v4146
        %4649 = vmatpush1.msra.mxu0 %v4145
        %4650 = vmatprep.subr.mxu0 %v4144
        %4651 = vmatpush1.msra.mxu0 %v4143
        %4652 = vmatprep.subr.mxu0 %v4142
        %4653 = vmatpush1.msra.mxu0 %v4141
        %4654 = vmatprep.subr.mxu0 0.0
        %4655 = vmatpush2.msra.mxu0 0.0
        %4656 = vmatprep.subr.mxu0 0.0
        %4657 = vmatpush2.msra.mxu0 0.0
        %4658 = vmatprep.subr.mxu0 0.0
        %4659 = vmatpush2.msra.mxu0 0.0
        %4660 = vmatprep.subr.mxu0 0.0
        %4661 = vmatpush2.msra.mxu0 0.0
        %4662 = vmatprep.subr.mxu0 0.0
        %4663 = vmatpush2.msra.mxu0 0.0
        %4664 = vmatprep.subr.mxu0 0.0
        %4665 = vmatpush2.msra.mxu0 0.0
        %4666 = vmatprep.subr.mxu0 0.0
        %4667 = vmatpush2.msra.mxu0 0.0
        %4668 = vmatprep.subr.mxu0 0.0
        %4669 = vmatpush2.msra.mxu0 0.0
        %4670 = vmatprep.subr.mxu0 0.0
        %4671 = vmatpush2.msra.mxu0 0.0
        %4672 = vmatprep.subr.mxu0 0.0
        %4673 = vmatpush2.msra.mxu0 0.0
        %4674 = vmatprep.subr.mxu0 0.0
        %4675 = vmatpush2.msra.mxu0 0.0
        %4676 = vmatprep.subr.mxu0 0.0
        %4677 = vmatpush2.msra.mxu0 0.0
        %4678 = vmatprep.subr.mxu0 0.0
        %4679 = vmatpush2.msra.mxu0 0.0
        %4680 = vmatprep.subr.mxu0 0.0
        %4681 = vmatpush2.msra.mxu0 0.0
        %4682 = vmatprep.subr.mxu0 0.0
        %4683 = vmatpush2.msra.mxu0 0.0
        %4684 = vmatprep.subr.mxu0 0.0
        %4685 = vmatpush2.msra.mxu0 0.0
        %4686 = vmatprep.mubr.f32.mxu0 0.0
        %4687 = vmatmul.mubr.f32.gmra.mxu0 %v4618
        %v4688 = vpop.f32.mrf.mxu0
        %v4689 = vadd.f32 0.0, %v4688
        %v4690 = vpop.f32.mrf.mxu0
        %4691 = vmatprep.mubr.f32.mxu0 0.0
        %4692 = vmatmul.mubr.f32.gmra.mxu0 %v4620
        %v4693 = vpop.f32.mrf.mxu0
        %v4694 = vpop.f32.mrf.mxu0
        %v4695 = vadd.f32 0.0, %v4694
        %4696 = vdwg.mxu0
        %v4697 = vadd.f32 %v4610, %v4689
        %v4698 = vadd.f32 %v4611, %v4695
        %v4699 = vxor.u32 %v4697, 2147483648
        %v4700 = vxor.u32 %v4698, 2147483648
        %v4701 = vmul.f32 %v4699, 1.442695
        %v4702 = vpow.pop %v4701
        %v4703 = vmul.f32 %v4700, 1.442695
        %v4704 = vpow.pop %v4703
        %v4705 = vadd.f32 %v4702, 1.0
        %v4706 = vadd.f32 %v4704, 1.0
        %v4707 = vrcp.pop %v4705
        %v4708 = vmul.f32 1.0, %v4707
        %v4709 = vrcp.pop %v4706
        %v4710 = vmul.f32 1.0, %v4709
        %v4711 = vtanh.pop %v4697
        %v4712 = vtanh.pop %v4698
        %v4713 = vmul.f32 %v4708, %v4596
        %v4714 = vmul.f32 %v4710, %v4597
        %4717 = vrot.lane.b32.xlu0 %v4711, 64
        %v4718 = vpop.permute.xlu0 %4717
        %4719 = vrot.lane.b32.xlu0 %v4712, 64
        %v4720 = vpop.permute.xlu0 %4719
        %v4723 = vmul.f32 %v4708, %v4718
        %v4724 = vmul.f32 %v4710, %v4720
        %4727 = vrot.lane.b32.xlu0 %v4723, 32
        %v4728 = vpop.permute.xlu0 %4727
        %4729 = vrot.lane.b32.xlu0 %v4724, 32
        %v4730 = vpop.permute.xlu0 %4729
        %v4733 = vadd.f32 %v4713, %v4728
        %v4734 = vadd.f32 %v4714, %v4730
        %v4735 = vtanh.pop %v4733
        %v4736 = vtanh.pop %v4734
        %4739 = vrot.lane.b32.xlu0 %v4735, 64
        %v4740 = vpop.permute.xlu0 %4739
        %4741 = vrot.lane.b32.xlu0 %v4736, 64
        %v4742 = vpop.permute.xlu0 %4741
        %v4745 = vmul.f32 %v4708, %v4740
        %v4746 = vmul.f32 %v4710, %v4742
        %v4747 = vld [vmem:[#allocation2 + $0x50] sm:$0xff]
        %v4748 = vld [vmem:[#allocation2 + $0x28] sm:$0xff]
        %4751 = vrot.lane.b32.xlu0 %v4745, 32
        %v4752 = vpop.permute.xlu0 %4751
        %4753 = vrot.lane.b32.xlu0 %v4746, 32
        %v4754 = vpop.permute.xlu0 %4753
        %v4755 = vsel %vm744, %v4752, 0
        %v4757 = vsel %vm744, %v4754, 0
        %4759 = vmatprep.subr.mxu0 0.0
        %4760 = vmatpush1.msra.mxu0 0.0
        %4761 = vmatprep.subr.mxu0 0.0
        %4762 = vmatpush1.msra.mxu0 0.0
        %4763 = vmatprep.subr.mxu0 0.0
        %4764 = vmatpush1.msra.mxu0 0.0
        %4765 = vmatprep.subr.mxu0 0.0
        %4766 = vmatpush1.msra.mxu0 0.0
        %4767 = vmatprep.subr.mxu0 0.0
        %4768 = vmatpush1.msra.mxu0 0.0
        %4769 = vmatprep.subr.mxu0 0.0
        %4770 = vmatpush1.msra.mxu0 0.0
        %4771 = vmatprep.subr.mxu0 0.0
        %4772 = vmatpush1.msra.mxu0 0.0
        %4773 = vmatprep.subr.mxu0 0.0
        %4774 = vmatpush1.msra.mxu0 0.0
        %4775 = vmatprep.subr.mxu0 0.0
        %4776 = vmatpush1.msra.mxu0 0.0
        %4777 = vmatprep.subr.mxu0 0.0
        %4778 = vmatpush1.msra.mxu0 0.0
        %4779 = vmatprep.subr.mxu0 0.0
        %4780 = vmatpush1.msra.mxu0 0.0
        %4781 = vmatprep.subr.mxu0 0.0
        %4782 = vmatpush1.msra.mxu0 0.0
        %4783 = vmatprep.subr.mxu0 %v4148
        %4784 = vmatpush1.msra.mxu0 %v4147
        %4785 = vmatprep.subr.mxu0 %v4146
        %4786 = vmatpush1.msra.mxu0 %v4145
        %4787 = vmatprep.subr.mxu0 %v4144
        %4788 = vmatpush1.msra.mxu0 %v4143
        %4789 = vmatprep.subr.mxu0 %v4142
        %4790 = vmatpush1.msra.mxu0 %v4141
        %4791 = vmatprep.subr.mxu0 0.0
        %4792 = vmatpush2.msra.mxu0 0.0
        %4793 = vmatprep.subr.mxu0 0.0
        %4794 = vmatpush2.msra.mxu0 0.0
        %4795 = vmatprep.subr.mxu0 0.0
        %4796 = vmatpush2.msra.mxu0 0.0
        %4797 = vmatprep.subr.mxu0 0.0
        %4798 = vmatpush2.msra.mxu0 0.0
        %4799 = vmatprep.subr.mxu0 0.0
        %4800 = vmatpush2.msra.mxu0 0.0
        %4801 = vmatprep.subr.mxu0 0.0
        %4802 = vmatpush2.msra.mxu0 0.0
        %4803 = vmatprep.subr.mxu0 0.0
        %4804 = vmatpush2.msra.mxu0 0.0
        %4805 = vmatprep.subr.mxu0 0.0
        %4806 = vmatpush2.msra.mxu0 0.0
        %4807 = vmatprep.subr.mxu0 0.0
        %4808 = vmatpush2.msra.mxu0 0.0
        %4809 = vmatprep.subr.mxu0 0.0
        %4810 = vmatpush2.msra.mxu0 0.0
        %4811 = vmatprep.subr.mxu0 0.0
        %4812 = vmatpush2.msra.mxu0 0.0
        %4813 = vmatprep.subr.mxu0 0.0
        %4814 = vmatpush2.msra.mxu0 0.0
        %4815 = vmatprep.subr.mxu0 0.0
        %4816 = vmatpush2.msra.mxu0 0.0
        %4817 = vmatprep.subr.mxu0 0.0
        %4818 = vmatpush2.msra.mxu0 0.0
        %4819 = vmatprep.subr.mxu0 0.0
        %4820 = vmatpush2.msra.mxu0 0.0
        %4821 = vmatprep.subr.mxu0 0.0
        %4822 = vmatpush2.msra.mxu0 0.0
        %4823 = vmatprep.mubr.f32.mxu0 0.0
        %4824 = vmatmul.mubr.f32.gmra.mxu0 %v4755
        %v4825 = vpop.f32.mrf.mxu0
        %v4826 = vadd.f32 0.0, %v4825
        %v4827 = vpop.f32.mrf.mxu0
        %4828 = vmatprep.mubr.f32.mxu0 0.0
        %4829 = vmatmul.mubr.f32.gmra.mxu0 %v4757
        %v4830 = vpop.f32.mrf.mxu0
        %v4831 = vpop.f32.mrf.mxu0
        %v4832 = vadd.f32 0.0, %v4831
        %4833 = vdwg.mxu0
        %v4834 = vadd.f32 %v4747, %v4826
        %v4835 = vadd.f32 %v4748, %v4832
        %v4836 = vxor.u32 %v4834, 2147483648
        %v4837 = vxor.u32 %v4835, 2147483648
        %v4838 = vmul.f32 %v4836, 1.442695
        %v4839 = vpow.pop %v4838
        %v4840 = vmul.f32 %v4837, 1.442695
        %v4841 = vpow.pop %v4840
        %v4842 = vadd.f32 %v4839, 1.0
        %v4843 = vadd.f32 %v4841, 1.0
        %v4844 = vrcp.pop %v4842
        %v4845 = vmul.f32 1.0, %v4844
        %v4846 = vrcp.pop %v4843
        %v4847 = vmul.f32 1.0, %v4846
        %v4848 = vtanh.pop %v4834
        %v4849 = vtanh.pop %v4835
        %v4850 = vmul.f32 %v4845, %v4733
        %v4851 = vmul.f32 %v4847, %v4734
        %4854 = vrot.lane.b32.xlu0 %v4848, 64
        %v4855 = vpop.permute.xlu0 %4854
        %4856 = vrot.lane.b32.xlu0 %v4849, 64
        %v4857 = vpop.permute.xlu0 %4856
        %v4860 = vmul.f32 %v4845, %v4855
        %v4861 = vmul.f32 %v4847, %v4857
        %4864 = vrot.lane.b32.xlu0 %v4860, 32
        %v4865 = vpop.permute.xlu0 %4864
        %4866 = vrot.lane.b32.xlu0 %v4861, 32
        %v4867 = vpop.permute.xlu0 %4866
        %v4870 = vadd.f32 %v4850, %v4865
        %v4871 = vadd.f32 %v4851, %v4867
        %v4872 = vtanh.pop %v4870
        %v4873 = vtanh.pop %v4871
        %4876 = vrot.lane.b32.xlu0 %v4872, 64
        %v4877 = vpop.permute.xlu0 %4876
        %4878 = vrot.lane.b32.xlu0 %v4873, 64
        %v4879 = vpop.permute.xlu0 %4878
        %v4882 = vmul.f32 %v4845, %v4877
        %v4883 = vmul.f32 %v4847, %v4879
        %v4884 = vld [vmem:[#allocation2 + $0x60] sm:$0xff]
        %v4885 = vld [vmem:[#allocation2 + $0x18] sm:$0xff]
        %4888 = vrot.lane.b32.xlu0 %v4882, 32
        %v4889 = vpop.permute.xlu0 %4888
        %4890 = vrot.lane.b32.xlu0 %v4883, 32
        %v4891 = vpop.permute.xlu0 %4890
        %v4892 = vsel %vm744, %v4889, 0
        %v4894 = vsel %vm744, %v4891, 0
        %4896 = vmatprep.subr.mxu0 0.0
        %4897 = vmatpush1.msra.mxu0 0.0
        %4898 = vmatprep.subr.mxu0 0.0
        %4899 = vmatpush1.msra.mxu0 0.0
        %4900 = vmatprep.subr.mxu0 0.0
        %4901 = vmatpush1.msra.mxu0 0.0
        %4902 = vmatprep.subr.mxu0 0.0
        %4903 = vmatpush1.msra.mxu0 0.0
        %4904 = vmatprep.subr.mxu0 0.0
        %4905 = vmatpush1.msra.mxu0 0.0
        %4906 = vmatprep.subr.mxu0 0.0
        %4907 = vmatpush1.msra.mxu0 0.0
        %4908 = vmatprep.subr.mxu0 0.0
        %4909 = vmatpush1.msra.mxu0 0.0
        %4910 = vmatprep.subr.mxu0 0.0
        %4911 = vmatpush1.msra.mxu0 0.0
        %4912 = vmatprep.subr.mxu0 0.0
        %4913 = vmatpush1.msra.mxu0 0.0
        %4914 = vmatprep.subr.mxu0 0.0
        %4915 = vmatpush1.msra.mxu0 0.0
        %4916 = vmatprep.subr.mxu0 0.0
        %4917 = vmatpush1.msra.mxu0 0.0
        %4918 = vmatprep.subr.mxu0 0.0
        %4919 = vmatpush1.msra.mxu0 0.0
        %4920 = vmatprep.subr.mxu0 %v4148
        %4921 = vmatpush1.msra.mxu0 %v4147
        %4922 = vmatprep.subr.mxu0 %v4146
        %4923 = vmatpush1.msra.mxu0 %v4145
        %4924 = vmatprep.subr.mxu0 %v4144
        %4925 = vmatpush1.msra.mxu0 %v4143
        %4926 = vmatprep.subr.mxu0 %v4142
        %4927 = vmatpush1.msra.mxu0 %v4141
        %4928 = vmatprep.subr.mxu0 0.0
        %4929 = vmatpush2.msra.mxu0 0.0
        %4930 = vmatprep.subr.mxu0 0.0
        %4931 = vmatpush2.msra.mxu0 0.0
        %4932 = vmatprep.subr.mxu0 0.0
        %4933 = vmatpush2.msra.mxu0 0.0
        %4934 = vmatprep.subr.mxu0 0.0
        %4935 = vmatpush2.msra.mxu0 0.0
        %4936 = vmatprep.subr.mxu0 0.0
        %4937 = vmatpush2.msra.mxu0 0.0
        %4938 = vmatprep.subr.mxu0 0.0
        %4939 = vmatpush2.msra.mxu0 0.0
        %4940 = vmatprep.subr.mxu0 0.0
        %4941 = vmatpush2.msra.mxu0 0.0
        %4942 = vmatprep.subr.mxu0 0.0
        %4943 = vmatpush2.msra.mxu0 0.0
        %4944 = vmatprep.subr.mxu0 0.0
        %4945 = vmatpush2.msra.mxu0 0.0
        %4946 = vmatprep.subr.mxu0 0.0
        %4947 = vmatpush2.msra.mxu0 0.0
        %4948 = vmatprep.subr.mxu0 0.0
        %4949 = vmatpush2.msra.mxu0 0.0
        %4950 = vmatprep.subr.mxu0 0.0
        %4951 = vmatpush2.msra.mxu0 0.0
        %4952 = vmatprep.subr.mxu0 0.0
        %4953 = vmatpush2.msra.mxu0 0.0
        %4954 = vmatprep.subr.mxu0 0.0
        %4955 = vmatpush2.msra.mxu0 0.0
        %4956 = vmatprep.subr.mxu0 0.0
        %4957 = vmatpush2.msra.mxu0 0.0
        %4958 = vmatprep.subr.mxu0 0.0
        %4959 = vmatpush2.msra.mxu0 0.0
        %4960 = vmatprep.mubr.f32.mxu0 0.0
        %4961 = vmatmul.mubr.f32.gmra.mxu0 %v4892
        %v4962 = vpop.f32.mrf.mxu0
        %v4963 = vadd.f32 0.0, %v4962
        %v4964 = vpop.f32.mrf.mxu0
        %4965 = vmatprep.mubr.f32.mxu0 0.0
        %4966 = vmatmul.mubr.f32.gmra.mxu0 %v4894
        %v4967 = vpop.f32.mrf.mxu0
        %v4968 = vpop.f32.mrf.mxu0
        %v4969 = vadd.f32 0.0, %v4968
        %4970 = vdwg.mxu0
        %v4971 = vadd.f32 %v4884, %v4963
        %v4972 = vadd.f32 %v4885, %v4969
        %v4973 = vxor.u32 %v4971, 2147483648
        %v4974 = vxor.u32 %v4972, 2147483648
        %v4975 = vmul.f32 %v4973, 1.442695
        %v4976 = vpow.pop %v4975
        %v4977 = vmul.f32 %v4974, 1.442695
        %v4978 = vpow.pop %v4977
        %v4979 = vadd.f32 %v4976, 1.0
        %v4980 = vadd.f32 %v4978, 1.0
        %v4981 = vrcp.pop %v4979
        %v4982 = vmul.f32 1.0, %v4981
        %v4983 = vrcp.pop %v4980
        %v4984 = vmul.f32 1.0, %v4983
        %v4985 = vtanh.pop %v4971
        %v4986 = vtanh.pop %v4972
        %v4987 = vmul.f32 %v4982, %v4870
        %v4988 = vmul.f32 %v4984, %v4871
        %4991 = vrot.lane.b32.xlu0 %v4985, 64
        %v4992 = vpop.permute.xlu0 %4991
        %4993 = vrot.lane.b32.xlu0 %v4986, 64
        %v4994 = vpop.permute.xlu0 %4993
        %v4997 = vmul.f32 %v4982, %v4992
        %v4998 = vmul.f32 %v4984, %v4994
        %5001 = vrot.lane.b32.xlu0 %v4997, 32
        %v5002 = vpop.permute.xlu0 %5001
        %5003 = vrot.lane.b32.xlu0 %v4998, 32
        %v5004 = vpop.permute.xlu0 %5003
        %v5007 = vadd.f32 %v4987, %v5002
        %v5008 = vadd.f32 %v4988, %v5004
        %v5009 = vtanh.pop %v5007
        %v5010 = vtanh.pop %v5008
        %5013 = vrot.lane.b32.xlu0 %v5009, 64
        %v5014 = vpop.permute.xlu0 %5013
        %5015 = vrot.lane.b32.xlu0 %v5010, 64
        %v5016 = vpop.permute.xlu0 %5015
        %v5019 = vmul.f32 %v4982, %v5014
        %v5020 = vmul.f32 %v4984, %v5016
        %v5021 = vld [vmem:[#allocation2 + $0x70] sm:$0xff]
        %v5022 = vld [vmem:[#allocation2 + $0x8] sm:$0xff]
        %5025 = vrot.lane.b32.xlu0 %v5019, 32
        %v5026 = vpop.permute.xlu0 %5025
        %5027 = vrot.lane.b32.xlu0 %v5020, 32
        %v5028 = vpop.permute.xlu0 %5027
        %v5029 = vsel %vm744, %v5026, 0
        %v5031 = vsel %vm744, %v5028, 0
        %5033 = vmatprep.subr.mxu0 0.0
        %5034 = vmatpush1.msra.mxu0 0.0
        %5035 = vmatprep.subr.mxu0 0.0
        %5036 = vmatpush1.msra.mxu0 0.0
        %5037 = vmatprep.subr.mxu0 0.0
        %5038 = vmatpush1.msra.mxu0 0.0
        %5039 = vmatprep.subr.mxu0 0.0
        %5040 = vmatpush1.msra.mxu0 0.0
        %5041 = vmatprep.subr.mxu0 0.0
        %5042 = vmatpush1.msra.mxu0 0.0
        %5043 = vmatprep.subr.mxu0 0.0
        %5044 = vmatpush1.msra.mxu0 0.0
        %5045 = vmatprep.subr.mxu0 0.0
        %5046 = vmatpush1.msra.mxu0 0.0
        %5047 = vmatprep.subr.mxu0 0.0
        %5048 = vmatpush1.msra.mxu0 0.0
        %5049 = vmatprep.subr.mxu0 0.0
        %5050 = vmatpush1.msra.mxu0 0.0
        %5051 = vmatprep.subr.mxu0 0.0
        %5052 = vmatpush1.msra.mxu0 0.0
        %5053 = vmatprep.subr.mxu0 0.0
        %5054 = vmatpush1.msra.mxu0 0.0
        %5055 = vmatprep.subr.mxu0 0.0
        %5056 = vmatpush1.msra.mxu0 0.0
        %5057 = vmatprep.subr.mxu0 %v4148
        %5058 = vmatpush1.msra.mxu0 %v4147
        %5059 = vmatprep.subr.mxu0 %v4146
        %5060 = vmatpush1.msra.mxu0 %v4145
        %5061 = vmatprep.subr.mxu0 %v4144
        %5062 = vmatpush1.msra.mxu0 %v4143
        %5063 = vmatprep.subr.mxu0 %v4142
        %5064 = vmatpush1.msra.mxu0 %v4141
        %5065 = vmatprep.subr.mxu0 0.0
        %5066 = vmatpush2.msra.mxu0 0.0
        %5067 = vmatprep.subr.mxu0 0.0
        %5068 = vmatpush2.msra.mxu0 0.0
        %5069 = vmatprep.subr.mxu0 0.0
        %5070 = vmatpush2.msra.mxu0 0.0
        %5071 = vmatprep.subr.mxu0 0.0
        %5072 = vmatpush2.msra.mxu0 0.0
        %5073 = vmatprep.subr.mxu0 0.0
        %5074 = vmatpush2.msra.mxu0 0.0
        %5075 = vmatprep.subr.mxu0 0.0
        %5076 = vmatpush2.msra.mxu0 0.0
        %5077 = vmatprep.subr.mxu0 0.0
        %5078 = vmatpush2.msra.mxu0 0.0
        %5079 = vmatprep.subr.mxu0 0.0
        %5080 = vmatpush2.msra.mxu0 0.0
        %5081 = vmatprep.subr.mxu0 0.0
        %5082 = vmatpush2.msra.mxu0 0.0
        %5083 = vmatprep.subr.mxu0 0.0
        %5084 = vmatpush2.msra.mxu0 0.0
        %5085 = vmatprep.subr.mxu0 0.0
        %5086 = vmatpush2.msra.mxu0 0.0
        %5087 = vmatprep.subr.mxu0 0.0
        %5088 = vmatpush2.msra.mxu0 0.0
        %5089 = vmatprep.subr.mxu0 0.0
        %5090 = vmatpush2.msra.mxu0 0.0
        %5091 = vmatprep.subr.mxu0 0.0
        %5092 = vmatpush2.msra.mxu0 0.0
        %5093 = vmatprep.subr.mxu0 0.0
        %5094 = vmatpush2.msra.mxu0 0.0
        %5095 = vmatprep.subr.mxu0 0.0
        %5096 = vmatpush2.msra.mxu0 0.0
        %5097 = vmatprep.mubr.f32.mxu0 0.0
        %5098 = vmatmul.mubr.f32.gmra.mxu0 %v5029
        %v5099 = vpop.f32.mrf.mxu0
        %v5100 = vadd.f32 0.0, %v5099
        %v5101 = vpop.f32.mrf.mxu0
        %5102 = vmatprep.mubr.f32.mxu0 0.0
        %5103 = vmatmul.mubr.f32.gmra.mxu0 %v5031
        %v5104 = vpop.f32.mrf.mxu0
        %v5105 = vpop.f32.mrf.mxu0
        %v5106 = vadd.f32 0.0, %v5105
        %5107 = vdwg.mxu0
        %v5108 = vadd.f32 %v5021, %v5100
        %v5109 = vadd.f32 %v5022, %v5106
        %v5110 = vxor.u32 %v5108, 2147483648
        %v5111 = vxor.u32 %v5109, 2147483648
        %v5112 = vmul.f32 %v5110, 1.442695
        %v5113 = vpow.pop %v5112
        %v5114 = vmul.f32 %v5111, 1.442695
        %v5115 = vpow.pop %v5114
        %v5116 = vadd.f32 %v5113, 1.0
        %v5117 = vadd.f32 %v5115, 1.0
        %v5118 = vrcp.pop %v5116
        %v5119 = vmul.f32 1.0, %v5118
        %v5120 = vrcp.pop %v5117
        %v5121 = vmul.f32 1.0, %v5120
        %v5122 = vtanh.pop %v5108
        %v5123 = vtanh.pop %v5109
        %v5124 = vmul.f32 %v5119, %v5007
        %v5125 = vmul.f32 %v5121, %v5008
        %5128 = vrot.lane.b32.xlu0 %v5122, 64
        %v5129 = vpop.permute.xlu0 %5128
        %5130 = vrot.lane.b32.xlu0 %v5123, 64
        %v5131 = vpop.permute.xlu0 %5130
        %v5134 = vmul.f32 %v5119, %v5129
        %v5135 = vmul.f32 %v5121, %v5131
        %5138 = vrot.lane.b32.xlu0 %v5134, 32
        %v5139 = vpop.permute.xlu0 %5138
        %5140 = vrot.lane.b32.xlu0 %v5135, 32
        %v5141 = vpop.permute.xlu0 %5140
        %v5144 = vadd.f32 %v5124, %v5139
        %v5145 = vadd.f32 %v5125, %v5141
        %v5146 = vtanh.pop %v5144
        %v5147 = vtanh.pop %v5145
        %5150 = vrot.lane.b32.xlu0 %v5146, 64
        %v5151 = vpop.permute.xlu0 %5150
        %5152 = vrot.lane.b32.xlu0 %v5147, 64
        %v5153 = vpop.permute.xlu0 %5152
        %v5156 = vmul.f32 %v5119, %v5151
        %v5157 = vmul.f32 %v5121, %v5153
        %5159 = vst.msk [vmem:[#allocation3] sm:$0xff] %vm744, %v4204
        %5161 = vrot.lane.b32.xlu0 %v5157, 64
        %v5162 = vpop.permute.xlu0 %5161
        %vm5164 = vcmask 523520
        %5165 = vst.msk [vmem:[#allocation3] sm:$0xff] %vm5164, %v5162
        %5166 = vrot.lane.b32.xlu0 %v4334, 96
        %v5167 = vpop.permute.xlu0 %5166
        %vm5169 = vcmask 785920
        %5170 = vst.msk [vmem:[#allocation3] sm:$0xff] %vm5169, %v5167
        %vm5171 = vcmask 1048320
        %5172 = vst.msk [vmem:[#allocation3] sm:$0xff] %vm5171, %v5020
        %5174 = vst.msk [vmem:[#allocation3 + $0x8] sm:$0xff] %vm744, %v4478
        %5175 = vrot.lane.b32.xlu0 %v4883, 64
        %v5176 = vpop.permute.xlu0 %5175
        %5178 = vst.msk [vmem:[#allocation3 + $0x8] sm:$0xff] %vm5164, %v5176
        %5179 = vrot.lane.b32.xlu0 %v4608, 96
        %v5180 = vpop.permute.xlu0 %5179
        %5182 = vst.msk [vmem:[#allocation3 + $0x8] sm:$0xff] %vm5169, %v5180
        %5183 = vst.msk [vmem:[#allocation3 + $0x8] sm:$0xff] %vm5171, %v4746
        %5185 = vst.msk [vmem:[#allocation3 + $0x10] sm:$0xff] %vm744, %v4752
        %5186 = vrot.lane.b32.xlu0 %v4609, 64
        %v5187 = vpop.permute.xlu0 %5186
        %5189 = vst.msk [vmem:[#allocation3 + $0x10] sm:$0xff] %vm5164, %v5187
        %5190 = vrot.lane.b32.xlu0 %v4882, 96
        %v5191 = vpop.permute.xlu0 %5190
        %5193 = vst.msk [vmem:[#allocation3 + $0x10] sm:$0xff] %vm5169, %v5191
        %5194 = vst.msk [vmem:[#allocation3 + $0x10] sm:$0xff] %vm5171, %v4472
        %5196 = vst.msk [vmem:[#allocation3 + $0x18] sm:$0xff] %vm744, %v5026
        %5197 = vrot.lane.b32.xlu0 %v4335, 64
        %v5198 = vpop.permute.xlu0 %5197
        %5200 = vst.msk [vmem:[#allocation3 + $0x18] sm:$0xff] %vm5164, %v5198
        %5202 = vrot.lane.b32.xlu0 %v5156, 96
        %v5203 = vpop.permute.xlu0 %5202
        %5205 = vst.msk [vmem:[#allocation3 + $0x18] sm:$0xff] %vm5169, %v5203
        %5206 = vst.msk [vmem:[#allocation3 + $0x18] sm:$0xff] %vm5171, %v4198
        %5208 = vrot.lane.b32.xlu0 %v1164, 32
        %v5209 = vpop.permute.xlu0 %5208
        %5211 = vst.msk [vmem:[#allocation3 + $0x20] sm:$0xff] %vm744, %v5209
        %5213 = vrot.lane.b32.xlu0 %v1188, 64
        %v5214 = vpop.permute.xlu0 %5213
        %5216 = vst.msk [vmem:[#allocation3 + $0x20] sm:$0xff] %vm5164, %v5214
        %v5217 = vld [vmem:[#allocation3] sm:$0xff]
        %v5218 = vld [vmem:[#allocation3 + $0x8] sm:$0xff]
        %v5219 = vld [vmem:[#allocation3 + $0x10] sm:$0xff]
        %v5220 = vld [vmem:[#allocation3 + $0x18] sm:$0xff]
        %v5221 = vld [vmem:[#allocation3 + $0x20] sm:$0xff]
        %v5222 = vld [vmem:[%s12] sm:$0xff]
        %v5223 = vld [vmem:[%s12 + $0x8] sm:$0xff]
        %v5224 = vld [vmem:[%s12 + $0x10] sm:$0xff]
        %v5225 = vld [vmem:[%s12 + $0x18] sm:$0xff]
        %v5226 = vld [vmem:[%s12 + $0x20] sm:$0xff]
        %v5227 = vld [vmem:[%s12 + $0x28] sm:$0xff]
        %v5228 = vld [vmem:[%s12 + $0x30] sm:$0xff]
        %v5229 = vld [vmem:[%s12 + $0x38] sm:$0xff]
        %v5230 = vld [vmem:[%s12 + $0x40] sm:$0xff]
        %v5231 = vld [vmem:[%s12 + $0x48] sm:$0xff]
        %v5232 = vld [vmem:[%s12 + $0x50] sm:$0xff]
        %v5233 = vld [vmem:[%s12 + $0x58] sm:$0xff]
        %v5234 = vld [vmem:[%s12 + $0x60] sm:$0xff]
        %v5235 = vld [vmem:[%s12 + $0x68] sm:$0xff]
        %v5236 = vld [vmem:[%s12 + $0x70] sm:$0xff]
        %v5237 = vld [vmem:[%s12 + $0x78] sm:$0xff]
        %v5238 = vld [vmem:[%s12 + $0x80] sm:$0xff]
        %v5239 = vld [vmem:[%s12 + $0x88] sm:$0xff]
        %v5240 = vld [vmem:[%s12 + $0x90] sm:$0xff]
        %v5241 = vld [vmem:[%s12 + $0x98] sm:$0xff]
        %v5242 = vld [vmem:[%s12 + $0xa0] sm:$0xff]
        %v5243 = vld [vmem:[%s12 + $0xa8] sm:$0xff]
        %v5244 = vld [vmem:[%s12 + $0xb0] sm:$0xff]
        %v5245 = vld [vmem:[%s12 + $0xb8] sm:$0xff]
        %v5246 = vld [vmem:[%s12 + $0xc0] sm:$0xff]
        %v5247 = vld [vmem:[%s12 + $0xc8] sm:$0xff]
        %v5248 = vld [vmem:[%s12 + $0xd0] sm:$0xff]
        %v5249 = vld [vmem:[%s12 + $0xd8] sm:$0xff]
        %v5250 = vld [vmem:[%s12 + $0xe0] sm:$0xff]
        %v5251 = vld [vmem:[%s12 + $0xe8] sm:$0xff]
        %v5252 = vld [vmem:[%s12 + $0xf0] sm:$0xff]
        %v5253 = vld [vmem:[%s12 + $0xf8] sm:$0xff]
        %v5254 = vld [vmem:[%s12 + $0x100] sm:$0xff]
        %v5255 = vld [vmem:[%s12 + $0x108] sm:$0xff]
        %v5256 = vld [vmem:[%s12 + $0x110] sm:$0xff]
        %v5257 = vld [vmem:[%s12 + $0x118] sm:$0xff]
        %v5258 = vld [vmem:[%s12 + $0x120] sm:$0xff]
        %v5259 = vld [vmem:[%s12 + $0x128] sm:$0xff]
        %v5260 = vld [vmem:[%s12 + $0x130] sm:$0xff]
        %v5261 = vld [vmem:[%s12 + $0x138] sm:$0xff]
        %v5262 = vld [vmem:[%s12 + $0x140] sm:$0xff]
        %v5263 = vld [vmem:[%s12 + $0x148] sm:$0xff]
        %v5264 = vld [vmem:[%s12 + $0x150] sm:$0xff]
        %v5265 = vld [vmem:[%s12 + $0x158] sm:$0xff]
        %v5266 = vld [vmem:[%s12 + $0x160] sm:$0xff]
        %v5267 = vld [vmem:[%s12 + $0x168] sm:$0xff]
        %v5268 = vld [vmem:[%s12 + $0x170] sm:$0xff]
        %v5269 = vld [vmem:[%s12 + $0x178] sm:$0xff]
        %v5270 = vld [vmem:[%s12 + $0x180] sm:$0xff]
        %v5271 = vld [vmem:[%s12 + $0x188] sm:$0xff]
        %v5272 = vld [vmem:[%s12 + $0x190] sm:$0xff]
        %v5273 = vld [vmem:[%s12 + $0x198] sm:$0xff]
        %v5274 = vld [vmem:[%s12 + $0x1a0] sm:$0xff]
        %v5275 = vld [vmem:[%s12 + $0x1a8] sm:$0xff]
        %v5276 = vld [vmem:[%s12 + $0x1b0] sm:$0xff]
        %v5277 = vld [vmem:[%s12 + $0x1b8] sm:$0xff]
        %v5278 = vld [vmem:[%s12 + $0x1c0] sm:$0xff]
        %v5279 = vld [vmem:[%s12 + $0x1c8] sm:$0xff]
        %v5280 = vld [vmem:[%s12 + $0x1d0] sm:$0xff]
        %v5281 = vld [vmem:[%s12 + $0x1d8] sm:$0xff]
        %v5282 = vld [vmem:[%s12 + $0x1e0] sm:$0xff]
        %v5283 = vld [vmem:[%s12 + $0x1e8] sm:$0xff]
        %v5284 = vld [vmem:[%s12 + $0x1f0] sm:$0xff]
        %v5285 = vld [vmem:[%s12 + $0x1f8] sm:$0xff]
        %v5286 = vld [vmem:[%s12 + $0x200] sm:$0xff]
        %v5287 = vld [vmem:[%s12 + $0x208] sm:$0xff]
        %v5288 = vld [vmem:[%s12 + $0x210] sm:$0xff]
        %v5289 = vld [vmem:[%s12 + $0x218] sm:$0xff]
        %v5290 = vld [vmem:[%s12 + $0x220] sm:$0xff]
        %v5291 = vld [vmem:[%s12 + $0x228] sm:$0xff]
        %v5292 = vld [vmem:[%s12 + $0x230] sm:$0xff]
        %v5293 = vld [vmem:[%s12 + $0x238] sm:$0xff]
        %v5294 = vld [vmem:[%s13] sm:$0x1]
        %v5296 = vlaneseq
        %v5297 = vshrl.u32 %v5296, 7
        %v5298 = vsub.s32 0, %v5297
        %v5299 = vrot.slane %v5294, %v5298
        %vm5301 = vcmask 523264
        %v5303 = vsel %vm5301, %v5221, 0
        %5305 = vmatprep.subr.mxu0 0.0
        %5306 = vmatpush1.msra.mxu0 %v5237
        %5307 = vmatprep.subr.mxu0 0.0
        %5308 = vmatpush1.msra.mxu0 %v5236
        %5309 = vmatprep.subr.mxu0 0.0
        %5310 = vmatpush1.msra.mxu0 %v5235
        %5311 = vmatprep.subr.mxu0 0.0
        %5312 = vmatpush1.msra.mxu0 %v5234
        %5313 = vmatprep.subr.mxu0 0.0
        %5314 = vmatpush1.msra.mxu0 %v5233
        %5315 = vmatprep.subr.mxu0 0.0
        %5316 = vmatpush1.msra.mxu0 %v5232
        %5317 = vmatprep.subr.mxu0 0.0
        %5318 = vmatpush1.msra.mxu0 %v5231
        %5319 = vmatprep.subr.mxu0 0.0
        %5320 = vmatpush1.msra.mxu0 %v5230
        %5321 = vmatprep.subr.mxu0 0.0
        %5322 = vmatpush1.msra.mxu0 %v5229
        %5323 = vmatprep.subr.mxu0 0.0
        %5324 = vmatpush1.msra.mxu0 %v5228
        %5325 = vmatprep.subr.mxu0 0.0
        %5326 = vmatpush1.msra.mxu0 %v5227
        %5327 = vmatprep.subr.mxu0 0.0
        %5328 = vmatpush1.msra.mxu0 %v5226
        %5329 = vmatprep.subr.mxu0 0.0
        %5330 = vmatpush1.msra.mxu0 %v5225
        %5331 = vmatprep.subr.mxu0 0.0
        %5332 = vmatpush1.msra.mxu0 %v5224
        %5333 = vmatprep.subr.mxu0 0.0
        %5334 = vmatpush1.msra.mxu0 %v5223
        %5335 = vmatprep.subr.mxu0 0.0
        %5336 = vmatpush1.msra.mxu0 %v5222
        %5337 = vmatprep.subr.mxu0 0.0
        %5338 = vmatpush2.msra.mxu0 %v5253
        %5339 = vmatprep.subr.mxu0 0.0
        %5340 = vmatpush2.msra.mxu0 %v5252
        %5341 = vmatprep.subr.mxu0 0.0
        %5342 = vmatpush2.msra.mxu0 %v5251
        %5343 = vmatprep.subr.mxu0 0.0
        %5344 = vmatpush2.msra.mxu0 %v5250
        %5345 = vmatprep.subr.mxu0 0.0
        %5346 = vmatpush2.msra.mxu0 %v5249
        %5347 = vmatprep.subr.mxu0 0.0
        %5348 = vmatpush2.msra.mxu0 %v5248
        %5349 = vmatprep.subr.mxu0 0.0
        %5350 = vmatpush2.msra.mxu0 %v5247
        %5351 = vmatprep.subr.mxu0 0.0
        %5352 = vmatpush2.msra.mxu0 %v5246
        %5353 = vmatprep.subr.mxu0 0.0
        %5354 = vmatpush2.msra.mxu0 %v5245
        %5355 = vmatprep.subr.mxu0 0.0
        %5356 = vmatpush2.msra.mxu0 %v5244
        %5357 = vmatprep.subr.mxu0 0.0
        %5358 = vmatpush2.msra.mxu0 %v5243
        %5359 = vmatprep.subr.mxu0 0.0
        %5360 = vmatpush2.msra.mxu0 %v5242
        %5361 = vmatprep.subr.mxu0 0.0
        %5362 = vmatpush2.msra.mxu0 %v5241
        %5363 = vmatprep.subr.mxu0 0.0
        %5364 = vmatpush2.msra.mxu0 %v5240
        %5365 = vmatprep.subr.mxu0 0.0
        %5366 = vmatpush2.msra.mxu0 %v5239
        %5367 = vmatprep.subr.mxu0 0.0
        %5368 = vmatpush2.msra.mxu0 %v5238
        %5369 = vmatprep.mubr.f32.mxu0 %v5218
        %5370 = vmatmul.mubr.f32.gmra.mxu0 %v5217
        %v5371 = vpop.f32.mrf.mxu0
        %v5372 = vadd.f32 %v5299, %v5371
        %v5373 = vpop.f32.mrf.mxu0
        %5374 = vdwg.mxu0
        %5375 = vmatprep.subr.mxu0 0.0
        %5376 = vmatpush1.msra.mxu0 %v5269
        %5377 = vmatprep.subr.mxu0 0.0
        %5378 = vmatpush1.msra.mxu0 %v5268
        %5379 = vmatprep.subr.mxu0 0.0
        %5380 = vmatpush1.msra.mxu0 %v5267
        %5381 = vmatprep.subr.mxu0 0.0
        %5382 = vmatpush1.msra.mxu0 %v5266
        %5383 = vmatprep.subr.mxu0 0.0
        %5384 = vmatpush1.msra.mxu0 %v5265
        %5385 = vmatprep.subr.mxu0 0.0
        %5386 = vmatpush1.msra.mxu0 %v5264
        %5387 = vmatprep.subr.mxu0 0.0
        %5388 = vmatpush1.msra.mxu0 %v5263
        %5389 = vmatprep.subr.mxu0 0.0
        %5390 = vmatpush1.msra.mxu0 %v5262
        %5391 = vmatprep.subr.mxu0 0.0
        %5392 = vmatpush1.msra.mxu0 %v5261
        %5393 = vmatprep.subr.mxu0 0.0
        %5394 = vmatpush1.msra.mxu0 %v5260
        %5395 = vmatprep.subr.mxu0 0.0
        %5396 = vmatpush1.msra.mxu0 %v5259
        %5397 = vmatprep.subr.mxu0 0.0
        %5398 = vmatpush1.msra.mxu0 %v5258
        %5399 = vmatprep.subr.mxu0 0.0
        %5400 = vmatpush1.msra.mxu0 %v5257
        %5401 = vmatprep.subr.mxu0 0.0
        %5402 = vmatpush1.msra.mxu0 %v5256
        %5403 = vmatprep.subr.mxu0 0.0
        %5404 = vmatpush1.msra.mxu0 %v5255
        %5405 = vmatprep.subr.mxu0 0.0
        %5406 = vmatpush1.msra.mxu0 %v5254
        %5407 = vmatprep.subr.mxu0 0.0
        %5408 = vmatpush2.msra.mxu0 %v5285
        %5409 = vmatprep.subr.mxu0 0.0
        %5410 = vmatpush2.msra.mxu0 %v5284
        %5411 = vmatprep.subr.mxu0 0.0
        %5412 = vmatpush2.msra.mxu0 %v5283
        %5413 = vmatprep.subr.mxu0 0.0
        %5414 = vmatpush2.msra.mxu0 %v5282
        %5415 = vmatprep.subr.mxu0 0.0
        %5416 = vmatpush2.msra.mxu0 %v5281
        %5417 = vmatprep.subr.mxu0 0.0
        %5418 = vmatpush2.msra.mxu0 %v5280
        %5419 = vmatprep.subr.mxu0 0.0
        %5420 = vmatpush2.msra.mxu0 %v5279
        %5421 = vmatprep.subr.mxu0 0.0
        %5422 = vmatpush2.msra.mxu0 %v5278
        %5423 = vmatprep.subr.mxu0 0.0
        %5424 = vmatpush2.msra.mxu0 %v5277
        %5425 = vmatprep.subr.mxu0 0.0
        %5426 = vmatpush2.msra.mxu0 %v5276
        %5427 = vmatprep.subr.mxu0 0.0
        %5428 = vmatpush2.msra.mxu0 %v5275
        %5429 = vmatprep.subr.mxu0 0.0
        %5430 = vmatpush2.msra.mxu0 %v5274
        %5431 = vmatprep.subr.mxu0 0.0
        %5432 = vmatpush2.msra.mxu0 %v5273
        %5433 = vmatprep.subr.mxu0 0.0
        %5434 = vmatpush2.msra.mxu0 %v5272
        %5435 = vmatprep.subr.mxu0 0.0
        %5436 = vmatpush2.msra.mxu0 %v5271
        %5437 = vmatprep.subr.mxu0 0.0
        %5438 = vmatpush2.msra.mxu0 %v5270
        %5439 = vmatprep.mubr.f32.mxu0 %v5220
        %5440 = vmatmul.mubr.f32.gmra.mxu0 %v5219
        %v5441 = vpop.f32.mrf.mxu0
        %v5442 = vadd.f32 %v5372, %v5441
        %v5443 = vpop.f32.mrf.mxu0
        %5444 = vdwg.mxu0
        %5445 = vmatprep.subr.mxu0 0.0
        %5446 = vmatpush1.msra.mxu0 0.0
        %5447 = vmatprep.subr.mxu0 0.0
        %5448 = vmatpush1.msra.mxu0 0.0
        %5449 = vmatprep.subr.mxu0 0.0
        %5450 = vmatpush1.msra.mxu0 0.0
        %5451 = vmatprep.subr.mxu0 0.0
        %5452 = vmatpush1.msra.mxu0 0.0
        %5453 = vmatprep.subr.mxu0 0.0
        %5454 = vmatpush1.msra.mxu0 0.0
        %5455 = vmatprep.subr.mxu0 0.0
        %5456 = vmatpush1.msra.mxu0 0.0
        %5457 = vmatprep.subr.mxu0 0.0
        %5458 = vmatpush1.msra.mxu0 0.0
        %5459 = vmatprep.subr.mxu0 0.0
        %5460 = vmatpush1.msra.mxu0 0.0
        %5461 = vmatprep.subr.mxu0 0.0
        %5462 = vmatpush1.msra.mxu0 %v5293
        %5463 = vmatprep.subr.mxu0 0.0
        %5464 = vmatpush1.msra.mxu0 %v5292
        %5465 = vmatprep.subr.mxu0 0.0
        %5466 = vmatpush1.msra.mxu0 %v5291
        %5467 = vmatprep.subr.mxu0 0.0
        %5468 = vmatpush1.msra.mxu0 %v5290
        %5469 = vmatprep.subr.mxu0 0.0
        %5470 = vmatpush1.msra.mxu0 %v5289
        %5471 = vmatprep.subr.mxu0 0.0
        %5472 = vmatpush1.msra.mxu0 %v5288
        %5473 = vmatprep.subr.mxu0 0.0
        %5474 = vmatpush1.msra.mxu0 %v5287
        %5475 = vmatprep.subr.mxu0 0.0
        %5476 = vmatpush1.msra.mxu0 %v5286
        %5477 = vmatprep.subr.mxu0 0.0
        %5478 = vmatpush2.msra.mxu0 0.0
        %5479 = vmatprep.subr.mxu0 0.0
        %5480 = vmatpush2.msra.mxu0 0.0
        %5481 = vmatprep.subr.mxu0 0.0
        %5482 = vmatpush2.msra.mxu0 0.0
        %5483 = vmatprep.subr.mxu0 0.0
        %5484 = vmatpush2.msra.mxu0 0.0
        %5485 = vmatprep.subr.mxu0 0.0
        %5486 = vmatpush2.msra.mxu0 0.0
        %5487 = vmatprep.subr.mxu0 0.0
        %5488 = vmatpush2.msra.mxu0 0.0
        %5489 = vmatprep.subr.mxu0 0.0
        %5490 = vmatpush2.msra.mxu0 0.0
        %5491 = vmatprep.subr.mxu0 0.0
        %5492 = vmatpush2.msra.mxu0 0.0
        %5493 = vmatprep.subr.mxu0 0.0
        %5494 = vmatpush2.msra.mxu0 0.0
        %5495 = vmatprep.subr.mxu0 0.0
        %5496 = vmatpush2.msra.mxu0 0.0
        %5497 = vmatprep.subr.mxu0 0.0
        %5498 = vmatpush2.msra.mxu0 0.0
        %5499 = vmatprep.subr.mxu0 0.0
        %5500 = vmatpush2.msra.mxu0 0.0
        %5501 = vmatprep.subr.mxu0 0.0
        %5502 = vmatpush2.msra.mxu0 0.0
        %5503 = vmatprep.subr.mxu0 0.0
        %5504 = vmatpush2.msra.mxu0 0.0
        %5505 = vmatprep.subr.mxu0 0.0
        %5506 = vmatpush2.msra.mxu0 0.0
        %5507 = vmatprep.subr.mxu0 0.0
        %5508 = vmatpush2.msra.mxu0 0.0
        %5509 = vmatprep.mubr.f32.mxu0 0.0
        %5510 = vmatmul.mubr.f32.gmra.mxu0 %v5303
        %v5511 = vpop.f32.mrf.mxu0
        %v5512 = vadd.f32 %v5442, %v5511
        %v5513 = vpop.f32.mrf.mxu0
        %5514 = vdwg.mxu0
        %5515 = vst.msk [vmem:[%s491] sm:$0xff] %vm602, %v5512
        %s5516 = sand.u32 %s337, 1
        %s5517 = scalar_lea.sflag [#allocation6], %s5516
        %s5518 = sand.u32 %s337, 1
        %s5519 = smul.addr %s5518, 8
        %s5520 = scalar_lea.vmem [#allocation9], %s5519
        // Predicated region
        $region85: #{tpu_custom_call.1} parent=75 // pred_check
          %p5521 = pneg %p347
        $region86: #{tpu_custom_call.1} parent=75 // pred_check_branch
          %5523 = sbr.rel (%p5521) target = $region88
        $region87: #{tpu_custom_call.1} parent=75 // pred_region
          %s5525 = ssub.s32 128, 128
          %5526 = vsyncadd %s5517, %s5525
          %s5527 = smul.addr %s30, 128
          %s5528 = scalar_lea.hbm %s14, %s5527
          %s5530 = sshll.u32 %s5520, 4
          %s5531 = int_to_ptr.vmem [resolvable:$true] %s5530
          %5533 = dma.vmem_to_hbm [thread:$0]  %s5531, 128, %s5528, %s5517
        $region88: #{tpu_custom_call.1} parent=75 // pred_fallthru
          _
      $region76: #{tpu_custom_call.1} parent=5 // pred_fallthru
        _
      %p5534 = scmp.le.s32.totalorder 2, %s25
      // Predicated region
      $region89: #{tpu_custom_call.1} parent=5 // pred_check
        %p5535 = pneg %p5534
      $region90: #{tpu_custom_call.1} parent=5 // pred_check_branch
        %5537 = sbr.rel (%p5535) target = $region92
      $region91: #{tpu_custom_call.1} parent=5 // pred_region
        %s5538 = ssub.s32 %s25, 2
        // Predicated region
        $region93: #{tpu_custom_call.1} parent=91 // pred_check
          %p5539 = pneg %p353
        $region94: #{tpu_custom_call.1} parent=91 // pred_check_branch
          %5541 = sbr.rel (%p5539) target = $region96
        $region95: #{tpu_custom_call.1} parent=91 // pred_region
          %s5542 = sand.u32 %s338, 1
          %s5543 = scalar_lea.sflag [#allocation6], %s5542
          %s5544 = sand.u32 %s338, 1
          %s5545 = smul.addr %s5544, 8
          %s5546 = scalar_lea.vmem [#allocation9], %s5545
          %5547 = dma.done %s5543, 128
        $region96: #{tpu_custom_call.1} parent=91 // pred_fallthru
          _
      $region92: #{tpu_custom_call.1} parent=5 // pred_fallthru
        _
    $region6: #{tpu_custom_call.1} parent=1 // loop_footer
      %s29 = sadd.s32 1, %s25
    $region7: #{tpu_custom_call.1} parent=1 // loop_footer_branch
      %24 = sbr.rel target = $region3
    $region8: #{tpu_custom_call.1} parent=1 // loop_exit
      _
    %5548 = vsyncpa [#allocation5], 1
    %s5549 = scalar_lea.sflag [#allocation5], 1
    %5550 = vsyncpa %s5549, 1
    %5551 = vsyncpa [#allocation8], 1
    %5552 = vsyncpa [#allocation6], 1
    %s5553 = scalar_lea.sflag [#allocation6], 1
    %5554 = vsyncpa %s5553, 1

</llo_original>
